<compile_context>
chip_gen: v7x
topology: tpu7x:2x2x1
jax: 0.10.0
libtpu: 0.0.40
codegen_flags: <defaults>
</compile_context>

<pallas_src>
import numpy as np

import jax
import jax.numpy as jnp
from jax.experimental import pallas as pl
from jax.experimental.pallas import tpu as pltpu

_INV_SQRT2 = 0.7071067811865476
_GELU_K = 0.7978845608028654          # sqrt(2/pi) for tanh-approximate GELU
_HALO = 3   # conv halo = max dilation (3x3 kernel, dilation d -> halo d, d <= 3)
_CPAD = 8   # column pad each side of the scratch (>= _HALO, multiple of 8 -> aligned)


def _ffn_kernel(x_ref,
                w_in_ref, b_in_ref,
                w_dw1_ref, b_dw1_ref, w_dw2_ref, b_dw2_ref, w_dw3_ref, b_dw3_ref,
                w_out_ref, b_out_ref,
                o_ref,
                pad1_ref, pad2_ref, pad3_ref):
    th = o_ref.shape[1]          # output rows per tile
    w_img = o_ref.shape[2]       # image width
    cp = o_ref.shape[3]          # padded output channels
    c_in = x_ref.shape[3]        # true input channels
    hidp = pad1_ref.shape[2]     # padded hidden channels
    rows = th + 2 * _HALO        # projected rows per tile (with recompute halo)

    h = pl.program_id(1)
    n_h = pl.num_programs(1)

    # ---- fused project_in: one (rows*W, C) x (C, 3*hidp) bf16 MXU matmul, f32 accum.
    #      x is H-padded by _HALO zero rows in the wrapper, so rows [h*th, h*th+rows)
    #      are always in range; halo rows are recomputed per tile.
    xm = x_ref[0, pl.ds(h * th, rows), :, :].reshape(rows * w_img, c_in)
    y = jnp.dot(xm.astype(jnp.bfloat16), w_in_ref[...],
                preferred_element_type=jnp.float32) + b_in_ref[...]
    y = y.reshape(rows, w_img, 3 * hidp)
    # lane slices at 128-multiples are free; interior column offset _CPAD is aligned.
    pad1_ref[:, pl.ds(_CPAD, w_img), :] = y[:, :, :hidp]
    pad2_ref[:, pl.ds(_CPAD, w_img), :] = y[:, :, hidp:2 * hidp]
    pad3_ref[:, pl.ds(_CPAD, w_img), :] = y[:, :, 2 * hidp:]

    # ---- halo maintenance.
    # Column halos are never touched by the projection store, so zero them only at
    # h == 0 (h is an 'arbitrary' grid axis -> every core visits h == 0 for each n).
    # Row halos hold the recomputed projection of the neighbouring tile's rows (the
    # correct halo values); only at the image boundary must they be zero.
    zr = jnp.zeros((_HALO, w_img + 2 * _CPAD, hidp), jnp.float32)

    @pl.when(h == 0)
    def _():
        zc = jnp.zeros((rows, _CPAD, hidp), jnp.float32)
        for pref in (pad1_ref, pad2_ref, pad3_ref):
            pref[:, pl.ds(0, _CPAD), :] = zc
            pref[:, pl.ds(_CPAD + w_img, _CPAD), :] = zc
            pref[pl.ds(0, _HALO), :, :] = zr

    @pl.when(h == n_h - 1)
    def _():
        for pref in (pad1_ref, pad2_ref, pad3_ref):
            pref[pl.ds(_HALO + th, _HALO), :, :] = zr

    # ---- depthwise 3x3 conv, dilation d: ONE aligned full-width window read per
    #      branch; the 3 column shifts and 9 row taps are cheap value slices.
    def dwconv(pad_ref, w_ref, b_ref, d):
        w = w_ref[...]                                              # (9, hidp)
        acc = jnp.broadcast_to(b_ref[...].reshape(1, 1, hidp), (th, w_img, hidp))
        full = pad_ref[pl.ds(_HALO - d, th + 2 * d), :, :]          # (th+2d, wp, hidp)
        for kw in range(3):
            c0 = _CPAD + (kw - 1) * d
            colwin = full[:, c0:c0 + w_img, :]                      # (th+2d, W, hidp)
            for kh in range(3):
                acc = acc + colwin[kh * d:kh * d + th] * w[kh * 3 + kw]
        return acc

    c1 = dwconv(pad1_ref, w_dw1_ref, b_dw1_ref, 1)
    # tanh-approximate GELU: tanh goes to the otherwise-idle EUP slot instead of an
    # erf polynomial on the saturated VALU.  Tiny numeric delta vs torch's exact GELU.
    g = 0.5 * c1 * (1.0 + jnp.tanh(_GELU_K * (c1 + 0.044715 * c1 * c1 * c1)))
    g = g * dwconv(pad2_ref, w_dw2_ref, b_dw2_ref, 2)
    g = g * dwconv(pad3_ref, w_dw3_ref, b_dw3_ref, 3)

    # ---- project_out (hidp -> Cp): bf16 MXU matmul, f32 accum, lane-dense store ----
    out = jnp.dot(g.reshape(th * w_img, hidp).astype(jnp.bfloat16), w_out_ref[...],
                  preferred_element_type=jnp.float32) + b_out_ref[...]
    o_ref[0] = out.reshape(th, w_img, cp).astype(o_ref.dtype)


def _round_up(x, m):
    return ((x + m - 1) // m) * m


def _vmem_capacity_bytes():
    """Per-core VMEM capacity; conservative 64 MiB (v7x) fallback if the query fails."""
    try:
        return int(pltpu.get_tpu_info().vmem_capacity_bytes)
    except Exception:
        return 64 << 20


def feedforward_pallas(x_nchw, tp, *, th=None):
    """FeedForward forward pass. x_nchw: (N, C, H, W); tp: torch-shaped weights."""
    x_nchw = jnp.asarray(x_nchw, jnp.float32)
    N, C, H, W = x_nchw.shape
    hid = tp["dw1_w"].shape[0]
    hidp = _round_up(hid, 128)
    cp = _round_up(C, 128)
    hp = H + 2 * _HALO
    wp = W + 2 * _CPAD

    # channel-last input, zero-padded along H by the conv halo (fused pass in XLA)
    x_pad = jnp.pad(jnp.transpose(x_nchw, (0, 2, 3, 1)),
                    ((0, 0), (_HALO, _HALO), (0, 0), (0, 0)))

    # ---- parameters in kernel layout (hidden / output channels padded to 128) ----
    w_in_full = tp["in_w"][:, :, 0, 0, 0]                                 # (3*hid, C)
    b_in_full = tp["in_b"]
    w_in_parts, b_in_parts = [], []
    for k in range(3):
        wk = w_in_full[k * hid:(k + 1) * hid, :].T                        # (C, hid)
        w_in_parts.append(jnp.pad(wk, ((0, 0), (0, hidp - hid))))
        b_in_parts.append(jnp.pad(b_in_full[k * hid:(k + 1) * hid], (0, hidp - hid)))
    # fused projection weight: (C, 3*hidp), bf16 MXU operand
    w_in_cat = jnp.concatenate(w_in_parts, axis=1).astype(jnp.bfloat16)
    b_in_cat = jnp.concatenate(b_in_parts)[None, :]                       # f32 (1, 3*hidp)

    def dw_taps(w3):                                                      # (hid,3,3)->(9,hidp)
        t = jnp.transpose(w3, (1, 2, 0)).reshape(9, hid)
        return jnp.pad(t, ((0, 0), (0, hidp - hid)))

    # Conv3d(3,3,3) on a depth-1 input with depth padding 1 only sees the middle depth
    # slice of its kernel -> collapse to a 2D 3x3 depthwise conv.
    w_dw1 = dw_taps(tp["dw1_w"][:, 0, 1])
    w_dw2 = dw_taps(tp["dw2_w"][:, 0])
    w_dw3 = dw_taps(tp["dw3_w"][:, 0])
    b_dw1 = jnp.pad(tp["dw1_b"], (0, hidp - hid))[None, :]
    b_dw2 = jnp.pad(tp["dw2_b"], (0, hidp - hid))[None, :]
    b_dw3 = jnp.pad(tp["dw3_b"], (0, hidp - hid))[None, :]

    w_out = jnp.pad(tp["out_w"][:, :, 0, 0, 0].T,
                    ((0, hidp - hid), (0, cp - C))).astype(jnp.bfloat16)
    b_out = jnp.pad(tp["out_b"], (0, cp - C))[None, :]

    params = (w_in_cat, b_in_cat,
              w_dw1, b_dw1, w_dw2, b_dw2, w_dw3, b_dw3, w_out, b_out)
    param_bytes = sum(int(p.size) * p.dtype.itemsize for p in params)

    # ---- generation-aware tile selection and VMEM budget ----
    vmem_cap = _vmem_capacity_bytes()
    budget = min(int(0.80 * vmem_cap), vmem_cap - (8 << 20))      # ~51 MiB v7x, ~102 MiB v5e/v6e

    def footprint(th_):
        rows_ = th_ + 2 * _HALO
        pads = 3 * rows_ * wp * hidp * 4                          # f32 scratch pads
        x_blk = 2 * hp * W * C * 4                                # double-buffered x block
        o_blk = 2 * th_ * W * cp * 4                              # double-buffered out block
        temps = (rows_ * W * 3 * hidp * 4                         # fused project_in result
                 + rows_ * wp * hidp * 4                          # per-branch window read
                 + 2 * th_ * W * hidp * 4)                        # acc / g temporaries
        return pads + x_blk + o_blk + temps + 2 * param_bytes

    if th is None:
        # TODO(synk): add remainder-tile handling (cdiv grid + masked boundary tile)
        # instead of requiring a divisor of H.
        th = 1
        for cand in sorted({d for d in range(1, min(H, 128) + 1) if H % d == 0},
                           reverse=True):
            if footprint(cand) <= budget:
                th = cand
                break
    assert H % th == 0, "H tile size must divide H"
    n_h = H // th
    rows = th + 2 * _HALO

    hard_cap = max(vmem_cap - (4 << 20), 32 << 20)
    vmem_limit = int(min(hard_cap, max(32 << 20, int(1.5 * footprint(th)))))

    _c2 = lambda n, h: (0, 0)
    in_specs = [pl.BlockSpec((1, hp, W, C), lambda n, h: (n, 0, 0, 0))]
    in_specs += [pl.BlockSpec(p.shape, _c2) for p in params]

    flops = N * n_h * (2 * rows * W * C * 3 * hidp        # fused project_in (halo recompute)
                       + 3 * 9 * 2 * th * W * hidp        # depthwise taps
                       + 12 * th * W * hidp               # gelu + gating (approx)
                       + 2 * th * W * hidp * cp)          # project_out
    cost = pl.CostEstimate(
        flops=int(flops),
        transcendentals=int(N * H * W * hidp),
        bytes_accessed=int(4 * (int(x_pad.size) + N * H * W * cp) + param_bytes))

    out_padded = pl.pallas_call(
        _ffn_kernel,
        out_shape=jax.ShapeDtypeStruct((N, H, W, cp), x_nchw.dtype),
        grid_spec=pltpu.PrefetchScalarGridSpec(
            num_scalar_prefetch=0,
            grid=(N, n_h),
            in_specs=in_specs,
            out_specs=pl.BlockSpec((1, th, W, cp), lambda n, h: (n, h, 0, 0)),
            scratch_shapes=[
                pltpu.VMEM((rows, wp, hidp), jnp.float32),
                pltpu.VMEM((rows, wp, hidp), jnp.float32),
                pltpu.VMEM((rows, wp, hidp), jnp.float32),
            ]),
        compiler_params=pltpu.CompilerParams(
            # h must be 'arbitrary' (sequential per core) so the column halos zeroed at
            # h == 0 are valid for every later h step; N stays 'parallel' for megacore.
            dimension_semantics=("parallel", "arbitrary"),
            vmem_limit_bytes=vmem_limit),
        cost_estimate=cost,
    )(x_pad, *params)

    # drop the output channel padding, back to NCHW
    return jnp.transpose(out_padded[..., :C], (0, 3, 1, 2))


# ---------------------------------------------------------------------------
# Plain-JAX reference (NCHW, torch-shaped weights, exact GELU) for validation.
# ---------------------------------------------------------------------------
def torch_ref(x_nchw, tp):
    hid = tp["dw1_w"].shape[0]
    w_in = tp["in_w"][:, :, 0, 0, 0]                       # (3*hid, dim)
    y = jnp.einsum("oc,nchw->nohw", w_in, x_nchw) + tp["in_b"][None, :, None, None]
    x1, x2, x3 = jnp.split(y, 3, axis=1)

    # dwconv1 as a true 3D depthwise conv on D=1 (validates the depth-collapse).
    x1_5d = x1[:, :, None, :, :]
    k1 = jnp.transpose(tp["dw1_w"][:, 0], (1, 2, 3, 0))[:, :, :, None, :]  # (3,3,3,1,hid)
    y1 = jax.lax.conv_general_dilated(
        x1_5d, k1, window_strides=(1, 1, 1), padding=[(1, 1)] * 3,
        dimension_numbers=("NCDHW", "DHWIO", "NCDHW"), feature_group_count=hid)
    x1 = y1[:, :, 0] + tp["dw1_b"][None, :, None, None]

    def dw2d(xx, w4, b, d):
        k = jnp.transpose(w4[:, 0], (1, 2, 0))[:, :, None, :]              # (3,3,1,hid)
        out = jax.lax.conv_general_dilated(
            xx, k, window_strides=(1, 1), padding=[(d, d), (d, d)],
            rhs_dilation=(d, d), dimension_numbers=("NCHW", "HWIO", "NCHW"),
            feature_group_count=hid)
        return out + b[None, :, None, None]

    x2 = dw2d(x2, tp["dw2_w"], tp["dw2_b"], 2)
    x3 = dw2d(x3, tp["dw3_w"], tp["dw3_b"], 3)

    g = 0.5 * x1 * (1.0 + jax.lax.erf(x1 * _INV_SQRT2))    # exact GELU (torch default)
    z = g * x2 * x3
    w_out = tp["out_w"][:, :, 0, 0, 0]                     # (dim, hid)
    return jnp.einsum("oc,nchw->nohw", w_out, z) + tp["out_b"][None, :, None, None]


if __name__ == "__main__":
    key = jax.random.PRNGKey(0)
    dim, ffn_expansion_factor = 4, 2.0
    hid = int(dim * ffn_expansion_factor)
    N, H, W = 2, 16, 16

    ks = jax.random.split(key, 11)

    def init(k, shape, scale=0.3):
        return (scale * jax.random.normal(k, shape)).astype(jnp.float32)

    # Deterministic synthetic parameters in torch layout (Conv weight shapes from __init__).
    tp = {
        "in_w":  init(ks[0], (3 * hid, dim, 1, 1, 1)),
        "in_b":  init(ks[1], (3 * hid,), 0.1),
        "dw1_w": init(ks[2], (hid, 1, 3, 3, 3)),
        "dw1_b": init(ks[3], (hid,), 0.1),
        "dw2_w": init(ks[4], (hid, 1, 3, 3)),
        "dw2_b": init(ks[5], (hid,), 0.1),
        "dw3_w": init(ks[6], (hid, 1, 3, 3)),
        "dw3_b": init(ks[7], (hid,), 0.1),
        "out_w": init(ks[8], (dim, hid, 1, 1, 1)),
        "out_b": init(ks[9], (dim,), 0.1),
    }
    x_nchw = jax.random.normal(ks[10], (N, dim, H, W), jnp.float32)

    # auto tile-H (VMEM-aware, single tile here) and an explicit th=8 run that
    # exercises the halo-recompute + boundary-zero + h==0-only halo-zeroing path.
    out_auto = feedforward_pallas(x_nchw, tp)
    out_tiled = feedforward_pallas(x_nchw, tp, th=8)
    jax.block_until_ready((out_auto, out_tiled))

    ref = torch_ref(x_nchw, tp)
    # tolerance accounts for bf16 MXU operands and the tanh-approximate GELU.
    np.testing.assert_allclose(np.asarray(out_auto), np.asarray(ref), rtol=5e-2, atol=2e-2)
    np.testing.assert_allclose(np.asarray(out_tiled), np.asarray(ref), rtol=5e-2, atol=2e-2)
    print("KERNEL_OK")
</pallas_src>

<mosaic_0001>
module attributes {stable_mosaic.version = 11 : i64} {
  func.func @_ffn_kernel(%arg0: i32, %arg1: i32, %arg2: memref<1x22x16x4xf32, #tpu.memory_space<vmem>>, %arg3: memref<4x384xbf16, #tpu.memory_space<vmem>>, %arg4: memref<1x384xf32, #tpu.memory_space<vmem>>, %arg5: memref<9x128xf32, #tpu.memory_space<vmem>>, %arg6: memref<1x128xf32, #tpu.memory_space<vmem>>, %arg7: memref<9x128xf32, #tpu.memory_space<vmem>>, %arg8: memref<1x128xf32, #tpu.memory_space<vmem>>, %arg9: memref<9x128xf32, #tpu.memory_space<vmem>>, %arg10: memref<1x128xf32, #tpu.memory_space<vmem>>, %arg11: memref<128x128xbf16, #tpu.memory_space<vmem>>, %arg12: memref<1x128xf32, #tpu.memory_space<vmem>>, %arg13: memref<1x16x16x128xf32, #tpu.memory_space<vmem>>, %arg14: memref<22x32x128xf32, #tpu.memory_space<vmem>>, %arg15: memref<22x32x128xf32, #tpu.memory_space<vmem>>, %arg16: memref<22x32x128xf32, #tpu.memory_space<vmem>>) attributes {dimension_semantics = [#tpu.dimension_semantics<parallel>, #tpu.dimension_semantics<arbitrary>], iteration_bounds = array<i64: 2, 1>, scalar_prefetch = 0 : i64, scratch_operands = 3 : i64, tpu.core_type = #tpu.core_type<tc>, window_params = [{transform_indices = @transform_0, window_bounds = array<i64: 1, 22, 16, 4>}, {pipeline_mode = #tpu.pipeline_mode<synchronous>, transform_indices = @transform_1, window_bounds = array<i64: 4, 384>}, {pipeline_mode = #tpu.pipeline_mode<synchronous>, transform_indices = @transform_2, window_bounds = array<i64: 1, 384>}, {pipeline_mode = #tpu.pipeline_mode<synchronous>, transform_indices = @transform_3, window_bounds = array<i64: 9, 128>}, {pipeline_mode = #tpu.pipeline_mode<synchronous>, transform_indices = @transform_4, window_bounds = array<i64: 1, 128>}, {pipeline_mode = #tpu.pipeline_mode<synchronous>, transform_indices = @transform_5, window_bounds = array<i64: 9, 128>}, {pipeline_mode = #tpu.pipeline_mode<synchronous>, transform_indices = @transform_6, window_bounds = array<i64: 1, 128>}, {pipeline_mode = #tpu.pipeline_mode<synchronous>, transform_indices = @transform_7, window_bounds = array<i64: 9, 128>}, {pipeline_mode = #tpu.pipeline_mode<synchronous>, transform_indices = @transform_8, window_bounds = array<i64: 1, 128>}, {pipeline_mode = #tpu.pipeline_mode<synchronous>, transform_indices = @transform_9, window_bounds = array<i64: 128, 128>}, {pipeline_mode = #tpu.pipeline_mode<synchronous>, transform_indices = @transform_10, window_bounds = array<i64: 1, 128>}, {transform_indices = @transform_11, window_bounds = array<i64: 1, 16, 16, 128>}]} {
    %c16_i32 = arith.constant 16 : i32
    %0 = arith.muli %arg1, %c16_i32 : i32
    %c0 = arith.constant 0 : index
    %1 = arith.index_cast %0 : i32 to index
    %c0_0 = arith.constant 0 : index
    %c0_1 = arith.constant 0 : index
    %2 = vector.load %arg2[%c0, %1, %c0_0, %c0_1] : memref<1x22x16x4xf32, #tpu.memory_space<vmem>>, vector<1x22x16x4xf32>
    %3 = vector.shape_cast %2 : vector<1x22x16x4xf32> to vector<22x16x4xf32>
    %4 = vector.shape_cast %3 : vector<22x16x4xf32> to vector<352x4xf32>
    %5 = arith.truncf %4 : vector<352x4xf32> to vector<352x4xbf16>
    %c0_2 = arith.constant 0 : index
    %c0_3 = arith.constant 0 : index
    %6 = vector.load %arg3[%c0_2, %c0_3] : memref<4x384xbf16, #tpu.memory_space<vmem>>, vector<4x384xbf16>
    %cst = arith.constant dense<0.000000e+00> : vector<352x384xf32>
    %7 = tpu.matmul %5, %6, %cst {dimension_numbers = #tpu.dot_dimension_numbers<[1], [0], [0], [1], [0, 0, 1, 1], [], []>} : vector<352x4xbf16>, vector<4x384xbf16>, vector<352x384xf32> -> vector<352x384xf32>
    %c0_4 = arith.constant 0 : index
    %c0_5 = arith.constant 0 : index
    %8 = vector.load %arg4[%c0_4, %c0_5] : memref<1x384xf32, #tpu.memory_space<vmem>>, vector<1x384xf32>
    %9 = vector.broadcast %8 : vector<1x384xf32> to vector<352x384xf32>
    %10 = arith.addf %7, %9 : vector<352x384xf32>
    %11 = vector.shape_cast %10 : vector<352x384xf32> to vector<22x16x384xf32>
    %12 = vector.extract_strided_slice %11 {offsets = [0, 0, 0], sizes = [22, 16, 128], strides = [1, 1, 1]} : vector<22x16x384xf32> to vector<22x16x128xf32>
    %c0_6 = arith.constant 0 : index
    %c8 = arith.constant 8 : index
    %c0_7 = arith.constant 0 : index
    %13 = vector.load %arg14[%c0_6, %c8, %c0_7] : memref<22x32x128xf32, #tpu.memory_space<vmem>>, vector<22x16x128xf32>
    tpu.vector_store %arg14[%c0_6, %c8, %c0_7], %12 {strides = array<i32>} : memref<22x32x128xf32, #tpu.memory_space<vmem>>, vector<22x16x128xf32>,
    %14 = vector.extract_strided_slice %11 {offsets = [0, 0, 128], sizes = [22, 16, 128], strides = [1, 1, 1]} : vector<22x16x384xf32> to vector<22x16x128xf32>
    %c0_8 = arith.constant 0 : index
    %c8_9 = arith.constant 8 : index
    %c0_10 = arith.constant 0 : index
    %15 = vector.load %arg15[%c0_8, %c8_9, %c0_10] : memref<22x32x128xf32, #tpu.memory_space<vmem>>, vector<22x16x128xf32>
    tpu.vector_store %arg15[%c0_8, %c8_9, %c0_10], %14 {strides = array<i32>} : memref<22x32x128xf32, #tpu.memory_space<vmem>>, vector<22x16x128xf32>,
    %16 = vector.extract_strided_slice %11 {offsets = [0, 0, 256], sizes = [22, 16, 128], strides = [1, 1, 1]} : vector<22x16x384xf32> to vector<22x16x128xf32>
    %c0_11 = arith.constant 0 : index
    %c8_12 = arith.constant 8 : index
    %c0_13 = arith.constant 0 : index
    %17 = vector.load %arg16[%c0_11, %c8_12, %c0_13] : memref<22x32x128xf32, #tpu.memory_space<vmem>>, vector<22x16x128xf32>
    tpu.vector_store %arg16[%c0_11, %c8_12, %c0_13], %16 {strides = array<i32>} : memref<22x32x128xf32, #tpu.memory_space<vmem>>, vector<22x16x128xf32>,
    %cst_14 = arith.constant 0.000000e+00 : f32
    %18 = vector.broadcast %cst_14 : f32 to vector<3x32x128xf32>
    %c0_i32 = arith.constant 0 : i32
    %19 = arith.cmpi eq, %arg1, %c0_i32 : i32
    %20 = arith.extui %19 : i1 to i32
    %c0_i32_15 = arith.constant 0 : i32
    %21 = arith.cmpi ne, %20, %c0_i32_15 : i32
    scf.if %21 {
      %cst_50 = arith.constant 0.000000e+00 : f32
      %267 = vector.broadcast %cst_50 : f32 to vector<22x8x128xf32>
      %c0_51 = arith.constant 0 : index
      %c0_52 = arith.constant 0 : index
      %c0_53 = arith.constant 0 : index
      %268 = vector.load %arg14[%c0_51, %c0_52, %c0_53] : memref<22x32x128xf32, #tpu.memory_space<vmem>>, vector<22x8x128xf32>
      tpu.vector_store %arg14[%c0_51, %c0_52, %c0_53], %267 {strides = array<i32>} : memref<22x32x128xf32, #tpu.memory_space<vmem>>, vector<22x8x128xf32>,
      %c0_54 = arith.constant 0 : index
      %c24 = arith.constant 24 : index
      %c0_55 = arith.constant 0 : index
      %269 = vector.load %arg14[%c0_54, %c24, %c0_55] : memref<22x32x128xf32, #tpu.memory_space<vmem>>, vector<22x8x128xf32>
      tpu.vector_store %arg14[%c0_54, %c24, %c0_55], %267 {strides = array<i32>} : memref<22x32x128xf32, #tpu.memory_space<vmem>>, vector<22x8x128xf32>,
      %c0_56 = arith.constant 0 : index
      %c0_57 = arith.constant 0 : index
      %c0_58 = arith.constant 0 : index
      %270 = vector.load %arg14[%c0_56, %c0_57, %c0_58] : memref<22x32x128xf32, #tpu.memory_space<vmem>>, vector<3x32x128xf32>
      tpu.vector_store %arg14[%c0_56, %c0_57, %c0_58], %18 {strides = array<i32>} : memref<22x32x128xf32, #tpu.memory_space<vmem>>, vector<3x32x128xf32>,
      %c0_59 = arith.constant 0 : index
      %c0_60 = arith.constant 0 : index
      %c0_61 = arith.constant 0 : index
      %271 = vector.load %arg15[%c0_59, %c0_60, %c0_61] : memref<22x32x128xf32, #tpu.memory_space<vmem>>, vector<22x8x128xf32>
      tpu.vector_store %arg15[%c0_59, %c0_60, %c0_61], %267 {strides = array<i32>} : memref<22x32x128xf32, #tpu.memory_space<vmem>>, vector<22x8x128xf32>,
      %c0_62 = arith.constant 0 : index
      %c24_63 = arith.constant 24 : index
      %c0_64 = arith.constant 0 : index
      %272 = vector.load %arg15[%c0_62, %c24_63, %c0_64] : memref<22x32x128xf32, #tpu.memory_space<vmem>>, vector<22x8x128xf32>
      tpu.vector_store %arg15[%c0_62, %c24_63, %c0_64], %267 {strides = array<i32>} : memref<22x32x128xf32, #tpu.memory_space<vmem>>, vector<22x8x128xf32>,
      %c0_65 = arith.constant 0 : index
      %c0_66 = arith.constant 0 : index
      %c0_67 = arith.constant 0 : index
      %273 = vector.load %arg15[%c0_65, %c0_66, %c0_67] : memref<22x32x128xf32, #tpu.memory_space<vmem>>, vector<3x32x128xf32>
      tpu.vector_store %arg15[%c0_65, %c0_66, %c0_67], %18 {strides = array<i32>} : memref<22x32x128xf32, #tpu.memory_space<vmem>>, vector<3x32x128xf32>,
      %c0_68 = arith.constant 0 : index
      %c0_69 = arith.constant 0 : index
      %c0_70 = arith.constant 0 : index
      %274 = vector.load %arg16[%c0_68, %c0_69, %c0_70] : memref<22x32x128xf32, #tpu.memory_space<vmem>>, vector<22x8x128xf32>
      tpu.vector_store %arg16[%c0_68, %c0_69, %c0_70], %267 {strides = array<i32>} : memref<22x32x128xf32, #tpu.memory_space<vmem>>, vector<22x8x128xf32>,
      %c0_71 = arith.constant 0 : index
      %c24_72 = arith.constant 24 : index
      %c0_73 = arith.constant 0 : index
      %275 = vector.load %arg16[%c0_71, %c24_72, %c0_73] : memref<22x32x128xf32, #tpu.memory_space<vmem>>, vector<22x8x128xf32>
      tpu.vector_store %arg16[%c0_71, %c24_72, %c0_73], %267 {strides = array<i32>} : memref<22x32x128xf32, #tpu.memory_space<vmem>>, vector<22x8x128xf32>,
      %c0_74 = arith.constant 0 : index
      %c0_75 = arith.constant 0 : index
      %c0_76 = arith.constant 0 : index
      %276 = vector.load %arg16[%c0_74, %c0_75, %c0_76] : memref<22x32x128xf32, #tpu.memory_space<vmem>>, vector<3x32x128xf32>
      tpu.vector_store %arg16[%c0_74, %c0_75, %c0_76], %18 {strides = array<i32>} : memref<22x32x128xf32, #tpu.memory_space<vmem>>, vector<3x32x128xf32>,
    } else {
    }
    %c0_i32_16 = arith.constant 0 : i32
    %22 = arith.cmpi eq, %arg1, %c0_i32_16 : i32
    %23 = arith.extui %22 : i1 to i32
    %c0_i32_17 = arith.constant 0 : i32
    %24 = arith.cmpi ne, %23, %c0_i32_17 : i32
    scf.if %24 {
      %c19 = arith.constant 19 : index
      %c0_50 = arith.constant 0 : index
      %c0_51 = arith.constant 0 : index
      %267 = vector.load %arg14[%c19, %c0_50, %c0_51] : memref<22x32x128xf32, #tpu.memory_space<vmem>>, vector<3x32x128xf32>
      tpu.vector_store %arg14[%c19, %c0_50, %c0_51], %18 {strides = array<i32>} : memref<22x32x128xf32, #tpu.memory_space<vmem>>, vector<3x32x128xf32>,
      %c19_52 = arith.constant 19 : index
      %c0_53 = arith.constant 0 : index
      %c0_54 = arith.constant 0 : index
      %268 = vector.load %arg15[%c19_52, %c0_53, %c0_54] : memref<22x32x128xf32, #tpu.memory_space<vmem>>, vector<3x32x128xf32>
      tpu.vector_store %arg15[%c19_52, %c0_53, %c0_54], %18 {strides = array<i32>} : memref<22x32x128xf32, #tpu.memory_space<vmem>>, vector<3x32x128xf32>,
      %c19_55 = arith.constant 19 : index
      %c0_56 = arith.constant 0 : index
      %c0_57 = arith.constant 0 : index
      %269 = vector.load %arg16[%c19_55, %c0_56, %c0_57] : memref<22x32x128xf32, #tpu.memory_space<vmem>>, vector<3x32x128xf32>
      tpu.vector_store %arg16[%c19_55, %c0_56, %c0_57], %18 {strides = array<i32>} : memref<22x32x128xf32, #tpu.memory_space<vmem>>, vector<3x32x128xf32>,
    } else {
    }
    %c0_18 = arith.constant 0 : index
    %c0_19 = arith.constant 0 : index
    %25 = vector.load %arg5[%c0_18, %c0_19] : memref<9x128xf32, #tpu.memory_space<vmem>>, vector<9x128xf32>
    %c0_20 = arith.constant 0 : index
    %c0_21 = arith.constant 0 : index
    %26 = vector.load %arg6[%c0_20, %c0_21] : memref<1x128xf32, #tpu.memory_space<vmem>>, vector<1x128xf32>
    %27 = vector.shape_cast %26 : vector<1x128xf32> to vector<1x1x128xf32>
    %28 = vector.shape_cast %27 : vector<1x1x128xf32> to vector<1x1x128xf32>
    %29 = vector.broadcast %28 : vector<1x1x128xf32> to vector<16x16x128xf32>
    %c2 = arith.constant 2 : index
    %c0_22 = arith.constant 0 : index
    %c0_23 = arith.constant 0 : index
    %30 = vector.load %arg14[%c2, %c0_22, %c0_23] : memref<22x32x128xf32, #tpu.memory_space<vmem>>, vector<18x32x128xf32>
    %31 = vector.extract_strided_slice %30 {offsets = [0, 7, 0], sizes = [18, 16, 128], strides = [1, 1, 1]} : vector<18x32x128xf32> to vector<18x16x128xf32>
    %32 = vector.extract_strided_slice %31 {offsets = [0, 0, 0], sizes = [16, 16, 128], strides = [1, 1, 1]} : vector<18x16x128xf32> to vector<16x16x128xf32>
    %33 = vector.extract_strided_slice %25 {offsets = [0, 0], sizes = [1, 128], strides = [1, 1]} : vector<9x128xf32> to vector<1x128xf32>
    %34 = vector.shape_cast %33 : vector<1x128xf32> to vector<128xf32>
    %35 = vector.shape_cast %34 : vector<128xf32> to vector<1x1x128xf32>
    %36 = vector.broadcast %35 : vector<1x1x128xf32> to vector<16x16x128xf32>
    %37 = arith.mulf %32, %36 : vector<16x16x128xf32>
    %38 = arith.addf %29, %37 : vector<16x16x128xf32>
    %39 = vector.extract_strided_slice %31 {offsets = [1, 0, 0], sizes = [16, 16, 128], strides = [1, 1, 1]} : vector<18x16x128xf32> to vector<16x16x128xf32>
    %40 = vector.extract_strided_slice %25 {offsets = [3, 0], sizes = [1, 128], strides = [1, 1]} : vector<9x128xf32> to vector<1x128xf32>
    %41 = vector.shape_cast %40 : vector<1x128xf32> to vector<128xf32>
    %42 = vector.shape_cast %41 : vector<128xf32> to vector<1x1x128xf32>
    %43 = vector.broadcast %42 : vector<1x1x128xf32> to vector<16x16x128xf32>
    %44 = arith.mulf %39, %43 : vector<16x16x128xf32>
    %45 = arith.addf %38, %44 : vector<16x16x128xf32>
    %46 = vector.extract_strided_slice %31 {offsets = [2, 0, 0], sizes = [16, 16, 128], strides = [1, 1, 1]} : vector<18x16x128xf32> to vector<16x16x128xf32>
    %47 = vector.extract_strided_slice %25 {offsets = [6, 0], sizes = [1, 128], strides = [1, 1]} : vector<9x128xf32> to vector<1x128xf32>
    %48 = vector.shape_cast %47 : vector<1x128xf32> to vector<128xf32>
    %49 = vector.shape_cast %48 : vector<128xf32> to vector<1x1x128xf32>
    %50 = vector.broadcast %49 : vector<1x1x128xf32> to vector<16x16x128xf32>
    %51 = arith.mulf %46, %50 : vector<16x16x128xf32>
    %52 = arith.addf %45, %51 : vector<16x16x128xf32>
    %53 = vector.extract_strided_slice %30 {offsets = [0, 8, 0], sizes = [18, 16, 128], strides = [1, 1, 1]} : vector<18x32x128xf32> to vector<18x16x128xf32>
    %54 = vector.extract_strided_slice %53 {offsets = [0, 0, 0], sizes = [16, 16, 128], strides = [1, 1, 1]} : vector<18x16x128xf32> to vector<16x16x128xf32>
    %55 = vector.extract_strided_slice %25 {offsets = [1, 0], sizes = [1, 128], strides = [1, 1]} : vector<9x128xf32> to vector<1x128xf32>
    %56 = vector.shape_cast %55 : vector<1x128xf32> to vector<128xf32>
    %57 = vector.shape_cast %56 : vector<128xf32> to vector<1x1x128xf32>
    %58 = vector.broadcast %57 : vector<1x1x128xf32> to vector<16x16x128xf32>
    %59 = arith.mulf %54, %58 : vector<16x16x128xf32>
    %60 = arith.addf %52, %59 : vector<16x16x128xf32>
    %61 = vector.extract_strided_slice %53 {offsets = [1, 0, 0], sizes = [16, 16, 128], strides = [1, 1, 1]} : vector<18x16x128xf32> to vector<16x16x128xf32>
    %62 = vector.extract_strided_slice %25 {offsets = [4, 0], sizes = [1, 128], strides = [1, 1]} : vector<9x128xf32> to vector<1x128xf32>
    %63 = vector.shape_cast %62 : vector<1x128xf32> to vector<128xf32>
    %64 = vector.shape_cast %63 : vector<128xf32> to vector<1x1x128xf32>
    %65 = vector.broadcast %64 : vector<1x1x128xf32> to vector<16x16x128xf32>
    %66 = arith.mulf %61, %65 : vector<16x16x128xf32>
    %67 = arith.addf %60, %66 : vector<16x16x128xf32>
    %68 = vector.extract_strided_slice %53 {offsets = [2, 0, 0], sizes = [16, 16, 128], strides = [1, 1, 1]} : vector<18x16x128xf32> to vector<16x16x128xf32>
    %69 = vector.extract_strided_slice %25 {offsets = [7, 0], sizes = [1, 128], strides = [1, 1]} : vector<9x128xf32> to vector<1x128xf32>
    %70 = vector.shape_cast %69 : vector<1x128xf32> to vector<128xf32>
    %71 = vector.shape_cast %70 : vector<128xf32> to vector<1x1x128xf32>
    %72 = vector.broadcast %71 : vector<1x1x128xf32> to vector<16x16x128xf32>
    %73 = arith.mulf %68, %72 : vector<16x16x128xf32>
    %74 = arith.addf %67, %73 : vector<16x16x128xf32>
    %75 = vector.extract_strided_slice %30 {offsets = [0, 9, 0], sizes = [18, 16, 128], strides = [1, 1, 1]} : vector<18x32x128xf32> to vector<18x16x128xf32>
    %76 = vector.extract_strided_slice %75 {offsets = [0, 0, 0], sizes = [16, 16, 128], strides = [1, 1, 1]} : vector<18x16x128xf32> to vector<16x16x128xf32>
    %77 = vector.extract_strided_slice %25 {offsets = [2, 0], sizes = [1, 128], strides = [1, 1]} : vector<9x128xf32> to vector<1x128xf32>
    %78 = vector.shape_cast %77 : vector<1x128xf32> to vector<128xf32>
    %79 = vector.shape_cast %78 : vector<128xf32> to vector<1x1x128xf32>
    %80 = vector.broadcast %79 : vector<1x1x128xf32> to vector<16x16x128xf32>
    %81 = arith.mulf %76, %80 : vector<16x16x128xf32>
    %82 = arith.addf %74, %81 : vector<16x16x128xf32>
    %83 = vector.extract_strided_slice %75 {offsets = [1, 0, 0], sizes = [16, 16, 128], strides = [1, 1, 1]} : vector<18x16x128xf32> to vector<16x16x128xf32>
    %84 = vector.extract_strided_slice %25 {offsets = [5, 0], sizes = [1, 128], strides = [1, 1]} : vector<9x128xf32> to vector<1x128xf32>
    %85 = vector.shape_cast %84 : vector<1x128xf32> to vector<128xf32>
    %86 = vector.shape_cast %85 : vector<128xf32> to vector<1x1x128xf32>
    %87 = vector.broadcast %86 : vector<1x1x128xf32> to vector<16x16x128xf32>
    %88 = arith.mulf %83, %87 : vector<16x16x128xf32>
    %89 = arith.addf %82, %88 : vector<16x16x128xf32>
    %90 = vector.extract_strided_slice %75 {offsets = [2, 0, 0], sizes = [16, 16, 128], strides = [1, 1, 1]} : vector<18x16x128xf32> to vector<16x16x128xf32>
    %91 = vector.extract_strided_slice %25 {offsets = [8, 0], sizes = [1, 128], strides = [1, 1]} : vector<9x128xf32> to vector<1x128xf32>
    %92 = vector.shape_cast %91 : vector<1x128xf32> to vector<128xf32>
    %93 = vector.shape_cast %92 : vector<128xf32> to vector<1x1x128xf32>
    %94 = vector.broadcast %93 : vector<1x1x128xf32> to vector<16x16x128xf32>
    %95 = arith.mulf %90, %94 : vector<16x16x128xf32>
    %96 = arith.addf %89, %95 : vector<16x16x128xf32>
    %cst_24 = arith.constant 5.000000e-01 : f32
    %97 = vector.broadcast %cst_24 : f32 to vector<16x16x128xf32>
    %98 = arith.mulf %97, %96 : vector<16x16x128xf32>
    %cst_25 = arith.constant 4.471500e-02 : f32
    %99 = vector.broadcast %cst_25 : f32 to vector<16x16x128xf32>
    %100 = arith.mulf %99, %96 : vector<16x16x128xf32>
    %101 = arith.mulf %100, %96 : vector<16x16x128xf32>
    %102 = arith.mulf %101, %96 : vector<16x16x128xf32>
    %103 = arith.addf %96, %102 : vector<16x16x128xf32>
    %cst_26 = arith.constant 0.797884583 : f32
    %104 = vector.broadcast %cst_26 : f32 to vector<16x16x128xf32>
    %105 = arith.mulf %104, %103 : vector<16x16x128xf32>
    %106 = math.tanh %105 : vector<16x16x128xf32>
    %cst_27 = arith.constant 1.000000e+00 : f32
    %107 = vector.broadcast %cst_27 : f32 to vector<16x16x128xf32>
    %108 = arith.addf %107, %106 : vector<16x16x128xf32>
    %109 = arith.mulf %98, %108 : vector<16x16x128xf32>
    %c0_28 = arith.constant 0 : index
    %c0_29 = arith.constant 0 : index
    %110 = vector.load %arg7[%c0_28, %c0_29] : memref<9x128xf32, #tpu.memory_space<vmem>>, vector<9x128xf32>
    %c0_30 = arith.constant 0 : index
    %c0_31 = arith.constant 0 : index
    %111 = vector.load %arg8[%c0_30, %c0_31] : memref<1x128xf32, #tpu.memory_space<vmem>>, vector<1x128xf32>
    %112 = vector.shape_cast %111 : vector<1x128xf32> to vector<1x1x128xf32>
    %113 = vector.shape_cast %112 : vector<1x1x128xf32> to vector<1x1x128xf32>
    %114 = vector.broadcast %113 : vector<1x1x128xf32> to vector<16x16x128xf32>
    %c1 = arith.constant 1 : index
    %c0_32 = arith.constant 0 : index
    %c0_33 = arith.constant 0 : index
    %115 = vector.load %arg15[%c1, %c0_32, %c0_33] : memref<22x32x128xf32, #tpu.memory_space<vmem>>, vector<20x32x128xf32>
    %116 = vector.extract_strided_slice %115 {offsets = [0, 6, 0], sizes = [20, 16, 128], strides = [1, 1, 1]} : vector<20x32x128xf32> to vector<20x16x128xf32>
    %117 = vector.extract_strided_slice %116 {offsets = [0, 0, 0], sizes = [16, 16, 128], strides = [1, 1, 1]} : vector<20x16x128xf32> to vector<16x16x128xf32>
    %118 = vector.extract_strided_slice %110 {offsets = [0, 0], sizes = [1, 128], strides = [1, 1]} : vector<9x128xf32> to vector<1x128xf32>
    %119 = vector.shape_cast %118 : vector<1x128xf32> to vector<128xf32>
    %120 = vector.shape_cast %119 : vector<128xf32> to vector<1x1x128xf32>
    %121 = vector.broadcast %120 : vector<1x1x128xf32> to vector<16x16x128xf32>
    %122 = arith.mulf %117, %121 : vector<16x16x128xf32>
    %123 = arith.addf %114, %122 : vector<16x16x128xf32>
    %124 = vector.extract_strided_slice %116 {offsets = [2, 0, 0], sizes = [16, 16, 128], strides = [1, 1, 1]} : vector<20x16x128xf32> to vector<16x16x128xf32>
    %125 = vector.extract_strided_slice %110 {offsets = [3, 0], sizes = [1, 128], strides = [1, 1]} : vector<9x128xf32> to vector<1x128xf32>
    %126 = vector.shape_cast %125 : vector<1x128xf32> to vector<128xf32>
    %127 = vector.shape_cast %126 : vector<128xf32> to vector<1x1x128xf32>
    %128 = vector.broadcast %127 : vector<1x1x128xf32> to vector<16x16x128xf32>
    %129 = arith.mulf %124, %128 : vector<16x16x128xf32>
    %130 = arith.addf %123, %129 : vector<16x16x128xf32>
    %131 = vector.extract_strided_slice %116 {offsets = [4, 0, 0], sizes = [16, 16, 128], strides = [1, 1, 1]} : vector<20x16x128xf32> to vector<16x16x128xf32>
    %132 = vector.extract_strided_slice %110 {offsets = [6, 0], sizes = [1, 128], strides = [1, 1]} : vector<9x128xf32> to vector<1x128xf32>
    %133 = vector.shape_cast %132 : vector<1x128xf32> to vector<128xf32>
    %134 = vector.shape_cast %133 : vector<128xf32> to vector<1x1x128xf32>
    %135 = vector.broadcast %134 : vector<1x1x128xf32> to vector<16x16x128xf32>
    %136 = arith.mulf %131, %135 : vector<16x16x128xf32>
    %137 = arith.addf %130, %136 : vector<16x16x128xf32>
    %138 = vector.extract_strided_slice %115 {offsets = [0, 8, 0], sizes = [20, 16, 128], strides = [1, 1, 1]} : vector<20x32x128xf32> to vector<20x16x128xf32>
    %139 = vector.extract_strided_slice %138 {offsets = [0, 0, 0], sizes = [16, 16, 128], strides = [1, 1, 1]} : vector<20x16x128xf32> to vector<16x16x128xf32>
    %140 = vector.extract_strided_slice %110 {offsets = [1, 0], sizes = [1, 128], strides = [1, 1]} : vector<9x128xf32> to vector<1x128xf32>
    %141 = vector.shape_cast %140 : vector<1x128xf32> to vector<128xf32>
    %142 = vector.shape_cast %141 : vector<128xf32> to vector<1x1x128xf32>
    %143 = vector.broadcast %142 : vector<1x1x128xf32> to vector<16x16x128xf32>
    %144 = arith.mulf %139, %143 : vector<16x16x128xf32>
    %145 = arith.addf %137, %144 : vector<16x16x128xf32>
    %146 = vector.extract_strided_slice %138 {offsets = [2, 0, 0], sizes = [16, 16, 128], strides = [1, 1, 1]} : vector<20x16x128xf32> to vector<16x16x128xf32>
    %147 = vector.extract_strided_slice %110 {offsets = [4, 0], sizes = [1, 128], strides = [1, 1]} : vector<9x128xf32> to vector<1x128xf32>
    %148 = vector.shape_cast %147 : vector<1x128xf32> to vector<128xf32>
    %149 = vector.shape_cast %148 : vector<128xf32> to vector<1x1x128xf32>
    %150 = vector.broadcast %149 : vector<1x1x128xf32> to vector<16x16x128xf32>
    %151 = arith.mulf %146, %150 : vector<16x16x128xf32>
    %152 = arith.addf %145, %151 : vector<16x16x128xf32>
    %153 = vector.extract_strided_slice %138 {offsets = [4, 0, 0], sizes = [16, 16, 128], strides = [1, 1, 1]} : vector<20x16x128xf32> to vector<16x16x128xf32>
    %154 = vector.extract_strided_slice %110 {offsets = [7, 0], sizes = [1, 128], strides = [1, 1]} : vector<9x128xf32> to vector<1x128xf32>
    %155 = vector.shape_cast %154 : vector<1x128xf32> to vector<128xf32>
    %156 = vector.shape_cast %155 : vector<128xf32> to vector<1x1x128xf32>
    %157 = vector.broadcast %156 : vector<1x1x128xf32> to vector<16x16x128xf32>
    %158 = arith.mulf %153, %157 : vector<16x16x128xf32>
    %159 = arith.addf %152, %158 : vector<16x16x128xf32>
    %160 = vector.extract_strided_slice %115 {offsets = [0, 10, 0], sizes = [20, 16, 128], strides = [1, 1, 1]} : vector<20x32x128xf32> to vector<20x16x128xf32>
    %161 = vector.extract_strided_slice %160 {offsets = [0, 0, 0], sizes = [16, 16, 128], strides = [1, 1, 1]} : vector<20x16x128xf32> to vector<16x16x128xf32>
    %162 = vector.extract_strided_slice %110 {offsets = [2, 0], sizes = [1, 128], strides = [1, 1]} : vector<9x128xf32> to vector<1x128xf32>
    %163 = vector.shape_cast %162 : vector<1x128xf32> to vector<128xf32>
    %164 = vector.shape_cast %163 : vector<128xf32> to vector<1x1x128xf32>
    %165 = vector.broadcast %164 : vector<1x1x128xf32> to vector<16x16x128xf32>
    %166 = arith.mulf %161, %165 : vector<16x16x128xf32>
    %167 = arith.addf %159, %166 : vector<16x16x128xf32>
    %168 = vector.extract_strided_slice %160 {offsets = [2, 0, 0], sizes = [16, 16, 128], strides = [1, 1, 1]} : vector<20x16x128xf32> to vector<16x16x128xf32>
    %169 = vector.extract_strided_slice %110 {offsets = [5, 0], sizes = [1, 128], strides = [1, 1]} : vector<9x128xf32> to vector<1x128xf32>
    %170 = vector.shape_cast %169 : vector<1x128xf32> to vector<128xf32>
    %171 = vector.shape_cast %170 : vector<128xf32> to vector<1x1x128xf32>
    %172 = vector.broadcast %171 : vector<1x1x128xf32> to vector<16x16x128xf32>
    %173 = arith.mulf %168, %172 : vector<16x16x128xf32>
    %174 = arith.addf %167, %173 : vector<16x16x128xf32>
    %175 = vector.extract_strided_slice %160 {offsets = [4, 0, 0], sizes = [16, 16, 128], strides = [1, 1, 1]} : vector<20x16x128xf32> to vector<16x16x128xf32>
    %176 = vector.extract_strided_slice %110 {offsets = [8, 0], sizes = [1, 128], strides = [1, 1]} : vector<9x128xf32> to vector<1x128xf32>
    %177 = vector.shape_cast %176 : vector<1x128xf32> to vector<128xf32>
    %178 = vector.shape_cast %177 : vector<128xf32> to vector<1x1x128xf32>
    %179 = vector.broadcast %178 : vector<1x1x128xf32> to vector<16x16x128xf32>
    %180 = arith.mulf %175, %179 : vector<16x16x128xf32>
    %181 = arith.addf %174, %180 : vector<16x16x128xf32>
    %182 = arith.mulf %109, %181 : vector<16x16x128xf32>
    %c0_34 = arith.constant 0 : index
    %c0_35 = arith.constant 0 : index
    %183 = vector.load %arg9[%c0_34, %c0_35] : memref<9x128xf32, #tpu.memory_space<vmem>>, vector<9x128xf32>
    %c0_36 = arith.constant 0 : index
    %c0_37 = arith.constant 0 : index
    %184 = vector.load %arg10[%c0_36, %c0_37] : memref<1x128xf32, #tpu.memory_space<vmem>>, vector<1x128xf32>
    %185 = vector.shape_cast %184 : vector<1x128xf32> to vector<1x1x128xf32>
    %186 = vector.shape_cast %185 : vector<1x1x128xf32> to vector<1x1x128xf32>
    %187 = vector.broadcast %186 : vector<1x1x128xf32> to vector<16x16x128xf32>
    %c0_38 = arith.constant 0 : index
    %c0_39 = arith.constant 0 : index
    %c0_40 = arith.constant 0 : index
    %188 = vector.load %arg16[%c0_38, %c0_39, %c0_40] : memref<22x32x128xf32, #tpu.memory_space<vmem>>, vector<22x32x128xf32>
    %189 = vector.extract_strided_slice %188 {offsets = [0, 5, 0], sizes = [22, 16, 128], strides = [1, 1, 1]} : vector<22x32x128xf32> to vector<22x16x128xf32>
    %190 = vector.extract_strided_slice %189 {offsets = [0, 0, 0], sizes = [16, 16, 128], strides = [1, 1, 1]} : vector<22x16x128xf32> to vector<16x16x128xf32>
    %191 = vector.extract_strided_slice %183 {offsets = [0, 0], sizes = [1, 128], strides = [1, 1]} : vector<9x128xf32> to vector<1x128xf32>
    %192 = vector.shape_cast %191 : vector<1x128xf32> to vector<128xf32>
    %193 = vector.shape_cast %192 : vector<128xf32> to vector<1x1x128xf32>
    %194 = vector.broadcast %193 : vector<1x1x128xf32> to vector<16x16x128xf32>
    %195 = arith.mulf %190, %194 : vector<16x16x128xf32>
    %196 = arith.addf %187, %195 : vector<16x16x128xf32>
    %197 = vector.extract_strided_slice %189 {offsets = [3, 0, 0], sizes = [16, 16, 128], strides = [1, 1, 1]} : vector<22x16x128xf32> to vector<16x16x128xf32>
    %198 = vector.extract_strided_slice %183 {offsets = [3, 0], sizes = [1, 128], strides = [1, 1]} : vector<9x128xf32> to vector<1x128xf32>
    %199 = vector.shape_cast %198 : vector<1x128xf32> to vector<128xf32>
    %200 = vector.shape_cast %199 : vector<128xf32> to vector<1x1x128xf32>
    %201 = vector.broadcast %200 : vector<1x1x128xf32> to vector<16x16x128xf32>
    %202 = arith.mulf %197, %201 : vector<16x16x128xf32>
    %203 = arith.addf %196, %202 : vector<16x16x128xf32>
    %204 = vector.extract_strided_slice %189 {offsets = [6, 0, 0], sizes = [16, 16, 128], strides = [1, 1, 1]} : vector<22x16x128xf32> to vector<16x16x128xf32>
    %205 = vector.extract_strided_slice %183 {offsets = [6, 0], sizes = [1, 128], strides = [1, 1]} : vector<9x128xf32> to vector<1x128xf32>
    %206 = vector.shape_cast %205 : vector<1x128xf32> to vector<128xf32>
    %207 = vector.shape_cast %206 : vector<128xf32> to vector<1x1x128xf32>
    %208 = vector.broadcast %207 : vector<1x1x128xf32> to vector<16x16x128xf32>
    %209 = arith.mulf %204, %208 : vector<16x16x128xf32>
    %210 = arith.addf %203, %209 : vector<16x16x128xf32>
    %211 = vector.extract_strided_slice %188 {offsets = [0, 8, 0], sizes = [22, 16, 128], strides = [1, 1, 1]} : vector<22x32x128xf32> to vector<22x16x128xf32>
    %212 = vector.extract_strided_slice %211 {offsets = [0, 0, 0], sizes = [16, 16, 128], strides = [1, 1, 1]} : vector<22x16x128xf32> to vector<16x16x128xf32>
    %213 = vector.extract_strided_slice %183 {offsets = [1, 0], sizes = [1, 128], strides = [1, 1]} : vector<9x128xf32> to vector<1x128xf32>
    %214 = vector.shape_cast %213 : vector<1x128xf32> to vector<128xf32>
    %215 = vector.shape_cast %214 : vector<128xf32> to vector<1x1x128xf32>
    %216 = vector.broadcast %215 : vector<1x1x128xf32> to vector<16x16x128xf32>
    %217 = arith.mulf %212, %216 : vector<16x16x128xf32>
    %218 = arith.addf %210, %217 : vector<16x16x128xf32>
    %219 = vector.extract_strided_slice %211 {offsets = [3, 0, 0], sizes = [16, 16, 128], strides = [1, 1, 1]} : vector<22x16x128xf32> to vector<16x16x128xf32>
    %220 = vector.extract_strided_slice %183 {offsets = [4, 0], sizes = [1, 128], strides = [1, 1]} : vector<9x128xf32> to vector<1x128xf32>
    %221 = vector.shape_cast %220 : vector<1x128xf32> to vector<128xf32>
    %222 = vector.shape_cast %221 : vector<128xf32> to vector<1x1x128xf32>
    %223 = vector.broadcast %222 : vector<1x1x128xf32> to vector<16x16x128xf32>
    %224 = arith.mulf %219, %223 : vector<16x16x128xf32>
    %225 = arith.addf %218, %224 : vector<16x16x128xf32>
    %226 = vector.extract_strided_slice %211 {offsets = [6, 0, 0], sizes = [16, 16, 128], strides = [1, 1, 1]} : vector<22x16x128xf32> to vector<16x16x128xf32>
    %227 = vector.extract_strided_slice %183 {offsets = [7, 0], sizes = [1, 128], strides = [1, 1]} : vector<9x128xf32> to vector<1x128xf32>
    %228 = vector.shape_cast %227 : vector<1x128xf32> to vector<128xf32>
    %229 = vector.shape_cast %228 : vector<128xf32> to vector<1x1x128xf32>
    %230 = vector.broadcast %229 : vector<1x1x128xf32> to vector<16x16x128xf32>
    %231 = arith.mulf %226, %230 : vector<16x16x128xf32>
    %232 = arith.addf %225, %231 : vector<16x16x128xf32>
    %233 = vector.extract_strided_slice %188 {offsets = [0, 11, 0], sizes = [22, 16, 128], strides = [1, 1, 1]} : vector<22x32x128xf32> to vector<22x16x128xf32>
    %234 = vector.extract_strided_slice %233 {offsets = [0, 0, 0], sizes = [16, 16, 128], strides = [1, 1, 1]} : vector<22x16x128xf32> to vector<16x16x128xf32>
    %235 = vector.extract_strided_slice %183 {offsets = [2, 0], sizes = [1, 128], strides = [1, 1]} : vector<9x128xf32> to vector<1x128xf32>
    %236 = vector.shape_cast %235 : vector<1x128xf32> to vector<128xf32>
    %237 = vector.shape_cast %236 : vector<128xf32> to vector<1x1x128xf32>
    %238 = vector.broadcast %237 : vector<1x1x128xf32> to vector<16x16x128xf32>
    %239 = arith.mulf %234, %238 : vector<16x16x128xf32>
    %240 = arith.addf %232, %239 : vector<16x16x128xf32>
    %241 = vector.extract_strided_slice %233 {offsets = [3, 0, 0], sizes = [16, 16, 128], strides = [1, 1, 1]} : vector<22x16x128xf32> to vector<16x16x128xf32>
    %242 = vector.extract_strided_slice %183 {offsets = [5, 0], sizes = [1, 128], strides = [1, 1]} : vector<9x128xf32> to vector<1x128xf32>
    %243 = vector.shape_cast %242 : vector<1x128xf32> to vector<128xf32>
    %244 = vector.shape_cast %243 : vector<128xf32> to vector<1x1x128xf32>
    %245 = vector.broadcast %244 : vector<1x1x128xf32> to vector<16x16x128xf32>
    %246 = arith.mulf %241, %245 : vector<16x16x128xf32>
    %247 = arith.addf %240, %246 : vector<16x16x128xf32>
    %248 = vector.extract_strided_slice %233 {offsets = [6, 0, 0], sizes = [16, 16, 128], strides = [1, 1, 1]} : vector<22x16x128xf32> to vector<16x16x128xf32>
    %249 = vector.extract_strided_slice %183 {offsets = [8, 0], sizes = [1, 128], strides = [1, 1]} : vector<9x128xf32> to vector<1x128xf32>
    %250 = vector.shape_cast %249 : vector<1x128xf32> to vector<128xf32>
    %251 = vector.shape_cast %250 : vector<128xf32> to vector<1x1x128xf32>
    %252 = vector.broadcast %251 : vector<1x1x128xf32> to vector<16x16x128xf32>
    %253 = arith.mulf %248, %252 : vector<16x16x128xf32>
    %254 = arith.addf %247, %253 : vector<16x16x128xf32>
    %255 = arith.mulf %182, %254 : vector<16x16x128xf32>
    %256 = vector.shape_cast %255 : vector<16x16x128xf32> to vector<256x128xf32>
    %257 = arith.truncf %256 : vector<256x128xf32> to vector<256x128xbf16>
    %c0_41 = arith.constant 0 : index
    %c0_42 = arith.constant 0 : index
    %258 = vector.load %arg11[%c0_41, %c0_42] : memref<128x128xbf16, #tpu.memory_space<vmem>>, vector<128x128xbf16>
    %cst_43 = arith.constant dense<0.000000e+00> : vector<256x128xf32>
    %259 = tpu.matmul %257, %258, %cst_43 {dimension_numbers = #tpu.dot_dimension_numbers<[1], [0], [0], [1], [0, 0, 1, 1], [], []>} : vector<256x128xbf16>, vector<128x128xbf16>, vector<256x128xf32> -> vector<256x128xf32>
    %c0_44 = arith.constant 0 : index
    %c0_45 = arith.constant 0 : index
    %260 = vector.load %arg12[%c0_44, %c0_45] : memref<1x128xf32, #tpu.memory_space<vmem>>, vector<1x128xf32>
    %261 = vector.broadcast %260 : vector<1x128xf32> to vector<256x128xf32>
    %262 = arith.addf %259, %261 : vector<256x128xf32>
    %263 = vector.shape_cast %262 : vector<256x128xf32> to vector<16x16x128xf32>
    %c0_46 = arith.constant 0 : index
    %c0_47 = arith.constant 0 : index
    %c0_48 = arith.constant 0 : index
    %c0_49 = arith.constant 0 : index
    %264 = vector.load %arg13[%c0_46, %c0_47, %c0_48, %c0_49] : memref<1x16x16x128xf32, #tpu.memory_space<vmem>>, vector<1x16x16x128xf32>
    %265 = vector.shape_cast %264 : vector<1x16x16x128xf32> to vector<16x16x128xf32>
    %266 = vector.shape_cast %263 : vector<16x16x128xf32> to vector<1x16x16x128xf32>
    tpu.vector_store %arg13[%c0_46, %c0_47, %c0_48, %c0_49], %266 {strides = array<i32>} : memref<1x16x16x128xf32, #tpu.memory_space<vmem>>, vector<1x16x16x128xf32>,
    return
  }
  func.func @transform_0(%arg0: i32, %arg1: i32) -> (i32, i32, i32, i32) {
    %c0_i32 = arith.constant 0 : i32
    %c0_i32_0 = arith.constant 0 : i32
    %c0_i32_1 = arith.constant 0 : i32
    %c0_i32_2 = arith.constant 0 : i32
    return %arg0, %c0_i32, %c0_i32_0, %c0_i32_1 : i32, i32, i32, i32
  }
  func.func @transform_1(%arg0: i32, %arg1: i32) -> (i32, i32) {
    %c0_i32 = arith.constant 0 : i32
    %c0_i32_0 = arith.constant 0 : i32
    %c0_i32_1 = arith.constant 0 : i32
    return %c0_i32, %c0_i32_0 : i32, i32
  }
  func.func @transform_2(%arg0: i32, %arg1: i32) -> (i32, i32) {
    %c0_i32 = arith.constant 0 : i32
    %c0_i32_0 = arith.constant 0 : i32
    %c0_i32_1 = arith.constant 0 : i32
    return %c0_i32, %c0_i32_0 : i32, i32
  }
  func.func @transform_3(%arg0: i32, %arg1: i32) -> (i32, i32) {
    %c0_i32 = arith.constant 0 : i32
    %c0_i32_0 = arith.constant 0 : i32
    %c0_i32_1 = arith.constant 0 : i32
    return %c0_i32, %c0_i32_0 : i32, i32
  }
  func.func @transform_4(%arg0: i32, %arg1: i32) -> (i32, i32) {
    %c0_i32 = arith.constant 0 : i32
    %c0_i32_0 = arith.constant 0 : i32
    %c0_i32_1 = arith.constant 0 : i32
    return %c0_i32, %c0_i32_0 : i32, i32
  }
  func.func @transform_5(%arg0: i32, %arg1: i32) -> (i32, i32) {
    %c0_i32 = arith.constant 0 : i32
    %c0_i32_0 = arith.constant 0 : i32
    %c0_i32_1 = arith.constant 0 : i32
    return %c0_i32, %c0_i32_0 : i32, i32
  }
  func.func @transform_6(%arg0: i32, %arg1: i32) -> (i32, i32) {
    %c0_i32 = arith.constant 0 : i32
    %c0_i32_0 = arith.constant 0 : i32
    %c0_i32_1 = arith.constant 0 : i32
    return %c0_i32, %c0_i32_0 : i32, i32
  }
  func.func @transform_7(%arg0: i32, %arg1: i32) -> (i32, i32) {
    %c0_i32 = arith.constant 0 : i32
    %c0_i32_0 = arith.constant 0 : i32
    %c0_i32_1 = arith.constant 0 : i32
    return %c0_i32, %c0_i32_0 : i32, i32
  }
  func.func @transform_8(%arg0: i32, %arg1: i32) -> (i32, i32) {
    %c0_i32 = arith.constant 0 : i32
    %c0_i32_0 = arith.constant 0 : i32
    %c0_i32_1 = arith.constant 0 : i32
    return %c0_i32, %c0_i32_0 : i32, i32
  }
  func.func @transform_9(%arg0: i32, %arg1: i32) -> (i32, i32) {
    %c0_i32 = arith.constant 0 : i32
    %c0_i32_0 = arith.constant 0 : i32
    %c0_i32_1 = arith.constant 0 : i32
    return %c0_i32, %c0_i32_0 : i32, i32
  }
  func.func @transform_10(%arg0: i32, %arg1: i32) -> (i32, i32) {
    %c0_i32 = arith.constant 0 : i32
    %c0_i32_0 = arith.constant 0 : i32
    %c0_i32_1 = arith.constant 0 : i32
    return %c0_i32, %c0_i32_0 : i32, i32
  }
  func.func @transform_11(%arg0: i32, %arg1: i32) -> (i32, i32, i32, i32) {
    %c0_i32 = arith.constant 0 : i32
    %c0_i32_0 = arith.constant 0 : i32
    %c0_i32_1 = arith.constant 0 : i32
    return %arg0, %arg1, %c0_i32, %c0_i32_0 : i32, i32, i32, i32
  }
}

</mosaic_0001>

<llo_original>
// kernel: tpu_custom_call.1
$region0: #{tpu_custom_call.1}
  #allocation0 [shape = 'u32[]', space=smem, size = 0x4, offset = 0x4, fixed_abs, tag = 'smem constant byte address 0x4 - core index']
  #allocation1 [shape = 'u32[144,128]{1,0:T(1,128)}', space=vmem, size = 0x12000, scoped, tag = 'internal scratch']
  #allocation2 [shape = 'f32[22,32,128]{2,1,0:T(8,128)}', space=vmem, size = 0x58000, scoped, tag = 'scratch operand']
  #allocation3 [shape = 'f32[22,32,128]{2,1,0:T(8,128)}', space=vmem, size = 0x58000, scoped, tag = 'scratch operand']
  #allocation4 [shape = 'f32[22,32,128]{2,1,0:T(8,128)}', space=vmem, size = 0x58000, scoped, tag = 'scratch operand']
  %s0 = inlined_call_operand.vmem [shape: f32[2,22,16,4], index: 0, kind: input, shape index: {}]
  %s1 = inlined_call_operand.vmem [shape: bf16[4,384], index: 1, kind: input, shape index: {}]
  %s2 = inlined_call_operand.vmem [shape: f32[1,384], index: 2, kind: input, shape index: {}]
  %s3 = inlined_call_operand.vmem [shape: f32[9,128], index: 3, kind: input, shape index: {}]
  %s4 = inlined_call_operand.vmem [shape: f32[1,128], index: 4, kind: input, shape index: {}]
  %s5 = inlined_call_operand.vmem [shape: f32[9,128], index: 5, kind: input, shape index: {}]
  %s6 = inlined_call_operand.vmem [shape: f32[1,128], index: 6, kind: input, shape index: {}]
  %s7 = inlined_call_operand.vmem [shape: f32[9,128], index: 7, kind: input, shape index: {}]
  %s8 = inlined_call_operand.vmem [shape: f32[1,128], index: 8, kind: input, shape index: {}]
  %s9 = inlined_call_operand.vmem [shape: bf16[128,128], index: 9, kind: input, shape index: {}]
  %s10 = inlined_call_operand.vmem [shape: f32[1,128], index: 10, kind: input, shape index: {}]
  %s11 = inlined_call_operand.hbm [shape: f32[2,16,16,128], index: 11, kind: output, shape index: {}]
  %s12 = sld [smem:[#allocation0]]
  $region81: #{tpu_custom_call.1} parent=0
    _
  %s14 = ssub.s32 1, %s12
  %s15 = scalar_select 0, %s14, %s12
  $region1: #{tpu_custom_call.1} parent=0
    #allocation5 [shape = 'u8[262144]{0}', space=vmem, size = 0x40000, scoped, tag = 'output window, operand 0']
    #allocation6 [shape = 's32[2]{0}', space=sflag, size = 0x8, scoped, tag = 'scoped memory for tpu_custom_call.1']
    %16 = vsyncpa [#allocation6], 0
    %s17 = scalar_lea.sflag [#allocation6], 1
    %18 = vsyncpa %s17, 0
    loop: start=0, step=1, limit=4
    $region2: #{tpu_custom_call.1} parent=1 // loop_pre_header
      _
    $region3: #{tpu_custom_call.1} parent=1 // loop_header
      %s20 = sphi 0, %s24
      %p21 = scmp.ge.s32.totalorder %s20, 4
      %s27 = sphi 0, %s39
      %s28 = sphi 0, %s35
      %s29 = sphi 0, %s27
      %s30 = sphi 0, %s28
      %s31 = sphi 0, %s29
      %s32 = sphi 0, %s30
      %s42 = sphi 0, %s44
      %s45 = sphi 0, %s42
      %s46 = sphi 0, %s45
      %s62 = sphi 0, %s46
      %s66 = sphi 0, %s66
      %s68 = sphi 0, %s66
      %s69 = sphi 0, %s68
      %s83 = sphi 0, %s69
      %s87 = sphi 0, %s87
      %s89 = sphi 0, %s87
      %s90 = sphi 0, %s89
      %s104 = sphi 0, %s90
      %s108 = sphi 0, %s108
      %s110 = sphi 0, %s108
      %s111 = sphi 0, %s110
      %s125 = sphi 0, %s111
      %s129 = sphi 0, %s129
      %s131 = sphi 0, %s129
      %s132 = sphi 0, %s131
      %s146 = sphi 0, %s132
      %s150 = sphi 0, %s150
      %s152 = sphi 0, %s150
      %s153 = sphi 0, %s152
      %s167 = sphi 0, %s153
      %s171 = sphi 0, %s171
      %s173 = sphi 0, %s171
      %s174 = sphi 0, %s173
      %s188 = sphi 0, %s174
      %s192 = sphi 0, %s192
      %s194 = sphi 0, %s192
      %s195 = sphi 0, %s194
      %s209 = sphi 0, %s195
      %s213 = sphi 0, %s213
      %s215 = sphi 0, %s213
      %s216 = sphi 0, %s215
      %s230 = sphi 0, %s216
      %s234 = sphi 0, %s234
      %s236 = sphi 0, %s234
      %s237 = sphi 0, %s236
      %s251 = sphi 0, %s237
      %s255 = sphi 0, %s255
      %s257 = sphi 0, %s255
      %s258 = sphi 0, %s257
      %s272 = sphi 0, %s258
      %s280 = sphi 0, %s282
      %s283 = sphi 0, %s280
      %s284 = sphi 0, %s283
      %s300 = sphi 0, %s284
    $region4: #{tpu_custom_call.1} parent=1 // loop_header_branch
      %23 = sbr.rel (%p21) target = $region8
    $region5: #{tpu_custom_call.1} parent=1 // loop_body
      %s25 = ssub.s32 %s20, 1
      %s26 = ssub.s32 %s20, 2
      %s33 = sadd.s32 1, %s28
      %p34 = scmp.ge.s32.totalorder %s33, 1
      %s35 = scalar_select %p34, 0, %s33
      %s36 = sadd.s32 1, %s27
      %s37 = scalar_select %p34, %s36, %s27
      %p38 = scmp.ge.s32.totalorder %s37, 2
      %s39 = scalar_select %p38, 0, %s37
      %s40 = ssub.s32 %s27, %s39
      %p41 = scmp.eq.s32.totalorder %s40, 0
      %s43 = sadd.s32 %s42, 1
      %s44 = scalar_select %p41, %s42, %s43
      %p47 = pneg %p41
      %p48 = scmp.eq.s32.totalorder %s20, 1
      %p49 = por %p47, %p48
      %p50 = scmp.ne.s32.totalorder %s42, %s45
      %p51 = scmp.eq.s32.totalorder %s20, 0
      %p52 = por %p50, %p51
      %p53 = scmp.ne.s32.totalorder %s42, %s45
      %p54 = scmp.eq.s32.totalorder %s25, 1
      %p55 = por %p53, %p54
      %p56 = scmp.ne.s32.totalorder %s45, %s46
      %p57 = scmp.eq.s32.totalorder %s25, 0
      %p58 = por %p56, %p57
      %p59 = scmp.ne.s32.totalorder %s45, %s46
      %p60 = scmp.eq.s32.totalorder %s26, 1
      %p61 = por %p59, %p60
      %p63 = scmp.ne.s32.totalorder %s46, %s62
      %p64 = scmp.eq.s32.totalorder %s26, 0
      %p65 = por %p63, %p64
      %s67 = sadd.s32 %s66, 1
      %p70 = scmp.eq.s32.totalorder %s20, 1
      %p71 = scmp.ne.s32.totalorder %s66, %s68
      %p72 = scmp.eq.s32.totalorder %s20, 0
      %p73 = por %p71, %p72
      %p74 = scmp.ne.s32.totalorder %s66, %s68
      %p75 = scmp.eq.s32.totalorder %s25, 1
      %p76 = por %p74, %p75
      %p77 = scmp.ne.s32.totalorder %s68, %s69
      %p78 = scmp.eq.s32.totalorder %s25, 0
      %p79 = por %p77, %p78
      %p80 = scmp.ne.s32.totalorder %s68, %s69
      %p81 = scmp.eq.s32.totalorder %s26, 1
      %p82 = por %p80, %p81
      %p84 = scmp.ne.s32.totalorder %s69, %s83
      %p85 = scmp.eq.s32.totalorder %s26, 0
      %p86 = por %p84, %p85
      %s88 = sadd.s32 %s87, 1
      %p91 = scmp.eq.s32.totalorder %s20, 1
      %p92 = scmp.ne.s32.totalorder %s87, %s89
      %p93 = scmp.eq.s32.totalorder %s20, 0
      %p94 = por %p92, %p93
      %p95 = scmp.ne.s32.totalorder %s87, %s89
      %p96 = scmp.eq.s32.totalorder %s25, 1
      %p97 = por %p95, %p96
      %p98 = scmp.ne.s32.totalorder %s89, %s90
      %p99 = scmp.eq.s32.totalorder %s25, 0
      %p100 = por %p98, %p99
      %p101 = scmp.ne.s32.totalorder %s89, %s90
      %p102 = scmp.eq.s32.totalorder %s26, 1
      %p103 = por %p101, %p102
      %p105 = scmp.ne.s32.totalorder %s90, %s104
      %p106 = scmp.eq.s32.totalorder %s26, 0
      %p107 = por %p105, %p106
      %s109 = sadd.s32 %s108, 1
      %p112 = scmp.eq.s32.totalorder %s20, 1
      %p113 = scmp.ne.s32.totalorder %s108, %s110
      %p114 = scmp.eq.s32.totalorder %s20, 0
      %p115 = por %p113, %p114
      %p116 = scmp.ne.s32.totalorder %s108, %s110
      %p117 = scmp.eq.s32.totalorder %s25, 1
      %p118 = por %p116, %p117
      %p119 = scmp.ne.s32.totalorder %s110, %s111
      %p120 = scmp.eq.s32.totalorder %s25, 0
      %p121 = por %p119, %p120
      %p122 = scmp.ne.s32.totalorder %s110, %s111
      %p123 = scmp.eq.s32.totalorder %s26, 1
      %p124 = por %p122, %p123
      %p126 = scmp.ne.s32.totalorder %s111, %s125
      %p127 = scmp.eq.s32.totalorder %s26, 0
      %p128 = por %p126, %p127
      %s130 = sadd.s32 %s129, 1
      %p133 = scmp.eq.s32.totalorder %s20, 1
      %p134 = scmp.ne.s32.totalorder %s129, %s131
      %p135 = scmp.eq.s32.totalorder %s20, 0
      %p136 = por %p134, %p135
      %p137 = scmp.ne.s32.totalorder %s129, %s131
      %p138 = scmp.eq.s32.totalorder %s25, 1
      %p139 = por %p137, %p138
      %p140 = scmp.ne.s32.totalorder %s131, %s132
      %p141 = scmp.eq.s32.totalorder %s25, 0
      %p142 = por %p140, %p141
      %p143 = scmp.ne.s32.totalorder %s131, %s132
      %p144 = scmp.eq.s32.totalorder %s26, 1
      %p145 = por %p143, %p144
      %p147 = scmp.ne.s32.totalorder %s132, %s146
      %p148 = scmp.eq.s32.totalorder %s26, 0
      %p149 = por %p147, %p148
      %s151 = sadd.s32 %s150, 1
      %p154 = scmp.eq.s32.totalorder %s20, 1
      %p155 = scmp.ne.s32.totalorder %s150, %s152
      %p156 = scmp.eq.s32.totalorder %s20, 0
      %p157 = por %p155, %p156
      %p158 = scmp.ne.s32.totalorder %s150, %s152
      %p159 = scmp.eq.s32.totalorder %s25, 1
      %p160 = por %p158, %p159
      %p161 = scmp.ne.s32.totalorder %s152, %s153
      %p162 = scmp.eq.s32.totalorder %s25, 0
      %p163 = por %p161, %p162
      %p164 = scmp.ne.s32.totalorder %s152, %s153
      %p165 = scmp.eq.s32.totalorder %s26, 1
      %p166 = por %p164, %p165
      %p168 = scmp.ne.s32.totalorder %s153, %s167
      %p169 = scmp.eq.s32.totalorder %s26, 0
      %p170 = por %p168, %p169
      %s172 = sadd.s32 %s171, 1
      %p175 = scmp.eq.s32.totalorder %s20, 1
      %p176 = scmp.ne.s32.totalorder %s171, %s173
      %p177 = scmp.eq.s32.totalorder %s20, 0
      %p178 = por %p176, %p177
      %p179 = scmp.ne.s32.totalorder %s171, %s173
      %p180 = scmp.eq.s32.totalorder %s25, 1
      %p181 = por %p179, %p180
      %p182 = scmp.ne.s32.totalorder %s173, %s174
      %p183 = scmp.eq.s32.totalorder %s25, 0
      %p184 = por %p182, %p183
      %p185 = scmp.ne.s32.totalorder %s173, %s174
      %p186 = scmp.eq.s32.totalorder %s26, 1
      %p187 = por %p185, %p186
      %p189 = scmp.ne.s32.totalorder %s174, %s188
      %p190 = scmp.eq.s32.totalorder %s26, 0
      %p191 = por %p189, %p190
      %s193 = sadd.s32 %s192, 1
      %p196 = scmp.eq.s32.totalorder %s20, 1
      %p197 = scmp.ne.s32.totalorder %s192, %s194
      %p198 = scmp.eq.s32.totalorder %s20, 0
      %p199 = por %p197, %p198
      %p200 = scmp.ne.s32.totalorder %s192, %s194
      %p201 = scmp.eq.s32.totalorder %s25, 1
      %p202 = por %p200, %p201
      %p203 = scmp.ne.s32.totalorder %s194, %s195
      %p204 = scmp.eq.s32.totalorder %s25, 0
      %p205 = por %p203, %p204
      %p206 = scmp.ne.s32.totalorder %s194, %s195
      %p207 = scmp.eq.s32.totalorder %s26, 1
      %p208 = por %p206, %p207
      %p210 = scmp.ne.s32.totalorder %s195, %s209
      %p211 = scmp.eq.s32.totalorder %s26, 0
      %p212 = por %p210, %p211
      %s214 = sadd.s32 %s213, 1
      %p217 = scmp.eq.s32.totalorder %s20, 1
      %p218 = scmp.ne.s32.totalorder %s213, %s215
      %p219 = scmp.eq.s32.totalorder %s20, 0
      %p220 = por %p218, %p219
      %p221 = scmp.ne.s32.totalorder %s213, %s215
      %p222 = scmp.eq.s32.totalorder %s25, 1
      %p223 = por %p221, %p222
      %p224 = scmp.ne.s32.totalorder %s215, %s216
      %p225 = scmp.eq.s32.totalorder %s25, 0
      %p226 = por %p224, %p225
      %p227 = scmp.ne.s32.totalorder %s215, %s216
      %p228 = scmp.eq.s32.totalorder %s26, 1
      %p229 = por %p227, %p228
      %p231 = scmp.ne.s32.totalorder %s216, %s230
      %p232 = scmp.eq.s32.totalorder %s26, 0
      %p233 = por %p231, %p232
      %s235 = sadd.s32 %s234, 1
      %p238 = scmp.eq.s32.totalorder %s20, 1
      %p239 = scmp.ne.s32.totalorder %s234, %s236
      %p240 = scmp.eq.s32.totalorder %s20, 0
      %p241 = por %p239, %p240
      %p242 = scmp.ne.s32.totalorder %s234, %s236
      %p243 = scmp.eq.s32.totalorder %s25, 1
      %p244 = por %p242, %p243
      %p245 = scmp.ne.s32.totalorder %s236, %s237
      %p246 = scmp.eq.s32.totalorder %s25, 0
      %p247 = por %p245, %p246
      %p248 = scmp.ne.s32.totalorder %s236, %s237
      %p249 = scmp.eq.s32.totalorder %s26, 1
      %p250 = por %p248, %p249
      %p252 = scmp.ne.s32.totalorder %s237, %s251
      %p253 = scmp.eq.s32.totalorder %s26, 0
      %p254 = por %p252, %p253
      %s256 = sadd.s32 %s255, 1
      %p259 = scmp.eq.s32.totalorder %s20, 1
      %p260 = scmp.ne.s32.totalorder %s255, %s257
      %p261 = scmp.eq.s32.totalorder %s20, 0
      %p262 = por %p260, %p261
      %p263 = scmp.ne.s32.totalorder %s255, %s257
      %p264 = scmp.eq.s32.totalorder %s25, 1
      %p265 = por %p263, %p264
      %p266 = scmp.ne.s32.totalorder %s257, %s258
      %p267 = scmp.eq.s32.totalorder %s25, 0
      %p268 = por %p266, %p267
      %p269 = scmp.ne.s32.totalorder %s257, %s258
      %p270 = scmp.eq.s32.totalorder %s26, 1
      %p271 = por %p269, %p270
      %p273 = scmp.ne.s32.totalorder %s258, %s272
      %p274 = scmp.eq.s32.totalorder %s26, 0
      %p275 = por %p273, %p274
      %s276 = ssub.s32 %s27, %s39
      %s277 = ssub.s32 %s28, %s35
      %s278 = sor.u32 %s276, %s277
      %p279 = scmp.eq.s32.totalorder %s278, 0
      %s281 = sadd.s32 %s280, 1
      %s282 = scalar_select %p279, %s280, %s281
      %p285 = pneg %p279
      %p286 = scmp.eq.s32.totalorder %s20, 1
      %p287 = por %p285, %p286
      %p288 = scmp.ne.s32.totalorder %s280, %s283
      %p289 = scmp.eq.s32.totalorder %s20, 0
      %p290 = por %p288, %p289
      %p291 = scmp.ne.s32.totalorder %s280, %s283
      %p292 = scmp.eq.s32.totalorder %s25, 1
      %p293 = por %p291, %p292
      %p294 = scmp.ne.s32.totalorder %s283, %s284
      %p295 = scmp.eq.s32.totalorder %s25, 0
      %p296 = por %p294, %p295
      %p297 = scmp.ne.s32.totalorder %s283, %s284
      %p298 = scmp.eq.s32.totalorder %s26, 1
      %p299 = por %p297, %p298
      %p301 = scmp.ne.s32.totalorder %s284, %s300
      %p302 = scmp.eq.s32.totalorder %s26, 0
      %p303 = por %p301, %p302
      %p304 = scmp.le.s32.totalorder 1, %s20
      %p305 = scmp.lt.s32.totalorder %s20, 3
      %p306 = pnand %p304, %p305
      %p307 = pneg %p306
      // Predicated region
      $region9: #{tpu_custom_call.1} parent=5 // pred_check
        _
      $region10: #{tpu_custom_call.1} parent=5 // pred_check_branch
        %309 = sbr.rel (%p306) target = $region12
      $region11: #{tpu_custom_call.1} parent=5 // pred_region
        %s310 = ssub.s32 %s20, 1
        // Predicated region
        $region13: #{tpu_custom_call.1} parent=11 // pred_check
          %p311 = pneg %p79
        $region14: #{tpu_custom_call.1} parent=11 // pred_check_branch
          %313 = sbr.rel (%p311) target = $region16
        $region15: #{tpu_custom_call.1} parent=11 // pred_region
          _
        $region16: #{tpu_custom_call.1} parent=11 // pred_fallthru
          _
        // Predicated region
        $region17: #{tpu_custom_call.1} parent=11 // pred_check
          %p314 = pneg %p100
        $region18: #{tpu_custom_call.1} parent=11 // pred_check_branch
          %316 = sbr.rel (%p314) target = $region20
        $region19: #{tpu_custom_call.1} parent=11 // pred_region
          _
        $region20: #{tpu_custom_call.1} parent=11 // pred_fallthru
          _
        // Predicated region
        $region21: #{tpu_custom_call.1} parent=11 // pred_check
          %p317 = pneg %p121
        $region22: #{tpu_custom_call.1} parent=11 // pred_check_branch
          %319 = sbr.rel (%p317) target = $region24
        $region23: #{tpu_custom_call.1} parent=11 // pred_region
          _
        $region24: #{tpu_custom_call.1} parent=11 // pred_fallthru
          _
        // Predicated region
        $region25: #{tpu_custom_call.1} parent=11 // pred_check
          %p320 = pneg %p142
        $region26: #{tpu_custom_call.1} parent=11 // pred_check_branch
          %322 = sbr.rel (%p320) target = $region28
        $region27: #{tpu_custom_call.1} parent=11 // pred_region
          _
        $region28: #{tpu_custom_call.1} parent=11 // pred_fallthru
          _
        // Predicated region
        $region29: #{tpu_custom_call.1} parent=11 // pred_check
          %p323 = pneg %p163
        $region30: #{tpu_custom_call.1} parent=11 // pred_check_branch
          %325 = sbr.rel (%p323) target = $region32
        $region31: #{tpu_custom_call.1} parent=11 // pred_region
          _
        $region32: #{tpu_custom_call.1} parent=11 // pred_fallthru
          _
        // Predicated region
        $region33: #{tpu_custom_call.1} parent=11 // pred_check
          %p326 = pneg %p184
        $region34: #{tpu_custom_call.1} parent=11 // pred_check_branch
          %328 = sbr.rel (%p326) target = $region36
        $region35: #{tpu_custom_call.1} parent=11 // pred_region
          _
        $region36: #{tpu_custom_call.1} parent=11 // pred_fallthru
          _
        // Predicated region
        $region37: #{tpu_custom_call.1} parent=11 // pred_check
          %p329 = pneg %p205
        $region38: #{tpu_custom_call.1} parent=11 // pred_check_branch
          %331 = sbr.rel (%p329) target = $region40
        $region39: #{tpu_custom_call.1} parent=11 // pred_region
          _
        $region40: #{tpu_custom_call.1} parent=11 // pred_fallthru
          _
        // Predicated region
        $region41: #{tpu_custom_call.1} parent=11 // pred_check
          %p332 = pneg %p226
        $region42: #{tpu_custom_call.1} parent=11 // pred_check_branch
          %334 = sbr.rel (%p332) target = $region44
        $region43: #{tpu_custom_call.1} parent=11 // pred_region
          _
        $region44: #{tpu_custom_call.1} parent=11 // pred_fallthru
          _
        // Predicated region
        $region45: #{tpu_custom_call.1} parent=11 // pred_check
          %p335 = pneg %p247
        $region46: #{tpu_custom_call.1} parent=11 // pred_check_branch
          %337 = sbr.rel (%p335) target = $region48
        $region47: #{tpu_custom_call.1} parent=11 // pred_region
          _
        $region48: #{tpu_custom_call.1} parent=11 // pred_fallthru
          _
        // Predicated region
        $region49: #{tpu_custom_call.1} parent=11 // pred_check
          %p338 = pneg %p268
        $region50: #{tpu_custom_call.1} parent=11 // pred_check_branch
          %340 = sbr.rel (%p338) target = $region52
        $region51: #{tpu_custom_call.1} parent=11 // pred_region
          _
        $region52: #{tpu_custom_call.1} parent=11 // pred_fallthru
          _
      $region12: #{tpu_custom_call.1} parent=5 // pred_fallthru
        _
      %p341 = scmp.lt.s32.totalorder %s20, 2
      // Predicated region
      $region53: #{tpu_custom_call.1} parent=5 // pred_check
        %p342 = pneg %p341
      $region54: #{tpu_custom_call.1} parent=5 // pred_check_branch
        %344 = sbr.rel (%p342) target = $region56
      $region55: #{tpu_custom_call.1} parent=5 // pred_region
        // Predicated region
        $region57: #{tpu_custom_call.1} parent=55 // pred_check
          %p345 = pneg %p52
        $region58: #{tpu_custom_call.1} parent=55 // pred_check_branch
          %347 = sbr.rel (%p345) target = $region60
        $region59: #{tpu_custom_call.1} parent=55 // pred_region
          %p348 = scmp.lt.s32.totalorder %s27, 1
          %s349 = scalar_select %p348, %s27, 1
          %s350 = smul.addr %s349, 44
          %s351 = smul.addr %s350, 8
          %s352 = scalar_lea.vmem %s0, %s351
        $region60: #{tpu_custom_call.1} parent=55 // pred_fallthru
          _
      $region56: #{tpu_custom_call.1} parent=5 // pred_fallthru
        _
      %p353 = scmp.le.s32.totalorder 1, %s20
      %p354 = scmp.lt.s32.totalorder %s20, 3
      %p355 = pnand %p353, %p354
      %p356 = pneg %p355
      // Predicated region
      $region61: #{tpu_custom_call.1} parent=5 // pred_check
        _
      $region62: #{tpu_custom_call.1} parent=5 // pred_check_branch
        %358 = sbr.rel (%p355) target = $region64
      $region63: #{tpu_custom_call.1} parent=5 // pred_region
        %s359 = ssub.s32 %s20, 1
        %p360 = scmp.lt.s32.totalorder %s29, 1
        %s361 = scalar_select %p360, %s29, 1
        %s362 = smul.addr %s361, 44
        %s363 = smul.addr %s362, 8
        %s364 = scalar_lea.vmem %s0, %s363
        %p365 = pneg %p58
        %p366 = pneg %p55
        %p367 = pneg %p79
        %p368 = pneg %p76
        %p369 = pneg %p100
        %p370 = pneg %p97
        %p371 = pneg %p121
        %p372 = pneg %p118
        %p373 = pneg %p142
        %p374 = pneg %p139
        %p375 = pneg %p163
        %p376 = pneg %p160
        %p377 = pneg %p184
        %p378 = pneg %p181
        %p379 = pneg %p205
        %p380 = pneg %p202
        %p381 = pneg %p226
        %p382 = pneg %p223
        %p383 = pneg %p247
        %p384 = pneg %p244
        %p385 = pneg %p268
        %p386 = pneg %p265
        %p387 = pneg %p296
        %p388 = pneg %p293
        %s389 = sand.u32 %s283, 1
        %s390 = scalar_lea.sflag [#allocation6], %s389
        %s391 = sand.u32 %s283, 1
        %s392 = smul.addr %s391, 256
        %s393 = scalar_lea.vmem [#allocation5], %s392
        %p394 = scmp.lt.s32.totalorder %s29, 1
        %s395 = scalar_select %p394, %s29, 1
        %s396 = smul.addr %s395, 44
        %s397 = smul.addr %s396, 8
        %s398 = scalar_lea.vmem %s0, %s397
        %s399 = smul.u32 16, %s30
        %s401 = smul.u32 %s30, 16
        %s402 = smul.u32 %s401, 16
        %s403 = scalar_lea.vmem %s398, %s402
        %v404 = vld [vmem:[%s403] sm:$0xff]
        %v405 = vld [vmem:[%s403 + $0x8] sm:$0xff]
        %v406 = vld [vmem:[%s403 + $0x10] sm:$0xff]
        %v407 = vld [vmem:[%s403 + $0x18] sm:$0xff]
        %v408 = vld [vmem:[%s403 + $0x20] sm:$0xff]
        %v409 = vld [vmem:[%s403 + $0x28] sm:$0xff]
        %v410 = vld [vmem:[%s403 + $0x30] sm:$0xff]
        %v411 = vld [vmem:[%s403 + $0x38] sm:$0xff]
        %v412 = vld [vmem:[%s403 + $0x40] sm:$0xff]
        %v413 = vld [vmem:[%s403 + $0x48] sm:$0xff]
        %v414 = vld [vmem:[%s403 + $0x50] sm:$0xff]
        %v415 = vld [vmem:[%s403 + $0x58] sm:$0xff]
        %v416 = vld [vmem:[%s403 + $0x60] sm:$0xff]
        %v417 = vld [vmem:[%s403 + $0x68] sm:$0xff]
        %v418 = vld [vmem:[%s403 + $0x70] sm:$0xff]
        %v419 = vld [vmem:[%s403 + $0x78] sm:$0xff]
        %v420 = vld [vmem:[%s403 + $0x80] sm:$0xff]
        %v421 = vld [vmem:[%s403 + $0x88] sm:$0xff]
        %v422 = vld [vmem:[%s403 + $0x90] sm:$0xff]
        %v423 = vld [vmem:[%s403 + $0x98] sm:$0xff]
        %v424 = vld [vmem:[%s403 + $0xa0] sm:$0xff]
        %v425 = vld [vmem:[%s403 + $0xa8] sm:$0xff]
        %v426 = vld [vmem:[%s403 + $0xb0] sm:$0xff]
        %v427 = vld [vmem:[%s403 + $0xb8] sm:$0xff]
        %v428 = vld [vmem:[%s403 + $0xc0] sm:$0xff]
        %v429 = vld [vmem:[%s403 + $0xc8] sm:$0xff]
        %v430 = vld [vmem:[%s403 + $0xd0] sm:$0xff]
        %v431 = vld [vmem:[%s403 + $0xd8] sm:$0xff]
        %v432 = vld [vmem:[%s403 + $0xe0] sm:$0xff]
        %v433 = vld [vmem:[%s403 + $0xe8] sm:$0xff]
        %v434 = vld [vmem:[%s403 + $0xf0] sm:$0xff]
        %v435 = vld [vmem:[%s403 + $0xf8] sm:$0xff]
        %v436 = vld [vmem:[%s403 + $0x100] sm:$0xff]
        %v437 = vld [vmem:[%s403 + $0x108] sm:$0xff]
        %v438 = vld [vmem:[%s403 + $0x110] sm:$0xff]
        %v439 = vld [vmem:[%s403 + $0x118] sm:$0xff]
        %v440 = vld [vmem:[%s403 + $0x120] sm:$0xff]
        %v441 = vld [vmem:[%s403 + $0x128] sm:$0xff]
        %v442 = vld [vmem:[%s403 + $0x130] sm:$0xff]
        %v443 = vld [vmem:[%s403 + $0x138] sm:$0xff]
        %v444 = vld [vmem:[%s403 + $0x140] sm:$0xff]
        %v445 = vld [vmem:[%s403 + $0x148] sm:$0xff]
        %v446 = vld [vmem:[%s403 + $0x150] sm:$0xff]
        %v447 = vld [vmem:[%s403 + $0x158] sm:$0xff]
        %v448 = vpack.c.bf16 %v405, %v404
        %v449 = vpack.c.bf16 %v407, %v406
        %v450 = vpack.c.bf16 %v409, %v408
        %v451 = vpack.c.bf16 %v411, %v410
        %v452 = vpack.c.bf16 %v413, %v412
        %v453 = vpack.c.bf16 %v415, %v414
        %v454 = vpack.c.bf16 %v417, %v416
        %v455 = vpack.c.bf16 %v419, %v418
        %v456 = vpack.c.bf16 %v421, %v420
        %v457 = vpack.c.bf16 %v423, %v422
        %v458 = vpack.c.bf16 %v425, %v424
        %v459 = vpack.c.bf16 %v427, %v426
        %v460 = vpack.c.bf16 %v429, %v428
        %v461 = vpack.c.bf16 %v431, %v430
        %v462 = vpack.c.bf16 %v433, %v432
        %v463 = vpack.c.bf16 %v435, %v434
        %v464 = vpack.c.bf16 %v437, %v436
        %v465 = vpack.c.bf16 %v439, %v438
        %v466 = vpack.c.bf16 %v441, %v440
        %v467 = vpack.c.bf16 %v443, %v442
        %v468 = vpack.c.bf16 %v445, %v444
        %v469 = vpack.c.bf16 %v447, %v446
        %v470 = vld [vmem:[%s1] sm:$0x3f]
        %v471 = vld [vmem:[%s2] sm:$0x7]
        %v473 = vlaneseq
        %v474 = vshrl.u32 %v473, 7
        %v475 = vsub.s32 0, %v474
        %v476 = vrot.slane %v471, %v475
        %v477 = vlaneseq
        %v478 = vshrl.u32 %v477, 7
        %v479 = vsub.s32 1, %v478
        %v480 = vrot.slane %v471, %v479
        %v481 = vlaneseq
        %v482 = vshrl.u32 %v481, 7
        %v483 = vsub.s32 2, %v482
        %v484 = vrot.slane %v471, %v483
        %v489 = vcombine.high %v470, %v470
        %v491 = vunpack.c.l.s4 1983009808
        %v492 = vunpack.c.0.s8 %v491
        %v493 = vlaneseq
        %v494 = vshrl.u32 %v493, 7
        %v495 = vsub.s32 %v492, %v494
        %v496 = vrot.slane %v470, %v495
        %v498 = vunpack.c.l.s4 1983009808
        %v499 = vunpack.c.0.s8 %v498
        %v500 = vlaneseq
        %v501 = vshrl.u32 %v500, 7
        %v502 = vsub.s32 %v499, %v501
        %v503 = vrot.slane %v489, %v502
        %v504 = vcombine.high %v496, %v496
        %vm505 = vcmask 31744
        %v507 = vsel %vm505, %v448, 0
        %v510 = vsel %vm505, %v449, 0
        %v513 = vsel %vm505, %v450, 0
        %v516 = vsel %vm505, %v451, 0
        %v519 = vsel %vm505, %v452, 0
        %v522 = vsel %vm505, %v453, 0
        %v525 = vsel %vm505, %v454, 0
        %v528 = vsel %vm505, %v455, 0
        %v531 = vsel %vm505, %v456, 0
        %v534 = vsel %vm505, %v457, 0
        %v537 = vsel %vm505, %v458, 0
        %v540 = vsel %vm505, %v459, 0
        %v543 = vsel %vm505, %v460, 0
        %v546 = vsel %vm505, %v461, 0
        %v549 = vsel %vm505, %v462, 0
        %v552 = vsel %vm505, %v463, 0
        %v555 = vsel %vm505, %v464, 0
        %v558 = vsel %vm505, %v465, 0
        %v561 = vsel %vm505, %v466, 0
        %v564 = vsel %vm505, %v467, 0
        %v567 = vsel %vm505, %v468, 0
        %v570 = vsel %vm505, %v469, 0
        %vm572 = vcmask 1041408
        %v574 = vsel %vm572, %v496, 0
        %v577 = vsel %vm572, %v504, 0
        %v580 = vsel %vm572, %v503, 0
        %582 = vmatprep.subr.bf16.mxu0 %v577
        %583 = vmatpush1.bf16.msra.mxu0 %v574
        %584 = vmatprep.subr.bf16.mxu0 0
        %585 = vmatpush1.bf16.msra.mxu0 0
        %586 = vmatprep.subr.bf16.mxu0 0
        %587 = vmatpush1.bf16.msra.mxu0 0
        %588 = vmatprep.subr.bf16.mxu0 0
        %589 = vmatpush1.bf16.msra.mxu0 0
        %590 = vmatprep.subr.bf16.mxu0 0
        %591 = vmatpush1.bf16.msra.mxu0 0
        %592 = vmatprep.subr.bf16.mxu0 0
        %593 = vmatpush1.bf16.msra.mxu0 0
        %594 = vmatprep.subr.bf16.mxu0 0
        %595 = vmatpush1.bf16.msra.mxu0 0
        %596 = vmatprep.subr.bf16.mxu0 0
        %597 = vmatpush1.bf16.msra.mxu0 0
        %598 = vmatprep.subr.bf16.mxu0 0
        %599 = vmatpush1.bf16.msra.mxu0 0
        %600 = vmatprep.subr.bf16.mxu0 0
        %601 = vmatpush1.bf16.msra.mxu0 0
        %602 = vmatprep.subr.bf16.mxu0 0
        %603 = vmatpush1.bf16.msra.mxu0 0
        %604 = vmatprep.subr.bf16.mxu0 0
        %605 = vmatpush1.bf16.msra.mxu0 0
        %606 = vmatprep.subr.bf16.mxu0 0
        %607 = vmatpush1.bf16.msra.mxu0 0
        %608 = vmatprep.subr.bf16.mxu0 0
        %609 = vmatpush1.bf16.msra.mxu0 0
        %610 = vmatprep.subr.bf16.mxu0 0
        %611 = vmatpush1.bf16.msra.mxu0 0
        %612 = vmatprep.subr.bf16.mxu0 0
        %613 = vmatpush1.bf16.msra.mxu0 0
        %614 = vmatprep.mubr.bf16.mxu0 0
        %615 = vmatmul.mubr.bf16.gmra.mrb[0].mxu0 %v507
        %v616 = vpop.f32.mrb[0].mxu0
        %v617 = vadd.f32 %v476, %v616
        %v618 = vpop.f32.mrb[0].mxu0
        %v619 = vadd.f32 %v480, %v618
        %v620 = vpop.f32.mrb[0].mxu0
        %v621 = vadd.f32 %v476, %v620
        %v622 = vpop.f32.mrb[0].mxu0
        %v623 = vadd.f32 %v480, %v622
        %624 = vmatprep.mubr.bf16.mxu0 0
        %625 = vmatmul.mubr.bf16.gmra.mrb[0].mxu0 %v510
        %v626 = vpop.f32.mrb[0].mxu0
        %v627 = vadd.f32 %v476, %v626
        %v628 = vpop.f32.mrb[0].mxu0
        %v629 = vadd.f32 %v480, %v628
        %v630 = vpop.f32.mrb[0].mxu0
        %v631 = vadd.f32 %v476, %v630
        %v632 = vpop.f32.mrb[0].mxu0
        %v633 = vadd.f32 %v480, %v632
        %634 = vmatprep.mubr.bf16.mxu0 0
        %635 = vmatmul.mubr.bf16.gmra.mrb[0].mxu0 %v513
        %v636 = vpop.f32.mrb[0].mxu0
        %v637 = vadd.f32 %v476, %v636
        %v638 = vpop.f32.mrb[0].mxu0
        %v639 = vadd.f32 %v480, %v638
        %v640 = vpop.f32.mrb[0].mxu0
        %v641 = vadd.f32 %v476, %v640
        %v642 = vpop.f32.mrb[0].mxu0
        %v643 = vadd.f32 %v480, %v642
        %644 = vmatprep.mubr.bf16.mxu0 0
        %645 = vmatmul.mubr.bf16.gmra.mrb[0].mxu0 %v516
        %v646 = vpop.f32.mrb[0].mxu0
        %v647 = vadd.f32 %v476, %v646
        %v648 = vpop.f32.mrb[0].mxu0
        %v649 = vadd.f32 %v480, %v648
        %v650 = vpop.f32.mrb[0].mxu0
        %v651 = vadd.f32 %v476, %v650
        %v652 = vpop.f32.mrb[0].mxu0
        %v653 = vadd.f32 %v480, %v652
        %654 = vmatprep.mubr.bf16.mxu0 0
        %655 = vmatmul.mubr.bf16.gmra.mrb[0].mxu0 %v519
        %v656 = vpop.f32.mrb[0].mxu0
        %v657 = vadd.f32 %v476, %v656
        %v658 = vpop.f32.mrb[0].mxu0
        %v659 = vadd.f32 %v480, %v658
        %v660 = vpop.f32.mrb[0].mxu0
        %v661 = vadd.f32 %v476, %v660
        %v662 = vpop.f32.mrb[0].mxu0
        %v663 = vadd.f32 %v480, %v662
        %664 = vmatprep.mubr.bf16.mxu0 0
        %665 = vmatmul.mubr.bf16.gmra.mrb[0].mxu0 %v522
        %v666 = vpop.f32.mrb[0].mxu0
        %v667 = vadd.f32 %v476, %v666
        %v668 = vpop.f32.mrb[0].mxu0
        %v669 = vadd.f32 %v480, %v668
        %v670 = vpop.f32.mrb[0].mxu0
        %v671 = vadd.f32 %v476, %v670
        %v672 = vpop.f32.mrb[0].mxu0
        %v673 = vadd.f32 %v480, %v672
        %674 = vmatprep.mubr.bf16.mxu0 0
        %675 = vmatmul.mubr.bf16.gmra.mrb[0].mxu0 %v525
        %v676 = vpop.f32.mrb[0].mxu0
        %v677 = vadd.f32 %v476, %v676
        %v678 = vpop.f32.mrb[0].mxu0
        %v679 = vadd.f32 %v480, %v678
        %v680 = vpop.f32.mrb[0].mxu0
        %v681 = vadd.f32 %v476, %v680
        %v682 = vpop.f32.mrb[0].mxu0
        %v683 = vadd.f32 %v480, %v682
        %684 = vmatprep.mubr.bf16.mxu0 0
        %685 = vmatmul.mubr.bf16.gmra.mrb[0].mxu0 %v528
        %v686 = vpop.f32.mrb[0].mxu0
        %v687 = vadd.f32 %v476, %v686
        %v688 = vpop.f32.mrb[0].mxu0
        %v689 = vadd.f32 %v480, %v688
        %v690 = vpop.f32.mrb[0].mxu0
        %v691 = vadd.f32 %v476, %v690
        %v692 = vpop.f32.mrb[0].mxu0
        %v693 = vadd.f32 %v480, %v692
        %694 = vmatprep.mubr.bf16.mxu0 0
        %695 = vmatmul.mubr.bf16.gmra.mrb[0].mxu0 %v531
        %v696 = vpop.f32.mrb[0].mxu0
        %v697 = vadd.f32 %v476, %v696
        %v698 = vpop.f32.mrb[0].mxu0
        %v699 = vadd.f32 %v480, %v698
        %v700 = vpop.f32.mrb[0].mxu0
        %v701 = vadd.f32 %v476, %v700
        %v702 = vpop.f32.mrb[0].mxu0
        %v703 = vadd.f32 %v480, %v702
        %704 = vmatprep.mubr.bf16.mxu0 0
        %705 = vmatmul.mubr.bf16.gmra.mrb[0].mxu0 %v534
        %v706 = vpop.f32.mrb[0].mxu0
        %v707 = vadd.f32 %v476, %v706
        %v708 = vpop.f32.mrb[0].mxu0
        %v709 = vadd.f32 %v480, %v708
        %v710 = vpop.f32.mrb[0].mxu0
        %v711 = vadd.f32 %v476, %v710
        %v712 = vpop.f32.mrb[0].mxu0
        %v713 = vadd.f32 %v480, %v712
        %714 = vmatprep.mubr.bf16.mxu0 0
        %715 = vmatmul.mubr.bf16.gmra.mrb[0].mxu0 %v537
        %v716 = vpop.f32.mrb[0].mxu0
        %v717 = vadd.f32 %v476, %v716
        %v718 = vpop.f32.mrb[0].mxu0
        %v719 = vadd.f32 %v480, %v718
        %v720 = vpop.f32.mrb[0].mxu0
        %v721 = vadd.f32 %v476, %v720
        %v722 = vpop.f32.mrb[0].mxu0
        %v723 = vadd.f32 %v480, %v722
        %724 = vmatprep.mubr.bf16.mxu0 0
        %725 = vmatmul.mubr.bf16.gmra.mrb[0].mxu0 %v540
        %v726 = vpop.f32.mrb[0].mxu0
        %v727 = vadd.f32 %v476, %v726
        %v728 = vpop.f32.mrb[0].mxu0
        %v729 = vadd.f32 %v480, %v728
        %v730 = vpop.f32.mrb[0].mxu0
        %v731 = vadd.f32 %v476, %v730
        %v732 = vpop.f32.mrb[0].mxu0
        %v733 = vadd.f32 %v480, %v732
        %734 = vmatprep.mubr.bf16.mxu0 0
        %735 = vmatmul.mubr.bf16.gmra.mrb[0].mxu0 %v543
        %v736 = vpop.f32.mrb[0].mxu0
        %v737 = vadd.f32 %v476, %v736
        %v738 = vpop.f32.mrb[0].mxu0
        %v739 = vadd.f32 %v480, %v738
        %v740 = vpop.f32.mrb[0].mxu0
        %v741 = vadd.f32 %v476, %v740
        %v742 = vpop.f32.mrb[0].mxu0
        %v743 = vadd.f32 %v480, %v742
        %744 = vmatprep.mubr.bf16.mxu0 0
        %745 = vmatmul.mubr.bf16.gmra.mrb[0].mxu0 %v546
        %v746 = vpop.f32.mrb[0].mxu0
        %v747 = vadd.f32 %v476, %v746
        %v748 = vpop.f32.mrb[0].mxu0
        %v749 = vadd.f32 %v480, %v748
        %v750 = vpop.f32.mrb[0].mxu0
        %v751 = vadd.f32 %v476, %v750
        %v752 = vpop.f32.mrb[0].mxu0
        %v753 = vadd.f32 %v480, %v752
        %754 = vmatprep.mubr.bf16.mxu0 0
        %755 = vmatmul.mubr.bf16.gmra.mrb[0].mxu0 %v549
        %v756 = vpop.f32.mrb[0].mxu0
        %v757 = vadd.f32 %v476, %v756
        %v758 = vpop.f32.mrb[0].mxu0
        %v759 = vadd.f32 %v480, %v758
        %v760 = vpop.f32.mrb[0].mxu0
        %v761 = vadd.f32 %v476, %v760
        %v762 = vpop.f32.mrb[0].mxu0
        %v763 = vadd.f32 %v480, %v762
        %764 = vmatprep.mubr.bf16.mxu0 0
        %765 = vmatmul.mubr.bf16.gmra.mrb[0].mxu0 %v552
        %v766 = vpop.f32.mrb[0].mxu0
        %v767 = vadd.f32 %v476, %v766
        %v768 = vpop.f32.mrb[0].mxu0
        %v769 = vadd.f32 %v480, %v768
        %v770 = vpop.f32.mrb[0].mxu0
        %v771 = vadd.f32 %v476, %v770
        %v772 = vpop.f32.mrb[0].mxu0
        %v773 = vadd.f32 %v480, %v772
        %774 = vmatprep.mubr.bf16.mxu0 0
        %775 = vmatmul.mubr.bf16.gmra.mrb[0].mxu0 %v555
        %v776 = vpop.f32.mrb[0].mxu0
        %v777 = vadd.f32 %v476, %v776
        %v778 = vpop.f32.mrb[0].mxu0
        %v779 = vadd.f32 %v480, %v778
        %v780 = vpop.f32.mrb[0].mxu0
        %v781 = vadd.f32 %v476, %v780
        %v782 = vpop.f32.mrb[0].mxu0
        %v783 = vadd.f32 %v480, %v782
        %784 = vmatprep.mubr.bf16.mxu0 0
        %785 = vmatmul.mubr.bf16.gmra.mrb[0].mxu0 %v558
        %v786 = vpop.f32.mrb[0].mxu0
        %v787 = vadd.f32 %v476, %v786
        %v788 = vpop.f32.mrb[0].mxu0
        %v789 = vadd.f32 %v480, %v788
        %v790 = vpop.f32.mrb[0].mxu0
        %v791 = vadd.f32 %v476, %v790
        %v792 = vpop.f32.mrb[0].mxu0
        %v793 = vadd.f32 %v480, %v792
        %794 = vmatprep.mubr.bf16.mxu0 0
        %795 = vmatmul.mubr.bf16.gmra.mrb[0].mxu0 %v561
        %v796 = vpop.f32.mrb[0].mxu0
        %v797 = vadd.f32 %v476, %v796
        %v798 = vpop.f32.mrb[0].mxu0
        %v799 = vadd.f32 %v480, %v798
        %v800 = vpop.f32.mrb[0].mxu0
        %v801 = vadd.f32 %v476, %v800
        %v802 = vpop.f32.mrb[0].mxu0
        %v803 = vadd.f32 %v480, %v802
        %804 = vmatprep.mubr.bf16.mxu0 0
        %805 = vmatmul.mubr.bf16.gmra.mrb[0].mxu0 %v564
        %v806 = vpop.f32.mrb[0].mxu0
        %v807 = vadd.f32 %v476, %v806
        %v808 = vpop.f32.mrb[0].mxu0
        %v809 = vadd.f32 %v480, %v808
        %v810 = vpop.f32.mrb[0].mxu0
        %v811 = vadd.f32 %v476, %v810
        %v812 = vpop.f32.mrb[0].mxu0
        %v813 = vadd.f32 %v480, %v812
        %814 = vmatprep.mubr.bf16.mxu0 0
        %815 = vmatmul.mubr.bf16.gmra.mrb[0].mxu0 %v567
        %v816 = vpop.f32.mrb[0].mxu0
        %v817 = vadd.f32 %v476, %v816
        %v818 = vpop.f32.mrb[0].mxu0
        %v819 = vadd.f32 %v480, %v818
        %v820 = vpop.f32.mrb[0].mxu0
        %v821 = vadd.f32 %v476, %v820
        %v822 = vpop.f32.mrb[0].mxu0
        %v823 = vadd.f32 %v480, %v822
        %824 = vmatprep.mubr.bf16.mxu0 0
        %825 = vmatmul.mubr.bf16.gmra.mrb[0].mxu0 %v570
        %v826 = vpop.f32.mrb[0].mxu0
        %v827 = vadd.f32 %v476, %v826
        %v828 = vpop.f32.mrb[0].mxu0
        %v829 = vadd.f32 %v480, %v828
        %v830 = vpop.f32.mrb[0].mxu0
        %v831 = vadd.f32 %v476, %v830
        %v832 = vpop.f32.mrb[0].mxu0
        %v833 = vadd.f32 %v480, %v832
        %834 = vdwg.mxu0
        %835 = vmatprep.subr.bf16.mxu0 0
        %836 = vmatpush1.bf16.msra.mxu0 %v580
        %837 = vmatprep.subr.bf16.mxu0 0
        %838 = vmatpush1.bf16.msra.mxu0 0
        %839 = vmatprep.subr.bf16.mxu0 0
        %840 = vmatpush1.bf16.msra.mxu0 0
        %841 = vmatprep.subr.bf16.mxu0 0
        %842 = vmatpush1.bf16.msra.mxu0 0
        %843 = vmatprep.subr.bf16.mxu0 0
        %844 = vmatpush1.bf16.msra.mxu0 0
        %845 = vmatprep.subr.bf16.mxu0 0
        %846 = vmatpush1.bf16.msra.mxu0 0
        %847 = vmatprep.subr.bf16.mxu0 0
        %848 = vmatpush1.bf16.msra.mxu0 0
        %849 = vmatprep.subr.bf16.mxu0 0
        %850 = vmatpush1.bf16.msra.mxu0 0
        %851 = vmatprep.subr.bf16.mxu0 0
        %852 = vmatpush1.bf16.msra.mxu0 0
        %853 = vmatprep.subr.bf16.mxu0 0
        %854 = vmatpush1.bf16.msra.mxu0 0
        %855 = vmatprep.subr.bf16.mxu0 0
        %856 = vmatpush1.bf16.msra.mxu0 0
        %857 = vmatprep.subr.bf16.mxu0 0
        %858 = vmatpush1.bf16.msra.mxu0 0
        %859 = vmatprep.subr.bf16.mxu0 0
        %860 = vmatpush1.bf16.msra.mxu0 0
        %861 = vmatprep.subr.bf16.mxu0 0
        %862 = vmatpush1.bf16.msra.mxu0 0
        %863 = vmatprep.subr.bf16.mxu0 0
        %864 = vmatpush1.bf16.msra.mxu0 0
        %865 = vmatprep.subr.bf16.mxu0 0
        %866 = vmatpush1.bf16.msra.mxu0 0
        %867 = vmatprep.mubr.bf16.mxu0 0
        %868 = vmatmul.mubr.bf16.gmra.mrb[0].mxu0 %v507
        %v869 = vpop.f32.mrb[0].mxu0
        %v870 = vadd.f32 %v484, %v869
        %v871 = vpop.f32.mrb[0].mxu0
        %v872 = vpop.f32.mrb[0].mxu0
        %v873 = vadd.f32 %v484, %v872
        %v874 = vpop.f32.mrb[0].mxu0
        %875 = vmatprep.mubr.bf16.mxu0 0
        %876 = vmatmul.mubr.bf16.gmra.mrb[0].mxu0 %v510
        %v877 = vpop.f32.mrb[0].mxu0
        %v878 = vadd.f32 %v484, %v877
        %v879 = vpop.f32.mrb[0].mxu0
        %v880 = vpop.f32.mrb[0].mxu0
        %v881 = vadd.f32 %v484, %v880
        %v882 = vpop.f32.mrb[0].mxu0
        %883 = vmatprep.mubr.bf16.mxu0 0
        %884 = vmatmul.mubr.bf16.gmra.mrb[0].mxu0 %v513
        %v885 = vpop.f32.mrb[0].mxu0
        %v886 = vadd.f32 %v484, %v885
        %v887 = vpop.f32.mrb[0].mxu0
        %v888 = vpop.f32.mrb[0].mxu0
        %v889 = vadd.f32 %v484, %v888
        %v890 = vpop.f32.mrb[0].mxu0
        %891 = vmatprep.mubr.bf16.mxu0 0
        %892 = vmatmul.mubr.bf16.gmra.mrb[0].mxu0 %v516
        %v893 = vpop.f32.mrb[0].mxu0
        %v894 = vadd.f32 %v484, %v893
        %v895 = vpop.f32.mrb[0].mxu0
        %v896 = vpop.f32.mrb[0].mxu0
        %v897 = vadd.f32 %v484, %v896
        %v898 = vpop.f32.mrb[0].mxu0
        %899 = vmatprep.mubr.bf16.mxu0 0
        %900 = vmatmul.mubr.bf16.gmra.mrb[0].mxu0 %v519
        %v901 = vpop.f32.mrb[0].mxu0
        %v902 = vadd.f32 %v484, %v901
        %v903 = vpop.f32.mrb[0].mxu0
        %v904 = vpop.f32.mrb[0].mxu0
        %v905 = vadd.f32 %v484, %v904
        %v906 = vpop.f32.mrb[0].mxu0
        %907 = vmatprep.mubr.bf16.mxu0 0
        %908 = vmatmul.mubr.bf16.gmra.mrb[0].mxu0 %v522
        %v909 = vpop.f32.mrb[0].mxu0
        %v910 = vadd.f32 %v484, %v909
        %v911 = vpop.f32.mrb[0].mxu0
        %v912 = vpop.f32.mrb[0].mxu0
        %v913 = vadd.f32 %v484, %v912
        %v914 = vpop.f32.mrb[0].mxu0
        %915 = vmatprep.mubr.bf16.mxu0 0
        %916 = vmatmul.mubr.bf16.gmra.mrb[0].mxu0 %v525
        %v917 = vpop.f32.mrb[0].mxu0
        %v918 = vadd.f32 %v484, %v917
        %v919 = vpop.f32.mrb[0].mxu0
        %v920 = vpop.f32.mrb[0].mxu0
        %v921 = vadd.f32 %v484, %v920
        %v922 = vpop.f32.mrb[0].mxu0
        %923 = vmatprep.mubr.bf16.mxu0 0
        %924 = vmatmul.mubr.bf16.gmra.mrb[0].mxu0 %v528
        %v925 = vpop.f32.mrb[0].mxu0
        %v926 = vadd.f32 %v484, %v925
        %v927 = vpop.f32.mrb[0].mxu0
        %v928 = vpop.f32.mrb[0].mxu0
        %v929 = vadd.f32 %v484, %v928
        %v930 = vpop.f32.mrb[0].mxu0
        %931 = vmatprep.mubr.bf16.mxu0 0
        %932 = vmatmul.mubr.bf16.gmra.mrb[0].mxu0 %v531
        %v933 = vpop.f32.mrb[0].mxu0
        %v934 = vadd.f32 %v484, %v933
        %v935 = vpop.f32.mrb[0].mxu0
        %v936 = vpop.f32.mrb[0].mxu0
        %v937 = vadd.f32 %v484, %v936
        %v938 = vpop.f32.mrb[0].mxu0
        %939 = vmatprep.mubr.bf16.mxu0 0
        %940 = vmatmul.mubr.bf16.gmra.mrb[0].mxu0 %v534
        %v941 = vpop.f32.mrb[0].mxu0
        %v942 = vadd.f32 %v484, %v941
        %v943 = vpop.f32.mrb[0].mxu0
        %v944 = vpop.f32.mrb[0].mxu0
        %v945 = vadd.f32 %v484, %v944
        %v946 = vpop.f32.mrb[0].mxu0
        %947 = vmatprep.mubr.bf16.mxu0 0
        %948 = vmatmul.mubr.bf16.gmra.mrb[0].mxu0 %v537
        %v949 = vpop.f32.mrb[0].mxu0
        %v950 = vadd.f32 %v484, %v949
        %v951 = vpop.f32.mrb[0].mxu0
        %v952 = vpop.f32.mrb[0].mxu0
        %v953 = vadd.f32 %v484, %v952
        %v954 = vpop.f32.mrb[0].mxu0
        %955 = vmatprep.mubr.bf16.mxu0 0
        %956 = vmatmul.mubr.bf16.gmra.mrb[0].mxu0 %v540
        %v957 = vpop.f32.mrb[0].mxu0
        %v958 = vadd.f32 %v484, %v957
        %v959 = vpop.f32.mrb[0].mxu0
        %v960 = vpop.f32.mrb[0].mxu0
        %v961 = vadd.f32 %v484, %v960
        %v962 = vpop.f32.mrb[0].mxu0
        %963 = vmatprep.mubr.bf16.mxu0 0
        %964 = vmatmul.mubr.bf16.gmra.mrb[0].mxu0 %v543
        %v965 = vpop.f32.mrb[0].mxu0
        %v966 = vadd.f32 %v484, %v965
        %v967 = vpop.f32.mrb[0].mxu0
        %v968 = vpop.f32.mrb[0].mxu0
        %v969 = vadd.f32 %v484, %v968
        %v970 = vpop.f32.mrb[0].mxu0
        %971 = vmatprep.mubr.bf16.mxu0 0
        %972 = vmatmul.mubr.bf16.gmra.mrb[0].mxu0 %v546
        %v973 = vpop.f32.mrb[0].mxu0
        %v974 = vadd.f32 %v484, %v973
        %v975 = vpop.f32.mrb[0].mxu0
        %v976 = vpop.f32.mrb[0].mxu0
        %v977 = vadd.f32 %v484, %v976
        %v978 = vpop.f32.mrb[0].mxu0
        %979 = vmatprep.mubr.bf16.mxu0 0
        %980 = vmatmul.mubr.bf16.gmra.mrb[0].mxu0 %v549
        %v981 = vpop.f32.mrb[0].mxu0
        %v982 = vadd.f32 %v484, %v981
        %v983 = vpop.f32.mrb[0].mxu0
        %v984 = vpop.f32.mrb[0].mxu0
        %v985 = vadd.f32 %v484, %v984
        %v986 = vpop.f32.mrb[0].mxu0
        %987 = vmatprep.mubr.bf16.mxu0 0
        %988 = vmatmul.mubr.bf16.gmra.mrb[0].mxu0 %v552
        %v989 = vpop.f32.mrb[0].mxu0
        %v990 = vadd.f32 %v484, %v989
        %v991 = vpop.f32.mrb[0].mxu0
        %v992 = vpop.f32.mrb[0].mxu0
        %v993 = vadd.f32 %v484, %v992
        %v994 = vpop.f32.mrb[0].mxu0
        %995 = vmatprep.mubr.bf16.mxu0 0
        %996 = vmatmul.mubr.bf16.gmra.mrb[0].mxu0 %v555
        %v997 = vpop.f32.mrb[0].mxu0
        %v998 = vadd.f32 %v484, %v997
        %v999 = vpop.f32.mrb[0].mxu0
        %v1000 = vpop.f32.mrb[0].mxu0
        %v1001 = vadd.f32 %v484, %v1000
        %v1002 = vpop.f32.mrb[0].mxu0
        %1003 = vmatprep.mubr.bf16.mxu0 0
        %1004 = vmatmul.mubr.bf16.gmra.mrb[0].mxu0 %v558
        %v1005 = vpop.f32.mrb[0].mxu0
        %v1006 = vadd.f32 %v484, %v1005
        %v1007 = vpop.f32.mrb[0].mxu0
        %v1008 = vpop.f32.mrb[0].mxu0
        %v1009 = vadd.f32 %v484, %v1008
        %v1010 = vpop.f32.mrb[0].mxu0
        %1011 = vmatprep.mubr.bf16.mxu0 0
        %1012 = vmatmul.mubr.bf16.gmra.mrb[0].mxu0 %v561
        %v1013 = vpop.f32.mrb[0].mxu0
        %v1014 = vadd.f32 %v484, %v1013
        %v1015 = vpop.f32.mrb[0].mxu0
        %v1016 = vpop.f32.mrb[0].mxu0
        %v1017 = vadd.f32 %v484, %v1016
        %v1018 = vpop.f32.mrb[0].mxu0
        %1019 = vmatprep.mubr.bf16.mxu0 0
        %1020 = vmatmul.mubr.bf16.gmra.mrb[0].mxu0 %v564
        %v1021 = vpop.f32.mrb[0].mxu0
        %v1022 = vadd.f32 %v484, %v1021
        %v1023 = vpop.f32.mrb[0].mxu0
        %v1024 = vpop.f32.mrb[0].mxu0
        %v1025 = vadd.f32 %v484, %v1024
        %v1026 = vpop.f32.mrb[0].mxu0
        %1027 = vmatprep.mubr.bf16.mxu0 0
        %1028 = vmatmul.mubr.bf16.gmra.mrb[0].mxu0 %v567
        %v1029 = vpop.f32.mrb[0].mxu0
        %v1030 = vadd.f32 %v484, %v1029
        %v1031 = vpop.f32.mrb[0].mxu0
        %v1032 = vpop.f32.mrb[0].mxu0
        %v1033 = vadd.f32 %v484, %v1032
        %v1034 = vpop.f32.mrb[0].mxu0
        %1035 = vmatprep.mubr.bf16.mxu0 0
        %1036 = vmatmul.mubr.bf16.gmra.mrb[0].mxu0 %v570
        %v1037 = vpop.f32.mrb[0].mxu0
        %v1038 = vadd.f32 %v484, %v1037
        %v1039 = vpop.f32.mrb[0].mxu0
        %v1040 = vpop.f32.mrb[0].mxu0
        %v1041 = vadd.f32 %v484, %v1040
        %v1042 = vpop.f32.mrb[0].mxu0
        %1043 = vdwg.mxu0
        %1044 = vst [vmem:[#allocation2 + $0x8] sm:$0xff] %v617
        %1045 = vst [vmem:[#allocation2 + $0x10] sm:$0xff] %v621
        %1046 = vst [vmem:[#allocation2 + $0x28] sm:$0xff] %v627
        %1047 = vst [vmem:[#allocation2 + $0x30] sm:$0xff] %v631
        %1048 = vst [vmem:[#allocation2 + $0x48] sm:$0xff] %v637
        %1049 = vst [vmem:[#allocation2 + $0x50] sm:$0xff] %v641
        %1050 = vst [vmem:[#allocation2 + $0x68] sm:$0xff] %v647
        %1051 = vst [vmem:[#allocation2 + $0x70] sm:$0xff] %v651
        %1052 = vst [vmem:[#allocation2 + $0x88] sm:$0xff] %v657
        %1053 = vst [vmem:[#allocation2 + $0x90] sm:$0xff] %v661
        %1054 = vst [vmem:[#allocation2 + $0xa8] sm:$0xff] %v667
        %1055 = vst [vmem:[#allocation2 + $0xb0] sm:$0xff] %v671
        %1056 = vst [vmem:[#allocation2 + $0xc8] sm:$0xff] %v677
        %1057 = vst [vmem:[#allocation2 + $0xd0] sm:$0xff] %v681
        %1058 = vst [vmem:[#allocation2 + $0xe8] sm:$0xff] %v687
        %1059 = vst [vmem:[#allocation2 + $0xf0] sm:$0xff] %v691
        %1060 = vst [vmem:[#allocation2 + $0x108] sm:$0xff] %v697
        %1061 = vst [vmem:[#allocation2 + $0x110] sm:$0xff] %v701
        %1062 = vst [vmem:[#allocation2 + $0x128] sm:$0xff] %v707
        %1063 = vst [vmem:[#allocation2 + $0x130] sm:$0xff] %v711
        %1064 = vst [vmem:[#allocation2 + $0x148] sm:$0xff] %v717
        %1065 = vst [vmem:[#allocation2 + $0x150] sm:$0xff] %v721
        %1066 = vst [vmem:[#allocation2 + $0x168] sm:$0xff] %v727
        %1067 = vst [vmem:[#allocation2 + $0x170] sm:$0xff] %v731
        %1068 = vst [vmem:[#allocation2 + $0x188] sm:$0xff] %v737
        %1069 = vst [vmem:[#allocation2 + $0x190] sm:$0xff] %v741
        %1070 = vst [vmem:[#allocation2 + $0x1a8] sm:$0xff] %v747
        %1071 = vst [vmem:[#allocation2 + $0x1b0] sm:$0xff] %v751
        %1072 = vst [vmem:[#allocation2 + $0x1c8] sm:$0xff] %v757
        %1073 = vst [vmem:[#allocation2 + $0x1d0] sm:$0xff] %v761
        %1074 = vst [vmem:[#allocation2 + $0x1e8] sm:$0xff] %v767
        %1075 = vst [vmem:[#allocation2 + $0x1f0] sm:$0xff] %v771
        %1076 = vst [vmem:[#allocation2 + $0x208] sm:$0xff] %v777
        %1077 = vst [vmem:[#allocation2 + $0x210] sm:$0xff] %v781
        %1078 = vst [vmem:[#allocation2 + $0x228] sm:$0xff] %v787
        %1079 = vst [vmem:[#allocation2 + $0x230] sm:$0xff] %v791
        %1080 = vst [vmem:[#allocation2 + $0x248] sm:$0xff] %v797
        %1081 = vst [vmem:[#allocation2 + $0x250] sm:$0xff] %v801
        %1082 = vst [vmem:[#allocation2 + $0x268] sm:$0xff] %v807
        %1083 = vst [vmem:[#allocation2 + $0x270] sm:$0xff] %v811
        %1084 = vst [vmem:[#allocation2 + $0x288] sm:$0xff] %v817
        %1085 = vst [vmem:[#allocation2 + $0x290] sm:$0xff] %v821
        %1086 = vst [vmem:[#allocation2 + $0x2a8] sm:$0xff] %v827
        %1087 = vst [vmem:[#allocation2 + $0x2b0] sm:$0xff] %v831
        %1088 = vst [vmem:[#allocation3 + $0x8] sm:$0xff] %v619
        %1089 = vst [vmem:[#allocation3 + $0x10] sm:$0xff] %v623
        %1090 = vst [vmem:[#allocation3 + $0x28] sm:$0xff] %v629
        %1091 = vst [vmem:[#allocation3 + $0x30] sm:$0xff] %v633
        %1092 = vst [vmem:[#allocation3 + $0x48] sm:$0xff] %v639
        %1093 = vst [vmem:[#allocation3 + $0x50] sm:$0xff] %v643
        %1094 = vst [vmem:[#allocation3 + $0x68] sm:$0xff] %v649
        %1095 = vst [vmem:[#allocation3 + $0x70] sm:$0xff] %v653
        %1096 = vst [vmem:[#allocation3 + $0x88] sm:$0xff] %v659
        %1097 = vst [vmem:[#allocation3 + $0x90] sm:$0xff] %v663
        %1098 = vst [vmem:[#allocation3 + $0xa8] sm:$0xff] %v669
        %1099 = vst [vmem:[#allocation3 + $0xb0] sm:$0xff] %v673
        %1100 = vst [vmem:[#allocation3 + $0xc8] sm:$0xff] %v679
        %1101 = vst [vmem:[#allocation3 + $0xd0] sm:$0xff] %v683
        %1102 = vst [vmem:[#allocation3 + $0xe8] sm:$0xff] %v689
        %1103 = vst [vmem:[#allocation3 + $0xf0] sm:$0xff] %v693
        %1104 = vst [vmem:[#allocation3 + $0x108] sm:$0xff] %v699
        %1105 = vst [vmem:[#allocation3 + $0x110] sm:$0xff] %v703
        %1106 = vst [vmem:[#allocation3 + $0x128] sm:$0xff] %v709
        %1107 = vst [vmem:[#allocation3 + $0x130] sm:$0xff] %v713
        %1108 = vst [vmem:[#allocation3 + $0x148] sm:$0xff] %v719
        %1109 = vst [vmem:[#allocation3 + $0x150] sm:$0xff] %v723
        %1110 = vst [vmem:[#allocation3 + $0x168] sm:$0xff] %v729
        %1111 = vst [vmem:[#allocation3 + $0x170] sm:$0xff] %v733
        %1112 = vst [vmem:[#allocation3 + $0x188] sm:$0xff] %v739
        %1113 = vst [vmem:[#allocation3 + $0x190] sm:$0xff] %v743
        %1114 = vst [vmem:[#allocation3 + $0x1a8] sm:$0xff] %v749
        %1115 = vst [vmem:[#allocation3 + $0x1b0] sm:$0xff] %v753
        %1116 = vst [vmem:[#allocation3 + $0x1c8] sm:$0xff] %v759
        %1117 = vst [vmem:[#allocation3 + $0x1d0] sm:$0xff] %v763
        %1118 = vst [vmem:[#allocation3 + $0x1e8] sm:$0xff] %v769
        %1119 = vst [vmem:[#allocation3 + $0x1f0] sm:$0xff] %v773
        %1120 = vst [vmem:[#allocation3 + $0x208] sm:$0xff] %v779
        %1121 = vst [vmem:[#allocation3 + $0x210] sm:$0xff] %v783
        %1122 = vst [vmem:[#allocation3 + $0x228] sm:$0xff] %v789
        %1123 = vst [vmem:[#allocation3 + $0x230] sm:$0xff] %v793
        %1124 = vst [vmem:[#allocation3 + $0x248] sm:$0xff] %v799
        %1125 = vst [vmem:[#allocation3 + $0x250] sm:$0xff] %v803
        %1126 = vst [vmem:[#allocation3 + $0x268] sm:$0xff] %v809
        %1127 = vst [vmem:[#allocation3 + $0x270] sm:$0xff] %v813
        %1128 = vst [vmem:[#allocation3 + $0x288] sm:$0xff] %v819
        %1129 = vst [vmem:[#allocation3 + $0x290] sm:$0xff] %v823
        %1130 = vst [vmem:[#allocation3 + $0x2a8] sm:$0xff] %v829
        %1131 = vst [vmem:[#allocation3 + $0x2b0] sm:$0xff] %v833
        %1132 = vst [vmem:[#allocation4 + $0x8] sm:$0xff] %v870
        %1133 = vst [vmem:[#allocation4 + $0x10] sm:$0xff] %v873
        %1134 = vst [vmem:[#allocation4 + $0x28] sm:$0xff] %v878
        %1135 = vst [vmem:[#allocation4 + $0x30] sm:$0xff] %v881
        %1136 = vst [vmem:[#allocation4 + $0x48] sm:$0xff] %v886
        %1137 = vst [vmem:[#allocation4 + $0x50] sm:$0xff] %v889
        %1138 = vst [vmem:[#allocation4 + $0x68] sm:$0xff] %v894
        %1139 = vst [vmem:[#allocation4 + $0x70] sm:$0xff] %v897
        %1140 = vst [vmem:[#allocation4 + $0x88] sm:$0xff] %v902
        %1141 = vst [vmem:[#allocation4 + $0x90] sm:$0xff] %v905
        %1142 = vst [vmem:[#allocation4 + $0xa8] sm:$0xff] %v910
        %1143 = vst [vmem:[#allocation4 + $0xb0] sm:$0xff] %v913
        %1144 = vst [vmem:[#allocation4 + $0xc8] sm:$0xff] %v918
        %1145 = vst [vmem:[#allocation4 + $0xd0] sm:$0xff] %v921
        %1146 = vst [vmem:[#allocation4 + $0xe8] sm:$0xff] %v926
        %1147 = vst [vmem:[#allocation4 + $0xf0] sm:$0xff] %v929
        %1148 = vst [vmem:[#allocation4 + $0x108] sm:$0xff] %v934
        %1149 = vst [vmem:[#allocation4 + $0x110] sm:$0xff] %v937
        %1150 = vst [vmem:[#allocation4 + $0x128] sm:$0xff] %v942
        %1151 = vst [vmem:[#allocation4 + $0x130] sm:$0xff] %v945
        %1152 = vst [vmem:[#allocation4 + $0x148] sm:$0xff] %v950
        %1153 = vst [vmem:[#allocation4 + $0x150] sm:$0xff] %v953
        %1154 = vst [vmem:[#allocation4 + $0x168] sm:$0xff] %v958
        %1155 = vst [vmem:[#allocation4 + $0x170] sm:$0xff] %v961
        %1156 = vst [vmem:[#allocation4 + $0x188] sm:$0xff] %v966
        %1157 = vst [vmem:[#allocation4 + $0x190] sm:$0xff] %v969
        %1158 = vst [vmem:[#allocation4 + $0x1a8] sm:$0xff] %v974
        %1159 = vst [vmem:[#allocation4 + $0x1b0] sm:$0xff] %v977
        %1160 = vst [vmem:[#allocation4 + $0x1c8] sm:$0xff] %v982
        %1161 = vst [vmem:[#allocation4 + $0x1d0] sm:$0xff] %v985
        %1162 = vst [vmem:[#allocation4 + $0x1e8] sm:$0xff] %v990
        %1163 = vst [vmem:[#allocation4 + $0x1f0] sm:$0xff] %v993
        %1164 = vst [vmem:[#allocation4 + $0x208] sm:$0xff] %v998
        %1165 = vst [vmem:[#allocation4 + $0x210] sm:$0xff] %v1001
        %1166 = vst [vmem:[#allocation4 + $0x228] sm:$0xff] %v1006
        %1167 = vst [vmem:[#allocation4 + $0x230] sm:$0xff] %v1009
        %1168 = vst [vmem:[#allocation4 + $0x248] sm:$0xff] %v1014
        %1169 = vst [vmem:[#allocation4 + $0x250] sm:$0xff] %v1017
        %1170 = vst [vmem:[#allocation4 + $0x268] sm:$0xff] %v1022
        %1171 = vst [vmem:[#allocation4 + $0x270] sm:$0xff] %v1025
        %1172 = vst [vmem:[#allocation4 + $0x288] sm:$0xff] %v1030
        %1173 = vst [vmem:[#allocation4 + $0x290] sm:$0xff] %v1033
        %1174 = vst [vmem:[#allocation4 + $0x2a8] sm:$0xff] %v1038
        %1175 = vst [vmem:[#allocation4 + $0x2b0] sm:$0xff] %v1041
        %p1176 = scmp.eq.s32.totalorder %s30, 0
        // Predicated region
        $region65: #{tpu_custom_call.1} parent=63 // pred_check
          %p1177 = pneg %p1176
        $region66: #{tpu_custom_call.1} parent=63 // pred_check_branch
          %1179 = sbr.rel (%p1177) target = $region68
        $region67: #{tpu_custom_call.1} parent=63 // pred_region
          %1180 = vst [vmem:[#allocation2] sm:$0xff] 0.0
          %1181 = vst [vmem:[#allocation2 + $0x20] sm:$0xff] 0.0
          %1182 = vst [vmem:[#allocation2 + $0x40] sm:$0xff] 0.0
          %1183 = vst [vmem:[#allocation2 + $0x60] sm:$0xff] 0.0
          %1184 = vst [vmem:[#allocation2 + $0x80] sm:$0xff] 0.0
          %1185 = vst [vmem:[#allocation2 + $0xa0] sm:$0xff] 0.0
          %1186 = vst [vmem:[#allocation2 + $0xc0] sm:$0xff] 0.0
          %1187 = vst [vmem:[#allocation2 + $0xe0] sm:$0xff] 0.0
          %1188 = vst [vmem:[#allocation2 + $0x100] sm:$0xff] 0.0
          %1189 = vst [vmem:[#allocation2 + $0x120] sm:$0xff] 0.0
          %1190 = vst [vmem:[#allocation2 + $0x140] sm:$0xff] 0.0
          %1191 = vst [vmem:[#allocation2 + $0x160] sm:$0xff] 0.0
          %1192 = vst [vmem:[#allocation2 + $0x180] sm:$0xff] 0.0
          %1193 = vst [vmem:[#allocation2 + $0x1a0] sm:$0xff] 0.0
          %1194 = vst [vmem:[#allocation2 + $0x1c0] sm:$0xff] 0.0
          %1195 = vst [vmem:[#allocation2 + $0x1e0] sm:$0xff] 0.0
          %1196 = vst [vmem:[#allocation2 + $0x200] sm:$0xff] 0.0
          %1197 = vst [vmem:[#allocation2 + $0x220] sm:$0xff] 0.0
          %1198 = vst [vmem:[#allocation2 + $0x240] sm:$0xff] 0.0
          %1199 = vst [vmem:[#allocation2 + $0x260] sm:$0xff] 0.0
          %1200 = vst [vmem:[#allocation2 + $0x280] sm:$0xff] 0.0
          %1201 = vst [vmem:[#allocation2 + $0x2a0] sm:$0xff] 0.0
          %1202 = vst [vmem:[#allocation2 + $0x18] sm:$0xff] 0.0
          %1203 = vst [vmem:[#allocation2 + $0x38] sm:$0xff] 0.0
          %1204 = vst [vmem:[#allocation2 + $0x58] sm:$0xff] 0.0
          %1205 = vst [vmem:[#allocation2 + $0x78] sm:$0xff] 0.0
          %1206 = vst [vmem:[#allocation2 + $0x98] sm:$0xff] 0.0
          %1207 = vst [vmem:[#allocation2 + $0xb8] sm:$0xff] 0.0
          %1208 = vst [vmem:[#allocation2 + $0xd8] sm:$0xff] 0.0
          %1209 = vst [vmem:[#allocation2 + $0xf8] sm:$0xff] 0.0
          %1210 = vst [vmem:[#allocation2 + $0x118] sm:$0xff] 0.0
          %1211 = vst [vmem:[#allocation2 + $0x138] sm:$0xff] 0.0
          %1212 = vst [vmem:[#allocation2 + $0x158] sm:$0xff] 0.0
          %1213 = vst [vmem:[#allocation2 + $0x178] sm:$0xff] 0.0
          %1214 = vst [vmem:[#allocation2 + $0x198] sm:$0xff] 0.0
          %1215 = vst [vmem:[#allocation2 + $0x1b8] sm:$0xff] 0.0
          %1216 = vst [vmem:[#allocation2 + $0x1d8] sm:$0xff] 0.0
          %1217 = vst [vmem:[#allocation2 + $0x1f8] sm:$0xff] 0.0
          %1218 = vst [vmem:[#allocation2 + $0x218] sm:$0xff] 0.0
          %1219 = vst [vmem:[#allocation2 + $0x238] sm:$0xff] 0.0
          %1220 = vst [vmem:[#allocation2 + $0x258] sm:$0xff] 0.0
          %1221 = vst [vmem:[#allocation2 + $0x278] sm:$0xff] 0.0
          %1222 = vst [vmem:[#allocation2 + $0x298] sm:$0xff] 0.0
          %1223 = vst [vmem:[#allocation2 + $0x2b8] sm:$0xff] 0.0
          %1224 = vst [vmem:[#allocation2] sm:$0xff] 0.0
          %1225 = vst [vmem:[#allocation2 + $0x8] sm:$0xff] 0.0
          %1226 = vst [vmem:[#allocation2 + $0x10] sm:$0xff] 0.0
          %1227 = vst [vmem:[#allocation2 + $0x18] sm:$0xff] 0.0
          %1228 = vst [vmem:[#allocation2 + $0x20] sm:$0xff] 0.0
          %1229 = vst [vmem:[#allocation2 + $0x28] sm:$0xff] 0.0
          %1230 = vst [vmem:[#allocation2 + $0x30] sm:$0xff] 0.0
          %1231 = vst [vmem:[#allocation2 + $0x38] sm:$0xff] 0.0
          %1232 = vst [vmem:[#allocation2 + $0x40] sm:$0xff] 0.0
          %1233 = vst [vmem:[#allocation2 + $0x48] sm:$0xff] 0.0
          %1234 = vst [vmem:[#allocation2 + $0x50] sm:$0xff] 0.0
          %1235 = vst [vmem:[#allocation2 + $0x58] sm:$0xff] 0.0
          %1236 = vst [vmem:[#allocation3] sm:$0xff] 0.0
          %1237 = vst [vmem:[#allocation3 + $0x20] sm:$0xff] 0.0
          %1238 = vst [vmem:[#allocation3 + $0x40] sm:$0xff] 0.0
          %1239 = vst [vmem:[#allocation3 + $0x60] sm:$0xff] 0.0
          %1240 = vst [vmem:[#allocation3 + $0x80] sm:$0xff] 0.0
          %1241 = vst [vmem:[#allocation3 + $0xa0] sm:$0xff] 0.0
          %1242 = vst [vmem:[#allocation3 + $0xc0] sm:$0xff] 0.0
          %1243 = vst [vmem:[#allocation3 + $0xe0] sm:$0xff] 0.0
          %1244 = vst [vmem:[#allocation3 + $0x100] sm:$0xff] 0.0
          %1245 = vst [vmem:[#allocation3 + $0x120] sm:$0xff] 0.0
          %1246 = vst [vmem:[#allocation3 + $0x140] sm:$0xff] 0.0
          %1247 = vst [vmem:[#allocation3 + $0x160] sm:$0xff] 0.0
          %1248 = vst [vmem:[#allocation3 + $0x180] sm:$0xff] 0.0
          %1249 = vst [vmem:[#allocation3 + $0x1a0] sm:$0xff] 0.0
          %1250 = vst [vmem:[#allocation3 + $0x1c0] sm:$0xff] 0.0
          %1251 = vst [vmem:[#allocation3 + $0x1e0] sm:$0xff] 0.0
          %1252 = vst [vmem:[#allocation3 + $0x200] sm:$0xff] 0.0
          %1253 = vst [vmem:[#allocation3 + $0x220] sm:$0xff] 0.0
          %1254 = vst [vmem:[#allocation3 + $0x240] sm:$0xff] 0.0
          %1255 = vst [vmem:[#allocation3 + $0x260] sm:$0xff] 0.0
          %1256 = vst [vmem:[#allocation3 + $0x280] sm:$0xff] 0.0
          %1257 = vst [vmem:[#allocation3 + $0x2a0] sm:$0xff] 0.0
          %1258 = vst [vmem:[#allocation3 + $0x18] sm:$0xff] 0.0
          %1259 = vst [vmem:[#allocation3 + $0x38] sm:$0xff] 0.0
          %1260 = vst [vmem:[#allocation3 + $0x58] sm:$0xff] 0.0
          %1261 = vst [vmem:[#allocation3 + $0x78] sm:$0xff] 0.0
          %1262 = vst [vmem:[#allocation3 + $0x98] sm:$0xff] 0.0
          %1263 = vst [vmem:[#allocation3 + $0xb8] sm:$0xff] 0.0
          %1264 = vst [vmem:[#allocation3 + $0xd8] sm:$0xff] 0.0
          %1265 = vst [vmem:[#allocation3 + $0xf8] sm:$0xff] 0.0
          %1266 = vst [vmem:[#allocation3 + $0x118] sm:$0xff] 0.0
          %1267 = vst [vmem:[#allocation3 + $0x138] sm:$0xff] 0.0
          %1268 = vst [vmem:[#allocation3 + $0x158] sm:$0xff] 0.0
          %1269 = vst [vmem:[#allocation3 + $0x178] sm:$0xff] 0.0
          %1270 = vst [vmem:[#allocation3 + $0x198] sm:$0xff] 0.0
          %1271 = vst [vmem:[#allocation3 + $0x1b8] sm:$0xff] 0.0
          %1272 = vst [vmem:[#allocation3 + $0x1d8] sm:$0xff] 0.0
          %1273 = vst [vmem:[#allocation3 + $0x1f8] sm:$0xff] 0.0
          %1274 = vst [vmem:[#allocation3 + $0x218] sm:$0xff] 0.0
          %1275 = vst [vmem:[#allocation3 + $0x238] sm:$0xff] 0.0
          %1276 = vst [vmem:[#allocation3 + $0x258] sm:$0xff] 0.0
          %1277 = vst [vmem:[#allocation3 + $0x278] sm:$0xff] 0.0
          %1278 = vst [vmem:[#allocation3 + $0x298] sm:$0xff] 0.0
          %1279 = vst [vmem:[#allocation3 + $0x2b8] sm:$0xff] 0.0
          %1280 = vst [vmem:[#allocation3] sm:$0xff] 0.0
          %1281 = vst [vmem:[#allocation3 + $0x8] sm:$0xff] 0.0
          %1282 = vst [vmem:[#allocation3 + $0x10] sm:$0xff] 0.0
          %1283 = vst [vmem:[#allocation3 + $0x18] sm:$0xff] 0.0
          %1284 = vst [vmem:[#allocation3 + $0x20] sm:$0xff] 0.0
          %1285 = vst [vmem:[#allocation3 + $0x28] sm:$0xff] 0.0
          %1286 = vst [vmem:[#allocation3 + $0x30] sm:$0xff] 0.0
          %1287 = vst [vmem:[#allocation3 + $0x38] sm:$0xff] 0.0
          %1288 = vst [vmem:[#allocation3 + $0x40] sm:$0xff] 0.0
          %1289 = vst [vmem:[#allocation3 + $0x48] sm:$0xff] 0.0
          %1290 = vst [vmem:[#allocation3 + $0x50] sm:$0xff] 0.0
          %1291 = vst [vmem:[#allocation3 + $0x58] sm:$0xff] 0.0
          %1292 = vst [vmem:[#allocation4] sm:$0xff] 0.0
          %1293 = vst [vmem:[#allocation4 + $0x20] sm:$0xff] 0.0
          %1294 = vst [vmem:[#allocation4 + $0x40] sm:$0xff] 0.0
          %1295 = vst [vmem:[#allocation4 + $0x60] sm:$0xff] 0.0
          %1296 = vst [vmem:[#allocation4 + $0x80] sm:$0xff] 0.0
          %1297 = vst [vmem:[#allocation4 + $0xa0] sm:$0xff] 0.0
          %1298 = vst [vmem:[#allocation4 + $0xc0] sm:$0xff] 0.0
          %1299 = vst [vmem:[#allocation4 + $0xe0] sm:$0xff] 0.0
          %1300 = vst [vmem:[#allocation4 + $0x100] sm:$0xff] 0.0
          %1301 = vst [vmem:[#allocation4 + $0x120] sm:$0xff] 0.0
          %1302 = vst [vmem:[#allocation4 + $0x140] sm:$0xff] 0.0
          %1303 = vst [vmem:[#allocation4 + $0x160] sm:$0xff] 0.0
          %1304 = vst [vmem:[#allocation4 + $0x180] sm:$0xff] 0.0
          %1305 = vst [vmem:[#allocation4 + $0x1a0] sm:$0xff] 0.0
          %1306 = vst [vmem:[#allocation4 + $0x1c0] sm:$0xff] 0.0
          %1307 = vst [vmem:[#allocation4 + $0x1e0] sm:$0xff] 0.0
          %1308 = vst [vmem:[#allocation4 + $0x200] sm:$0xff] 0.0
          %1309 = vst [vmem:[#allocation4 + $0x220] sm:$0xff] 0.0
          %1310 = vst [vmem:[#allocation4 + $0x240] sm:$0xff] 0.0
          %1311 = vst [vmem:[#allocation4 + $0x260] sm:$0xff] 0.0
          %1312 = vst [vmem:[#allocation4 + $0x280] sm:$0xff] 0.0
          %1313 = vst [vmem:[#allocation4 + $0x2a0] sm:$0xff] 0.0
          %1314 = vst [vmem:[#allocation4 + $0x18] sm:$0xff] 0.0
          %1315 = vst [vmem:[#allocation4 + $0x38] sm:$0xff] 0.0
          %1316 = vst [vmem:[#allocation4 + $0x58] sm:$0xff] 0.0
          %1317 = vst [vmem:[#allocation4 + $0x78] sm:$0xff] 0.0
          %1318 = vst [vmem:[#allocation4 + $0x98] sm:$0xff] 0.0
          %1319 = vst [vmem:[#allocation4 + $0xb8] sm:$0xff] 0.0
          %1320 = vst [vmem:[#allocation4 + $0xd8] sm:$0xff] 0.0
          %1321 = vst [vmem:[#allocation4 + $0xf8] sm:$0xff] 0.0
          %1322 = vst [vmem:[#allocation4 + $0x118] sm:$0xff] 0.0
          %1323 = vst [vmem:[#allocation4 + $0x138] sm:$0xff] 0.0
          %1324 = vst [vmem:[#allocation4 + $0x158] sm:$0xff] 0.0
          %1325 = vst [vmem:[#allocation4 + $0x178] sm:$0xff] 0.0
          %1326 = vst [vmem:[#allocation4 + $0x198] sm:$0xff] 0.0
          %1327 = vst [vmem:[#allocation4 + $0x1b8] sm:$0xff] 0.0
          %1328 = vst [vmem:[#allocation4 + $0x1d8] sm:$0xff] 0.0
          %1329 = vst [vmem:[#allocation4 + $0x1f8] sm:$0xff] 0.0
          %1330 = vst [vmem:[#allocation4 + $0x218] sm:$0xff] 0.0
          %1331 = vst [vmem:[#allocation4 + $0x238] sm:$0xff] 0.0
          %1332 = vst [vmem:[#allocation4 + $0x258] sm:$0xff] 0.0
          %1333 = vst [vmem:[#allocation4 + $0x278] sm:$0xff] 0.0
          %1334 = vst [vmem:[#allocation4 + $0x298] sm:$0xff] 0.0
          %1335 = vst [vmem:[#allocation4 + $0x2b8] sm:$0xff] 0.0
          %1336 = vst [vmem:[#allocation4] sm:$0xff] 0.0
          %1337 = vst [vmem:[#allocation4 + $0x8] sm:$0xff] 0.0
          %1338 = vst [vmem:[#allocation4 + $0x10] sm:$0xff] 0.0
          %1339 = vst [vmem:[#allocation4 + $0x18] sm:$0xff] 0.0
          %1340 = vst [vmem:[#allocation4 + $0x20] sm:$0xff] 0.0
          %1341 = vst [vmem:[#allocation4 + $0x28] sm:$0xff] 0.0
          %1342 = vst [vmem:[#allocation4 + $0x30] sm:$0xff] 0.0
          %1343 = vst [vmem:[#allocation4 + $0x38] sm:$0xff] 0.0
          %1344 = vst [vmem:[#allocation4 + $0x40] sm:$0xff] 0.0
          %1345 = vst [vmem:[#allocation4 + $0x48] sm:$0xff] 0.0
          %1346 = vst [vmem:[#allocation4 + $0x50] sm:$0xff] 0.0
          %1347 = vst [vmem:[#allocation4 + $0x58] sm:$0xff] 0.0
          %s1348 = scalar_lea.vmem [#allocation2], 608
          %1349 = vst [vmem:[%s1348] sm:$0xff] 0.0
          %1350 = vst [vmem:[%s1348 + $0x8] sm:$0xff] 0.0
          %1351 = vst [vmem:[%s1348 + $0x10] sm:$0xff] 0.0
          %1352 = vst [vmem:[%s1348 + $0x18] sm:$0xff] 0.0
          %1353 = vst [vmem:[%s1348 + $0x20] sm:$0xff] 0.0
          %1354 = vst [vmem:[%s1348 + $0x28] sm:$0xff] 0.0
          %1355 = vst [vmem:[%s1348 + $0x30] sm:$0xff] 0.0
          %1356 = vst [vmem:[%s1348 + $0x38] sm:$0xff] 0.0
          %1357 = vst [vmem:[%s1348 + $0x40] sm:$0xff] 0.0
          %1358 = vst [vmem:[%s1348 + $0x48] sm:$0xff] 0.0
          %1359 = vst [vmem:[%s1348 + $0x50] sm:$0xff] 0.0
          %1360 = vst [vmem:[%s1348 + $0x58] sm:$0xff] 0.0
          %s1361 = scalar_lea.vmem [#allocation3], 608
          %1362 = vst [vmem:[%s1361] sm:$0xff] 0.0
          %1363 = vst [vmem:[%s1361 + $0x8] sm:$0xff] 0.0
          %1364 = vst [vmem:[%s1361 + $0x10] sm:$0xff] 0.0
          %1365 = vst [vmem:[%s1361 + $0x18] sm:$0xff] 0.0
          %1366 = vst [vmem:[%s1361 + $0x20] sm:$0xff] 0.0
          %1367 = vst [vmem:[%s1361 + $0x28] sm:$0xff] 0.0
          %1368 = vst [vmem:[%s1361 + $0x30] sm:$0xff] 0.0
          %1369 = vst [vmem:[%s1361 + $0x38] sm:$0xff] 0.0
          %1370 = vst [vmem:[%s1361 + $0x40] sm:$0xff] 0.0
          %1371 = vst [vmem:[%s1361 + $0x48] sm:$0xff] 0.0
          %1372 = vst [vmem:[%s1361 + $0x50] sm:$0xff] 0.0
          %1373 = vst [vmem:[%s1361 + $0x58] sm:$0xff] 0.0
          %s1374 = scalar_lea.vmem [#allocation4], 608
          %1375 = vst [vmem:[%s1374] sm:$0xff] 0.0
          %1376 = vst [vmem:[%s1374 + $0x8] sm:$0xff] 0.0
          %1377 = vst [vmem:[%s1374 + $0x10] sm:$0xff] 0.0
          %1378 = vst [vmem:[%s1374 + $0x18] sm:$0xff] 0.0
          %1379 = vst [vmem:[%s1374 + $0x20] sm:$0xff] 0.0
          %1380 = vst [vmem:[%s1374 + $0x28] sm:$0xff] 0.0
          %1381 = vst [vmem:[%s1374 + $0x30] sm:$0xff] 0.0
          %1382 = vst [vmem:[%s1374 + $0x38] sm:$0xff] 0.0
          %1383 = vst [vmem:[%s1374 + $0x40] sm:$0xff] 0.0
          %1384 = vst [vmem:[%s1374 + $0x48] sm:$0xff] 0.0
          %1385 = vst [vmem:[%s1374 + $0x50] sm:$0xff] 0.0
          %1386 = vst [vmem:[%s1374 + $0x58] sm:$0xff] 0.0
        $region68: #{tpu_custom_call.1} parent=63 // pred_fallthru
          _
        %v1387 = vld [vmem:[%s3] sm:$0xff]
        %v1388 = vld [vmem:[%s3 + $0x8] sm:$0x1]
        %v1389 = vld [vmem:[%s4] sm:$0x1]
        %v1391 = vlaneseq
        %v1392 = vshrl.u32 %v1391, 7
        %v1393 = vsub.s32 0, %v1392
        %v1394 = vrot.slane %v1389, %v1393
        %s1396 = scalar_lea.vmem [#allocation2], 64
        %v1397 = vld [vmem:[%s1396] sm:$0xff]
        %v1398 = vld [vmem:[%s1396 + $0x8] sm:$0xff]
        %v1399 = vld [vmem:[%s1396 + $0x10] sm:$0xff]
        %v1400 = vld [vmem:[%s1396 + $0x18] sm:$0xff]
        %v1401 = vld [vmem:[%s1396 + $0x20] sm:$0xff]
        %v1402 = vld [vmem:[%s1396 + $0x28] sm:$0xff]
        %v1403 = vld [vmem:[%s1396 + $0x30] sm:$0xff]
        %v1404 = vld [vmem:[%s1396 + $0x38] sm:$0xff]
        %v1405 = vld [vmem:[%s1396 + $0x40] sm:$0xff]
        %v1406 = vld [vmem:[%s1396 + $0x48] sm:$0xff]
        %v1407 = vld [vmem:[%s1396 + $0x50] sm:$0xff]
        %v1408 = vld [vmem:[%s1396 + $0x58] sm:$0xff]
        %v1409 = vld [vmem:[%s1396 + $0x60] sm:$0xff]
        %v1410 = vld [vmem:[%s1396 + $0x68] sm:$0xff]
        %v1411 = vld [vmem:[%s1396 + $0x70] sm:$0xff]
        %v1412 = vld [vmem:[%s1396 + $0x78] sm:$0xff]
        %v1413 = vld [vmem:[%s1396 + $0x80] sm:$0xff]
        %v1414 = vld [vmem:[%s1396 + $0x88] sm:$0xff]
        %v1415 = vld [vmem:[%s1396 + $0x90] sm:$0xff]
        %v1416 = vld [vmem:[%s1396 + $0x98] sm:$0xff]
        %v1417 = vld [vmem:[%s1396 + $0xa0] sm:$0xff]
        %v1418 = vld [vmem:[%s1396 + $0xa8] sm:$0xff]
        %v1419 = vld [vmem:[%s1396 + $0xb0] sm:$0xff]
        %v1420 = vld [vmem:[%s1396 + $0xb8] sm:$0xff]
        %v1421 = vld [vmem:[%s1396 + $0xc0] sm:$0xff]
        %v1422 = vld [vmem:[%s1396 + $0xc8] sm:$0xff]
        %v1423 = vld [vmem:[%s1396 + $0xd0] sm:$0xff]
        %v1424 = vld [vmem:[%s1396 + $0xd8] sm:$0xff]
        %v1425 = vld [vmem:[%s1396 + $0xe0] sm:$0xff]
        %v1426 = vld [vmem:[%s1396 + $0xe8] sm:$0xff]
        %v1427 = vld [vmem:[%s1396 + $0xf0] sm:$0xff]
        %v1428 = vld [vmem:[%s1396 + $0xf8] sm:$0xff]
        %v1429 = vld [vmem:[%s1396 + $0x100] sm:$0xff]
        %v1430 = vld [vmem:[%s1396 + $0x108] sm:$0xff]
        %v1431 = vld [vmem:[%s1396 + $0x110] sm:$0xff]
        %v1432 = vld [vmem:[%s1396 + $0x118] sm:$0xff]
        %v1433 = vld [vmem:[%s1396 + $0x120] sm:$0xff]
        %v1434 = vld [vmem:[%s1396 + $0x128] sm:$0xff]
        %v1435 = vld [vmem:[%s1396 + $0x130] sm:$0xff]
        %v1436 = vld [vmem:[%s1396 + $0x138] sm:$0xff]
        %v1437 = vld [vmem:[%s1396 + $0x140] sm:$0xff]
        %v1438 = vld [vmem:[%s1396 + $0x148] sm:$0xff]
        %v1439 = vld [vmem:[%s1396 + $0x150] sm:$0xff]
        %v1440 = vld [vmem:[%s1396 + $0x158] sm:$0xff]
        %v1441 = vld [vmem:[%s1396 + $0x160] sm:$0xff]
        %v1442 = vld [vmem:[%s1396 + $0x168] sm:$0xff]
        %v1443 = vld [vmem:[%s1396 + $0x170] sm:$0xff]
        %v1444 = vld [vmem:[%s1396 + $0x178] sm:$0xff]
        %v1445 = vld [vmem:[%s1396 + $0x180] sm:$0xff]
        %v1446 = vld [vmem:[%s1396 + $0x188] sm:$0xff]
        %v1447 = vld [vmem:[%s1396 + $0x190] sm:$0xff]
        %v1448 = vld [vmem:[%s1396 + $0x198] sm:$0xff]
        %v1449 = vld [vmem:[%s1396 + $0x1a0] sm:$0xff]
        %v1450 = vld [vmem:[%s1396 + $0x1a8] sm:$0xff]
        %v1451 = vld [vmem:[%s1396 + $0x1b0] sm:$0xff]
        %v1452 = vld [vmem:[%s1396 + $0x1b8] sm:$0xff]
        %v1453 = vld [vmem:[%s1396 + $0x1c0] sm:$0xff]
        %v1454 = vld [vmem:[%s1396 + $0x1c8] sm:$0xff]
        %v1455 = vld [vmem:[%s1396 + $0x1d0] sm:$0xff]
        %v1456 = vld [vmem:[%s1396 + $0x1d8] sm:$0xff]
        %v1457 = vld [vmem:[%s1396 + $0x1e0] sm:$0xff]
        %v1458 = vld [vmem:[%s1396 + $0x1e8] sm:$0xff]
        %v1459 = vld [vmem:[%s1396 + $0x1f0] sm:$0xff]
        %v1460 = vld [vmem:[%s1396 + $0x1f8] sm:$0xff]
        %v1461 = vld [vmem:[%s1396 + $0x200] sm:$0xff]
        %v1462 = vld [vmem:[%s1396 + $0x208] sm:$0xff]
        %v1463 = vld [vmem:[%s1396 + $0x210] sm:$0xff]
        %v1464 = vld [vmem:[%s1396 + $0x218] sm:$0xff]
        %v1465 = vld [vmem:[%s1396 + $0x220] sm:$0xff]
        %v1466 = vld [vmem:[%s1396 + $0x228] sm:$0xff]
        %v1467 = vld [vmem:[%s1396 + $0x230] sm:$0xff]
        %v1468 = vld [vmem:[%s1396 + $0x238] sm:$0xff]
        %v1469 = vlaneseq
        %v1470 = vshrl.u32 %v1469, 7
        %v1471 = vsub.s32 0, %v1470
        %v1472 = vrot.slane %v1387, %v1471
        %v1473 = vmul.f32 %v1397, %v1472
        %v1474 = vmul.f32 %v1398, %v1472
        %v1475 = vmul.f32 %v1399, %v1472
        %v1476 = vmul.f32 %v1401, %v1472
        %v1477 = vmul.f32 %v1402, %v1472
        %v1478 = vmul.f32 %v1403, %v1472
        %v1479 = vmul.f32 %v1405, %v1472
        %v1480 = vmul.f32 %v1406, %v1472
        %v1481 = vmul.f32 %v1407, %v1472
        %v1482 = vmul.f32 %v1409, %v1472
        %v1483 = vmul.f32 %v1410, %v1472
        %v1484 = vmul.f32 %v1411, %v1472
        %v1485 = vmul.f32 %v1413, %v1472
        %v1486 = vmul.f32 %v1414, %v1472
        %v1487 = vmul.f32 %v1415, %v1472
        %v1488 = vmul.f32 %v1417, %v1472
        %v1489 = vmul.f32 %v1418, %v1472
        %v1490 = vmul.f32 %v1419, %v1472
        %v1491 = vmul.f32 %v1421, %v1472
        %v1492 = vmul.f32 %v1422, %v1472
        %v1493 = vmul.f32 %v1423, %v1472
        %v1494 = vmul.f32 %v1425, %v1472
        %v1495 = vmul.f32 %v1426, %v1472
        %v1496 = vmul.f32 %v1427, %v1472
        %v1497 = vmul.f32 %v1429, %v1472
        %v1498 = vmul.f32 %v1430, %v1472
        %v1499 = vmul.f32 %v1431, %v1472
        %v1500 = vmul.f32 %v1433, %v1472
        %v1501 = vmul.f32 %v1434, %v1472
        %v1502 = vmul.f32 %v1435, %v1472
        %v1503 = vmul.f32 %v1437, %v1472
        %v1504 = vmul.f32 %v1438, %v1472
        %v1505 = vmul.f32 %v1439, %v1472
        %v1506 = vmul.f32 %v1441, %v1472
        %v1507 = vmul.f32 %v1442, %v1472
        %v1508 = vmul.f32 %v1443, %v1472
        %v1509 = vmul.f32 %v1445, %v1472
        %v1510 = vmul.f32 %v1446, %v1472
        %v1511 = vmul.f32 %v1447, %v1472
        %v1512 = vmul.f32 %v1449, %v1472
        %v1513 = vmul.f32 %v1450, %v1472
        %v1514 = vmul.f32 %v1451, %v1472
        %v1515 = vmul.f32 %v1453, %v1472
        %v1516 = vmul.f32 %v1454, %v1472
        %v1517 = vmul.f32 %v1455, %v1472
        %v1518 = vmul.f32 %v1457, %v1472
        %v1519 = vmul.f32 %v1458, %v1472
        %v1520 = vmul.f32 %v1459, %v1472
        %v1521 = vadd.f32 %v1394, %v1473
        %v1522 = vadd.f32 %v1394, %v1474
        %v1523 = vadd.f32 %v1394, %v1475
        %v1524 = vadd.f32 %v1394, %v1476
        %v1525 = vadd.f32 %v1394, %v1477
        %v1526 = vadd.f32 %v1394, %v1478
        %v1527 = vadd.f32 %v1394, %v1479
        %v1528 = vadd.f32 %v1394, %v1480
        %v1529 = vadd.f32 %v1394, %v1481
        %v1530 = vadd.f32 %v1394, %v1482
        %v1531 = vadd.f32 %v1394, %v1483
        %v1532 = vadd.f32 %v1394, %v1484
        %v1533 = vadd.f32 %v1394, %v1485
        %v1534 = vadd.f32 %v1394, %v1486
        %v1535 = vadd.f32 %v1394, %v1487
        %v1536 = vadd.f32 %v1394, %v1488
        %v1537 = vadd.f32 %v1394, %v1489
        %v1538 = vadd.f32 %v1394, %v1490
        %v1539 = vadd.f32 %v1394, %v1491
        %v1540 = vadd.f32 %v1394, %v1492
        %v1541 = vadd.f32 %v1394, %v1493
        %v1542 = vadd.f32 %v1394, %v1494
        %v1543 = vadd.f32 %v1394, %v1495
        %v1544 = vadd.f32 %v1394, %v1496
        %v1545 = vadd.f32 %v1394, %v1497
        %v1546 = vadd.f32 %v1394, %v1498
        %v1547 = vadd.f32 %v1394, %v1499
        %v1548 = vadd.f32 %v1394, %v1500
        %v1549 = vadd.f32 %v1394, %v1501
        %v1550 = vadd.f32 %v1394, %v1502
        %v1551 = vadd.f32 %v1394, %v1503
        %v1552 = vadd.f32 %v1394, %v1504
        %v1553 = vadd.f32 %v1394, %v1505
        %v1554 = vadd.f32 %v1394, %v1506
        %v1555 = vadd.f32 %v1394, %v1507
        %v1556 = vadd.f32 %v1394, %v1508
        %v1557 = vadd.f32 %v1394, %v1509
        %v1558 = vadd.f32 %v1394, %v1510
        %v1559 = vadd.f32 %v1394, %v1511
        %v1560 = vadd.f32 %v1394, %v1512
        %v1561 = vadd.f32 %v1394, %v1513
        %v1562 = vadd.f32 %v1394, %v1514
        %v1563 = vadd.f32 %v1394, %v1515
        %v1564 = vadd.f32 %v1394, %v1516
        %v1565 = vadd.f32 %v1394, %v1517
        %v1566 = vadd.f32 %v1394, %v1518
        %v1567 = vadd.f32 %v1394, %v1519
        %v1568 = vadd.f32 %v1394, %v1520
        %v1569 = vlaneseq
        %v1570 = vshrl.u32 %v1569, 7
        %v1571 = vsub.s32 3, %v1570
        %v1572 = vrot.slane %v1387, %v1571
        %v1573 = vmul.f32 %v1401, %v1572
        %v1574 = vmul.f32 %v1402, %v1572
        %v1575 = vmul.f32 %v1403, %v1572
        %v1576 = vmul.f32 %v1405, %v1572
        %v1577 = vmul.f32 %v1406, %v1572
        %v1578 = vmul.f32 %v1407, %v1572
        %v1579 = vmul.f32 %v1409, %v1572
        %v1580 = vmul.f32 %v1410, %v1572
        %v1581 = vmul.f32 %v1411, %v1572
        %v1582 = vmul.f32 %v1413, %v1572
        %v1583 = vmul.f32 %v1414, %v1572
        %v1584 = vmul.f32 %v1415, %v1572
        %v1585 = vmul.f32 %v1417, %v1572
        %v1586 = vmul.f32 %v1418, %v1572
        %v1587 = vmul.f32 %v1419, %v1572
        %v1588 = vmul.f32 %v1421, %v1572
        %v1589 = vmul.f32 %v1422, %v1572
        %v1590 = vmul.f32 %v1423, %v1572
        %v1591 = vmul.f32 %v1425, %v1572
        %v1592 = vmul.f32 %v1426, %v1572
        %v1593 = vmul.f32 %v1427, %v1572
        %v1594 = vmul.f32 %v1429, %v1572
        %v1595 = vmul.f32 %v1430, %v1572
        %v1596 = vmul.f32 %v1431, %v1572
        %v1597 = vmul.f32 %v1433, %v1572
        %v1598 = vmul.f32 %v1434, %v1572
        %v1599 = vmul.f32 %v1435, %v1572
        %v1600 = vmul.f32 %v1437, %v1572
        %v1601 = vmul.f32 %v1438, %v1572
        %v1602 = vmul.f32 %v1439, %v1572
        %v1603 = vmul.f32 %v1441, %v1572
        %v1604 = vmul.f32 %v1442, %v1572
        %v1605 = vmul.f32 %v1443, %v1572
        %v1606 = vmul.f32 %v1445, %v1572
        %v1607 = vmul.f32 %v1446, %v1572
        %v1608 = vmul.f32 %v1447, %v1572
        %v1609 = vmul.f32 %v1449, %v1572
        %v1610 = vmul.f32 %v1450, %v1572
        %v1611 = vmul.f32 %v1451, %v1572
        %v1612 = vmul.f32 %v1453, %v1572
        %v1613 = vmul.f32 %v1454, %v1572
        %v1614 = vmul.f32 %v1455, %v1572
        %v1615 = vmul.f32 %v1457, %v1572
        %v1616 = vmul.f32 %v1458, %v1572
        %v1617 = vmul.f32 %v1459, %v1572
        %v1618 = vmul.f32 %v1461, %v1572
        %v1619 = vmul.f32 %v1462, %v1572
        %v1620 = vmul.f32 %v1463, %v1572
        %v1621 = vadd.f32 %v1521, %v1573
        %v1622 = vadd.f32 %v1522, %v1574
        %v1623 = vadd.f32 %v1523, %v1575
        %v1624 = vadd.f32 %v1524, %v1576
        %v1625 = vadd.f32 %v1525, %v1577
        %v1626 = vadd.f32 %v1526, %v1578
        %v1627 = vadd.f32 %v1527, %v1579
        %v1628 = vadd.f32 %v1528, %v1580
        %v1629 = vadd.f32 %v1529, %v1581
        %v1630 = vadd.f32 %v1530, %v1582
        %v1631 = vadd.f32 %v1531, %v1583
        %v1632 = vadd.f32 %v1532, %v1584
        %v1633 = vadd.f32 %v1533, %v1585
        %v1634 = vadd.f32 %v1534, %v1586
        %v1635 = vadd.f32 %v1535, %v1587
        %v1636 = vadd.f32 %v1536, %v1588
        %v1637 = vadd.f32 %v1537, %v1589
        %v1638 = vadd.f32 %v1538, %v1590
        %v1639 = vadd.f32 %v1539, %v1591
        %v1640 = vadd.f32 %v1540, %v1592
        %v1641 = vadd.f32 %v1541, %v1593
        %v1642 = vadd.f32 %v1542, %v1594
        %v1643 = vadd.f32 %v1543, %v1595
        %v1644 = vadd.f32 %v1544, %v1596
        %v1645 = vadd.f32 %v1545, %v1597
        %v1646 = vadd.f32 %v1546, %v1598
        %v1647 = vadd.f32 %v1547, %v1599
        %v1648 = vadd.f32 %v1548, %v1600
        %v1649 = vadd.f32 %v1549, %v1601
        %v1650 = vadd.f32 %v1550, %v1602
        %v1651 = vadd.f32 %v1551, %v1603
        %v1652 = vadd.f32 %v1552, %v1604
        %v1653 = vadd.f32 %v1553, %v1605
        %v1654 = vadd.f32 %v1554, %v1606
        %v1655 = vadd.f32 %v1555, %v1607
        %v1656 = vadd.f32 %v1556, %v1608
        %v1657 = vadd.f32 %v1557, %v1609
        %v1658 = vadd.f32 %v1558, %v1610
        %v1659 = vadd.f32 %v1559, %v1611
        %v1660 = vadd.f32 %v1560, %v1612
        %v1661 = vadd.f32 %v1561, %v1613
        %v1662 = vadd.f32 %v1562, %v1614
        %v1663 = vadd.f32 %v1563, %v1615
        %v1664 = vadd.f32 %v1564, %v1616
        %v1665 = vadd.f32 %v1565, %v1617
        %v1666 = vadd.f32 %v1566, %v1618
        %v1667 = vadd.f32 %v1567, %v1619
        %v1668 = vadd.f32 %v1568, %v1620
        %v1669 = vlaneseq
        %v1670 = vshrl.u32 %v1669, 7
        %v1671 = vsub.s32 6, %v1670
        %v1672 = vrot.slane %v1387, %v1671
        %v1673 = vmul.f32 %v1405, %v1672
        %v1674 = vmul.f32 %v1406, %v1672
        %v1675 = vmul.f32 %v1407, %v1672
        %v1676 = vmul.f32 %v1409, %v1672
        %v1677 = vmul.f32 %v1410, %v1672
        %v1678 = vmul.f32 %v1411, %v1672
        %v1679 = vmul.f32 %v1413, %v1672
        %v1680 = vmul.f32 %v1414, %v1672
        %v1681 = vmul.f32 %v1415, %v1672
        %v1682 = vmul.f32 %v1417, %v1672
        %v1683 = vmul.f32 %v1418, %v1672
        %v1684 = vmul.f32 %v1419, %v1672
        %v1685 = vmul.f32 %v1421, %v1672
        %v1686 = vmul.f32 %v1422, %v1672
        %v1687 = vmul.f32 %v1423, %v1672
        %v1688 = vmul.f32 %v1425, %v1672
        %v1689 = vmul.f32 %v1426, %v1672
        %v1690 = vmul.f32 %v1427, %v1672
        %v1691 = vmul.f32 %v1429, %v1672
        %v1692 = vmul.f32 %v1430, %v1672
        %v1693 = vmul.f32 %v1431, %v1672
        %v1694 = vmul.f32 %v1433, %v1672
        %v1695 = vmul.f32 %v1434, %v1672
        %v1696 = vmul.f32 %v1435, %v1672
        %v1697 = vmul.f32 %v1437, %v1672
        %v1698 = vmul.f32 %v1438, %v1672
        %v1699 = vmul.f32 %v1439, %v1672
        %v1700 = vmul.f32 %v1441, %v1672
        %v1701 = vmul.f32 %v1442, %v1672
        %v1702 = vmul.f32 %v1443, %v1672
        %v1703 = vmul.f32 %v1445, %v1672
        %v1704 = vmul.f32 %v1446, %v1672
        %v1705 = vmul.f32 %v1447, %v1672
        %v1706 = vmul.f32 %v1449, %v1672
        %v1707 = vmul.f32 %v1450, %v1672
        %v1708 = vmul.f32 %v1451, %v1672
        %v1709 = vmul.f32 %v1453, %v1672
        %v1710 = vmul.f32 %v1454, %v1672
        %v1711 = vmul.f32 %v1455, %v1672
        %v1712 = vmul.f32 %v1457, %v1672
        %v1713 = vmul.f32 %v1458, %v1672
        %v1714 = vmul.f32 %v1459, %v1672
        %v1715 = vmul.f32 %v1461, %v1672
        %v1716 = vmul.f32 %v1462, %v1672
        %v1717 = vmul.f32 %v1463, %v1672
        %v1718 = vmul.f32 %v1465, %v1672
        %v1719 = vmul.f32 %v1466, %v1672
        %v1720 = vmul.f32 %v1467, %v1672
        %v1721 = vadd.f32 %v1621, %v1673
        %v1722 = vadd.f32 %v1622, %v1674
        %v1723 = vadd.f32 %v1623, %v1675
        %v1724 = vadd.f32 %v1624, %v1676
        %v1725 = vadd.f32 %v1625, %v1677
        %v1726 = vadd.f32 %v1626, %v1678
        %v1727 = vadd.f32 %v1627, %v1679
        %v1728 = vadd.f32 %v1628, %v1680
        %v1729 = vadd.f32 %v1629, %v1681
        %v1730 = vadd.f32 %v1630, %v1682
        %v1731 = vadd.f32 %v1631, %v1683
        %v1732 = vadd.f32 %v1632, %v1684
        %v1733 = vadd.f32 %v1633, %v1685
        %v1734 = vadd.f32 %v1634, %v1686
        %v1735 = vadd.f32 %v1635, %v1687
        %v1736 = vadd.f32 %v1636, %v1688
        %v1737 = vadd.f32 %v1637, %v1689
        %v1738 = vadd.f32 %v1638, %v1690
        %v1739 = vadd.f32 %v1639, %v1691
        %v1740 = vadd.f32 %v1640, %v1692
        %v1741 = vadd.f32 %v1641, %v1693
        %v1742 = vadd.f32 %v1642, %v1694
        %v1743 = vadd.f32 %v1643, %v1695
        %v1744 = vadd.f32 %v1644, %v1696
        %v1745 = vadd.f32 %v1645, %v1697
        %v1746 = vadd.f32 %v1646, %v1698
        %v1747 = vadd.f32 %v1647, %v1699
        %v1748 = vadd.f32 %v1648, %v1700
        %v1749 = vadd.f32 %v1649, %v1701
        %v1750 = vadd.f32 %v1650, %v1702
        %v1751 = vadd.f32 %v1651, %v1703
        %v1752 = vadd.f32 %v1652, %v1704
        %v1753 = vadd.f32 %v1653, %v1705
        %v1754 = vadd.f32 %v1654, %v1706
        %v1755 = vadd.f32 %v1655, %v1707
        %v1756 = vadd.f32 %v1656, %v1708
        %v1757 = vadd.f32 %v1657, %v1709
        %v1758 = vadd.f32 %v1658, %v1710
        %v1759 = vadd.f32 %v1659, %v1711
        %v1760 = vadd.f32 %v1660, %v1712
        %v1761 = vadd.f32 %v1661, %v1713
        %v1762 = vadd.f32 %v1662, %v1714
        %v1763 = vadd.f32 %v1663, %v1715
        %v1764 = vadd.f32 %v1664, %v1716
        %v1765 = vadd.f32 %v1665, %v1717
        %v1766 = vadd.f32 %v1666, %v1718
        %v1767 = vadd.f32 %v1667, %v1719
        %v1768 = vadd.f32 %v1668, %v1720
        %v1769 = vlaneseq
        %v1770 = vshrl.u32 %v1769, 7
        %v1771 = vsub.s32 1, %v1770
        %v1772 = vrot.slane %v1387, %v1771
        %v1773 = vmul.f32 %v1398, %v1772
        %v1774 = vmul.f32 %v1399, %v1772
        %v1775 = vmul.f32 %v1402, %v1772
        %v1776 = vmul.f32 %v1403, %v1772
        %v1777 = vmul.f32 %v1406, %v1772
        %v1778 = vmul.f32 %v1407, %v1772
        %v1779 = vmul.f32 %v1410, %v1772
        %v1780 = vmul.f32 %v1411, %v1772
        %v1781 = vmul.f32 %v1414, %v1772
        %v1782 = vmul.f32 %v1415, %v1772
        %v1783 = vmul.f32 %v1418, %v1772
        %v1784 = vmul.f32 %v1419, %v1772
        %v1785 = vmul.f32 %v1422, %v1772
        %v1786 = vmul.f32 %v1423, %v1772
        %v1787 = vmul.f32 %v1426, %v1772
        %v1788 = vmul.f32 %v1427, %v1772
        %v1789 = vmul.f32 %v1430, %v1772
        %v1790 = vmul.f32 %v1431, %v1772
        %v1791 = vmul.f32 %v1434, %v1772
        %v1792 = vmul.f32 %v1435, %v1772
        %v1793 = vmul.f32 %v1438, %v1772
        %v1794 = vmul.f32 %v1439, %v1772
        %v1795 = vmul.f32 %v1442, %v1772
        %v1796 = vmul.f32 %v1443, %v1772
        %v1797 = vmul.f32 %v1446, %v1772
        %v1798 = vmul.f32 %v1447, %v1772
        %v1799 = vmul.f32 %v1450, %v1772
        %v1800 = vmul.f32 %v1451, %v1772
        %v1801 = vmul.f32 %v1454, %v1772
        %v1802 = vmul.f32 %v1455, %v1772
        %v1803 = vmul.f32 %v1458, %v1772
        %v1804 = vmul.f32 %v1459, %v1772
        %vm1837 = vcmask 1046528
        %v1838 = vrot.slane %v1773, 1
        %v1839 = vrot.slane %v1774, 1
        %v1840 = vsel %vm1837, %v1838, %v1839
        %v1841 = vrot.slane %v1775, 1
        %v1842 = vrot.slane %v1776, 1
        %v1843 = vsel %vm1837, %v1841, %v1842
        %v1844 = vrot.slane %v1777, 1
        %v1845 = vrot.slane %v1778, 1
        %v1846 = vsel %vm1837, %v1844, %v1845
        %v1847 = vrot.slane %v1779, 1
        %v1848 = vrot.slane %v1780, 1
        %v1849 = vsel %vm1837, %v1847, %v1848
        %v1850 = vrot.slane %v1781, 1
        %v1851 = vrot.slane %v1782, 1
        %v1852 = vsel %vm1837, %v1850, %v1851
        %v1853 = vrot.slane %v1783, 1
        %v1854 = vrot.slane %v1784, 1
        %v1855 = vsel %vm1837, %v1853, %v1854
        %v1856 = vrot.slane %v1785, 1
        %v1857 = vrot.slane %v1786, 1
        %v1858 = vsel %vm1837, %v1856, %v1857
        %v1859 = vrot.slane %v1787, 1
        %v1860 = vrot.slane %v1788, 1
        %v1861 = vsel %vm1837, %v1859, %v1860
        %v1862 = vrot.slane %v1789, 1
        %v1863 = vrot.slane %v1790, 1
        %v1864 = vsel %vm1837, %v1862, %v1863
        %v1865 = vrot.slane %v1791, 1
        %v1866 = vrot.slane %v1792, 1
        %v1867 = vsel %vm1837, %v1865, %v1866
        %v1868 = vrot.slane %v1793, 1
        %v1869 = vrot.slane %v1794, 1
        %v1870 = vsel %vm1837, %v1868, %v1869
        %v1871 = vrot.slane %v1795, 1
        %v1872 = vrot.slane %v1796, 1
        %v1873 = vsel %vm1837, %v1871, %v1872
        %v1874 = vrot.slane %v1797, 1
        %v1875 = vrot.slane %v1798, 1
        %v1876 = vsel %vm1837, %v1874, %v1875
        %v1877 = vrot.slane %v1799, 1
        %v1878 = vrot.slane %v1800, 1
        %v1879 = vsel %vm1837, %v1877, %v1878
        %v1880 = vrot.slane %v1801, 1
        %v1881 = vrot.slane %v1802, 1
        %v1882 = vsel %vm1837, %v1880, %v1881
        %v1883 = vrot.slane %v1803, 1
        %v1884 = vrot.slane %v1804, 1
        %v1885 = vsel %vm1837, %v1883, %v1884
        %v1934 = vadd.f32 %v1721, %v1838
        %v1935 = vadd.f32 %v1722, %v1840
        %v1936 = vadd.f32 %v1723, %v1839
        %v1937 = vadd.f32 %v1724, %v1841
        %v1938 = vadd.f32 %v1725, %v1843
        %v1939 = vadd.f32 %v1726, %v1842
        %v1940 = vadd.f32 %v1727, %v1844
        %v1941 = vadd.f32 %v1728, %v1846
        %v1942 = vadd.f32 %v1729, %v1845
        %v1943 = vadd.f32 %v1730, %v1847
        %v1944 = vadd.f32 %v1731, %v1849
        %v1945 = vadd.f32 %v1732, %v1848
        %v1946 = vadd.f32 %v1733, %v1850
        %v1947 = vadd.f32 %v1734, %v1852
        %v1948 = vadd.f32 %v1735, %v1851
        %v1949 = vadd.f32 %v1736, %v1853
        %v1950 = vadd.f32 %v1737, %v1855
        %v1951 = vadd.f32 %v1738, %v1854
        %v1952 = vadd.f32 %v1739, %v1856
        %v1953 = vadd.f32 %v1740, %v1858
        %v1954 = vadd.f32 %v1741, %v1857
        %v1955 = vadd.f32 %v1742, %v1859
        %v1956 = vadd.f32 %v1743, %v1861
        %v1957 = vadd.f32 %v1744, %v1860
        %v1958 = vadd.f32 %v1745, %v1862
        %v1959 = vadd.f32 %v1746, %v1864
        %v1960 = vadd.f32 %v1747, %v1863
        %v1961 = vadd.f32 %v1748, %v1865
        %v1962 = vadd.f32 %v1749, %v1867
        %v1963 = vadd.f32 %v1750, %v1866
        %v1964 = vadd.f32 %v1751, %v1868
        %v1965 = vadd.f32 %v1752, %v1870
        %v1966 = vadd.f32 %v1753, %v1869
        %v1967 = vadd.f32 %v1754, %v1871
        %v1968 = vadd.f32 %v1755, %v1873
        %v1969 = vadd.f32 %v1756, %v1872
        %v1970 = vadd.f32 %v1757, %v1874
        %v1971 = vadd.f32 %v1758, %v1876
        %v1972 = vadd.f32 %v1759, %v1875
        %v1973 = vadd.f32 %v1760, %v1877
        %v1974 = vadd.f32 %v1761, %v1879
        %v1975 = vadd.f32 %v1762, %v1878
        %v1976 = vadd.f32 %v1763, %v1880
        %v1977 = vadd.f32 %v1764, %v1882
        %v1978 = vadd.f32 %v1765, %v1881
        %v1979 = vadd.f32 %v1766, %v1883
        %v1980 = vadd.f32 %v1767, %v1885
        %v1981 = vadd.f32 %v1768, %v1884
        %v1982 = vlaneseq
        %v1983 = vshrl.u32 %v1982, 7
        %v1984 = vsub.s32 4, %v1983
        %v1985 = vrot.slane %v1387, %v1984
        %v1986 = vmul.f32 %v1402, %v1985
        %v1987 = vmul.f32 %v1403, %v1985
        %v1988 = vmul.f32 %v1406, %v1985
        %v1989 = vmul.f32 %v1407, %v1985
        %v1990 = vmul.f32 %v1410, %v1985
        %v1991 = vmul.f32 %v1411, %v1985
        %v1992 = vmul.f32 %v1414, %v1985
        %v1993 = vmul.f32 %v1415, %v1985
        %v1994 = vmul.f32 %v1418, %v1985
        %v1995 = vmul.f32 %v1419, %v1985
        %v1996 = vmul.f32 %v1422, %v1985
        %v1997 = vmul.f32 %v1423, %v1985
        %v1998 = vmul.f32 %v1426, %v1985
        %v1999 = vmul.f32 %v1427, %v1985
        %v2000 = vmul.f32 %v1430, %v1985
        %v2001 = vmul.f32 %v1431, %v1985
        %v2002 = vmul.f32 %v1434, %v1985
        %v2003 = vmul.f32 %v1435, %v1985
        %v2004 = vmul.f32 %v1438, %v1985
        %v2005 = vmul.f32 %v1439, %v1985
        %v2006 = vmul.f32 %v1442, %v1985
        %v2007 = vmul.f32 %v1443, %v1985
        %v2008 = vmul.f32 %v1446, %v1985
        %v2009 = vmul.f32 %v1447, %v1985
        %v2010 = vmul.f32 %v1450, %v1985
        %v2011 = vmul.f32 %v1451, %v1985
        %v2012 = vmul.f32 %v1454, %v1985
        %v2013 = vmul.f32 %v1455, %v1985
        %v2014 = vmul.f32 %v1458, %v1985
        %v2015 = vmul.f32 %v1459, %v1985
        %v2016 = vmul.f32 %v1462, %v1985
        %v2017 = vmul.f32 %v1463, %v1985
        %v2050 = vrot.slane %v1986, 1
        %v2051 = vrot.slane %v1987, 1
        %v2052 = vsel %vm1837, %v2050, %v2051
        %v2053 = vrot.slane %v1988, 1
        %v2054 = vrot.slane %v1989, 1
        %v2055 = vsel %vm1837, %v2053, %v2054
        %v2056 = vrot.slane %v1990, 1
        %v2057 = vrot.slane %v1991, 1
        %v2058 = vsel %vm1837, %v2056, %v2057
        %v2059 = vrot.slane %v1992, 1
        %v2060 = vrot.slane %v1993, 1
        %v2061 = vsel %vm1837, %v2059, %v2060
        %v2062 = vrot.slane %v1994, 1
        %v2063 = vrot.slane %v1995, 1
        %v2064 = vsel %vm1837, %v2062, %v2063
        %v2065 = vrot.slane %v1996, 1
        %v2066 = vrot.slane %v1997, 1
        %v2067 = vsel %vm1837, %v2065, %v2066
        %v2068 = vrot.slane %v1998, 1
        %v2069 = vrot.slane %v1999, 1
        %v2070 = vsel %vm1837, %v2068, %v2069
        %v2071 = vrot.slane %v2000, 1
        %v2072 = vrot.slane %v2001, 1
        %v2073 = vsel %vm1837, %v2071, %v2072
        %v2074 = vrot.slane %v2002, 1
        %v2075 = vrot.slane %v2003, 1
        %v2076 = vsel %vm1837, %v2074, %v2075
        %v2077 = vrot.slane %v2004, 1
        %v2078 = vrot.slane %v2005, 1
        %v2079 = vsel %vm1837, %v2077, %v2078
        %v2080 = vrot.slane %v2006, 1
        %v2081 = vrot.slane %v2007, 1
        %v2082 = vsel %vm1837, %v2080, %v2081
        %v2083 = vrot.slane %v2008, 1
        %v2084 = vrot.slane %v2009, 1
        %v2085 = vsel %vm1837, %v2083, %v2084
        %v2086 = vrot.slane %v2010, 1
        %v2087 = vrot.slane %v2011, 1
        %v2088 = vsel %vm1837, %v2086, %v2087
        %v2089 = vrot.slane %v2012, 1
        %v2090 = vrot.slane %v2013, 1
        %v2091 = vsel %vm1837, %v2089, %v2090
        %v2092 = vrot.slane %v2014, 1
        %v2093 = vrot.slane %v2015, 1
        %v2094 = vsel %vm1837, %v2092, %v2093
        %v2095 = vrot.slane %v2016, 1
        %v2096 = vrot.slane %v2017, 1
        %v2097 = vsel %vm1837, %v2095, %v2096
        %v2146 = vadd.f32 %v1934, %v2050
        %v2147 = vadd.f32 %v1935, %v2052
        %v2148 = vadd.f32 %v1936, %v2051
        %v2149 = vadd.f32 %v1937, %v2053
        %v2150 = vadd.f32 %v1938, %v2055
        %v2151 = vadd.f32 %v1939, %v2054
        %v2152 = vadd.f32 %v1940, %v2056
        %v2153 = vadd.f32 %v1941, %v2058
        %v2154 = vadd.f32 %v1942, %v2057
        %v2155 = vadd.f32 %v1943, %v2059
        %v2156 = vadd.f32 %v1944, %v2061
        %v2157 = vadd.f32 %v1945, %v2060
        %v2158 = vadd.f32 %v1946, %v2062
        %v2159 = vadd.f32 %v1947, %v2064
        %v2160 = vadd.f32 %v1948, %v2063
        %v2161 = vadd.f32 %v1949, %v2065
        %v2162 = vadd.f32 %v1950, %v2067
        %v2163 = vadd.f32 %v1951, %v2066
        %v2164 = vadd.f32 %v1952, %v2068
        %v2165 = vadd.f32 %v1953, %v2070
        %v2166 = vadd.f32 %v1954, %v2069
        %v2167 = vadd.f32 %v1955, %v2071
        %v2168 = vadd.f32 %v1956, %v2073
        %v2169 = vadd.f32 %v1957, %v2072
        %v2170 = vadd.f32 %v1958, %v2074
        %v2171 = vadd.f32 %v1959, %v2076
        %v2172 = vadd.f32 %v1960, %v2075
        %v2173 = vadd.f32 %v1961, %v2077
        %v2174 = vadd.f32 %v1962, %v2079
        %v2175 = vadd.f32 %v1963, %v2078
        %v2176 = vadd.f32 %v1964, %v2080
        %v2177 = vadd.f32 %v1965, %v2082
        %v2178 = vadd.f32 %v1966, %v2081
        %v2179 = vadd.f32 %v1967, %v2083
        %v2180 = vadd.f32 %v1968, %v2085
        %v2181 = vadd.f32 %v1969, %v2084
        %v2182 = vadd.f32 %v1970, %v2086
        %v2183 = vadd.f32 %v1971, %v2088
        %v2184 = vadd.f32 %v1972, %v2087
        %v2185 = vadd.f32 %v1973, %v2089
        %v2186 = vadd.f32 %v1974, %v2091
        %v2187 = vadd.f32 %v1975, %v2090
        %v2188 = vadd.f32 %v1976, %v2092
        %v2189 = vadd.f32 %v1977, %v2094
        %v2190 = vadd.f32 %v1978, %v2093
        %v2191 = vadd.f32 %v1979, %v2095
        %v2192 = vadd.f32 %v1980, %v2097
        %v2193 = vadd.f32 %v1981, %v2096
        %v2194 = vlaneseq
        %v2195 = vshrl.u32 %v2194, 7
        %v2196 = vsub.s32 7, %v2195
        %v2197 = vrot.slane %v1387, %v2196
        %v2198 = vmul.f32 %v1406, %v2197
        %v2199 = vmul.f32 %v1407, %v2197
        %v2200 = vmul.f32 %v1410, %v2197
        %v2201 = vmul.f32 %v1411, %v2197
        %v2202 = vmul.f32 %v1414, %v2197
        %v2203 = vmul.f32 %v1415, %v2197
        %v2204 = vmul.f32 %v1418, %v2197
        %v2205 = vmul.f32 %v1419, %v2197
        %v2206 = vmul.f32 %v1422, %v2197
        %v2207 = vmul.f32 %v1423, %v2197
        %v2208 = vmul.f32 %v1426, %v2197
        %v2209 = vmul.f32 %v1427, %v2197
        %v2210 = vmul.f32 %v1430, %v2197
        %v2211 = vmul.f32 %v1431, %v2197
        %v2212 = vmul.f32 %v1434, %v2197
        %v2213 = vmul.f32 %v1435, %v2197
        %v2214 = vmul.f32 %v1438, %v2197
        %v2215 = vmul.f32 %v1439, %v2197
        %v2216 = vmul.f32 %v1442, %v2197
        %v2217 = vmul.f32 %v1443, %v2197
        %v2218 = vmul.f32 %v1446, %v2197
        %v2219 = vmul.f32 %v1447, %v2197
        %v2220 = vmul.f32 %v1450, %v2197
        %v2221 = vmul.f32 %v1451, %v2197
        %v2222 = vmul.f32 %v1454, %v2197
        %v2223 = vmul.f32 %v1455, %v2197
        %v2224 = vmul.f32 %v1458, %v2197
        %v2225 = vmul.f32 %v1459, %v2197
        %v2226 = vmul.f32 %v1462, %v2197
        %v2227 = vmul.f32 %v1463, %v2197
        %v2228 = vmul.f32 %v1466, %v2197
        %v2229 = vmul.f32 %v1467, %v2197
        %v2262 = vrot.slane %v2198, 1
        %v2263 = vrot.slane %v2199, 1
        %v2264 = vsel %vm1837, %v2262, %v2263
        %v2265 = vrot.slane %v2200, 1
        %v2266 = vrot.slane %v2201, 1
        %v2267 = vsel %vm1837, %v2265, %v2266
        %v2268 = vrot.slane %v2202, 1
        %v2269 = vrot.slane %v2203, 1
        %v2270 = vsel %vm1837, %v2268, %v2269
        %v2271 = vrot.slane %v2204, 1
        %v2272 = vrot.slane %v2205, 1
        %v2273 = vsel %vm1837, %v2271, %v2272
        %v2274 = vrot.slane %v2206, 1
        %v2275 = vrot.slane %v2207, 1
        %v2276 = vsel %vm1837, %v2274, %v2275
        %v2277 = vrot.slane %v2208, 1
        %v2278 = vrot.slane %v2209, 1
        %v2279 = vsel %vm1837, %v2277, %v2278
        %v2280 = vrot.slane %v2210, 1
        %v2281 = vrot.slane %v2211, 1
        %v2282 = vsel %vm1837, %v2280, %v2281
        %v2283 = vrot.slane %v2212, 1
        %v2284 = vrot.slane %v2213, 1
        %v2285 = vsel %vm1837, %v2283, %v2284
        %v2286 = vrot.slane %v2214, 1
        %v2287 = vrot.slane %v2215, 1
        %v2288 = vsel %vm1837, %v2286, %v2287
        %v2289 = vrot.slane %v2216, 1
        %v2290 = vrot.slane %v2217, 1
        %v2291 = vsel %vm1837, %v2289, %v2290
        %v2292 = vrot.slane %v2218, 1
        %v2293 = vrot.slane %v2219, 1
        %v2294 = vsel %vm1837, %v2292, %v2293
        %v2295 = vrot.slane %v2220, 1
        %v2296 = vrot.slane %v2221, 1
        %v2297 = vsel %vm1837, %v2295, %v2296
        %v2298 = vrot.slane %v2222, 1
        %v2299 = vrot.slane %v2223, 1
        %v2300 = vsel %vm1837, %v2298, %v2299
        %v2301 = vrot.slane %v2224, 1
        %v2302 = vrot.slane %v2225, 1
        %v2303 = vsel %vm1837, %v2301, %v2302
        %v2304 = vrot.slane %v2226, 1
        %v2305 = vrot.slane %v2227, 1
        %v2306 = vsel %vm1837, %v2304, %v2305
        %v2307 = vrot.slane %v2228, 1
        %v2308 = vrot.slane %v2229, 1
        %v2309 = vsel %vm1837, %v2307, %v2308
        %v2358 = vadd.f32 %v2146, %v2262
        %v2359 = vadd.f32 %v2147, %v2264
        %v2360 = vadd.f32 %v2148, %v2263
        %v2361 = vadd.f32 %v2149, %v2265
        %v2362 = vadd.f32 %v2150, %v2267
        %v2363 = vadd.f32 %v2151, %v2266
        %v2364 = vadd.f32 %v2152, %v2268
        %v2365 = vadd.f32 %v2153, %v2270
        %v2366 = vadd.f32 %v2154, %v2269
        %v2367 = vadd.f32 %v2155, %v2271
        %v2368 = vadd.f32 %v2156, %v2273
        %v2369 = vadd.f32 %v2157, %v2272
        %v2370 = vadd.f32 %v2158, %v2274
        %v2371 = vadd.f32 %v2159, %v2276
        %v2372 = vadd.f32 %v2160, %v2275
        %v2373 = vadd.f32 %v2161, %v2277
        %v2374 = vadd.f32 %v2162, %v2279
        %v2375 = vadd.f32 %v2163, %v2278
        %v2376 = vadd.f32 %v2164, %v2280
        %v2377 = vadd.f32 %v2165, %v2282
        %v2378 = vadd.f32 %v2166, %v2281
        %v2379 = vadd.f32 %v2167, %v2283
        %v2380 = vadd.f32 %v2168, %v2285
        %v2381 = vadd.f32 %v2169, %v2284
        %v2382 = vadd.f32 %v2170, %v2286
        %v2383 = vadd.f32 %v2171, %v2288
        %v2384 = vadd.f32 %v2172, %v2287
        %v2385 = vadd.f32 %v2173, %v2289
        %v2386 = vadd.f32 %v2174, %v2291
        %v2387 = vadd.f32 %v2175, %v2290
        %v2388 = vadd.f32 %v2176, %v2292
        %v2389 = vadd.f32 %v2177, %v2294
        %v2390 = vadd.f32 %v2178, %v2293
        %v2391 = vadd.f32 %v2179, %v2295
        %v2392 = vadd.f32 %v2180, %v2297
        %v2393 = vadd.f32 %v2181, %v2296
        %v2394 = vadd.f32 %v2182, %v2298
        %v2395 = vadd.f32 %v2183, %v2300
        %v2396 = vadd.f32 %v2184, %v2299
        %v2397 = vadd.f32 %v2185, %v2301
        %v2398 = vadd.f32 %v2186, %v2303
        %v2399 = vadd.f32 %v2187, %v2302
        %v2400 = vadd.f32 %v2188, %v2304
        %v2401 = vadd.f32 %v2189, %v2306
        %v2402 = vadd.f32 %v2190, %v2305
        %v2403 = vadd.f32 %v2191, %v2307
        %v2404 = vadd.f32 %v2192, %v2309
        %v2405 = vadd.f32 %v2193, %v2308
        %v2406 = vlaneseq
        %v2407 = vshrl.u32 %v2406, 7
        %v2408 = vsub.s32 2, %v2407
        %v2409 = vrot.slane %v1387, %v2408
        %v2410 = vmul.f32 %v1398, %v2409
        %v2411 = vmul.f32 %v1399, %v2409
        %v2412 = vmul.f32 %v1400, %v2409
        %v2413 = vmul.f32 %v1402, %v2409
        %v2414 = vmul.f32 %v1403, %v2409
        %v2415 = vmul.f32 %v1404, %v2409
        %v2416 = vmul.f32 %v1406, %v2409
        %v2417 = vmul.f32 %v1407, %v2409
        %v2418 = vmul.f32 %v1408, %v2409
        %v2419 = vmul.f32 %v1410, %v2409
        %v2420 = vmul.f32 %v1411, %v2409
        %v2421 = vmul.f32 %v1412, %v2409
        %v2422 = vmul.f32 %v1414, %v2409
        %v2423 = vmul.f32 %v1415, %v2409
        %v2424 = vmul.f32 %v1416, %v2409
        %v2425 = vmul.f32 %v1418, %v2409
        %v2426 = vmul.f32 %v1419, %v2409
        %v2427 = vmul.f32 %v1420, %v2409
        %v2428 = vmul.f32 %v1422, %v2409
        %v2429 = vmul.f32 %v1423, %v2409
        %v2430 = vmul.f32 %v1424, %v2409
        %v2431 = vmul.f32 %v1426, %v2409
        %v2432 = vmul.f32 %v1427, %v2409
        %v2433 = vmul.f32 %v1428, %v2409
        %v2434 = vmul.f32 %v1430, %v2409
        %v2435 = vmul.f32 %v1431, %v2409
        %v2436 = vmul.f32 %v1432, %v2409
        %v2437 = vmul.f32 %v1434, %v2409
        %v2438 = vmul.f32 %v1435, %v2409
        %v2439 = vmul.f32 %v1436, %v2409
        %v2440 = vmul.f32 %v1438, %v2409
        %v2441 = vmul.f32 %v1439, %v2409
        %v2442 = vmul.f32 %v1440, %v2409
        %v2443 = vmul.f32 %v1442, %v2409
        %v2444 = vmul.f32 %v1443, %v2409
        %v2445 = vmul.f32 %v1444, %v2409
        %v2446 = vmul.f32 %v1446, %v2409
        %v2447 = vmul.f32 %v1447, %v2409
        %v2448 = vmul.f32 %v1448, %v2409
        %v2449 = vmul.f32 %v1450, %v2409
        %v2450 = vmul.f32 %v1451, %v2409
        %v2451 = vmul.f32 %v1452, %v2409
        %v2452 = vmul.f32 %v1454, %v2409
        %v2453 = vmul.f32 %v1455, %v2409
        %v2454 = vmul.f32 %v1456, %v2409
        %v2455 = vmul.f32 %v1458, %v2409
        %v2456 = vmul.f32 %v1459, %v2409
        %v2457 = vmul.f32 %v1460, %v2409
        %vm2506 = vcmask 1045504
        %v2507 = vrot.slane %v2410, 2
        %v2508 = vrot.slane %v2411, 2
        %v2509 = vsel %vm2506, %v2507, %v2508
        %v2510 = vrot.slane %v2412, 2
        %v2511 = vsel %vm2506, %v2508, %v2510
        %v2512 = vrot.slane %v2413, 2
        %v2513 = vrot.slane %v2414, 2
        %v2514 = vsel %vm2506, %v2512, %v2513
        %v2515 = vrot.slane %v2415, 2
        %v2516 = vsel %vm2506, %v2513, %v2515
        %v2517 = vrot.slane %v2416, 2
        %v2518 = vrot.slane %v2417, 2
        %v2519 = vsel %vm2506, %v2517, %v2518
        %v2520 = vrot.slane %v2418, 2
        %v2521 = vsel %vm2506, %v2518, %v2520
        %v2522 = vrot.slane %v2419, 2
        %v2523 = vrot.slane %v2420, 2
        %v2524 = vsel %vm2506, %v2522, %v2523
        %v2525 = vrot.slane %v2421, 2
        %v2526 = vsel %vm2506, %v2523, %v2525
        %v2527 = vrot.slane %v2422, 2
        %v2528 = vrot.slane %v2423, 2
        %v2529 = vsel %vm2506, %v2527, %v2528
        %v2530 = vrot.slane %v2424, 2
        %v2531 = vsel %vm2506, %v2528, %v2530
        %v2532 = vrot.slane %v2425, 2
        %v2533 = vrot.slane %v2426, 2
        %v2534 = vsel %vm2506, %v2532, %v2533
        %v2535 = vrot.slane %v2427, 2
        %v2536 = vsel %vm2506, %v2533, %v2535
        %v2537 = vrot.slane %v2428, 2
        %v2538 = vrot.slane %v2429, 2
        %v2539 = vsel %vm2506, %v2537, %v2538
        %v2540 = vrot.slane %v2430, 2
        %v2541 = vsel %vm2506, %v2538, %v2540
        %v2542 = vrot.slane %v2431, 2
        %v2543 = vrot.slane %v2432, 2
        %v2544 = vsel %vm2506, %v2542, %v2543
        %v2545 = vrot.slane %v2433, 2
        %v2546 = vsel %vm2506, %v2543, %v2545
        %v2547 = vrot.slane %v2434, 2
        %v2548 = vrot.slane %v2435, 2
        %v2549 = vsel %vm2506, %v2547, %v2548
        %v2550 = vrot.slane %v2436, 2
        %v2551 = vsel %vm2506, %v2548, %v2550
        %v2552 = vrot.slane %v2437, 2
        %v2553 = vrot.slane %v2438, 2
        %v2554 = vsel %vm2506, %v2552, %v2553
        %v2555 = vrot.slane %v2439, 2
        %v2556 = vsel %vm2506, %v2553, %v2555
        %v2557 = vrot.slane %v2440, 2
        %v2558 = vrot.slane %v2441, 2
        %v2559 = vsel %vm2506, %v2557, %v2558
        %v2560 = vrot.slane %v2442, 2
        %v2561 = vsel %vm2506, %v2558, %v2560
        %v2562 = vrot.slane %v2443, 2
        %v2563 = vrot.slane %v2444, 2
        %v2564 = vsel %vm2506, %v2562, %v2563
        %v2565 = vrot.slane %v2445, 2
        %v2566 = vsel %vm2506, %v2563, %v2565
        %v2567 = vrot.slane %v2446, 2
        %v2568 = vrot.slane %v2447, 2
        %v2569 = vsel %vm2506, %v2567, %v2568
        %v2570 = vrot.slane %v2448, 2
        %v2571 = vsel %vm2506, %v2568, %v2570
        %v2572 = vrot.slane %v2449, 2
        %v2573 = vrot.slane %v2450, 2
        %v2574 = vsel %vm2506, %v2572, %v2573
        %v2575 = vrot.slane %v2451, 2
        %v2576 = vsel %vm2506, %v2573, %v2575
        %v2577 = vrot.slane %v2452, 2
        %v2578 = vrot.slane %v2453, 2
        %v2579 = vsel %vm2506, %v2577, %v2578
        %v2580 = vrot.slane %v2454, 2
        %v2581 = vsel %vm2506, %v2578, %v2580
        %v2582 = vrot.slane %v2455, 2
        %v2583 = vrot.slane %v2456, 2
        %v2584 = vsel %vm2506, %v2582, %v2583
        %v2585 = vrot.slane %v2457, 2
        %v2586 = vsel %vm2506, %v2583, %v2585
        %v2635 = vadd.f32 %v2358, %v2507
        %v2636 = vadd.f32 %v2359, %v2509
        %v2637 = vadd.f32 %v2360, %v2511
        %v2638 = vadd.f32 %v2361, %v2512
        %v2639 = vadd.f32 %v2362, %v2514
        %v2640 = vadd.f32 %v2363, %v2516
        %v2641 = vadd.f32 %v2364, %v2517
        %v2642 = vadd.f32 %v2365, %v2519
        %v2643 = vadd.f32 %v2366, %v2521
        %v2644 = vadd.f32 %v2367, %v2522
        %v2645 = vadd.f32 %v2368, %v2524
        %v2646 = vadd.f32 %v2369, %v2526
        %v2647 = vadd.f32 %v2370, %v2527
        %v2648 = vadd.f32 %v2371, %v2529
        %v2649 = vadd.f32 %v2372, %v2531
        %v2650 = vadd.f32 %v2373, %v2532
        %v2651 = vadd.f32 %v2374, %v2534
        %v2652 = vadd.f32 %v2375, %v2536
        %v2653 = vadd.f32 %v2376, %v2537
        %v2654 = vadd.f32 %v2377, %v2539
        %v2655 = vadd.f32 %v2378, %v2541
        %v2656 = vadd.f32 %v2379, %v2542
        %v2657 = vadd.f32 %v2380, %v2544
        %v2658 = vadd.f32 %v2381, %v2546
        %v2659 = vadd.f32 %v2382, %v2547
        %v2660 = vadd.f32 %v2383, %v2549
        %v2661 = vadd.f32 %v2384, %v2551
        %v2662 = vadd.f32 %v2385, %v2552
        %v2663 = vadd.f32 %v2386, %v2554
        %v2664 = vadd.f32 %v2387, %v2556
        %v2665 = vadd.f32 %v2388, %v2557
        %v2666 = vadd.f32 %v2389, %v2559
        %v2667 = vadd.f32 %v2390, %v2561
        %v2668 = vadd.f32 %v2391, %v2562
        %v2669 = vadd.f32 %v2392, %v2564
        %v2670 = vadd.f32 %v2393, %v2566
        %v2671 = vadd.f32 %v2394, %v2567
        %v2672 = vadd.f32 %v2395, %v2569
        %v2673 = vadd.f32 %v2396, %v2571
        %v2674 = vadd.f32 %v2397, %v2572
        %v2675 = vadd.f32 %v2398, %v2574
        %v2676 = vadd.f32 %v2399, %v2576
        %v2677 = vadd.f32 %v2400, %v2577
        %v2678 = vadd.f32 %v2401, %v2579
        %v2679 = vadd.f32 %v2402, %v2581
        %v2680 = vadd.f32 %v2403, %v2582
        %v2681 = vadd.f32 %v2404, %v2584
        %v2682 = vadd.f32 %v2405, %v2586
        %v2683 = vlaneseq
        %v2684 = vshrl.u32 %v2683, 7
        %v2685 = vsub.s32 5, %v2684
        %v2686 = vrot.slane %v1387, %v2685
        %v2687 = vmul.f32 %v1402, %v2686
        %v2688 = vmul.f32 %v1403, %v2686
        %v2689 = vmul.f32 %v1404, %v2686
        %v2690 = vmul.f32 %v1406, %v2686
        %v2691 = vmul.f32 %v1407, %v2686
        %v2692 = vmul.f32 %v1408, %v2686
        %v2693 = vmul.f32 %v1410, %v2686
        %v2694 = vmul.f32 %v1411, %v2686
        %v2695 = vmul.f32 %v1412, %v2686
        %v2696 = vmul.f32 %v1414, %v2686
        %v2697 = vmul.f32 %v1415, %v2686
        %v2698 = vmul.f32 %v1416, %v2686
        %v2699 = vmul.f32 %v1418, %v2686
        %v2700 = vmul.f32 %v1419, %v2686
        %v2701 = vmul.f32 %v1420, %v2686
        %v2702 = vmul.f32 %v1422, %v2686
        %v2703 = vmul.f32 %v1423, %v2686
        %v2704 = vmul.f32 %v1424, %v2686
        %v2705 = vmul.f32 %v1426, %v2686
        %v2706 = vmul.f32 %v1427, %v2686
        %v2707 = vmul.f32 %v1428, %v2686
        %v2708 = vmul.f32 %v1430, %v2686
        %v2709 = vmul.f32 %v1431, %v2686
        %v2710 = vmul.f32 %v1432, %v2686
        %v2711 = vmul.f32 %v1434, %v2686
        %v2712 = vmul.f32 %v1435, %v2686
        %v2713 = vmul.f32 %v1436, %v2686
        %v2714 = vmul.f32 %v1438, %v2686
        %v2715 = vmul.f32 %v1439, %v2686
        %v2716 = vmul.f32 %v1440, %v2686
        %v2717 = vmul.f32 %v1442, %v2686
        %v2718 = vmul.f32 %v1443, %v2686
        %v2719 = vmul.f32 %v1444, %v2686
        %v2720 = vmul.f32 %v1446, %v2686
        %v2721 = vmul.f32 %v1447, %v2686
        %v2722 = vmul.f32 %v1448, %v2686
        %v2723 = vmul.f32 %v1450, %v2686
        %v2724 = vmul.f32 %v1451, %v2686
        %v2725 = vmul.f32 %v1452, %v2686
        %v2726 = vmul.f32 %v1454, %v2686
        %v2727 = vmul.f32 %v1455, %v2686
        %v2728 = vmul.f32 %v1456, %v2686
        %v2729 = vmul.f32 %v1458, %v2686
        %v2730 = vmul.f32 %v1459, %v2686
        %v2731 = vmul.f32 %v1460, %v2686
        %v2732 = vmul.f32 %v1462, %v2686
        %v2733 = vmul.f32 %v1463, %v2686
        %v2734 = vmul.f32 %v1464, %v2686
        %v2783 = vrot.slane %v2687, 2
        %v2784 = vrot.slane %v2688, 2
        %v2785 = vsel %vm2506, %v2783, %v2784
        %v2786 = vrot.slane %v2689, 2
        %v2787 = vsel %vm2506, %v2784, %v2786
        %v2788 = vrot.slane %v2690, 2
        %v2789 = vrot.slane %v2691, 2
        %v2790 = vsel %vm2506, %v2788, %v2789
        %v2791 = vrot.slane %v2692, 2
        %v2792 = vsel %vm2506, %v2789, %v2791
        %v2793 = vrot.slane %v2693, 2
        %v2794 = vrot.slane %v2694, 2
        %v2795 = vsel %vm2506, %v2793, %v2794
        %v2796 = vrot.slane %v2695, 2
        %v2797 = vsel %vm2506, %v2794, %v2796
        %v2798 = vrot.slane %v2696, 2
        %v2799 = vrot.slane %v2697, 2
        %v2800 = vsel %vm2506, %v2798, %v2799
        %v2801 = vrot.slane %v2698, 2
        %v2802 = vsel %vm2506, %v2799, %v2801
        %v2803 = vrot.slane %v2699, 2
        %v2804 = vrot.slane %v2700, 2
        %v2805 = vsel %vm2506, %v2803, %v2804
        %v2806 = vrot.slane %v2701, 2
        %v2807 = vsel %vm2506, %v2804, %v2806
        %v2808 = vrot.slane %v2702, 2
        %v2809 = vrot.slane %v2703, 2
        %v2810 = vsel %vm2506, %v2808, %v2809
        %v2811 = vrot.slane %v2704, 2
        %v2812 = vsel %vm2506, %v2809, %v2811
        %v2813 = vrot.slane %v2705, 2
        %v2814 = vrot.slane %v2706, 2
        %v2815 = vsel %vm2506, %v2813, %v2814
        %v2816 = vrot.slane %v2707, 2
        %v2817 = vsel %vm2506, %v2814, %v2816
        %v2818 = vrot.slane %v2708, 2
        %v2819 = vrot.slane %v2709, 2
        %v2820 = vsel %vm2506, %v2818, %v2819
        %v2821 = vrot.slane %v2710, 2
        %v2822 = vsel %vm2506, %v2819, %v2821
        %v2823 = vrot.slane %v2711, 2
        %v2824 = vrot.slane %v2712, 2
        %v2825 = vsel %vm2506, %v2823, %v2824
        %v2826 = vrot.slane %v2713, 2
        %v2827 = vsel %vm2506, %v2824, %v2826
        %v2828 = vrot.slane %v2714, 2
        %v2829 = vrot.slane %v2715, 2
        %v2830 = vsel %vm2506, %v2828, %v2829
        %v2831 = vrot.slane %v2716, 2
        %v2832 = vsel %vm2506, %v2829, %v2831
        %v2833 = vrot.slane %v2717, 2
        %v2834 = vrot.slane %v2718, 2
        %v2835 = vsel %vm2506, %v2833, %v2834
        %v2836 = vrot.slane %v2719, 2
        %v2837 = vsel %vm2506, %v2834, %v2836
        %v2838 = vrot.slane %v2720, 2
        %v2839 = vrot.slane %v2721, 2
        %v2840 = vsel %vm2506, %v2838, %v2839
        %v2841 = vrot.slane %v2722, 2
        %v2842 = vsel %vm2506, %v2839, %v2841
        %v2843 = vrot.slane %v2723, 2
        %v2844 = vrot.slane %v2724, 2
        %v2845 = vsel %vm2506, %v2843, %v2844
        %v2846 = vrot.slane %v2725, 2
        %v2847 = vsel %vm2506, %v2844, %v2846
        %v2848 = vrot.slane %v2726, 2
        %v2849 = vrot.slane %v2727, 2
        %v2850 = vsel %vm2506, %v2848, %v2849
        %v2851 = vrot.slane %v2728, 2
        %v2852 = vsel %vm2506, %v2849, %v2851
        %v2853 = vrot.slane %v2729, 2
        %v2854 = vrot.slane %v2730, 2
        %v2855 = vsel %vm2506, %v2853, %v2854
        %v2856 = vrot.slane %v2731, 2
        %v2857 = vsel %vm2506, %v2854, %v2856
        %v2858 = vrot.slane %v2732, 2
        %v2859 = vrot.slane %v2733, 2
        %v2860 = vsel %vm2506, %v2858, %v2859
        %v2861 = vrot.slane %v2734, 2
        %v2862 = vsel %vm2506, %v2859, %v2861
        %v2911 = vadd.f32 %v2635, %v2783
        %v2912 = vadd.f32 %v2636, %v2785
        %v2913 = vadd.f32 %v2637, %v2787
        %v2914 = vadd.f32 %v2638, %v2788
        %v2915 = vadd.f32 %v2639, %v2790
        %v2916 = vadd.f32 %v2640, %v2792
        %v2917 = vadd.f32 %v2641, %v2793
        %v2918 = vadd.f32 %v2642, %v2795
        %v2919 = vadd.f32 %v2643, %v2797
        %v2920 = vadd.f32 %v2644, %v2798
        %v2921 = vadd.f32 %v2645, %v2800
        %v2922 = vadd.f32 %v2646, %v2802
        %v2923 = vadd.f32 %v2647, %v2803
        %v2924 = vadd.f32 %v2648, %v2805
        %v2925 = vadd.f32 %v2649, %v2807
        %v2926 = vadd.f32 %v2650, %v2808
        %v2927 = vadd.f32 %v2651, %v2810
        %v2928 = vadd.f32 %v2652, %v2812
        %v2929 = vadd.f32 %v2653, %v2813
        %v2930 = vadd.f32 %v2654, %v2815
        %v2931 = vadd.f32 %v2655, %v2817
        %v2932 = vadd.f32 %v2656, %v2818
        %v2933 = vadd.f32 %v2657, %v2820
        %v2934 = vadd.f32 %v2658, %v2822
        %v2935 = vadd.f32 %v2659, %v2823
        %v2936 = vadd.f32 %v2660, %v2825
        %v2937 = vadd.f32 %v2661, %v2827
        %v2938 = vadd.f32 %v2662, %v2828
        %v2939 = vadd.f32 %v2663, %v2830
        %v2940 = vadd.f32 %v2664, %v2832
        %v2941 = vadd.f32 %v2665, %v2833
        %v2942 = vadd.f32 %v2666, %v2835
        %v2943 = vadd.f32 %v2667, %v2837
        %v2944 = vadd.f32 %v2668, %v2838
        %v2945 = vadd.f32 %v2669, %v2840
        %v2946 = vadd.f32 %v2670, %v2842
        %v2947 = vadd.f32 %v2671, %v2843
        %v2948 = vadd.f32 %v2672, %v2845
        %v2949 = vadd.f32 %v2673, %v2847
        %v2950 = vadd.f32 %v2674, %v2848
        %v2951 = vadd.f32 %v2675, %v2850
        %v2952 = vadd.f32 %v2676, %v2852
        %v2953 = vadd.f32 %v2677, %v2853
        %v2954 = vadd.f32 %v2678, %v2855
        %v2955 = vadd.f32 %v2679, %v2857
        %v2956 = vadd.f32 %v2680, %v2858
        %v2957 = vadd.f32 %v2681, %v2860
        %v2958 = vadd.f32 %v2682, %v2862
        %v2959 = vlaneseq
        %v2960 = vshrl.u32 %v2959, 7
        %v2961 = vsub.s32 0, %v2960
        %v2962 = vrot.slane %v1388, %v2961
        %v2963 = vmul.f32 %v1406, %v2962
        %v2964 = vmul.f32 %v1407, %v2962
        %v2965 = vmul.f32 %v1408, %v2962
        %v2966 = vmul.f32 %v1410, %v2962
        %v2967 = vmul.f32 %v1411, %v2962
        %v2968 = vmul.f32 %v1412, %v2962
        %v2969 = vmul.f32 %v1414, %v2962
        %v2970 = vmul.f32 %v1415, %v2962
        %v2971 = vmul.f32 %v1416, %v2962
        %v2972 = vmul.f32 %v1418, %v2962
        %v2973 = vmul.f32 %v1419, %v2962
        %v2974 = vmul.f32 %v1420, %v2962
        %v2975 = vmul.f32 %v1422, %v2962
        %v2976 = vmul.f32 %v1423, %v2962
        %v2977 = vmul.f32 %v1424, %v2962
        %v2978 = vmul.f32 %v1426, %v2962
        %v2979 = vmul.f32 %v1427, %v2962
        %v2980 = vmul.f32 %v1428, %v2962
        %v2981 = vmul.f32 %v1430, %v2962
        %v2982 = vmul.f32 %v1431, %v2962
        %v2983 = vmul.f32 %v1432, %v2962
        %v2984 = vmul.f32 %v1434, %v2962
        %v2985 = vmul.f32 %v1435, %v2962
        %v2986 = vmul.f32 %v1436, %v2962
        %v2987 = vmul.f32 %v1438, %v2962
        %v2988 = vmul.f32 %v1439, %v2962
        %v2989 = vmul.f32 %v1440, %v2962
        %v2990 = vmul.f32 %v1442, %v2962
        %v2991 = vmul.f32 %v1443, %v2962
        %v2992 = vmul.f32 %v1444, %v2962
        %v2993 = vmul.f32 %v1446, %v2962
        %v2994 = vmul.f32 %v1447, %v2962
        %v2995 = vmul.f32 %v1448, %v2962
        %v2996 = vmul.f32 %v1450, %v2962
        %v2997 = vmul.f32 %v1451, %v2962
        %v2998 = vmul.f32 %v1452, %v2962
        %v2999 = vmul.f32 %v1454, %v2962
        %v3000 = vmul.f32 %v1455, %v2962
        %v3001 = vmul.f32 %v1456, %v2962
        %v3002 = vmul.f32 %v1458, %v2962
        %v3003 = vmul.f32 %v1459, %v2962
        %v3004 = vmul.f32 %v1460, %v2962
        %v3005 = vmul.f32 %v1462, %v2962
        %v3006 = vmul.f32 %v1463, %v2962
        %v3007 = vmul.f32 %v1464, %v2962
        %v3008 = vmul.f32 %v1466, %v2962
        %v3009 = vmul.f32 %v1467, %v2962
        %v3010 = vmul.f32 %v1468, %v2962
        %v3059 = vrot.slane %v2963, 2
        %v3060 = vrot.slane %v2964, 2
        %v3061 = vsel %vm2506, %v3059, %v3060
        %v3062 = vrot.slane %v2965, 2
        %v3063 = vsel %vm2506, %v3060, %v3062
        %v3064 = vrot.slane %v2966, 2
        %v3065 = vrot.slane %v2967, 2
        %v3066 = vsel %vm2506, %v3064, %v3065
        %v3067 = vrot.slane %v2968, 2
        %v3068 = vsel %vm2506, %v3065, %v3067
        %v3069 = vrot.slane %v2969, 2
        %v3070 = vrot.slane %v2970, 2
        %v3071 = vsel %vm2506, %v3069, %v3070
        %v3072 = vrot.slane %v2971, 2
        %v3073 = vsel %vm2506, %v3070, %v3072
        %v3074 = vrot.slane %v2972, 2
        %v3075 = vrot.slane %v2973, 2
        %v3076 = vsel %vm2506, %v3074, %v3075
        %v3077 = vrot.slane %v2974, 2
        %v3078 = vsel %vm2506, %v3075, %v3077
        %v3079 = vrot.slane %v2975, 2
        %v3080 = vrot.slane %v2976, 2
        %v3081 = vsel %vm2506, %v3079, %v3080
        %v3082 = vrot.slane %v2977, 2
        %v3083 = vsel %vm2506, %v3080, %v3082
        %v3084 = vrot.slane %v2978, 2
        %v3085 = vrot.slane %v2979, 2
        %v3086 = vsel %vm2506, %v3084, %v3085
        %v3087 = vrot.slane %v2980, 2
        %v3088 = vsel %vm2506, %v3085, %v3087
        %v3089 = vrot.slane %v2981, 2
        %v3090 = vrot.slane %v2982, 2
        %v3091 = vsel %vm2506, %v3089, %v3090
        %v3092 = vrot.slane %v2983, 2
        %v3093 = vsel %vm2506, %v3090, %v3092
        %v3094 = vrot.slane %v2984, 2
        %v3095 = vrot.slane %v2985, 2
        %v3096 = vsel %vm2506, %v3094, %v3095
        %v3097 = vrot.slane %v2986, 2
        %v3098 = vsel %vm2506, %v3095, %v3097
        %v3099 = vrot.slane %v2987, 2
        %v3100 = vrot.slane %v2988, 2
        %v3101 = vsel %vm2506, %v3099, %v3100
        %v3102 = vrot.slane %v2989, 2
        %v3103 = vsel %vm2506, %v3100, %v3102
        %v3104 = vrot.slane %v2990, 2
        %v3105 = vrot.slane %v2991, 2
        %v3106 = vsel %vm2506, %v3104, %v3105
        %v3107 = vrot.slane %v2992, 2
        %v3108 = vsel %vm2506, %v3105, %v3107
        %v3109 = vrot.slane %v2993, 2
        %v3110 = vrot.slane %v2994, 2
        %v3111 = vsel %vm2506, %v3109, %v3110
        %v3112 = vrot.slane %v2995, 2
        %v3113 = vsel %vm2506, %v3110, %v3112
        %v3114 = vrot.slane %v2996, 2
        %v3115 = vrot.slane %v2997, 2
        %v3116 = vsel %vm2506, %v3114, %v3115
        %v3117 = vrot.slane %v2998, 2
        %v3118 = vsel %vm2506, %v3115, %v3117
        %v3119 = vrot.slane %v2999, 2
        %v3120 = vrot.slane %v3000, 2
        %v3121 = vsel %vm2506, %v3119, %v3120
        %v3122 = vrot.slane %v3001, 2
        %v3123 = vsel %vm2506, %v3120, %v3122
        %v3124 = vrot.slane %v3002, 2
        %v3125 = vrot.slane %v3003, 2
        %v3126 = vsel %vm2506, %v3124, %v3125
        %v3127 = vrot.slane %v3004, 2
        %v3128 = vsel %vm2506, %v3125, %v3127
        %v3129 = vrot.slane %v3005, 2
        %v3130 = vrot.slane %v3006, 2
        %v3131 = vsel %vm2506, %v3129, %v3130
        %v3132 = vrot.slane %v3007, 2
        %v3133 = vsel %vm2506, %v3130, %v3132
        %v3134 = vrot.slane %v3008, 2
        %v3135 = vrot.slane %v3009, 2
        %v3136 = vsel %vm2506, %v3134, %v3135
        %v3137 = vrot.slane %v3010, 2
        %v3138 = vsel %vm2506, %v3135, %v3137
        %v3187 = vadd.f32 %v2911, %v3059
        %v3188 = vadd.f32 %v2912, %v3061
        %v3189 = vadd.f32 %v2913, %v3063
        %v3190 = vadd.f32 %v2914, %v3064
        %v3191 = vadd.f32 %v2915, %v3066
        %v3192 = vadd.f32 %v2916, %v3068
        %v3193 = vadd.f32 %v2917, %v3069
        %v3194 = vadd.f32 %v2918, %v3071
        %v3195 = vadd.f32 %v2919, %v3073
        %v3196 = vadd.f32 %v2920, %v3074
        %v3197 = vadd.f32 %v2921, %v3076
        %v3198 = vadd.f32 %v2922, %v3078
        %v3199 = vadd.f32 %v2923, %v3079
        %v3200 = vadd.f32 %v2924, %v3081
        %v3201 = vadd.f32 %v2925, %v3083
        %v3202 = vadd.f32 %v2926, %v3084
        %v3203 = vadd.f32 %v2927, %v3086
        %v3204 = vadd.f32 %v2928, %v3088
        %v3205 = vadd.f32 %v2929, %v3089
        %v3206 = vadd.f32 %v2930, %v3091
        %v3207 = vadd.f32 %v2931, %v3093
        %v3208 = vadd.f32 %v2932, %v3094
        %v3209 = vadd.f32 %v2933, %v3096
        %v3210 = vadd.f32 %v2934, %v3098
        %v3211 = vadd.f32 %v2935, %v3099
        %v3212 = vadd.f32 %v2936, %v3101
        %v3213 = vadd.f32 %v2937, %v3103
        %v3214 = vadd.f32 %v2938, %v3104
        %v3215 = vadd.f32 %v2939, %v3106
        %v3216 = vadd.f32 %v2940, %v3108
        %v3217 = vadd.f32 %v2941, %v3109
        %v3218 = vadd.f32 %v2942, %v3111
        %v3219 = vadd.f32 %v2943, %v3113
        %v3220 = vadd.f32 %v2944, %v3114
        %v3221 = vadd.f32 %v2945, %v3116
        %v3222 = vadd.f32 %v2946, %v3118
        %v3223 = vadd.f32 %v2947, %v3119
        %v3224 = vadd.f32 %v2948, %v3121
        %v3225 = vadd.f32 %v2949, %v3123
        %v3226 = vadd.f32 %v2950, %v3124
        %v3227 = vadd.f32 %v2951, %v3126
        %v3228 = vadd.f32 %v2952, %v3128
        %v3229 = vadd.f32 %v2953, %v3129
        %v3230 = vadd.f32 %v2954, %v3131
        %v3231 = vadd.f32 %v2955, %v3133
        %v3232 = vadd.f32 %v2956, %v3134
        %v3233 = vadd.f32 %v2957, %v3136
        %v3234 = vadd.f32 %v2958, %v3138
        %v3235 = vmul.f32 %v3187, 0.5
        %v3236 = vmul.f32 %v3188, 0.5
        %v3237 = vmul.f32 %v3189, 0.5
        %v3238 = vmul.f32 %v3190, 0.5
        %v3239 = vmul.f32 %v3191, 0.5
        %v3240 = vmul.f32 %v3192, 0.5
        %v3241 = vmul.f32 %v3193, 0.5
        %v3242 = vmul.f32 %v3194, 0.5
        %v3243 = vmul.f32 %v3195, 0.5
        %v3244 = vmul.f32 %v3196, 0.5
        %v3245 = vmul.f32 %v3197, 0.5
        %v3246 = vmul.f32 %v3198, 0.5
        %v3247 = vmul.f32 %v3199, 0.5
        %v3248 = vmul.f32 %v3200, 0.5
        %v3249 = vmul.f32 %v3201, 0.5
        %v3250 = vmul.f32 %v3202, 0.5
        %v3251 = vmul.f32 %v3203, 0.5
        %v3252 = vmul.f32 %v3204, 0.5
        %v3253 = vmul.f32 %v3205, 0.5
        %v3254 = vmul.f32 %v3206, 0.5
        %v3255 = vmul.f32 %v3207, 0.5
        %v3256 = vmul.f32 %v3208, 0.5
        %v3257 = vmul.f32 %v3209, 0.5
        %v3258 = vmul.f32 %v3210, 0.5
        %v3259 = vmul.f32 %v3211, 0.5
        %v3260 = vmul.f32 %v3212, 0.5
        %v3261 = vmul.f32 %v3213, 0.5
        %v3262 = vmul.f32 %v3214, 0.5
        %v3263 = vmul.f32 %v3215, 0.5
        %v3264 = vmul.f32 %v3216, 0.5
        %v3265 = vmul.f32 %v3217, 0.5
        %v3266 = vmul.f32 %v3218, 0.5
        %v3267 = vmul.f32 %v3219, 0.5
        %v3268 = vmul.f32 %v3220, 0.5
        %v3269 = vmul.f32 %v3221, 0.5
        %v3270 = vmul.f32 %v3222, 0.5
        %v3271 = vmul.f32 %v3223, 0.5
        %v3272 = vmul.f32 %v3224, 0.5
        %v3273 = vmul.f32 %v3225, 0.5
        %v3274 = vmul.f32 %v3226, 0.5
        %v3275 = vmul.f32 %v3227, 0.5
        %v3276 = vmul.f32 %v3228, 0.5
        %v3277 = vmul.f32 %v3229, 0.5
        %v3278 = vmul.f32 %v3230, 0.5
        %v3279 = vmul.f32 %v3231, 0.5
        %v3280 = vmul.f32 %v3232, 0.5
        %v3281 = vmul.f32 %v3233, 0.5
        %v3282 = vmul.f32 %v3234, 0.5
        %v3283 = vmul.f32 %v3187, 0.044715
        %v3284 = vmul.f32 %v3188, 0.044715
        %v3285 = vmul.f32 %v3189, 0.044715
        %v3286 = vmul.f32 %v3190, 0.044715
        %v3287 = vmul.f32 %v3191, 0.044715
        %v3288 = vmul.f32 %v3192, 0.044715
        %v3289 = vmul.f32 %v3193, 0.044715
        %v3290 = vmul.f32 %v3194, 0.044715
        %v3291 = vmul.f32 %v3195, 0.044715
        %v3292 = vmul.f32 %v3196, 0.044715
        %v3293 = vmul.f32 %v3197, 0.044715
        %v3294 = vmul.f32 %v3198, 0.044715
        %v3295 = vmul.f32 %v3199, 0.044715
        %v3296 = vmul.f32 %v3200, 0.044715
        %v3297 = vmul.f32 %v3201, 0.044715
        %v3298 = vmul.f32 %v3202, 0.044715
        %v3299 = vmul.f32 %v3203, 0.044715
        %v3300 = vmul.f32 %v3204, 0.044715
        %v3301 = vmul.f32 %v3205, 0.044715
        %v3302 = vmul.f32 %v3206, 0.044715
        %v3303 = vmul.f32 %v3207, 0.044715
        %v3304 = vmul.f32 %v3208, 0.044715
        %v3305 = vmul.f32 %v3209, 0.044715
        %v3306 = vmul.f32 %v3210, 0.044715
        %v3307 = vmul.f32 %v3211, 0.044715
        %v3308 = vmul.f32 %v3212, 0.044715
        %v3309 = vmul.f32 %v3213, 0.044715
        %v3310 = vmul.f32 %v3214, 0.044715
        %v3311 = vmul.f32 %v3215, 0.044715
        %v3312 = vmul.f32 %v3216, 0.044715
        %v3313 = vmul.f32 %v3217, 0.044715
        %v3314 = vmul.f32 %v3218, 0.044715
        %v3315 = vmul.f32 %v3219, 0.044715
        %v3316 = vmul.f32 %v3220, 0.044715
        %v3317 = vmul.f32 %v3221, 0.044715
        %v3318 = vmul.f32 %v3222, 0.044715
        %v3319 = vmul.f32 %v3223, 0.044715
        %v3320 = vmul.f32 %v3224, 0.044715
        %v3321 = vmul.f32 %v3225, 0.044715
        %v3322 = vmul.f32 %v3226, 0.044715
        %v3323 = vmul.f32 %v3227, 0.044715
        %v3324 = vmul.f32 %v3228, 0.044715
        %v3325 = vmul.f32 %v3229, 0.044715
        %v3326 = vmul.f32 %v3230, 0.044715
        %v3327 = vmul.f32 %v3231, 0.044715
        %v3328 = vmul.f32 %v3232, 0.044715
        %v3329 = vmul.f32 %v3233, 0.044715
        %v3330 = vmul.f32 %v3234, 0.044715
        %v3331 = vmul.f32 %v3283, %v3187
        %v3332 = vmul.f32 %v3284, %v3188
        %v3333 = vmul.f32 %v3285, %v3189
        %v3334 = vmul.f32 %v3286, %v3190
        %v3335 = vmul.f32 %v3287, %v3191
        %v3336 = vmul.f32 %v3288, %v3192
        %v3337 = vmul.f32 %v3289, %v3193
        %v3338 = vmul.f32 %v3290, %v3194
        %v3339 = vmul.f32 %v3291, %v3195
        %v3340 = vmul.f32 %v3292, %v3196
        %v3341 = vmul.f32 %v3293, %v3197
        %v3342 = vmul.f32 %v3294, %v3198
        %v3343 = vmul.f32 %v3295, %v3199
        %v3344 = vmul.f32 %v3296, %v3200
        %v3345 = vmul.f32 %v3297, %v3201
        %v3346 = vmul.f32 %v3298, %v3202
        %v3347 = vmul.f32 %v3299, %v3203
        %v3348 = vmul.f32 %v3300, %v3204
        %v3349 = vmul.f32 %v3301, %v3205
        %v3350 = vmul.f32 %v3302, %v3206
        %v3351 = vmul.f32 %v3303, %v3207
        %v3352 = vmul.f32 %v3304, %v3208
        %v3353 = vmul.f32 %v3305, %v3209
        %v3354 = vmul.f32 %v3306, %v3210
        %v3355 = vmul.f32 %v3307, %v3211
        %v3356 = vmul.f32 %v3308, %v3212
        %v3357 = vmul.f32 %v3309, %v3213
        %v3358 = vmul.f32 %v3310, %v3214
        %v3359 = vmul.f32 %v3311, %v3215
        %v3360 = vmul.f32 %v3312, %v3216
        %v3361 = vmul.f32 %v3313, %v3217
        %v3362 = vmul.f32 %v3314, %v3218
        %v3363 = vmul.f32 %v3315, %v3219
        %v3364 = vmul.f32 %v3316, %v3220
        %v3365 = vmul.f32 %v3317, %v3221
        %v3366 = vmul.f32 %v3318, %v3222
        %v3367 = vmul.f32 %v3319, %v3223
        %v3368 = vmul.f32 %v3320, %v3224
        %v3369 = vmul.f32 %v3321, %v3225
        %v3370 = vmul.f32 %v3322, %v3226
        %v3371 = vmul.f32 %v3323, %v3227
        %v3372 = vmul.f32 %v3324, %v3228
        %v3373 = vmul.f32 %v3325, %v3229
        %v3374 = vmul.f32 %v3326, %v3230
        %v3375 = vmul.f32 %v3327, %v3231
        %v3376 = vmul.f32 %v3328, %v3232
        %v3377 = vmul.f32 %v3329, %v3233
        %v3378 = vmul.f32 %v3330, %v3234
        %v3379 = vmul.f32 %v3331, %v3187
        %v3380 = vmul.f32 %v3332, %v3188
        %v3381 = vmul.f32 %v3333, %v3189
        %v3382 = vmul.f32 %v3334, %v3190
        %v3383 = vmul.f32 %v3335, %v3191
        %v3384 = vmul.f32 %v3336, %v3192
        %v3385 = vmul.f32 %v3337, %v3193
        %v3386 = vmul.f32 %v3338, %v3194
        %v3387 = vmul.f32 %v3339, %v3195
        %v3388 = vmul.f32 %v3340, %v3196
        %v3389 = vmul.f32 %v3341, %v3197
        %v3390 = vmul.f32 %v3342, %v3198
        %v3391 = vmul.f32 %v3343, %v3199
        %v3392 = vmul.f32 %v3344, %v3200
        %v3393 = vmul.f32 %v3345, %v3201
        %v3394 = vmul.f32 %v3346, %v3202
        %v3395 = vmul.f32 %v3347, %v3203
        %v3396 = vmul.f32 %v3348, %v3204
        %v3397 = vmul.f32 %v3349, %v3205
        %v3398 = vmul.f32 %v3350, %v3206
        %v3399 = vmul.f32 %v3351, %v3207
        %v3400 = vmul.f32 %v3352, %v3208
        %v3401 = vmul.f32 %v3353, %v3209
        %v3402 = vmul.f32 %v3354, %v3210
        %v3403 = vmul.f32 %v3355, %v3211
        %v3404 = vmul.f32 %v3356, %v3212
        %v3405 = vmul.f32 %v3357, %v3213
        %v3406 = vmul.f32 %v3358, %v3214
        %v3407 = vmul.f32 %v3359, %v3215
        %v3408 = vmul.f32 %v3360, %v3216
        %v3409 = vmul.f32 %v3361, %v3217
        %v3410 = vmul.f32 %v3362, %v3218
        %v3411 = vmul.f32 %v3363, %v3219
        %v3412 = vmul.f32 %v3364, %v3220
        %v3413 = vmul.f32 %v3365, %v3221
        %v3414 = vmul.f32 %v3366, %v3222
        %v3415 = vmul.f32 %v3367, %v3223
        %v3416 = vmul.f32 %v3368, %v3224
        %v3417 = vmul.f32 %v3369, %v3225
        %v3418 = vmul.f32 %v3370, %v3226
        %v3419 = vmul.f32 %v3371, %v3227
        %v3420 = vmul.f32 %v3372, %v3228
        %v3421 = vmul.f32 %v3373, %v3229
        %v3422 = vmul.f32 %v3374, %v3230
        %v3423 = vmul.f32 %v3375, %v3231
        %v3424 = vmul.f32 %v3376, %v3232
        %v3425 = vmul.f32 %v3377, %v3233
        %v3426 = vmul.f32 %v3378, %v3234
        %v3427 = vadd.f32 %v3187, %v3379
        %v3428 = vadd.f32 %v3188, %v3380
        %v3429 = vadd.f32 %v3189, %v3381
        %v3430 = vadd.f32 %v3190, %v3382
        %v3431 = vadd.f32 %v3191, %v3383
        %v3432 = vadd.f32 %v3192, %v3384
        %v3433 = vadd.f32 %v3193, %v3385
        %v3434 = vadd.f32 %v3194, %v3386
        %v3435 = vadd.f32 %v3195, %v3387
        %v3436 = vadd.f32 %v3196, %v3388
        %v3437 = vadd.f32 %v3197, %v3389
        %v3438 = vadd.f32 %v3198, %v3390
        %v3439 = vadd.f32 %v3199, %v3391
        %v3440 = vadd.f32 %v3200, %v3392
        %v3441 = vadd.f32 %v3201, %v3393
        %v3442 = vadd.f32 %v3202, %v3394
        %v3443 = vadd.f32 %v3203, %v3395
        %v3444 = vadd.f32 %v3204, %v3396
        %v3445 = vadd.f32 %v3205, %v3397
        %v3446 = vadd.f32 %v3206, %v3398
        %v3447 = vadd.f32 %v3207, %v3399
        %v3448 = vadd.f32 %v3208, %v3400
        %v3449 = vadd.f32 %v3209, %v3401
        %v3450 = vadd.f32 %v3210, %v3402
        %v3451 = vadd.f32 %v3211, %v3403
        %v3452 = vadd.f32 %v3212, %v3404
        %v3453 = vadd.f32 %v3213, %v3405
        %v3454 = vadd.f32 %v3214, %v3406
        %v3455 = vadd.f32 %v3215, %v3407
        %v3456 = vadd.f32 %v3216, %v3408
        %v3457 = vadd.f32 %v3217, %v3409
        %v3458 = vadd.f32 %v3218, %v3410
        %v3459 = vadd.f32 %v3219, %v3411
        %v3460 = vadd.f32 %v3220, %v3412
        %v3461 = vadd.f32 %v3221, %v3413
        %v3462 = vadd.f32 %v3222, %v3414
        %v3463 = vadd.f32 %v3223, %v3415
        %v3464 = vadd.f32 %v3224, %v3416
        %v3465 = vadd.f32 %v3225, %v3417
        %v3466 = vadd.f32 %v3226, %v3418
        %v3467 = vadd.f32 %v3227, %v3419
        %v3468 = vadd.f32 %v3228, %v3420
        %v3469 = vadd.f32 %v3229, %v3421
        %v3470 = vadd.f32 %v3230, %v3422
        %v3471 = vadd.f32 %v3231, %v3423
        %v3472 = vadd.f32 %v3232, %v3424
        %v3473 = vadd.f32 %v3233, %v3425
        %v3474 = vadd.f32 %v3234, %v3426
        %v3475 = vmul.f32 %v3427, 0.7978846
        %v3476 = vmul.f32 %v3428, 0.7978846
        %v3477 = vmul.f32 %v3429, 0.7978846
        %v3478 = vmul.f32 %v3430, 0.7978846
        %v3479 = vmul.f32 %v3431, 0.7978846
        %v3480 = vmul.f32 %v3432, 0.7978846
        %v3481 = vmul.f32 %v3433, 0.7978846
        %v3482 = vmul.f32 %v3434, 0.7978846
        %v3483 = vmul.f32 %v3435, 0.7978846
        %v3484 = vmul.f32 %v3436, 0.7978846
        %v3485 = vmul.f32 %v3437, 0.7978846
        %v3486 = vmul.f32 %v3438, 0.7978846
        %v3487 = vmul.f32 %v3439, 0.7978846
        %v3488 = vmul.f32 %v3440, 0.7978846
        %v3489 = vmul.f32 %v3441, 0.7978846
        %v3490 = vmul.f32 %v3442, 0.7978846
        %v3491 = vmul.f32 %v3443, 0.7978846
        %v3492 = vmul.f32 %v3444, 0.7978846
        %v3493 = vmul.f32 %v3445, 0.7978846
        %v3494 = vmul.f32 %v3446, 0.7978846
        %v3495 = vmul.f32 %v3447, 0.7978846
        %v3496 = vmul.f32 %v3448, 0.7978846
        %v3497 = vmul.f32 %v3449, 0.7978846
        %v3498 = vmul.f32 %v3450, 0.7978846
        %v3499 = vmul.f32 %v3451, 0.7978846
        %v3500 = vmul.f32 %v3452, 0.7978846
        %v3501 = vmul.f32 %v3453, 0.7978846
        %v3502 = vmul.f32 %v3454, 0.7978846
        %v3503 = vmul.f32 %v3455, 0.7978846
        %v3504 = vmul.f32 %v3456, 0.7978846
        %v3505 = vmul.f32 %v3457, 0.7978846
        %v3506 = vmul.f32 %v3458, 0.7978846
        %v3507 = vmul.f32 %v3459, 0.7978846
        %v3508 = vmul.f32 %v3460, 0.7978846
        %v3509 = vmul.f32 %v3461, 0.7978846
        %v3510 = vmul.f32 %v3462, 0.7978846
        %v3511 = vmul.f32 %v3463, 0.7978846
        %v3512 = vmul.f32 %v3464, 0.7978846
        %v3513 = vmul.f32 %v3465, 0.7978846
        %v3514 = vmul.f32 %v3466, 0.7978846
        %v3515 = vmul.f32 %v3467, 0.7978846
        %v3516 = vmul.f32 %v3468, 0.7978846
        %v3517 = vmul.f32 %v3469, 0.7978846
        %v3518 = vmul.f32 %v3470, 0.7978846
        %v3519 = vmul.f32 %v3471, 0.7978846
        %v3520 = vmul.f32 %v3472, 0.7978846
        %v3521 = vmul.f32 %v3473, 0.7978846
        %v3522 = vmul.f32 %v3474, 0.7978846
        %v3523 = vtanh.pop %v3475
        %v3524 = vtanh.pop %v3476
        %v3525 = vtanh.pop %v3477
        %v3526 = vtanh.pop %v3478
        %v3527 = vtanh.pop %v3479
        %v3528 = vtanh.pop %v3480
        %v3529 = vtanh.pop %v3481
        %v3530 = vtanh.pop %v3482
        %v3531 = vtanh.pop %v3483
        %v3532 = vtanh.pop %v3484
        %v3533 = vtanh.pop %v3485
        %v3534 = vtanh.pop %v3486
        %v3535 = vtanh.pop %v3487
        %v3536 = vtanh.pop %v3488
        %v3537 = vtanh.pop %v3489
        %v3538 = vtanh.pop %v3490
        %v3539 = vtanh.pop %v3491
        %v3540 = vtanh.pop %v3492
        %v3541 = vtanh.pop %v3493
        %v3542 = vtanh.pop %v3494
        %v3543 = vtanh.pop %v3495
        %v3544 = vtanh.pop %v3496
        %v3545 = vtanh.pop %v3497
        %v3546 = vtanh.pop %v3498
        %v3547 = vtanh.pop %v3499
        %v3548 = vtanh.pop %v3500
        %v3549 = vtanh.pop %v3501
        %v3550 = vtanh.pop %v3502
        %v3551 = vtanh.pop %v3503
        %v3552 = vtanh.pop %v3504
        %v3553 = vtanh.pop %v3505
        %v3554 = vtanh.pop %v3506
        %v3555 = vtanh.pop %v3507
        %v3556 = vtanh.pop %v3508
        %v3557 = vtanh.pop %v3509
        %v3558 = vtanh.pop %v3510
        %v3559 = vtanh.pop %v3511
        %v3560 = vtanh.pop %v3512
        %v3561 = vtanh.pop %v3513
        %v3562 = vtanh.pop %v3514
        %v3563 = vtanh.pop %v3515
        %v3564 = vtanh.pop %v3516
        %v3565 = vtanh.pop %v3517
        %v3566 = vtanh.pop %v3518
        %v3567 = vtanh.pop %v3519
        %v3568 = vtanh.pop %v3520
        %v3569 = vtanh.pop %v3521
        %v3570 = vtanh.pop %v3522
        %v3571 = vadd.f32 %v3523, 1.0
        %v3572 = vadd.f32 %v3524, 1.0
        %v3573 = vadd.f32 %v3525, 1.0
        %v3574 = vadd.f32 %v3526, 1.0
        %v3575 = vadd.f32 %v3527, 1.0
        %v3576 = vadd.f32 %v3528, 1.0
        %v3577 = vadd.f32 %v3529, 1.0
        %v3578 = vadd.f32 %v3530, 1.0
        %v3579 = vadd.f32 %v3531, 1.0
        %v3580 = vadd.f32 %v3532, 1.0
        %v3581 = vadd.f32 %v3533, 1.0
        %v3582 = vadd.f32 %v3534, 1.0
        %v3583 = vadd.f32 %v3535, 1.0
        %v3584 = vadd.f32 %v3536, 1.0
        %v3585 = vadd.f32 %v3537, 1.0
        %v3586 = vadd.f32 %v3538, 1.0
        %v3587 = vadd.f32 %v3539, 1.0
        %v3588 = vadd.f32 %v3540, 1.0
        %v3589 = vadd.f32 %v3541, 1.0
        %v3590 = vadd.f32 %v3542, 1.0
        %v3591 = vadd.f32 %v3543, 1.0
        %v3592 = vadd.f32 %v3544, 1.0
        %v3593 = vadd.f32 %v3545, 1.0
        %v3594 = vadd.f32 %v3546, 1.0
        %v3595 = vadd.f32 %v3547, 1.0
        %v3596 = vadd.f32 %v3548, 1.0
        %v3597 = vadd.f32 %v3549, 1.0
        %v3598 = vadd.f32 %v3550, 1.0
        %v3599 = vadd.f32 %v3551, 1.0
        %v3600 = vadd.f32 %v3552, 1.0
        %v3601 = vadd.f32 %v3553, 1.0
        %v3602 = vadd.f32 %v3554, 1.0
        %v3603 = vadd.f32 %v3555, 1.0
        %v3604 = vadd.f32 %v3556, 1.0
        %v3605 = vadd.f32 %v3557, 1.0
        %v3606 = vadd.f32 %v3558, 1.0
        %v3607 = vadd.f32 %v3559, 1.0
        %v3608 = vadd.f32 %v3560, 1.0
        %v3609 = vadd.f32 %v3561, 1.0
        %v3610 = vadd.f32 %v3562, 1.0
        %v3611 = vadd.f32 %v3563, 1.0
        %v3612 = vadd.f32 %v3564, 1.0
        %v3613 = vadd.f32 %v3565, 1.0
        %v3614 = vadd.f32 %v3566, 1.0
        %v3615 = vadd.f32 %v3567, 1.0
        %v3616 = vadd.f32 %v3568, 1.0
        %v3617 = vadd.f32 %v3569, 1.0
        %v3618 = vadd.f32 %v3570, 1.0
        %v3619 = vmul.f32 %v3235, %v3571
        %v3620 = vmul.f32 %v3236, %v3572
        %v3621 = vmul.f32 %v3237, %v3573
        %v3622 = vmul.f32 %v3238, %v3574
        %v3623 = vmul.f32 %v3239, %v3575
        %v3624 = vmul.f32 %v3240, %v3576
        %v3625 = vmul.f32 %v3241, %v3577
        %v3626 = vmul.f32 %v3242, %v3578
        %v3627 = vmul.f32 %v3243, %v3579
        %v3628 = vmul.f32 %v3244, %v3580
        %v3629 = vmul.f32 %v3245, %v3581
        %v3630 = vmul.f32 %v3246, %v3582
        %v3631 = vmul.f32 %v3247, %v3583
        %v3632 = vmul.f32 %v3248, %v3584
        %v3633 = vmul.f32 %v3249, %v3585
        %v3634 = vmul.f32 %v3250, %v3586
        %v3635 = vmul.f32 %v3251, %v3587
        %v3636 = vmul.f32 %v3252, %v3588
        %v3637 = vmul.f32 %v3253, %v3589
        %v3638 = vmul.f32 %v3254, %v3590
        %v3639 = vmul.f32 %v3255, %v3591
        %v3640 = vmul.f32 %v3256, %v3592
        %v3641 = vmul.f32 %v3257, %v3593
        %v3642 = vmul.f32 %v3258, %v3594
        %v3643 = vmul.f32 %v3259, %v3595
        %v3644 = vmul.f32 %v3260, %v3596
        %v3645 = vmul.f32 %v3261, %v3597
        %v3646 = vmul.f32 %v3262, %v3598
        %v3647 = vmul.f32 %v3263, %v3599
        %v3648 = vmul.f32 %v3264, %v3600
        %v3649 = vmul.f32 %v3265, %v3601
        %v3650 = vmul.f32 %v3266, %v3602
        %v3651 = vmul.f32 %v3267, %v3603
        %v3652 = vmul.f32 %v3268, %v3604
        %v3653 = vmul.f32 %v3269, %v3605
        %v3654 = vmul.f32 %v3270, %v3606
        %v3655 = vmul.f32 %v3271, %v3607
        %v3656 = vmul.f32 %v3272, %v3608
        %v3657 = vmul.f32 %v3273, %v3609
        %v3658 = vmul.f32 %v3274, %v3610
        %v3659 = vmul.f32 %v3275, %v3611
        %v3660 = vmul.f32 %v3276, %v3612
        %v3661 = vmul.f32 %v3277, %v3613
        %v3662 = vmul.f32 %v3278, %v3614
        %v3663 = vmul.f32 %v3279, %v3615
        %v3664 = vmul.f32 %v3280, %v3616
        %v3665 = vmul.f32 %v3281, %v3617
        %v3666 = vmul.f32 %v3282, %v3618
        %v3667 = vld [vmem:[%s5] sm:$0xff]
        %v3668 = vld [vmem:[%s5 + $0x8] sm:$0x1]
        %v3669 = vld [vmem:[%s6] sm:$0x1]
        %v3671 = vlaneseq
        %v3672 = vshrl.u32 %v3671, 7
        %v3673 = vsub.s32 0, %v3672
        %v3674 = vrot.slane %v3669, %v3673
        %s3676 = scalar_lea.vmem [#allocation3], 32
        %v3677 = vld [vmem:[%s3676] sm:$0xff]
        %v3678 = vld [vmem:[%s3676 + $0x8] sm:$0xff]
        %v3679 = vld [vmem:[%s3676 + $0x10] sm:$0xff]
        %v3680 = vld [vmem:[%s3676 + $0x18] sm:$0xff]
        %v3681 = vld [vmem:[%s3676 + $0x20] sm:$0xff]
        %v3682 = vld [vmem:[%s3676 + $0x28] sm:$0xff]
        %v3683 = vld [vmem:[%s3676 + $0x30] sm:$0xff]
        %v3684 = vld [vmem:[%s3676 + $0x38] sm:$0xff]
        %v3685 = vld [vmem:[%s3676 + $0x40] sm:$0xff]
        %v3686 = vld [vmem:[%s3676 + $0x48] sm:$0xff]
        %v3687 = vld [vmem:[%s3676 + $0x50] sm:$0xff]
        %v3688 = vld [vmem:[%s3676 + $0x58] sm:$0xff]
        %v3689 = vld [vmem:[%s3676 + $0x60] sm:$0xff]
        %v3690 = vld [vmem:[%s3676 + $0x68] sm:$0xff]
        %v3691 = vld [vmem:[%s3676 + $0x70] sm:$0xff]
        %v3692 = vld [vmem:[%s3676 + $0x78] sm:$0xff]
        %v3693 = vld [vmem:[%s3676 + $0x80] sm:$0xff]
        %v3694 = vld [vmem:[%s3676 + $0x88] sm:$0xff]
        %v3695 = vld [vmem:[%s3676 + $0x90] sm:$0xff]
        %v3696 = vld [vmem:[%s3676 + $0x98] sm:$0xff]
        %v3697 = vld [vmem:[%s3676 + $0xa0] sm:$0xff]
        %v3698 = vld [vmem:[%s3676 + $0xa8] sm:$0xff]
        %v3699 = vld [vmem:[%s3676 + $0xb0] sm:$0xff]
        %v3700 = vld [vmem:[%s3676 + $0xb8] sm:$0xff]
        %v3701 = vld [vmem:[%s3676 + $0xc0] sm:$0xff]
        %v3702 = vld [vmem:[%s3676 + $0xc8] sm:$0xff]
        %v3703 = vld [vmem:[%s3676 + $0xd0] sm:$0xff]
        %v3704 = vld [vmem:[%s3676 + $0xd8] sm:$0xff]
        %v3705 = vld [vmem:[%s3676 + $0xe0] sm:$0xff]
        %v3706 = vld [vmem:[%s3676 + $0xe8] sm:$0xff]
        %v3707 = vld [vmem:[%s3676 + $0xf0] sm:$0xff]
        %v3708 = vld [vmem:[%s3676 + $0xf8] sm:$0xff]
        %v3709 = vld [vmem:[%s3676 + $0x100] sm:$0xff]
        %v3710 = vld [vmem:[%s3676 + $0x108] sm:$0xff]
        %v3711 = vld [vmem:[%s3676 + $0x110] sm:$0xff]
        %v3712 = vld [vmem:[%s3676 + $0x118] sm:$0xff]
        %v3713 = vld [vmem:[%s3676 + $0x120] sm:$0xff]
        %v3714 = vld [vmem:[%s3676 + $0x128] sm:$0xff]
        %v3715 = vld [vmem:[%s3676 + $0x130] sm:$0xff]
        %v3716 = vld [vmem:[%s3676 + $0x138] sm:$0xff]
        %v3717 = vld [vmem:[%s3676 + $0x140] sm:$0xff]
        %v3718 = vld [vmem:[%s3676 + $0x148] sm:$0xff]
        %v3719 = vld [vmem:[%s3676 + $0x150] sm:$0xff]
        %v3720 = vld [vmem:[%s3676 + $0x158] sm:$0xff]
        %v3721 = vld [vmem:[%s3676 + $0x160] sm:$0xff]
        %v3722 = vld [vmem:[%s3676 + $0x168] sm:$0xff]
        %v3723 = vld [vmem:[%s3676 + $0x170] sm:$0xff]
        %v3724 = vld [vmem:[%s3676 + $0x178] sm:$0xff]
        %v3725 = vld [vmem:[%s3676 + $0x180] sm:$0xff]
        %v3726 = vld [vmem:[%s3676 + $0x188] sm:$0xff]
        %v3727 = vld [vmem:[%s3676 + $0x190] sm:$0xff]
        %v3728 = vld [vmem:[%s3676 + $0x198] sm:$0xff]
        %v3729 = vld [vmem:[%s3676 + $0x1a0] sm:$0xff]
        %v3730 = vld [vmem:[%s3676 + $0x1a8] sm:$0xff]
        %v3731 = vld [vmem:[%s3676 + $0x1b0] sm:$0xff]
        %v3732 = vld [vmem:[%s3676 + $0x1b8] sm:$0xff]
        %v3733 = vld [vmem:[%s3676 + $0x1c0] sm:$0xff]
        %v3734 = vld [vmem:[%s3676 + $0x1c8] sm:$0xff]
        %v3735 = vld [vmem:[%s3676 + $0x1d0] sm:$0xff]
        %v3736 = vld [vmem:[%s3676 + $0x1d8] sm:$0xff]
        %v3737 = vld [vmem:[%s3676 + $0x1e0] sm:$0xff]
        %v3738 = vld [vmem:[%s3676 + $0x1e8] sm:$0xff]
        %v3739 = vld [vmem:[%s3676 + $0x1f0] sm:$0xff]
        %v3740 = vld [vmem:[%s3676 + $0x1f8] sm:$0xff]
        %v3741 = vld [vmem:[%s3676 + $0x200] sm:$0xff]
        %v3742 = vld [vmem:[%s3676 + $0x208] sm:$0xff]
        %v3743 = vld [vmem:[%s3676 + $0x210] sm:$0xff]
        %v3744 = vld [vmem:[%s3676 + $0x218] sm:$0xff]
        %v3745 = vld [vmem:[%s3676 + $0x220] sm:$0xff]
        %v3746 = vld [vmem:[%s3676 + $0x228] sm:$0xff]
        %v3747 = vld [vmem:[%s3676 + $0x230] sm:$0xff]
        %v3748 = vld [vmem:[%s3676 + $0x238] sm:$0xff]
        %v3749 = vld [vmem:[%s3676 + $0x240] sm:$0xff]
        %v3750 = vld [vmem:[%s3676 + $0x248] sm:$0xff]
        %v3751 = vld [vmem:[%s3676 + $0x250] sm:$0xff]
        %v3752 = vld [vmem:[%s3676 + $0x258] sm:$0xff]
        %v3753 = vld [vmem:[%s3676 + $0x260] sm:$0xff]
        %v3754 = vld [vmem:[%s3676 + $0x268] sm:$0xff]
        %v3755 = vld [vmem:[%s3676 + $0x270] sm:$0xff]
        %v3756 = vld [vmem:[%s3676 + $0x278] sm:$0xff]
        %v3757 = vlaneseq
        %v3758 = vshrl.u32 %v3757, 7
        %v3759 = vsub.s32 0, %v3758
        %v3760 = vrot.slane %v3667, %v3759
        %v3761 = vmul.f32 %v3677, %v3760
        %v3762 = vmul.f32 %v3678, %v3760
        %v3763 = vmul.f32 %v3679, %v3760
        %v3764 = vmul.f32 %v3681, %v3760
        %v3765 = vmul.f32 %v3682, %v3760
        %v3766 = vmul.f32 %v3683, %v3760
        %v3767 = vmul.f32 %v3685, %v3760
        %v3768 = vmul.f32 %v3686, %v3760
        %v3769 = vmul.f32 %v3687, %v3760
        %v3770 = vmul.f32 %v3689, %v3760
        %v3771 = vmul.f32 %v3690, %v3760
        %v3772 = vmul.f32 %v3691, %v3760
        %v3773 = vmul.f32 %v3693, %v3760
        %v3774 = vmul.f32 %v3694, %v3760
        %v3775 = vmul.f32 %v3695, %v3760
        %v3776 = vmul.f32 %v3697, %v3760
        %v3777 = vmul.f32 %v3698, %v3760
        %v3778 = vmul.f32 %v3699, %v3760
        %v3779 = vmul.f32 %v3701, %v3760
        %v3780 = vmul.f32 %v3702, %v3760
        %v3781 = vmul.f32 %v3703, %v3760
        %v3782 = vmul.f32 %v3705, %v3760
        %v3783 = vmul.f32 %v3706, %v3760
        %v3784 = vmul.f32 %v3707, %v3760
        %v3785 = vmul.f32 %v3709, %v3760
        %v3786 = vmul.f32 %v3710, %v3760
        %v3787 = vmul.f32 %v3711, %v3760
        %v3788 = vmul.f32 %v3713, %v3760
        %v3789 = vmul.f32 %v3714, %v3760
        %v3790 = vmul.f32 %v3715, %v3760
        %v3791 = vmul.f32 %v3717, %v3760
        %v3792 = vmul.f32 %v3718, %v3760
        %v3793 = vmul.f32 %v3719, %v3760
        %v3794 = vmul.f32 %v3721, %v3760
        %v3795 = vmul.f32 %v3722, %v3760
        %v3796 = vmul.f32 %v3723, %v3760
        %v3797 = vmul.f32 %v3725, %v3760
        %v3798 = vmul.f32 %v3726, %v3760
        %v3799 = vmul.f32 %v3727, %v3760
        %v3800 = vmul.f32 %v3729, %v3760
        %v3801 = vmul.f32 %v3730, %v3760
        %v3802 = vmul.f32 %v3731, %v3760
        %v3803 = vmul.f32 %v3733, %v3760
        %v3804 = vmul.f32 %v3734, %v3760
        %v3805 = vmul.f32 %v3735, %v3760
        %v3806 = vmul.f32 %v3737, %v3760
        %v3807 = vmul.f32 %v3738, %v3760
        %v3808 = vmul.f32 %v3739, %v3760
        %v3809 = vadd.f32 %v3674, %v3761
        %v3810 = vadd.f32 %v3674, %v3762
        %v3811 = vadd.f32 %v3674, %v3763
        %v3812 = vadd.f32 %v3674, %v3764
        %v3813 = vadd.f32 %v3674, %v3765
        %v3814 = vadd.f32 %v3674, %v3766
        %v3815 = vadd.f32 %v3674, %v3767
        %v3816 = vadd.f32 %v3674, %v3768
        %v3817 = vadd.f32 %v3674, %v3769
        %v3818 = vadd.f32 %v3674, %v3770
        %v3819 = vadd.f32 %v3674, %v3771
        %v3820 = vadd.f32 %v3674, %v3772
        %v3821 = vadd.f32 %v3674, %v3773
        %v3822 = vadd.f32 %v3674, %v3774
        %v3823 = vadd.f32 %v3674, %v3775
        %v3824 = vadd.f32 %v3674, %v3776
        %v3825 = vadd.f32 %v3674, %v3777
        %v3826 = vadd.f32 %v3674, %v3778
        %v3827 = vadd.f32 %v3674, %v3779
        %v3828 = vadd.f32 %v3674, %v3780
        %v3829 = vadd.f32 %v3674, %v3781
        %v3830 = vadd.f32 %v3674, %v3782
        %v3831 = vadd.f32 %v3674, %v3783
        %v3832 = vadd.f32 %v3674, %v3784
        %v3833 = vadd.f32 %v3674, %v3785
        %v3834 = vadd.f32 %v3674, %v3786
        %v3835 = vadd.f32 %v3674, %v3787
        %v3836 = vadd.f32 %v3674, %v3788
        %v3837 = vadd.f32 %v3674, %v3789
        %v3838 = vadd.f32 %v3674, %v3790
        %v3839 = vadd.f32 %v3674, %v3791
        %v3840 = vadd.f32 %v3674, %v3792
        %v3841 = vadd.f32 %v3674, %v3793
        %v3842 = vadd.f32 %v3674, %v3794
        %v3843 = vadd.f32 %v3674, %v3795
        %v3844 = vadd.f32 %v3674, %v3796
        %v3845 = vadd.f32 %v3674, %v3797
        %v3846 = vadd.f32 %v3674, %v3798
        %v3847 = vadd.f32 %v3674, %v3799
        %v3848 = vadd.f32 %v3674, %v3800
        %v3849 = vadd.f32 %v3674, %v3801
        %v3850 = vadd.f32 %v3674, %v3802
        %v3851 = vadd.f32 %v3674, %v3803
        %v3852 = vadd.f32 %v3674, %v3804
        %v3853 = vadd.f32 %v3674, %v3805
        %v3854 = vadd.f32 %v3674, %v3806
        %v3855 = vadd.f32 %v3674, %v3807
        %v3856 = vadd.f32 %v3674, %v3808
        %v3857 = vlaneseq
        %v3858 = vshrl.u32 %v3857, 7
        %v3859 = vsub.s32 3, %v3858
        %v3860 = vrot.slane %v3667, %v3859
        %v3861 = vmul.f32 %v3685, %v3860
        %v3862 = vmul.f32 %v3686, %v3860
        %v3863 = vmul.f32 %v3687, %v3860
        %v3864 = vmul.f32 %v3689, %v3860
        %v3865 = vmul.f32 %v3690, %v3860
        %v3866 = vmul.f32 %v3691, %v3860
        %v3867 = vmul.f32 %v3693, %v3860
        %v3868 = vmul.f32 %v3694, %v3860
        %v3869 = vmul.f32 %v3695, %v3860
        %v3870 = vmul.f32 %v3697, %v3860
        %v3871 = vmul.f32 %v3698, %v3860
        %v3872 = vmul.f32 %v3699, %v3860
        %v3873 = vmul.f32 %v3701, %v3860
        %v3874 = vmul.f32 %v3702, %v3860
        %v3875 = vmul.f32 %v3703, %v3860
        %v3876 = vmul.f32 %v3705, %v3860
        %v3877 = vmul.f32 %v3706, %v3860
        %v3878 = vmul.f32 %v3707, %v3860
        %v3879 = vmul.f32 %v3709, %v3860
        %v3880 = vmul.f32 %v3710, %v3860
        %v3881 = vmul.f32 %v3711, %v3860
        %v3882 = vmul.f32 %v3713, %v3860
        %v3883 = vmul.f32 %v3714, %v3860
        %v3884 = vmul.f32 %v3715, %v3860
        %v3885 = vmul.f32 %v3717, %v3860
        %v3886 = vmul.f32 %v3718, %v3860
        %v3887 = vmul.f32 %v3719, %v3860
        %v3888 = vmul.f32 %v3721, %v3860
        %v3889 = vmul.f32 %v3722, %v3860
        %v3890 = vmul.f32 %v3723, %v3860
        %v3891 = vmul.f32 %v3725, %v3860
        %v3892 = vmul.f32 %v3726, %v3860
        %v3893 = vmul.f32 %v3727, %v3860
        %v3894 = vmul.f32 %v3729, %v3860
        %v3895 = vmul.f32 %v3730, %v3860
        %v3896 = vmul.f32 %v3731, %v3860
        %v3897 = vmul.f32 %v3733, %v3860
        %v3898 = vmul.f32 %v3734, %v3860
        %v3899 = vmul.f32 %v3735, %v3860
        %v3900 = vmul.f32 %v3737, %v3860
        %v3901 = vmul.f32 %v3738, %v3860
        %v3902 = vmul.f32 %v3739, %v3860
        %v3903 = vmul.f32 %v3741, %v3860
        %v3904 = vmul.f32 %v3742, %v3860
        %v3905 = vmul.f32 %v3743, %v3860
        %v3906 = vmul.f32 %v3745, %v3860
        %v3907 = vmul.f32 %v3746, %v3860
        %v3908 = vmul.f32 %v3747, %v3860
        %v3909 = vadd.f32 %v3809, %v3861
        %v3910 = vadd.f32 %v3810, %v3862
        %v3911 = vadd.f32 %v3811, %v3863
        %v3912 = vadd.f32 %v3812, %v3864
        %v3913 = vadd.f32 %v3813, %v3865
        %v3914 = vadd.f32 %v3814, %v3866
        %v3915 = vadd.f32 %v3815, %v3867
        %v3916 = vadd.f32 %v3816, %v3868
        %v3917 = vadd.f32 %v3817, %v3869
        %v3918 = vadd.f32 %v3818, %v3870
        %v3919 = vadd.f32 %v3819, %v3871
        %v3920 = vadd.f32 %v3820, %v3872
        %v3921 = vadd.f32 %v3821, %v3873
        %v3922 = vadd.f32 %v3822, %v3874
        %v3923 = vadd.f32 %v3823, %v3875
        %v3924 = vadd.f32 %v3824, %v3876
        %v3925 = vadd.f32 %v3825, %v3877
        %v3926 = vadd.f32 %v3826, %v3878
        %v3927 = vadd.f32 %v3827, %v3879
        %v3928 = vadd.f32 %v3828, %v3880
        %v3929 = vadd.f32 %v3829, %v3881
        %v3930 = vadd.f32 %v3830, %v3882
        %v3931 = vadd.f32 %v3831, %v3883
        %v3932 = vadd.f32 %v3832, %v3884
        %v3933 = vadd.f32 %v3833, %v3885
        %v3934 = vadd.f32 %v3834, %v3886
        %v3935 = vadd.f32 %v3835, %v3887
        %v3936 = vadd.f32 %v3836, %v3888
        %v3937 = vadd.f32 %v3837, %v3889
        %v3938 = vadd.f32 %v3838, %v3890
        %v3939 = vadd.f32 %v3839, %v3891
        %v3940 = vadd.f32 %v3840, %v3892
        %v3941 = vadd.f32 %v3841, %v3893
        %v3942 = vadd.f32 %v3842, %v3894
        %v3943 = vadd.f32 %v3843, %v3895
        %v3944 = vadd.f32 %v3844, %v3896
        %v3945 = vadd.f32 %v3845, %v3897
        %v3946 = vadd.f32 %v3846, %v3898
        %v3947 = vadd.f32 %v3847, %v3899
        %v3948 = vadd.f32 %v3848, %v3900
        %v3949 = vadd.f32 %v3849, %v3901
        %v3950 = vadd.f32 %v3850, %v3902
        %v3951 = vadd.f32 %v3851, %v3903
        %v3952 = vadd.f32 %v3852, %v3904
        %v3953 = vadd.f32 %v3853, %v3905
        %v3954 = vadd.f32 %v3854, %v3906
        %v3955 = vadd.f32 %v3855, %v3907
        %v3956 = vadd.f32 %v3856, %v3908
        %v3957 = vlaneseq
        %v3958 = vshrl.u32 %v3957, 7
        %v3959 = vsub.s32 6, %v3958
        %v3960 = vrot.slane %v3667, %v3959
        %v3961 = vmul.f32 %v3693, %v3960
        %v3962 = vmul.f32 %v3694, %v3960
        %v3963 = vmul.f32 %v3695, %v3960
        %v3964 = vmul.f32 %v3697, %v3960
        %v3965 = vmul.f32 %v3698, %v3960
        %v3966 = vmul.f32 %v3699, %v3960
        %v3967 = vmul.f32 %v3701, %v3960
        %v3968 = vmul.f32 %v3702, %v3960
        %v3969 = vmul.f32 %v3703, %v3960
        %v3970 = vmul.f32 %v3705, %v3960
        %v3971 = vmul.f32 %v3706, %v3960
        %v3972 = vmul.f32 %v3707, %v3960
        %v3973 = vmul.f32 %v3709, %v3960
        %v3974 = vmul.f32 %v3710, %v3960
        %v3975 = vmul.f32 %v3711, %v3960
        %v3976 = vmul.f32 %v3713, %v3960
        %v3977 = vmul.f32 %v3714, %v3960
        %v3978 = vmul.f32 %v3715, %v3960
        %v3979 = vmul.f32 %v3717, %v3960
        %v3980 = vmul.f32 %v3718, %v3960
        %v3981 = vmul.f32 %v3719, %v3960
        %v3982 = vmul.f32 %v3721, %v3960
        %v3983 = vmul.f32 %v3722, %v3960
        %v3984 = vmul.f32 %v3723, %v3960
        %v3985 = vmul.f32 %v3725, %v3960
        %v3986 = vmul.f32 %v3726, %v3960
        %v3987 = vmul.f32 %v3727, %v3960
        %v3988 = vmul.f32 %v3729, %v3960
        %v3989 = vmul.f32 %v3730, %v3960
        %v3990 = vmul.f32 %v3731, %v3960
        %v3991 = vmul.f32 %v3733, %v3960
        %v3992 = vmul.f32 %v3734, %v3960
        %v3993 = vmul.f32 %v3735, %v3960
        %v3994 = vmul.f32 %v3737, %v3960
        %v3995 = vmul.f32 %v3738, %v3960
        %v3996 = vmul.f32 %v3739, %v3960
        %v3997 = vmul.f32 %v3741, %v3960
        %v3998 = vmul.f32 %v3742, %v3960
        %v3999 = vmul.f32 %v3743, %v3960
        %v4000 = vmul.f32 %v3745, %v3960
        %v4001 = vmul.f32 %v3746, %v3960
        %v4002 = vmul.f32 %v3747, %v3960
        %v4003 = vmul.f32 %v3749, %v3960
        %v4004 = vmul.f32 %v3750, %v3960
        %v4005 = vmul.f32 %v3751, %v3960
        %v4006 = vmul.f32 %v3753, %v3960
        %v4007 = vmul.f32 %v3754, %v3960
        %v4008 = vmul.f32 %v3755, %v3960
        %v4009 = vadd.f32 %v3909, %v3961
        %v4010 = vadd.f32 %v3910, %v3962
        %v4011 = vadd.f32 %v3911, %v3963
        %v4012 = vadd.f32 %v3912, %v3964
        %v4013 = vadd.f32 %v3913, %v3965
        %v4014 = vadd.f32 %v3914, %v3966
        %v4015 = vadd.f32 %v3915, %v3967
        %v4016 = vadd.f32 %v3916, %v3968
        %v4017 = vadd.f32 %v3917, %v3969
        %v4018 = vadd.f32 %v3918, %v3970
        %v4019 = vadd.f32 %v3919, %v3971
        %v4020 = vadd.f32 %v3920, %v3972
        %v4021 = vadd.f32 %v3921, %v3973
        %v4022 = vadd.f32 %v3922, %v3974
        %v4023 = vadd.f32 %v3923, %v3975
        %v4024 = vadd.f32 %v3924, %v3976
        %v4025 = vadd.f32 %v3925, %v3977
        %v4026 = vadd.f32 %v3926, %v3978
        %v4027 = vadd.f32 %v3927, %v3979
        %v4028 = vadd.f32 %v3928, %v3980
        %v4029 = vadd.f32 %v3929, %v3981
        %v4030 = vadd.f32 %v3930, %v3982
        %v4031 = vadd.f32 %v3931, %v3983
        %v4032 = vadd.f32 %v3932, %v3984
        %v4033 = vadd.f32 %v3933, %v3985
        %v4034 = vadd.f32 %v3934, %v3986
        %v4035 = vadd.f32 %v3935, %v3987
        %v4036 = vadd.f32 %v3936, %v3988
        %v4037 = vadd.f32 %v3937, %v3989
        %v4038 = vadd.f32 %v3938, %v3990
        %v4039 = vadd.f32 %v3939, %v3991
        %v4040 = vadd.f32 %v3940, %v3992
        %v4041 = vadd.f32 %v3941, %v3993
        %v4042 = vadd.f32 %v3942, %v3994
        %v4043 = vadd.f32 %v3943, %v3995
        %v4044 = vadd.f32 %v3944, %v3996
        %v4045 = vadd.f32 %v3945, %v3997
        %v4046 = vadd.f32 %v3946, %v3998
        %v4047 = vadd.f32 %v3947, %v3999
        %v4048 = vadd.f32 %v3948, %v4000
        %v4049 = vadd.f32 %v3949, %v4001
        %v4050 = vadd.f32 %v3950, %v4002
        %v4051 = vadd.f32 %v3951, %v4003
        %v4052 = vadd.f32 %v3952, %v4004
        %v4053 = vadd.f32 %v3953, %v4005
        %v4054 = vadd.f32 %v3954, %v4006
        %v4055 = vadd.f32 %v3955, %v4007
        %v4056 = vadd.f32 %v3956, %v4008
        %v4057 = vlaneseq
        %v4058 = vshrl.u32 %v4057, 7
        %v4059 = vsub.s32 1, %v4058
        %v4060 = vrot.slane %v3667, %v4059
        %v4061 = vmul.f32 %v3678, %v4060
        %v4062 = vmul.f32 %v3679, %v4060
        %v4063 = vmul.f32 %v3682, %v4060
        %v4064 = vmul.f32 %v3683, %v4060
        %v4065 = vmul.f32 %v3686, %v4060
        %v4066 = vmul.f32 %v3687, %v4060
        %v4067 = vmul.f32 %v3690, %v4060
        %v4068 = vmul.f32 %v3691, %v4060
        %v4069 = vmul.f32 %v3694, %v4060
        %v4070 = vmul.f32 %v3695, %v4060
        %v4071 = vmul.f32 %v3698, %v4060
        %v4072 = vmul.f32 %v3699, %v4060
        %v4073 = vmul.f32 %v3702, %v4060
        %v4074 = vmul.f32 %v3703, %v4060
        %v4075 = vmul.f32 %v3706, %v4060
        %v4076 = vmul.f32 %v3707, %v4060
        %v4077 = vmul.f32 %v3710, %v4060
        %v4078 = vmul.f32 %v3711, %v4060
        %v4079 = vmul.f32 %v3714, %v4060
        %v4080 = vmul.f32 %v3715, %v4060
        %v4081 = vmul.f32 %v3718, %v4060
        %v4082 = vmul.f32 %v3719, %v4060
        %v4083 = vmul.f32 %v3722, %v4060
        %v4084 = vmul.f32 %v3723, %v4060
        %v4085 = vmul.f32 %v3726, %v4060
        %v4086 = vmul.f32 %v3727, %v4060
        %v4087 = vmul.f32 %v3730, %v4060
        %v4088 = vmul.f32 %v3731, %v4060
        %v4089 = vmul.f32 %v3734, %v4060
        %v4090 = vmul.f32 %v3735, %v4060
        %v4091 = vmul.f32 %v3738, %v4060
        %v4092 = vmul.f32 %v3739, %v4060
        %v4125 = vrot.slane %v4061, 2
        %v4126 = vrot.slane %v4062, 2
        %v4127 = vsel %vm2506, %v4125, %v4126
        %v4128 = vrot.slane %v4063, 2
        %v4129 = vrot.slane %v4064, 2
        %v4130 = vsel %vm2506, %v4128, %v4129
        %v4131 = vrot.slane %v4065, 2
        %v4132 = vrot.slane %v4066, 2
        %v4133 = vsel %vm2506, %v4131, %v4132
        %v4134 = vrot.slane %v4067, 2
        %v4135 = vrot.slane %v4068, 2
        %v4136 = vsel %vm2506, %v4134, %v4135
        %v4137 = vrot.slane %v4069, 2
        %v4138 = vrot.slane %v4070, 2
        %v4139 = vsel %vm2506, %v4137, %v4138
        %v4140 = vrot.slane %v4071, 2
        %v4141 = vrot.slane %v4072, 2
        %v4142 = vsel %vm2506, %v4140, %v4141
        %v4143 = vrot.slane %v4073, 2
        %v4144 = vrot.slane %v4074, 2
        %v4145 = vsel %vm2506, %v4143, %v4144
        %v4146 = vrot.slane %v4075, 2
        %v4147 = vrot.slane %v4076, 2
        %v4148 = vsel %vm2506, %v4146, %v4147
        %v4149 = vrot.slane %v4077, 2
        %v4150 = vrot.slane %v4078, 2
        %v4151 = vsel %vm2506, %v4149, %v4150
        %v4152 = vrot.slane %v4079, 2
        %v4153 = vrot.slane %v4080, 2
        %v4154 = vsel %vm2506, %v4152, %v4153
        %v4155 = vrot.slane %v4081, 2
        %v4156 = vrot.slane %v4082, 2
        %v4157 = vsel %vm2506, %v4155, %v4156
        %v4158 = vrot.slane %v4083, 2
        %v4159 = vrot.slane %v4084, 2
        %v4160 = vsel %vm2506, %v4158, %v4159
        %v4161 = vrot.slane %v4085, 2
        %v4162 = vrot.slane %v4086, 2
        %v4163 = vsel %vm2506, %v4161, %v4162
        %v4164 = vrot.slane %v4087, 2
        %v4165 = vrot.slane %v4088, 2
        %v4166 = vsel %vm2506, %v4164, %v4165
        %v4167 = vrot.slane %v4089, 2
        %v4168 = vrot.slane %v4090, 2
        %v4169 = vsel %vm2506, %v4167, %v4168
        %v4170 = vrot.slane %v4091, 2
        %v4171 = vrot.slane %v4092, 2
        %v4172 = vsel %vm2506, %v4170, %v4171
        %v4221 = vadd.f32 %v4009, %v4125
        %v4222 = vadd.f32 %v4010, %v4127
        %v4223 = vadd.f32 %v4011, %v4126
        %v4224 = vadd.f32 %v4012, %v4128
        %v4225 = vadd.f32 %v4013, %v4130
        %v4226 = vadd.f32 %v4014, %v4129
        %v4227 = vadd.f32 %v4015, %v4131
        %v4228 = vadd.f32 %v4016, %v4133
        %v4229 = vadd.f32 %v4017, %v4132
        %v4230 = vadd.f32 %v4018, %v4134
        %v4231 = vadd.f32 %v4019, %v4136
        %v4232 = vadd.f32 %v4020, %v4135
        %v4233 = vadd.f32 %v4021, %v4137
        %v4234 = vadd.f32 %v4022, %v4139
        %v4235 = vadd.f32 %v4023, %v4138
        %v4236 = vadd.f32 %v4024, %v4140
        %v4237 = vadd.f32 %v4025, %v4142
        %v4238 = vadd.f32 %v4026, %v4141
        %v4239 = vadd.f32 %v4027, %v4143
        %v4240 = vadd.f32 %v4028, %v4145
        %v4241 = vadd.f32 %v4029, %v4144
        %v4242 = vadd.f32 %v4030, %v4146
        %v4243 = vadd.f32 %v4031, %v4148
        %v4244 = vadd.f32 %v4032, %v4147
        %v4245 = vadd.f32 %v4033, %v4149
        %v4246 = vadd.f32 %v4034, %v4151
        %v4247 = vadd.f32 %v4035, %v4150
        %v4248 = vadd.f32 %v4036, %v4152
        %v4249 = vadd.f32 %v4037, %v4154
        %v4250 = vadd.f32 %v4038, %v4153
        %v4251 = vadd.f32 %v4039, %v4155
        %v4252 = vadd.f32 %v4040, %v4157
        %v4253 = vadd.f32 %v4041, %v4156
        %v4254 = vadd.f32 %v4042, %v4158
        %v4255 = vadd.f32 %v4043, %v4160
        %v4256 = vadd.f32 %v4044, %v4159
        %v4257 = vadd.f32 %v4045, %v4161
        %v4258 = vadd.f32 %v4046, %v4163
        %v4259 = vadd.f32 %v4047, %v4162
        %v4260 = vadd.f32 %v4048, %v4164
        %v4261 = vadd.f32 %v4049, %v4166
        %v4262 = vadd.f32 %v4050, %v4165
        %v4263 = vadd.f32 %v4051, %v4167
        %v4264 = vadd.f32 %v4052, %v4169
        %v4265 = vadd.f32 %v4053, %v4168
        %v4266 = vadd.f32 %v4054, %v4170
        %v4267 = vadd.f32 %v4055, %v4172
        %v4268 = vadd.f32 %v4056, %v4171
        %v4269 = vlaneseq
        %v4270 = vshrl.u32 %v4269, 7
        %v4271 = vsub.s32 4, %v4270
        %v4272 = vrot.slane %v3667, %v4271
        %v4273 = vmul.f32 %v3686, %v4272
        %v4274 = vmul.f32 %v3687, %v4272
        %v4275 = vmul.f32 %v3690, %v4272
        %v4276 = vmul.f32 %v3691, %v4272
        %v4277 = vmul.f32 %v3694, %v4272
        %v4278 = vmul.f32 %v3695, %v4272
        %v4279 = vmul.f32 %v3698, %v4272
        %v4280 = vmul.f32 %v3699, %v4272
        %v4281 = vmul.f32 %v3702, %v4272
        %v4282 = vmul.f32 %v3703, %v4272
        %v4283 = vmul.f32 %v3706, %v4272
        %v4284 = vmul.f32 %v3707, %v4272
        %v4285 = vmul.f32 %v3710, %v4272
        %v4286 = vmul.f32 %v3711, %v4272
        %v4287 = vmul.f32 %v3714, %v4272
        %v4288 = vmul.f32 %v3715, %v4272
        %v4289 = vmul.f32 %v3718, %v4272
        %v4290 = vmul.f32 %v3719, %v4272
        %v4291 = vmul.f32 %v3722, %v4272
        %v4292 = vmul.f32 %v3723, %v4272
        %v4293 = vmul.f32 %v3726, %v4272
        %v4294 = vmul.f32 %v3727, %v4272
        %v4295 = vmul.f32 %v3730, %v4272
        %v4296 = vmul.f32 %v3731, %v4272
        %v4297 = vmul.f32 %v3734, %v4272
        %v4298 = vmul.f32 %v3735, %v4272
        %v4299 = vmul.f32 %v3738, %v4272
        %v4300 = vmul.f32 %v3739, %v4272
        %v4301 = vmul.f32 %v3742, %v4272
        %v4302 = vmul.f32 %v3743, %v4272
        %v4303 = vmul.f32 %v3746, %v4272
        %v4304 = vmul.f32 %v3747, %v4272
        %v4337 = vrot.slane %v4273, 2
        %v4338 = vrot.slane %v4274, 2
        %v4339 = vsel %vm2506, %v4337, %v4338
        %v4340 = vrot.slane %v4275, 2
        %v4341 = vrot.slane %v4276, 2
        %v4342 = vsel %vm2506, %v4340, %v4341
        %v4343 = vrot.slane %v4277, 2
        %v4344 = vrot.slane %v4278, 2
        %v4345 = vsel %vm2506, %v4343, %v4344
        %v4346 = vrot.slane %v4279, 2
        %v4347 = vrot.slane %v4280, 2
        %v4348 = vsel %vm2506, %v4346, %v4347
        %v4349 = vrot.slane %v4281, 2
        %v4350 = vrot.slane %v4282, 2
        %v4351 = vsel %vm2506, %v4349, %v4350
        %v4352 = vrot.slane %v4283, 2
        %v4353 = vrot.slane %v4284, 2
        %v4354 = vsel %vm2506, %v4352, %v4353
        %v4355 = vrot.slane %v4285, 2
        %v4356 = vrot.slane %v4286, 2
        %v4357 = vsel %vm2506, %v4355, %v4356
        %v4358 = vrot.slane %v4287, 2
        %v4359 = vrot.slane %v4288, 2
        %v4360 = vsel %vm2506, %v4358, %v4359
        %v4361 = vrot.slane %v4289, 2
        %v4362 = vrot.slane %v4290, 2
        %v4363 = vsel %vm2506, %v4361, %v4362
        %v4364 = vrot.slane %v4291, 2
        %v4365 = vrot.slane %v4292, 2
        %v4366 = vsel %vm2506, %v4364, %v4365
        %v4367 = vrot.slane %v4293, 2
        %v4368 = vrot.slane %v4294, 2
        %v4369 = vsel %vm2506, %v4367, %v4368
        %v4370 = vrot.slane %v4295, 2
        %v4371 = vrot.slane %v4296, 2
        %v4372 = vsel %vm2506, %v4370, %v4371
        %v4373 = vrot.slane %v4297, 2
        %v4374 = vrot.slane %v4298, 2
        %v4375 = vsel %vm2506, %v4373, %v4374
        %v4376 = vrot.slane %v4299, 2
        %v4377 = vrot.slane %v4300, 2
        %v4378 = vsel %vm2506, %v4376, %v4377
        %v4379 = vrot.slane %v4301, 2
        %v4380 = vrot.slane %v4302, 2
        %v4381 = vsel %vm2506, %v4379, %v4380
        %v4382 = vrot.slane %v4303, 2
        %v4383 = vrot.slane %v4304, 2
        %v4384 = vsel %vm2506, %v4382, %v4383
        %v4433 = vadd.f32 %v4221, %v4337
        %v4434 = vadd.f32 %v4222, %v4339
        %v4435 = vadd.f32 %v4223, %v4338
        %v4436 = vadd.f32 %v4224, %v4340
        %v4437 = vadd.f32 %v4225, %v4342
        %v4438 = vadd.f32 %v4226, %v4341
        %v4439 = vadd.f32 %v4227, %v4343
        %v4440 = vadd.f32 %v4228, %v4345
        %v4441 = vadd.f32 %v4229, %v4344
        %v4442 = vadd.f32 %v4230, %v4346
        %v4443 = vadd.f32 %v4231, %v4348
        %v4444 = vadd.f32 %v4232, %v4347
        %v4445 = vadd.f32 %v4233, %v4349
        %v4446 = vadd.f32 %v4234, %v4351
        %v4447 = vadd.f32 %v4235, %v4350
        %v4448 = vadd.f32 %v4236, %v4352
        %v4449 = vadd.f32 %v4237, %v4354
        %v4450 = vadd.f32 %v4238, %v4353
        %v4451 = vadd.f32 %v4239, %v4355
        %v4452 = vadd.f32 %v4240, %v4357
        %v4453 = vadd.f32 %v4241, %v4356
        %v4454 = vadd.f32 %v4242, %v4358
        %v4455 = vadd.f32 %v4243, %v4360
        %v4456 = vadd.f32 %v4244, %v4359
        %v4457 = vadd.f32 %v4245, %v4361
        %v4458 = vadd.f32 %v4246, %v4363
        %v4459 = vadd.f32 %v4247, %v4362
        %v4460 = vadd.f32 %v4248, %v4364
        %v4461 = vadd.f32 %v4249, %v4366
        %v4462 = vadd.f32 %v4250, %v4365
        %v4463 = vadd.f32 %v4251, %v4367
        %v4464 = vadd.f32 %v4252, %v4369
        %v4465 = vadd.f32 %v4253, %v4368
        %v4466 = vadd.f32 %v4254, %v4370
        %v4467 = vadd.f32 %v4255, %v4372
        %v4468 = vadd.f32 %v4256, %v4371
        %v4469 = vadd.f32 %v4257, %v4373
        %v4470 = vadd.f32 %v4258, %v4375
        %v4471 = vadd.f32 %v4259, %v4374
        %v4472 = vadd.f32 %v4260, %v4376
        %v4473 = vadd.f32 %v4261, %v4378
        %v4474 = vadd.f32 %v4262, %v4377
        %v4475 = vadd.f32 %v4263, %v4379
        %v4476 = vadd.f32 %v4264, %v4381
        %v4477 = vadd.f32 %v4265, %v4380
        %v4478 = vadd.f32 %v4266, %v4382
        %v4479 = vadd.f32 %v4267, %v4384
        %v4480 = vadd.f32 %v4268, %v4383
        %v4481 = vlaneseq
        %v4482 = vshrl.u32 %v4481, 7
        %v4483 = vsub.s32 7, %v4482
        %v4484 = vrot.slane %v3667, %v4483
        %v4485 = vmul.f32 %v3694, %v4484
        %v4486 = vmul.f32 %v3695, %v4484
        %v4487 = vmul.f32 %v3698, %v4484
        %v4488 = vmul.f32 %v3699, %v4484
        %v4489 = vmul.f32 %v3702, %v4484
        %v4490 = vmul.f32 %v3703, %v4484
        %v4491 = vmul.f32 %v3706, %v4484
        %v4492 = vmul.f32 %v3707, %v4484
        %v4493 = vmul.f32 %v3710, %v4484
        %v4494 = vmul.f32 %v3711, %v4484
        %v4495 = vmul.f32 %v3714, %v4484
        %v4496 = vmul.f32 %v3715, %v4484
        %v4497 = vmul.f32 %v3718, %v4484
        %v4498 = vmul.f32 %v3719, %v4484
        %v4499 = vmul.f32 %v3722, %v4484
        %v4500 = vmul.f32 %v3723, %v4484
        %v4501 = vmul.f32 %v3726, %v4484
        %v4502 = vmul.f32 %v3727, %v4484
        %v4503 = vmul.f32 %v3730, %v4484
        %v4504 = vmul.f32 %v3731, %v4484
        %v4505 = vmul.f32 %v3734, %v4484
        %v4506 = vmul.f32 %v3735, %v4484
        %v4507 = vmul.f32 %v3738, %v4484
        %v4508 = vmul.f32 %v3739, %v4484
        %v4509 = vmul.f32 %v3742, %v4484
        %v4510 = vmul.f32 %v3743, %v4484
        %v4511 = vmul.f32 %v3746, %v4484
        %v4512 = vmul.f32 %v3747, %v4484
        %v4513 = vmul.f32 %v3750, %v4484
        %v4514 = vmul.f32 %v3751, %v4484
        %v4515 = vmul.f32 %v3754, %v4484
        %v4516 = vmul.f32 %v3755, %v4484
        %v4549 = vrot.slane %v4485, 2
        %v4550 = vrot.slane %v4486, 2
        %v4551 = vsel %vm2506, %v4549, %v4550
        %v4552 = vrot.slane %v4487, 2
        %v4553 = vrot.slane %v4488, 2
        %v4554 = vsel %vm2506, %v4552, %v4553
        %v4555 = vrot.slane %v4489, 2
        %v4556 = vrot.slane %v4490, 2
        %v4557 = vsel %vm2506, %v4555, %v4556
        %v4558 = vrot.slane %v4491, 2
        %v4559 = vrot.slane %v4492, 2
        %v4560 = vsel %vm2506, %v4558, %v4559
        %v4561 = vrot.slane %v4493, 2
        %v4562 = vrot.slane %v4494, 2
        %v4563 = vsel %vm2506, %v4561, %v4562
        %v4564 = vrot.slane %v4495, 2
        %v4565 = vrot.slane %v4496, 2
        %v4566 = vsel %vm2506, %v4564, %v4565
        %v4567 = vrot.slane %v4497, 2
        %v4568 = vrot.slane %v4498, 2
        %v4569 = vsel %vm2506, %v4567, %v4568
        %v4570 = vrot.slane %v4499, 2
        %v4571 = vrot.slane %v4500, 2
        %v4572 = vsel %vm2506, %v4570, %v4571
        %v4573 = vrot.slane %v4501, 2
        %v4574 = vrot.slane %v4502, 2
        %v4575 = vsel %vm2506, %v4573, %v4574
        %v4576 = vrot.slane %v4503, 2
        %v4577 = vrot.slane %v4504, 2
        %v4578 = vsel %vm2506, %v4576, %v4577
        %v4579 = vrot.slane %v4505, 2
        %v4580 = vrot.slane %v4506, 2
        %v4581 = vsel %vm2506, %v4579, %v4580
        %v4582 = vrot.slane %v4507, 2
        %v4583 = vrot.slane %v4508, 2
        %v4584 = vsel %vm2506, %v4582, %v4583
        %v4585 = vrot.slane %v4509, 2
        %v4586 = vrot.slane %v4510, 2
        %v4587 = vsel %vm2506, %v4585, %v4586
        %v4588 = vrot.slane %v4511, 2
        %v4589 = vrot.slane %v4512, 2
        %v4590 = vsel %vm2506, %v4588, %v4589
        %v4591 = vrot.slane %v4513, 2
        %v4592 = vrot.slane %v4514, 2
        %v4593 = vsel %vm2506, %v4591, %v4592
        %v4594 = vrot.slane %v4515, 2
        %v4595 = vrot.slane %v4516, 2
        %v4596 = vsel %vm2506, %v4594, %v4595
        %v4645 = vadd.f32 %v4433, %v4549
        %v4646 = vadd.f32 %v4434, %v4551
        %v4647 = vadd.f32 %v4435, %v4550
        %v4648 = vadd.f32 %v4436, %v4552
        %v4649 = vadd.f32 %v4437, %v4554
        %v4650 = vadd.f32 %v4438, %v4553
        %v4651 = vadd.f32 %v4439, %v4555
        %v4652 = vadd.f32 %v4440, %v4557
        %v4653 = vadd.f32 %v4441, %v4556
        %v4654 = vadd.f32 %v4442, %v4558
        %v4655 = vadd.f32 %v4443, %v4560
        %v4656 = vadd.f32 %v4444, %v4559
        %v4657 = vadd.f32 %v4445, %v4561
        %v4658 = vadd.f32 %v4446, %v4563
        %v4659 = vadd.f32 %v4447, %v4562
        %v4660 = vadd.f32 %v4448, %v4564
        %v4661 = vadd.f32 %v4449, %v4566
        %v4662 = vadd.f32 %v4450, %v4565
        %v4663 = vadd.f32 %v4451, %v4567
        %v4664 = vadd.f32 %v4452, %v4569
        %v4665 = vadd.f32 %v4453, %v4568
        %v4666 = vadd.f32 %v4454, %v4570
        %v4667 = vadd.f32 %v4455, %v4572
        %v4668 = vadd.f32 %v4456, %v4571
        %v4669 = vadd.f32 %v4457, %v4573
        %v4670 = vadd.f32 %v4458, %v4575
        %v4671 = vadd.f32 %v4459, %v4574
        %v4672 = vadd.f32 %v4460, %v4576
        %v4673 = vadd.f32 %v4461, %v4578
        %v4674 = vadd.f32 %v4462, %v4577
        %v4675 = vadd.f32 %v4463, %v4579
        %v4676 = vadd.f32 %v4464, %v4581
        %v4677 = vadd.f32 %v4465, %v4580
        %v4678 = vadd.f32 %v4466, %v4582
        %v4679 = vadd.f32 %v4467, %v4584
        %v4680 = vadd.f32 %v4468, %v4583
        %v4681 = vadd.f32 %v4469, %v4585
        %v4682 = vadd.f32 %v4470, %v4587
        %v4683 = vadd.f32 %v4471, %v4586
        %v4684 = vadd.f32 %v4472, %v4588
        %v4685 = vadd.f32 %v4473, %v4590
        %v4686 = vadd.f32 %v4474, %v4589
        %v4687 = vadd.f32 %v4475, %v4591
        %v4688 = vadd.f32 %v4476, %v4593
        %v4689 = vadd.f32 %v4477, %v4592
        %v4690 = vadd.f32 %v4478, %v4594
        %v4691 = vadd.f32 %v4479, %v4596
        %v4692 = vadd.f32 %v4480, %v4595
        %v4693 = vlaneseq
        %v4694 = vshrl.u32 %v4693, 7
        %v4695 = vsub.s32 2, %v4694
        %v4696 = vrot.slane %v3667, %v4695
        %v4697 = vmul.f32 %v3678, %v4696
        %v4698 = vmul.f32 %v3679, %v4696
        %v4699 = vmul.f32 %v3680, %v4696
        %v4700 = vmul.f32 %v3682, %v4696
        %v4701 = vmul.f32 %v3683, %v4696
        %v4702 = vmul.f32 %v3684, %v4696
        %v4703 = vmul.f32 %v3686, %v4696
        %v4704 = vmul.f32 %v3687, %v4696
        %v4705 = vmul.f32 %v3688, %v4696
        %v4706 = vmul.f32 %v3690, %v4696
        %v4707 = vmul.f32 %v3691, %v4696
        %v4708 = vmul.f32 %v3692, %v4696
        %v4709 = vmul.f32 %v3694, %v4696
        %v4710 = vmul.f32 %v3695, %v4696
        %v4711 = vmul.f32 %v3696, %v4696
        %v4712 = vmul.f32 %v3698, %v4696
        %v4713 = vmul.f32 %v3699, %v4696
        %v4714 = vmul.f32 %v3700, %v4696
        %v4715 = vmul.f32 %v3702, %v4696
        %v4716 = vmul.f32 %v3703, %v4696
        %v4717 = vmul.f32 %v3704, %v4696
        %v4718 = vmul.f32 %v3706, %v4696
        %v4719 = vmul.f32 %v3707, %v4696
        %v4720 = vmul.f32 %v3708, %v4696
        %v4721 = vmul.f32 %v3710, %v4696
        %v4722 = vmul.f32 %v3711, %v4696
        %v4723 = vmul.f32 %v3712, %v4696
        %v4724 = vmul.f32 %v3714, %v4696
        %v4725 = vmul.f32 %v3715, %v4696
        %v4726 = vmul.f32 %v3716, %v4696
        %v4727 = vmul.f32 %v3718, %v4696
        %v4728 = vmul.f32 %v3719, %v4696
        %v4729 = vmul.f32 %v3720, %v4696
        %v4730 = vmul.f32 %v3722, %v4696
        %v4731 = vmul.f32 %v3723, %v4696
        %v4732 = vmul.f32 %v3724, %v4696
        %v4733 = vmul.f32 %v3726, %v4696
        %v4734 = vmul.f32 %v3727, %v4696
        %v4735 = vmul.f32 %v3728, %v4696
        %v4736 = vmul.f32 %v3730, %v4696
        %v4737 = vmul.f32 %v3731, %v4696
        %v4738 = vmul.f32 %v3732, %v4696
        %v4739 = vmul.f32 %v3734, %v4696
        %v4740 = vmul.f32 %v3735, %v4696
        %v4741 = vmul.f32 %v3736, %v4696
        %v4742 = vmul.f32 %v3738, %v4696
        %v4743 = vmul.f32 %v3739, %v4696
        %v4744 = vmul.f32 %v3740, %v4696
        %vm4793 = vcmask 1043456
        %v4794 = vrot.slane %v4697, 4
        %v4795 = vrot.slane %v4698, 4
        %v4796 = vsel %vm4793, %v4794, %v4795
        %v4797 = vrot.slane %v4699, 4
        %v4798 = vsel %vm4793, %v4795, %v4797
        %v4799 = vrot.slane %v4700, 4
        %v4800 = vrot.slane %v4701, 4
        %v4801 = vsel %vm4793, %v4799, %v4800
        %v4802 = vrot.slane %v4702, 4
        %v4803 = vsel %vm4793, %v4800, %v4802
        %v4804 = vrot.slane %v4703, 4
        %v4805 = vrot.slane %v4704, 4
        %v4806 = vsel %vm4793, %v4804, %v4805
        %v4807 = vrot.slane %v4705, 4
        %v4808 = vsel %vm4793, %v4805, %v4807
        %v4809 = vrot.slane %v4706, 4
        %v4810 = vrot.slane %v4707, 4
        %v4811 = vsel %vm4793, %v4809, %v4810
        %v4812 = vrot.slane %v4708, 4
        %v4813 = vsel %vm4793, %v4810, %v4812
        %v4814 = vrot.slane %v4709, 4
        %v4815 = vrot.slane %v4710, 4
        %v4816 = vsel %vm4793, %v4814, %v4815
        %v4817 = vrot.slane %v4711, 4
        %v4818 = vsel %vm4793, %v4815, %v4817
        %v4819 = vrot.slane %v4712, 4
        %v4820 = vrot.slane %v4713, 4
        %v4821 = vsel %vm4793, %v4819, %v4820
        %v4822 = vrot.slane %v4714, 4
        %v4823 = vsel %vm4793, %v4820, %v4822
        %v4824 = vrot.slane %v4715, 4
        %v4825 = vrot.slane %v4716, 4
        %v4826 = vsel %vm4793, %v4824, %v4825
        %v4827 = vrot.slane %v4717, 4
        %v4828 = vsel %vm4793, %v4825, %v4827
        %v4829 = vrot.slane %v4718, 4
        %v4830 = vrot.slane %v4719, 4
        %v4831 = vsel %vm4793, %v4829, %v4830
        %v4832 = vrot.slane %v4720, 4
        %v4833 = vsel %vm4793, %v4830, %v4832
        %v4834 = vrot.slane %v4721, 4
        %v4835 = vrot.slane %v4722, 4
        %v4836 = vsel %vm4793, %v4834, %v4835
        %v4837 = vrot.slane %v4723, 4
        %v4838 = vsel %vm4793, %v4835, %v4837
        %v4839 = vrot.slane %v4724, 4
        %v4840 = vrot.slane %v4725, 4
        %v4841 = vsel %vm4793, %v4839, %v4840
        %v4842 = vrot.slane %v4726, 4
        %v4843 = vsel %vm4793, %v4840, %v4842
        %v4844 = vrot.slane %v4727, 4
        %v4845 = vrot.slane %v4728, 4
        %v4846 = vsel %vm4793, %v4844, %v4845
        %v4847 = vrot.slane %v4729, 4
        %v4848 = vsel %vm4793, %v4845, %v4847
        %v4849 = vrot.slane %v4730, 4
        %v4850 = vrot.slane %v4731, 4
        %v4851 = vsel %vm4793, %v4849, %v4850
        %v4852 = vrot.slane %v4732, 4
        %v4853 = vsel %vm4793, %v4850, %v4852
        %v4854 = vrot.slane %v4733, 4
        %v4855 = vrot.slane %v4734, 4
        %v4856 = vsel %vm4793, %v4854, %v4855
        %v4857 = vrot.slane %v4735, 4
        %v4858 = vsel %vm4793, %v4855, %v4857
        %v4859 = vrot.slane %v4736, 4
        %v4860 = vrot.slane %v4737, 4
        %v4861 = vsel %vm4793, %v4859, %v4860
        %v4862 = vrot.slane %v4738, 4
        %v4863 = vsel %vm4793, %v4860, %v4862
        %v4864 = vrot.slane %v4739, 4
        %v4865 = vrot.slane %v4740, 4
        %v4866 = vsel %vm4793, %v4864, %v4865
        %v4867 = vrot.slane %v4741, 4
        %v4868 = vsel %vm4793, %v4865, %v4867
        %v4869 = vrot.slane %v4742, 4
        %v4870 = vrot.slane %v4743, 4
        %v4871 = vsel %vm4793, %v4869, %v4870
        %v4872 = vrot.slane %v4744, 4
        %v4873 = vsel %vm4793, %v4870, %v4872
        %v4922 = vadd.f32 %v4645, %v4794
        %v4923 = vadd.f32 %v4646, %v4796
        %v4924 = vadd.f32 %v4647, %v4798
        %v4925 = vadd.f32 %v4648, %v4799
        %v4926 = vadd.f32 %v4649, %v4801
        %v4927 = vadd.f32 %v4650, %v4803
        %v4928 = vadd.f32 %v4651, %v4804
        %v4929 = vadd.f32 %v4652, %v4806
        %v4930 = vadd.f32 %v4653, %v4808
        %v4931 = vadd.f32 %v4654, %v4809
        %v4932 = vadd.f32 %v4655, %v4811
        %v4933 = vadd.f32 %v4656, %v4813
        %v4934 = vadd.f32 %v4657, %v4814
        %v4935 = vadd.f32 %v4658, %v4816
        %v4936 = vadd.f32 %v4659, %v4818
        %v4937 = vadd.f32 %v4660, %v4819
        %v4938 = vadd.f32 %v4661, %v4821
        %v4939 = vadd.f32 %v4662, %v4823
        %v4940 = vadd.f32 %v4663, %v4824
        %v4941 = vadd.f32 %v4664, %v4826
        %v4942 = vadd.f32 %v4665, %v4828
        %v4943 = vadd.f32 %v4666, %v4829
        %v4944 = vadd.f32 %v4667, %v4831
        %v4945 = vadd.f32 %v4668, %v4833
        %v4946 = vadd.f32 %v4669, %v4834
        %v4947 = vadd.f32 %v4670, %v4836
        %v4948 = vadd.f32 %v4671, %v4838
        %v4949 = vadd.f32 %v4672, %v4839
        %v4950 = vadd.f32 %v4673, %v4841
        %v4951 = vadd.f32 %v4674, %v4843
        %v4952 = vadd.f32 %v4675, %v4844
        %v4953 = vadd.f32 %v4676, %v4846
        %v4954 = vadd.f32 %v4677, %v4848
        %v4955 = vadd.f32 %v4678, %v4849
        %v4956 = vadd.f32 %v4679, %v4851
        %v4957 = vadd.f32 %v4680, %v4853
        %v4958 = vadd.f32 %v4681, %v4854
        %v4959 = vadd.f32 %v4682, %v4856
        %v4960 = vadd.f32 %v4683, %v4858
        %v4961 = vadd.f32 %v4684, %v4859
        %v4962 = vadd.f32 %v4685, %v4861
        %v4963 = vadd.f32 %v4686, %v4863
        %v4964 = vadd.f32 %v4687, %v4864
        %v4965 = vadd.f32 %v4688, %v4866
        %v4966 = vadd.f32 %v4689, %v4868
        %v4967 = vadd.f32 %v4690, %v4869
        %v4968 = vadd.f32 %v4691, %v4871
        %v4969 = vadd.f32 %v4692, %v4873
        %v4970 = vlaneseq
        %v4971 = vshrl.u32 %v4970, 7
        %v4972 = vsub.s32 5, %v4971
        %v4973 = vrot.slane %v3667, %v4972
        %v4974 = vmul.f32 %v3686, %v4973
        %v4975 = vmul.f32 %v3687, %v4973
        %v4976 = vmul.f32 %v3688, %v4973
        %v4977 = vmul.f32 %v3690, %v4973
        %v4978 = vmul.f32 %v3691, %v4973
        %v4979 = vmul.f32 %v3692, %v4973
        %v4980 = vmul.f32 %v3694, %v4973
        %v4981 = vmul.f32 %v3695, %v4973
        %v4982 = vmul.f32 %v3696, %v4973
        %v4983 = vmul.f32 %v3698, %v4973
        %v4984 = vmul.f32 %v3699, %v4973
        %v4985 = vmul.f32 %v3700, %v4973
        %v4986 = vmul.f32 %v3702, %v4973
        %v4987 = vmul.f32 %v3703, %v4973
        %v4988 = vmul.f32 %v3704, %v4973
        %v4989 = vmul.f32 %v3706, %v4973
        %v4990 = vmul.f32 %v3707, %v4973
        %v4991 = vmul.f32 %v3708, %v4973
        %v4992 = vmul.f32 %v3710, %v4973
        %v4993 = vmul.f32 %v3711, %v4973
        %v4994 = vmul.f32 %v3712, %v4973
        %v4995 = vmul.f32 %v3714, %v4973
        %v4996 = vmul.f32 %v3715, %v4973
        %v4997 = vmul.f32 %v3716, %v4973
        %v4998 = vmul.f32 %v3718, %v4973
        %v4999 = vmul.f32 %v3719, %v4973
        %v5000 = vmul.f32 %v3720, %v4973
        %v5001 = vmul.f32 %v3722, %v4973
        %v5002 = vmul.f32 %v3723, %v4973
        %v5003 = vmul.f32 %v3724, %v4973
        %v5004 = vmul.f32 %v3726, %v4973
        %v5005 = vmul.f32 %v3727, %v4973
        %v5006 = vmul.f32 %v3728, %v4973
        %v5007 = vmul.f32 %v3730, %v4973
        %v5008 = vmul.f32 %v3731, %v4973
        %v5009 = vmul.f32 %v3732, %v4973
        %v5010 = vmul.f32 %v3734, %v4973
        %v5011 = vmul.f32 %v3735, %v4973
        %v5012 = vmul.f32 %v3736, %v4973
        %v5013 = vmul.f32 %v3738, %v4973
        %v5014 = vmul.f32 %v3739, %v4973
        %v5015 = vmul.f32 %v3740, %v4973
        %v5016 = vmul.f32 %v3742, %v4973
        %v5017 = vmul.f32 %v3743, %v4973
        %v5018 = vmul.f32 %v3744, %v4973
        %v5019 = vmul.f32 %v3746, %v4973
        %v5020 = vmul.f32 %v3747, %v4973
        %v5021 = vmul.f32 %v3748, %v4973
        %v5070 = vrot.slane %v4974, 4
        %v5071 = vrot.slane %v4975, 4
        %v5072 = vsel %vm4793, %v5070, %v5071
        %v5073 = vrot.slane %v4976, 4
        %v5074 = vsel %vm4793, %v5071, %v5073
        %v5075 = vrot.slane %v4977, 4
        %v5076 = vrot.slane %v4978, 4
        %v5077 = vsel %vm4793, %v5075, %v5076
        %v5078 = vrot.slane %v4979, 4
        %v5079 = vsel %vm4793, %v5076, %v5078
        %v5080 = vrot.slane %v4980, 4
        %v5081 = vrot.slane %v4981, 4
        %v5082 = vsel %vm4793, %v5080, %v5081
        %v5083 = vrot.slane %v4982, 4
        %v5084 = vsel %vm4793, %v5081, %v5083
        %v5085 = vrot.slane %v4983, 4
        %v5086 = vrot.slane %v4984, 4
        %v5087 = vsel %vm4793, %v5085, %v5086
        %v5088 = vrot.slane %v4985, 4
        %v5089 = vsel %vm4793, %v5086, %v5088
        %v5090 = vrot.slane %v4986, 4
        %v5091 = vrot.slane %v4987, 4
        %v5092 = vsel %vm4793, %v5090, %v5091
        %v5093 = vrot.slane %v4988, 4
        %v5094 = vsel %vm4793, %v5091, %v5093
        %v5095 = vrot.slane %v4989, 4
        %v5096 = vrot.slane %v4990, 4
        %v5097 = vsel %vm4793, %v5095, %v5096
        %v5098 = vrot.slane %v4991, 4
        %v5099 = vsel %vm4793, %v5096, %v5098
        %v5100 = vrot.slane %v4992, 4
        %v5101 = vrot.slane %v4993, 4
        %v5102 = vsel %vm4793, %v5100, %v5101
        %v5103 = vrot.slane %v4994, 4
        %v5104 = vsel %vm4793, %v5101, %v5103
        %v5105 = vrot.slane %v4995, 4
        %v5106 = vrot.slane %v4996, 4
        %v5107 = vsel %vm4793, %v5105, %v5106
        %v5108 = vrot.slane %v4997, 4
        %v5109 = vsel %vm4793, %v5106, %v5108
        %v5110 = vrot.slane %v4998, 4
        %v5111 = vrot.slane %v4999, 4
        %v5112 = vsel %vm4793, %v5110, %v5111
        %v5113 = vrot.slane %v5000, 4
        %v5114 = vsel %vm4793, %v5111, %v5113
        %v5115 = vrot.slane %v5001, 4
        %v5116 = vrot.slane %v5002, 4
        %v5117 = vsel %vm4793, %v5115, %v5116
        %v5118 = vrot.slane %v5003, 4
        %v5119 = vsel %vm4793, %v5116, %v5118
        %v5120 = vrot.slane %v5004, 4
        %v5121 = vrot.slane %v5005, 4
        %v5122 = vsel %vm4793, %v5120, %v5121
        %v5123 = vrot.slane %v5006, 4
        %v5124 = vsel %vm4793, %v5121, %v5123
        %v5125 = vrot.slane %v5007, 4
        %v5126 = vrot.slane %v5008, 4
        %v5127 = vsel %vm4793, %v5125, %v5126
        %v5128 = vrot.slane %v5009, 4
        %v5129 = vsel %vm4793, %v5126, %v5128
        %v5130 = vrot.slane %v5010, 4
        %v5131 = vrot.slane %v5011, 4
        %v5132 = vsel %vm4793, %v5130, %v5131
        %v5133 = vrot.slane %v5012, 4
        %v5134 = vsel %vm4793, %v5131, %v5133
        %v5135 = vrot.slane %v5013, 4
        %v5136 = vrot.slane %v5014, 4
        %v5137 = vsel %vm4793, %v5135, %v5136
        %v5138 = vrot.slane %v5015, 4
        %v5139 = vsel %vm4793, %v5136, %v5138
        %v5140 = vrot.slane %v5016, 4
        %v5141 = vrot.slane %v5017, 4
        %v5142 = vsel %vm4793, %v5140, %v5141
        %v5143 = vrot.slane %v5018, 4
        %v5144 = vsel %vm4793, %v5141, %v5143
        %v5145 = vrot.slane %v5019, 4
        %v5146 = vrot.slane %v5020, 4
        %v5147 = vsel %vm4793, %v5145, %v5146
        %v5148 = vrot.slane %v5021, 4
        %v5149 = vsel %vm4793, %v5146, %v5148
        %v5198 = vadd.f32 %v4922, %v5070
        %v5199 = vadd.f32 %v4923, %v5072
        %v5200 = vadd.f32 %v4924, %v5074
        %v5201 = vadd.f32 %v4925, %v5075
        %v5202 = vadd.f32 %v4926, %v5077
        %v5203 = vadd.f32 %v4927, %v5079
        %v5204 = vadd.f32 %v4928, %v5080
        %v5205 = vadd.f32 %v4929, %v5082
        %v5206 = vadd.f32 %v4930, %v5084
        %v5207 = vadd.f32 %v4931, %v5085
        %v5208 = vadd.f32 %v4932, %v5087
        %v5209 = vadd.f32 %v4933, %v5089
        %v5210 = vadd.f32 %v4934, %v5090
        %v5211 = vadd.f32 %v4935, %v5092
        %v5212 = vadd.f32 %v4936, %v5094
        %v5213 = vadd.f32 %v4937, %v5095
        %v5214 = vadd.f32 %v4938, %v5097
        %v5215 = vadd.f32 %v4939, %v5099
        %v5216 = vadd.f32 %v4940, %v5100
        %v5217 = vadd.f32 %v4941, %v5102
        %v5218 = vadd.f32 %v4942, %v5104
        %v5219 = vadd.f32 %v4943, %v5105
        %v5220 = vadd.f32 %v4944, %v5107
        %v5221 = vadd.f32 %v4945, %v5109
        %v5222 = vadd.f32 %v4946, %v5110
        %v5223 = vadd.f32 %v4947, %v5112
        %v5224 = vadd.f32 %v4948, %v5114
        %v5225 = vadd.f32 %v4949, %v5115
        %v5226 = vadd.f32 %v4950, %v5117
        %v5227 = vadd.f32 %v4951, %v5119
        %v5228 = vadd.f32 %v4952, %v5120
        %v5229 = vadd.f32 %v4953, %v5122
        %v5230 = vadd.f32 %v4954, %v5124
        %v5231 = vadd.f32 %v4955, %v5125
        %v5232 = vadd.f32 %v4956, %v5127
        %v5233 = vadd.f32 %v4957, %v5129
        %v5234 = vadd.f32 %v4958, %v5130
        %v5235 = vadd.f32 %v4959, %v5132
        %v5236 = vadd.f32 %v4960, %v5134
        %v5237 = vadd.f32 %v4961, %v5135
        %v5238 = vadd.f32 %v4962, %v5137
        %v5239 = vadd.f32 %v4963, %v5139
        %v5240 = vadd.f32 %v4964, %v5140
        %v5241 = vadd.f32 %v4965, %v5142
        %v5242 = vadd.f32 %v4966, %v5144
        %v5243 = vadd.f32 %v4967, %v5145
        %v5244 = vadd.f32 %v4968, %v5147
        %v5245 = vadd.f32 %v4969, %v5149
        %v5246 = vlaneseq
        %v5247 = vshrl.u32 %v5246, 7
        %v5248 = vsub.s32 0, %v5247
        %v5249 = vrot.slane %v3668, %v5248
        %v5250 = vmul.f32 %v3694, %v5249
        %v5251 = vmul.f32 %v3695, %v5249
        %v5252 = vmul.f32 %v3696, %v5249
        %v5253 = vmul.f32 %v3698, %v5249
        %v5254 = vmul.f32 %v3699, %v5249
        %v5255 = vmul.f32 %v3700, %v5249
        %v5256 = vmul.f32 %v3702, %v5249
        %v5257 = vmul.f32 %v3703, %v5249
        %v5258 = vmul.f32 %v3704, %v5249
        %v5259 = vmul.f32 %v3706, %v5249
        %v5260 = vmul.f32 %v3707, %v5249
        %v5261 = vmul.f32 %v3708, %v5249
        %v5262 = vmul.f32 %v3710, %v5249
        %v5263 = vmul.f32 %v3711, %v5249
        %v5264 = vmul.f32 %v3712, %v5249
        %v5265 = vmul.f32 %v3714, %v5249
        %v5266 = vmul.f32 %v3715, %v5249
        %v5267 = vmul.f32 %v3716, %v5249
        %v5268 = vmul.f32 %v3718, %v5249
        %v5269 = vmul.f32 %v3719, %v5249
        %v5270 = vmul.f32 %v3720, %v5249
        %v5271 = vmul.f32 %v3722, %v5249
        %v5272 = vmul.f32 %v3723, %v5249
        %v5273 = vmul.f32 %v3724, %v5249
        %v5274 = vmul.f32 %v3726, %v5249
        %v5275 = vmul.f32 %v3727, %v5249
        %v5276 = vmul.f32 %v3728, %v5249
        %v5277 = vmul.f32 %v3730, %v5249
        %v5278 = vmul.f32 %v3731, %v5249
        %v5279 = vmul.f32 %v3732, %v5249
        %v5280 = vmul.f32 %v3734, %v5249
        %v5281 = vmul.f32 %v3735, %v5249
        %v5282 = vmul.f32 %v3736, %v5249
        %v5283 = vmul.f32 %v3738, %v5249
        %v5284 = vmul.f32 %v3739, %v5249
        %v5285 = vmul.f32 %v3740, %v5249
        %v5286 = vmul.f32 %v3742, %v5249
        %v5287 = vmul.f32 %v3743, %v5249
        %v5288 = vmul.f32 %v3744, %v5249
        %v5289 = vmul.f32 %v3746, %v5249
        %v5290 = vmul.f32 %v3747, %v5249
        %v5291 = vmul.f32 %v3748, %v5249
        %v5292 = vmul.f32 %v3750, %v5249
        %v5293 = vmul.f32 %v3751, %v5249
        %v5294 = vmul.f32 %v3752, %v5249
        %v5295 = vmul.f32 %v3754, %v5249
        %v5296 = vmul.f32 %v3755, %v5249
        %v5297 = vmul.f32 %v3756, %v5249
        %v5346 = vrot.slane %v5250, 4
        %v5347 = vrot.slane %v5251, 4
        %v5348 = vsel %vm4793, %v5346, %v5347
        %v5349 = vrot.slane %v5252, 4
        %v5350 = vsel %vm4793, %v5347, %v5349
        %v5351 = vrot.slane %v5253, 4
        %v5352 = vrot.slane %v5254, 4
        %v5353 = vsel %vm4793, %v5351, %v5352
        %v5354 = vrot.slane %v5255, 4
        %v5355 = vsel %vm4793, %v5352, %v5354
        %v5356 = vrot.slane %v5256, 4
        %v5357 = vrot.slane %v5257, 4
        %v5358 = vsel %vm4793, %v5356, %v5357
        %v5359 = vrot.slane %v5258, 4
        %v5360 = vsel %vm4793, %v5357, %v5359
        %v5361 = vrot.slane %v5259, 4
        %v5362 = vrot.slane %v5260, 4
        %v5363 = vsel %vm4793, %v5361, %v5362
        %v5364 = vrot.slane %v5261, 4
        %v5365 = vsel %vm4793, %v5362, %v5364
        %v5366 = vrot.slane %v5262, 4
        %v5367 = vrot.slane %v5263, 4
        %v5368 = vsel %vm4793, %v5366, %v5367
        %v5369 = vrot.slane %v5264, 4
        %v5370 = vsel %vm4793, %v5367, %v5369
        %v5371 = vrot.slane %v5265, 4
        %v5372 = vrot.slane %v5266, 4
        %v5373 = vsel %vm4793, %v5371, %v5372
        %v5374 = vrot.slane %v5267, 4
        %v5375 = vsel %vm4793, %v5372, %v5374
        %v5376 = vrot.slane %v5268, 4
        %v5377 = vrot.slane %v5269, 4
        %v5378 = vsel %vm4793, %v5376, %v5377
        %v5379 = vrot.slane %v5270, 4
        %v5380 = vsel %vm4793, %v5377, %v5379
        %v5381 = vrot.slane %v5271, 4
        %v5382 = vrot.slane %v5272, 4
        %v5383 = vsel %vm4793, %v5381, %v5382
        %v5384 = vrot.slane %v5273, 4
        %v5385 = vsel %vm4793, %v5382, %v5384
        %v5386 = vrot.slane %v5274, 4
        %v5387 = vrot.slane %v5275, 4
        %v5388 = vsel %vm4793, %v5386, %v5387
        %v5389 = vrot.slane %v5276, 4
        %v5390 = vsel %vm4793, %v5387, %v5389
        %v5391 = vrot.slane %v5277, 4
        %v5392 = vrot.slane %v5278, 4
        %v5393 = vsel %vm4793, %v5391, %v5392
        %v5394 = vrot.slane %v5279, 4
        %v5395 = vsel %vm4793, %v5392, %v5394
        %v5396 = vrot.slane %v5280, 4
        %v5397 = vrot.slane %v5281, 4
        %v5398 = vsel %vm4793, %v5396, %v5397
        %v5399 = vrot.slane %v5282, 4
        %v5400 = vsel %vm4793, %v5397, %v5399
        %v5401 = vrot.slane %v5283, 4
        %v5402 = vrot.slane %v5284, 4
        %v5403 = vsel %vm4793, %v5401, %v5402
        %v5404 = vrot.slane %v5285, 4
        %v5405 = vsel %vm4793, %v5402, %v5404
        %v5406 = vrot.slane %v5286, 4
        %v5407 = vrot.slane %v5287, 4
        %v5408 = vsel %vm4793, %v5406, %v5407
        %v5409 = vrot.slane %v5288, 4
        %v5410 = vsel %vm4793, %v5407, %v5409
        %v5411 = vrot.slane %v5289, 4
        %v5412 = vrot.slane %v5290, 4
        %v5413 = vsel %vm4793, %v5411, %v5412
        %v5414 = vrot.slane %v5291, 4
        %v5415 = vsel %vm4793, %v5412, %v5414
        %v5416 = vrot.slane %v5292, 4
        %v5417 = vrot.slane %v5293, 4
        %v5418 = vsel %vm4793, %v5416, %v5417
        %v5419 = vrot.slane %v5294, 4
        %v5420 = vsel %vm4793, %v5417, %v5419
        %v5421 = vrot.slane %v5295, 4
        %v5422 = vrot.slane %v5296, 4
        %v5423 = vsel %vm4793, %v5421, %v5422
        %v5424 = vrot.slane %v5297, 4
        %v5425 = vsel %vm4793, %v5422, %v5424
        %v5474 = vadd.f32 %v5198, %v5346
        %v5475 = vadd.f32 %v5199, %v5348
        %v5476 = vadd.f32 %v5200, %v5350
        %v5477 = vadd.f32 %v5201, %v5351
        %v5478 = vadd.f32 %v5202, %v5353
        %v5479 = vadd.f32 %v5203, %v5355
        %v5480 = vadd.f32 %v5204, %v5356
        %v5481 = vadd.f32 %v5205, %v5358
        %v5482 = vadd.f32 %v5206, %v5360
        %v5483 = vadd.f32 %v5207, %v5361
        %v5484 = vadd.f32 %v5208, %v5363
        %v5485 = vadd.f32 %v5209, %v5365
        %v5486 = vadd.f32 %v5210, %v5366
        %v5487 = vadd.f32 %v5211, %v5368
        %v5488 = vadd.f32 %v5212, %v5370
        %v5489 = vadd.f32 %v5213, %v5371
        %v5490 = vadd.f32 %v5214, %v5373
        %v5491 = vadd.f32 %v5215, %v5375
        %v5492 = vadd.f32 %v5216, %v5376
        %v5493 = vadd.f32 %v5217, %v5378
        %v5494 = vadd.f32 %v5218, %v5380
        %v5495 = vadd.f32 %v5219, %v5381
        %v5496 = vadd.f32 %v5220, %v5383
        %v5497 = vadd.f32 %v5221, %v5385
        %v5498 = vadd.f32 %v5222, %v5386
        %v5499 = vadd.f32 %v5223, %v5388
        %v5500 = vadd.f32 %v5224, %v5390
        %v5501 = vadd.f32 %v5225, %v5391
        %v5502 = vadd.f32 %v5226, %v5393
        %v5503 = vadd.f32 %v5227, %v5395
        %v5504 = vadd.f32 %v5228, %v5396
        %v5505 = vadd.f32 %v5229, %v5398
        %v5506 = vadd.f32 %v5230, %v5400
        %v5507 = vadd.f32 %v5231, %v5401
        %v5508 = vadd.f32 %v5232, %v5403
        %v5509 = vadd.f32 %v5233, %v5405
        %v5510 = vadd.f32 %v5234, %v5406
        %v5511 = vadd.f32 %v5235, %v5408
        %v5512 = vadd.f32 %v5236, %v5410
        %v5513 = vadd.f32 %v5237, %v5411
        %v5514 = vadd.f32 %v5238, %v5413
        %v5515 = vadd.f32 %v5239, %v5415
        %v5516 = vadd.f32 %v5240, %v5416
        %v5517 = vadd.f32 %v5241, %v5418
        %v5518 = vadd.f32 %v5242, %v5420
        %v5519 = vadd.f32 %v5243, %v5421
        %v5520 = vadd.f32 %v5244, %v5423
        %v5521 = vadd.f32 %v5245, %v5425
        %vm5570 = vcmask 1040384
        %v5571 = vrot.slane %v5474, 7
        %v5572 = vrot.slane %v5475, 7
        %v5573 = vsel %vm5570, %v5571, %v5572
        %v5574 = vrot.slane %v5476, 7
        %v5575 = vsel %vm5570, %v5572, %v5574
        %v5576 = vrot.slane %v5477, 7
        %v5577 = vrot.slane %v5478, 7
        %v5578 = vsel %vm5570, %v5576, %v5577
        %v5579 = vrot.slane %v5479, 7
        %v5580 = vsel %vm5570, %v5577, %v5579
        %v5581 = vrot.slane %v5480, 7
        %v5582 = vrot.slane %v5481, 7
        %v5583 = vsel %vm5570, %v5581, %v5582
        %v5584 = vrot.slane %v5482, 7
        %v5585 = vsel %vm5570, %v5582, %v5584
        %v5586 = vrot.slane %v5483, 7
        %v5587 = vrot.slane %v5484, 7
        %v5588 = vsel %vm5570, %v5586, %v5587
        %v5589 = vrot.slane %v5485, 7
        %v5590 = vsel %vm5570, %v5587, %v5589
        %v5591 = vrot.slane %v5486, 7
        %v5592 = vrot.slane %v5487, 7
        %v5593 = vsel %vm5570, %v5591, %v5592
        %v5594 = vrot.slane %v5488, 7
        %v5595 = vsel %vm5570, %v5592, %v5594
        %v5596 = vrot.slane %v5489, 7
        %v5597 = vrot.slane %v5490, 7
        %v5598 = vsel %vm5570, %v5596, %v5597
        %v5599 = vrot.slane %v5491, 7
        %v5600 = vsel %vm5570, %v5597, %v5599
        %v5601 = vrot.slane %v5492, 7
        %v5602 = vrot.slane %v5493, 7
        %v5603 = vsel %vm5570, %v5601, %v5602
        %v5604 = vrot.slane %v5494, 7
        %v5605 = vsel %vm5570, %v5602, %v5604
        %v5606 = vrot.slane %v5495, 7
        %v5607 = vrot.slane %v5496, 7
        %v5608 = vsel %vm5570, %v5606, %v5607
        %v5609 = vrot.slane %v5497, 7
        %v5610 = vsel %vm5570, %v5607, %v5609
        %v5611 = vrot.slane %v5498, 7
        %v5612 = vrot.slane %v5499, 7
        %v5613 = vsel %vm5570, %v5611, %v5612
        %v5614 = vrot.slane %v5500, 7
        %v5615 = vsel %vm5570, %v5612, %v5614
        %v5616 = vrot.slane %v5501, 7
        %v5617 = vrot.slane %v5502, 7
        %v5618 = vsel %vm5570, %v5616, %v5617
        %v5619 = vrot.slane %v5503, 7
        %v5620 = vsel %vm5570, %v5617, %v5619
        %v5621 = vrot.slane %v5504, 7
        %v5622 = vrot.slane %v5505, 7
        %v5623 = vsel %vm5570, %v5621, %v5622
        %v5624 = vrot.slane %v5506, 7
        %v5625 = vsel %vm5570, %v5622, %v5624
        %v5626 = vrot.slane %v5507, 7
        %v5627 = vrot.slane %v5508, 7
        %v5628 = vsel %vm5570, %v5626, %v5627
        %v5629 = vrot.slane %v5509, 7
        %v5630 = vsel %vm5570, %v5627, %v5629
        %v5631 = vrot.slane %v5510, 7
        %v5632 = vrot.slane %v5511, 7
        %v5633 = vsel %vm5570, %v5631, %v5632
        %v5634 = vrot.slane %v5512, 7
        %v5635 = vsel %vm5570, %v5632, %v5634
        %v5636 = vrot.slane %v5513, 7
        %v5637 = vrot.slane %v5514, 7
        %v5638 = vsel %vm5570, %v5636, %v5637
        %v5639 = vrot.slane %v5515, 7
        %v5640 = vsel %vm5570, %v5637, %v5639
        %v5641 = vrot.slane %v5516, 7
        %v5642 = vrot.slane %v5517, 7
        %v5643 = vsel %vm5570, %v5641, %v5642
        %v5644 = vrot.slane %v5518, 7
        %v5645 = vsel %vm5570, %v5642, %v5644
        %v5646 = vrot.slane %v5519, 7
        %v5647 = vrot.slane %v5520, 7
        %v5648 = vsel %vm5570, %v5646, %v5647
        %v5649 = vrot.slane %v5521, 7
        %v5650 = vsel %vm5570, %v5647, %v5649
        %v5699 = vmul.f32 %v3619, %v5571
        %v5700 = vmul.f32 %v3620, %v5573
        %v5701 = vmul.f32 %v3621, %v5575
        %v5702 = vmul.f32 %v3622, %v5576
        %v5703 = vmul.f32 %v3623, %v5578
        %v5704 = vmul.f32 %v3624, %v5580
        %v5705 = vmul.f32 %v3625, %v5581
        %v5706 = vmul.f32 %v3626, %v5583
        %v5707 = vmul.f32 %v3627, %v5585
        %v5708 = vmul.f32 %v3628, %v5586
        %v5709 = vmul.f32 %v3629, %v5588
        %v5710 = vmul.f32 %v3630, %v5590
        %v5711 = vmul.f32 %v3631, %v5591
        %v5712 = vmul.f32 %v3632, %v5593
        %v5713 = vmul.f32 %v3633, %v5595
        %v5714 = vmul.f32 %v3634, %v5596
        %v5715 = vmul.f32 %v3635, %v5598
        %v5716 = vmul.f32 %v3636, %v5600
        %v5717 = vmul.f32 %v3637, %v5601
        %v5718 = vmul.f32 %v3638, %v5603
        %v5719 = vmul.f32 %v3639, %v5605
        %v5720 = vmul.f32 %v3640, %v5606
        %v5721 = vmul.f32 %v3641, %v5608
        %v5722 = vmul.f32 %v3642, %v5610
        %v5723 = vmul.f32 %v3643, %v5611
        %v5724 = vmul.f32 %v3644, %v5613
        %v5725 = vmul.f32 %v3645, %v5615
        %v5726 = vmul.f32 %v3646, %v5616
        %v5727 = vmul.f32 %v3647, %v5618
        %v5728 = vmul.f32 %v3648, %v5620
        %v5729 = vmul.f32 %v3649, %v5621
        %v5730 = vmul.f32 %v3650, %v5623
        %v5731 = vmul.f32 %v3651, %v5625
        %v5732 = vmul.f32 %v3652, %v5626
        %v5733 = vmul.f32 %v3653, %v5628
        %v5734 = vmul.f32 %v3654, %v5630
        %v5735 = vmul.f32 %v3655, %v5631
        %v5736 = vmul.f32 %v3656, %v5633
        %v5737 = vmul.f32 %v3657, %v5635
        %v5738 = vmul.f32 %v3658, %v5636
        %v5739 = vmul.f32 %v3659, %v5638
        %v5740 = vmul.f32 %v3660, %v5640
        %v5741 = vmul.f32 %v3661, %v5641
        %v5742 = vmul.f32 %v3662, %v5643
        %v5743 = vmul.f32 %v3663, %v5645
        %v5744 = vmul.f32 %v3664, %v5646
        %v5745 = vmul.f32 %v3665, %v5648
        %v5746 = vmul.f32 %v3666, %v5650
        %v5747 = vld [vmem:[%s7] sm:$0xff]
        %v5748 = vld [vmem:[%s7 + $0x8] sm:$0x1]
        %v5749 = vld [vmem:[%s8] sm:$0x1]
        %v5751 = vlaneseq
        %v5752 = vshrl.u32 %v5751, 7
        %v5753 = vsub.s32 0, %v5752
        %v5754 = vrot.slane %v5749, %v5753
        %v5756 = vld [vmem:[#allocation4] sm:$0xff]
        %v5757 = vld [vmem:[#allocation4 + $0x8] sm:$0xff]
        %v5758 = vld [vmem:[#allocation4 + $0x10] sm:$0xff]
        %v5759 = vld [vmem:[#allocation4 + $0x18] sm:$0xff]
        %v5760 = vld [vmem:[#allocation4 + $0x20] sm:$0xff]
        %v5761 = vld [vmem:[#allocation4 + $0x28] sm:$0xff]
        %v5762 = vld [vmem:[#allocation4 + $0x30] sm:$0xff]
        %v5763 = vld [vmem:[#allocation4 + $0x38] sm:$0xff]
        %v5764 = vld [vmem:[#allocation4 + $0x40] sm:$0xff]
        %v5765 = vld [vmem:[#allocation4 + $0x48] sm:$0xff]
        %v5766 = vld [vmem:[#allocation4 + $0x50] sm:$0xff]
        %v5767 = vld [vmem:[#allocation4 + $0x58] sm:$0xff]
        %v5768 = vld [vmem:[#allocation4 + $0x60] sm:$0xff]
        %v5769 = vld [vmem:[#allocation4 + $0x68] sm:$0xff]
        %v5770 = vld [vmem:[#allocation4 + $0x70] sm:$0xff]
        %v5771 = vld [vmem:[#allocation4 + $0x78] sm:$0xff]
        %v5772 = vld [vmem:[#allocation4 + $0x80] sm:$0xff]
        %v5773 = vld [vmem:[#allocation4 + $0x88] sm:$0xff]
        %v5774 = vld [vmem:[#allocation4 + $0x90] sm:$0xff]
        %v5775 = vld [vmem:[#allocation4 + $0x98] sm:$0xff]
        %v5776 = vld [vmem:[#allocation4 + $0xa0] sm:$0xff]
        %v5777 = vld [vmem:[#allocation4 + $0xa8] sm:$0xff]
        %v5778 = vld [vmem:[#allocation4 + $0xb0] sm:$0xff]
        %v5779 = vld [vmem:[#allocation4 + $0xb8] sm:$0xff]
        %v5780 = vld [vmem:[#allocation4 + $0xc0] sm:$0xff]
        %v5781 = vld [vmem:[#allocation4 + $0xc8] sm:$0xff]
        %v5782 = vld [vmem:[#allocation4 + $0xd0] sm:$0xff]
        %v5783 = vld [vmem:[#allocation4 + $0xd8] sm:$0xff]
        %v5784 = vld [vmem:[#allocation4 + $0xe0] sm:$0xff]
        %v5785 = vld [vmem:[#allocation4 + $0xe8] sm:$0xff]
        %v5786 = vld [vmem:[#allocation4 + $0xf0] sm:$0xff]
        %v5787 = vld [vmem:[#allocation4 + $0xf8] sm:$0xff]
        %v5788 = vld [vmem:[#allocation4 + $0x100] sm:$0xff]
        %v5789 = vld [vmem:[#allocation4 + $0x108] sm:$0xff]
        %v5790 = vld [vmem:[#allocation4 + $0x110] sm:$0xff]
        %v5791 = vld [vmem:[#allocation4 + $0x118] sm:$0xff]
        %v5792 = vld [vmem:[#allocation4 + $0x120] sm:$0xff]
        %v5793 = vld [vmem:[#allocation4 + $0x128] sm:$0xff]
        %v5794 = vld [vmem:[#allocation4 + $0x130] sm:$0xff]
        %v5795 = vld [vmem:[#allocation4 + $0x138] sm:$0xff]
        %v5796 = vld [vmem:[#allocation4 + $0x140] sm:$0xff]
        %v5797 = vld [vmem:[#allocation4 + $0x148] sm:$0xff]
        %v5798 = vld [vmem:[#allocation4 + $0x150] sm:$0xff]
        %v5799 = vld [vmem:[#allocation4 + $0x158] sm:$0xff]
        %v5800 = vld [vmem:[#allocation4 + $0x160] sm:$0xff]
        %v5801 = vld [vmem:[#allocation4 + $0x168] sm:$0xff]
        %v5802 = vld [vmem:[#allocation4 + $0x170] sm:$0xff]
        %v5803 = vld [vmem:[#allocation4 + $0x178] sm:$0xff]
        %v5804 = vld [vmem:[#allocation4 + $0x180] sm:$0xff]
        %v5805 = vld [vmem:[#allocation4 + $0x188] sm:$0xff]
        %v5806 = vld [vmem:[#allocation4 + $0x190] sm:$0xff]
        %v5807 = vld [vmem:[#allocation4 + $0x198] sm:$0xff]
        %v5808 = vld [vmem:[#allocation4 + $0x1a0] sm:$0xff]
        %v5809 = vld [vmem:[#allocation4 + $0x1a8] sm:$0xff]
        %v5810 = vld [vmem:[#allocation4 + $0x1b0] sm:$0xff]
        %v5811 = vld [vmem:[#allocation4 + $0x1b8] sm:$0xff]
        %v5812 = vld [vmem:[#allocation4 + $0x1c0] sm:$0xff]
        %v5813 = vld [vmem:[#allocation4 + $0x1c8] sm:$0xff]
        %v5814 = vld [vmem:[#allocation4 + $0x1d0] sm:$0xff]
        %v5815 = vld [vmem:[#allocation4 + $0x1d8] sm:$0xff]
        %v5816 = vld [vmem:[#allocation4 + $0x1e0] sm:$0xff]
        %v5817 = vld [vmem:[#allocation4 + $0x1e8] sm:$0xff]
        %v5818 = vld [vmem:[#allocation4 + $0x1f0] sm:$0xff]
        %v5819 = vld [vmem:[#allocation4 + $0x1f8] sm:$0xff]
        %v5820 = vld [vmem:[#allocation4 + $0x200] sm:$0xff]
        %v5821 = vld [vmem:[#allocation4 + $0x208] sm:$0xff]
        %v5822 = vld [vmem:[#allocation4 + $0x210] sm:$0xff]
        %v5823 = vld [vmem:[#allocation4 + $0x218] sm:$0xff]
        %v5824 = vld [vmem:[#allocation4 + $0x220] sm:$0xff]
        %v5825 = vld [vmem:[#allocation4 + $0x228] sm:$0xff]
        %v5826 = vld [vmem:[#allocation4 + $0x230] sm:$0xff]
        %v5827 = vld [vmem:[#allocation4 + $0x238] sm:$0xff]
        %v5828 = vld [vmem:[#allocation4 + $0x240] sm:$0xff]
        %v5829 = vld [vmem:[#allocation4 + $0x248] sm:$0xff]
        %v5830 = vld [vmem:[#allocation4 + $0x250] sm:$0xff]
        %v5831 = vld [vmem:[#allocation4 + $0x258] sm:$0xff]
        %v5832 = vld [vmem:[#allocation4 + $0x260] sm:$0xff]
        %v5833 = vld [vmem:[#allocation4 + $0x268] sm:$0xff]
        %v5834 = vld [vmem:[#allocation4 + $0x270] sm:$0xff]
        %v5835 = vld [vmem:[#allocation4 + $0x278] sm:$0xff]
        %v5836 = vld [vmem:[#allocation4 + $0x280] sm:$0xff]
        %v5837 = vld [vmem:[#allocation4 + $0x288] sm:$0xff]
        %v5838 = vld [vmem:[#allocation4 + $0x290] sm:$0xff]
        %v5839 = vld [vmem:[#allocation4 + $0x298] sm:$0xff]
        %v5840 = vld [vmem:[#allocation4 + $0x2a0] sm:$0xff]
        %v5841 = vld [vmem:[#allocation4 + $0x2a8] sm:$0xff]
        %v5842 = vld [vmem:[#allocation4 + $0x2b0] sm:$0xff]
        %v5843 = vld [vmem:[#allocation4 + $0x2b8] sm:$0xff]
        %v5844 = vlaneseq
        %v5845 = vshrl.u32 %v5844, 7
        %v5846 = vsub.s32 0, %v5845
        %v5847 = vrot.slane %v5747, %v5846
        %v5848 = vmul.f32 %v5756, %v5847
        %v5849 = vmul.f32 %v5757, %v5847
        %v5850 = vmul.f32 %v5758, %v5847
        %v5851 = vmul.f32 %v5760, %v5847
        %v5852 = vmul.f32 %v5761, %v5847
        %v5853 = vmul.f32 %v5762, %v5847
        %v5854 = vmul.f32 %v5764, %v5847
        %v5855 = vmul.f32 %v5765, %v5847
        %v5856 = vmul.f32 %v5766, %v5847
        %v5857 = vmul.f32 %v5768, %v5847
        %v5858 = vmul.f32 %v5769, %v5847
        %v5859 = vmul.f32 %v5770, %v5847
        %v5860 = vmul.f32 %v5772, %v5847
        %v5861 = vmul.f32 %v5773, %v5847
        %v5862 = vmul.f32 %v5774, %v5847
        %v5863 = vmul.f32 %v5776, %v5847
        %v5864 = vmul.f32 %v5777, %v5847
        %v5865 = vmul.f32 %v5778, %v5847
        %v5866 = vmul.f32 %v5780, %v5847
        %v5867 = vmul.f32 %v5781, %v5847
        %v5868 = vmul.f32 %v5782, %v5847
        %v5869 = vmul.f32 %v5784, %v5847
        %v5870 = vmul.f32 %v5785, %v5847
        %v5871 = vmul.f32 %v5786, %v5847
        %v5872 = vmul.f32 %v5788, %v5847
        %v5873 = vmul.f32 %v5789, %v5847
        %v5874 = vmul.f32 %v5790, %v5847
        %v5875 = vmul.f32 %v5792, %v5847
        %v5876 = vmul.f32 %v5793, %v5847
        %v5877 = vmul.f32 %v5794, %v5847
        %v5878 = vmul.f32 %v5796, %v5847
        %v5879 = vmul.f32 %v5797, %v5847
        %v5880 = vmul.f32 %v5798, %v5847
        %v5881 = vmul.f32 %v5800, %v5847
        %v5882 = vmul.f32 %v5801, %v5847
        %v5883 = vmul.f32 %v5802, %v5847
        %v5884 = vmul.f32 %v5804, %v5847
        %v5885 = vmul.f32 %v5805, %v5847
        %v5886 = vmul.f32 %v5806, %v5847
        %v5887 = vmul.f32 %v5808, %v5847
        %v5888 = vmul.f32 %v5809, %v5847
        %v5889 = vmul.f32 %v5810, %v5847
        %v5890 = vmul.f32 %v5812, %v5847
        %v5891 = vmul.f32 %v5813, %v5847
        %v5892 = vmul.f32 %v5814, %v5847
        %v5893 = vmul.f32 %v5816, %v5847
        %v5894 = vmul.f32 %v5817, %v5847
        %v5895 = vmul.f32 %v5818, %v5847
        %v5896 = vadd.f32 %v5754, %v5848
        %v5897 = vadd.f32 %v5754, %v5849
        %v5898 = vadd.f32 %v5754, %v5850
        %v5899 = vadd.f32 %v5754, %v5851
        %v5900 = vadd.f32 %v5754, %v5852
        %v5901 = vadd.f32 %v5754, %v5853
        %v5902 = vadd.f32 %v5754, %v5854
        %v5903 = vadd.f32 %v5754, %v5855
        %v5904 = vadd.f32 %v5754, %v5856
        %v5905 = vadd.f32 %v5754, %v5857
        %v5906 = vadd.f32 %v5754, %v5858
        %v5907 = vadd.f32 %v5754, %v5859
        %v5908 = vadd.f32 %v5754, %v5860
        %v5909 = vadd.f32 %v5754, %v5861
        %v5910 = vadd.f32 %v5754, %v5862
        %v5911 = vadd.f32 %v5754, %v5863
        %v5912 = vadd.f32 %v5754, %v5864
        %v5913 = vadd.f32 %v5754, %v5865
        %v5914 = vadd.f32 %v5754, %v5866
        %v5915 = vadd.f32 %v5754, %v5867
        %v5916 = vadd.f32 %v5754, %v5868
        %v5917 = vadd.f32 %v5754, %v5869
        %v5918 = vadd.f32 %v5754, %v5870
        %v5919 = vadd.f32 %v5754, %v5871
        %v5920 = vadd.f32 %v5754, %v5872
        %v5921 = vadd.f32 %v5754, %v5873
        %v5922 = vadd.f32 %v5754, %v5874
        %v5923 = vadd.f32 %v5754, %v5875
        %v5924 = vadd.f32 %v5754, %v5876
        %v5925 = vadd.f32 %v5754, %v5877
        %v5926 = vadd.f32 %v5754, %v5878
        %v5927 = vadd.f32 %v5754, %v5879
        %v5928 = vadd.f32 %v5754, %v5880
        %v5929 = vadd.f32 %v5754, %v5881
        %v5930 = vadd.f32 %v5754, %v5882
        %v5931 = vadd.f32 %v5754, %v5883
        %v5932 = vadd.f32 %v5754, %v5884
        %v5933 = vadd.f32 %v5754, %v5885
        %v5934 = vadd.f32 %v5754, %v5886
        %v5935 = vadd.f32 %v5754, %v5887
        %v5936 = vadd.f32 %v5754, %v5888
        %v5937 = vadd.f32 %v5754, %v5889
        %v5938 = vadd.f32 %v5754, %v5890
        %v5939 = vadd.f32 %v5754, %v5891
        %v5940 = vadd.f32 %v5754, %v5892
        %v5941 = vadd.f32 %v5754, %v5893
        %v5942 = vadd.f32 %v5754, %v5894
        %v5943 = vadd.f32 %v5754, %v5895
        %v5944 = vlaneseq
        %v5945 = vshrl.u32 %v5944, 7
        %v5946 = vsub.s32 3, %v5945
        %v5947 = vrot.slane %v5747, %v5946
        %v5948 = vmul.f32 %v5768, %v5947
        %v5949 = vmul.f32 %v5769, %v5947
        %v5950 = vmul.f32 %v5770, %v5947
        %v5951 = vmul.f32 %v5772, %v5947
        %v5952 = vmul.f32 %v5773, %v5947
        %v5953 = vmul.f32 %v5774, %v5947
        %v5954 = vmul.f32 %v5776, %v5947
        %v5955 = vmul.f32 %v5777, %v5947
        %v5956 = vmul.f32 %v5778, %v5947
        %v5957 = vmul.f32 %v5780, %v5947
        %v5958 = vmul.f32 %v5781, %v5947
        %v5959 = vmul.f32 %v5782, %v5947
        %v5960 = vmul.f32 %v5784, %v5947
        %v5961 = vmul.f32 %v5785, %v5947
        %v5962 = vmul.f32 %v5786, %v5947
        %v5963 = vmul.f32 %v5788, %v5947
        %v5964 = vmul.f32 %v5789, %v5947
        %v5965 = vmul.f32 %v5790, %v5947
        %v5966 = vmul.f32 %v5792, %v5947
        %v5967 = vmul.f32 %v5793, %v5947
        %v5968 = vmul.f32 %v5794, %v5947
        %v5969 = vmul.f32 %v5796, %v5947
        %v5970 = vmul.f32 %v5797, %v5947
        %v5971 = vmul.f32 %v5798, %v5947
        %v5972 = vmul.f32 %v5800, %v5947
        %v5973 = vmul.f32 %v5801, %v5947
        %v5974 = vmul.f32 %v5802, %v5947
        %v5975 = vmul.f32 %v5804, %v5947
        %v5976 = vmul.f32 %v5805, %v5947
        %v5977 = vmul.f32 %v5806, %v5947
        %v5978 = vmul.f32 %v5808, %v5947
        %v5979 = vmul.f32 %v5809, %v5947
        %v5980 = vmul.f32 %v5810, %v5947
        %v5981 = vmul.f32 %v5812, %v5947
        %v5982 = vmul.f32 %v5813, %v5947
        %v5983 = vmul.f32 %v5814, %v5947
        %v5984 = vmul.f32 %v5816, %v5947
        %v5985 = vmul.f32 %v5817, %v5947
        %v5986 = vmul.f32 %v5818, %v5947
        %v5987 = vmul.f32 %v5820, %v5947
        %v5988 = vmul.f32 %v5821, %v5947
        %v5989 = vmul.f32 %v5822, %v5947
        %v5990 = vmul.f32 %v5824, %v5947
        %v5991 = vmul.f32 %v5825, %v5947
        %v5992 = vmul.f32 %v5826, %v5947
        %v5993 = vmul.f32 %v5828, %v5947
        %v5994 = vmul.f32 %v5829, %v5947
        %v5995 = vmul.f32 %v5830, %v5947
        %v5996 = vadd.f32 %v5896, %v5948
        %v5997 = vadd.f32 %v5897, %v5949
        %v5998 = vadd.f32 %v5898, %v5950
        %v5999 = vadd.f32 %v5899, %v5951
        %v6000 = vadd.f32 %v5900, %v5952
        %v6001 = vadd.f32 %v5901, %v5953
        %v6002 = vadd.f32 %v5902, %v5954
        %v6003 = vadd.f32 %v5903, %v5955
        %v6004 = vadd.f32 %v5904, %v5956
        %v6005 = vadd.f32 %v5905, %v5957
        %v6006 = vadd.f32 %v5906, %v5958
        %v6007 = vadd.f32 %v5907, %v5959
        %v6008 = vadd.f32 %v5908, %v5960
        %v6009 = vadd.f32 %v5909, %v5961
        %v6010 = vadd.f32 %v5910, %v5962
        %v6011 = vadd.f32 %v5911, %v5963
        %v6012 = vadd.f32 %v5912, %v5964
        %v6013 = vadd.f32 %v5913, %v5965
        %v6014 = vadd.f32 %v5914, %v5966
        %v6015 = vadd.f32 %v5915, %v5967
        %v6016 = vadd.f32 %v5916, %v5968
        %v6017 = vadd.f32 %v5917, %v5969
        %v6018 = vadd.f32 %v5918, %v5970
        %v6019 = vadd.f32 %v5919, %v5971
        %v6020 = vadd.f32 %v5920, %v5972
        %v6021 = vadd.f32 %v5921, %v5973
        %v6022 = vadd.f32 %v5922, %v5974
        %v6023 = vadd.f32 %v5923, %v5975
        %v6024 = vadd.f32 %v5924, %v5976
        %v6025 = vadd.f32 %v5925, %v5977
        %v6026 = vadd.f32 %v5926, %v5978
        %v6027 = vadd.f32 %v5927, %v5979
        %v6028 = vadd.f32 %v5928, %v5980
        %v6029 = vadd.f32 %v5929, %v5981
        %v6030 = vadd.f32 %v5930, %v5982
        %v6031 = vadd.f32 %v5931, %v5983
        %v6032 = vadd.f32 %v5932, %v5984
        %v6033 = vadd.f32 %v5933, %v5985
        %v6034 = vadd.f32 %v5934, %v5986
        %v6035 = vadd.f32 %v5935, %v5987
        %v6036 = vadd.f32 %v5936, %v5988
        %v6037 = vadd.f32 %v5937, %v5989
        %v6038 = vadd.f32 %v5938, %v5990
        %v6039 = vadd.f32 %v5939, %v5991
        %v6040 = vadd.f32 %v5940, %v5992
        %v6041 = vadd.f32 %v5941, %v5993
        %v6042 = vadd.f32 %v5942, %v5994
        %v6043 = vadd.f32 %v5943, %v5995
        %v6044 = vlaneseq
        %v6045 = vshrl.u32 %v6044, 7
        %v6046 = vsub.s32 6, %v6045
        %v6047 = vrot.slane %v5747, %v6046
        %v6048 = vmul.f32 %v5780, %v6047
        %v6049 = vmul.f32 %v5781, %v6047
        %v6050 = vmul.f32 %v5782, %v6047
        %v6051 = vmul.f32 %v5784, %v6047
        %v6052 = vmul.f32 %v5785, %v6047
        %v6053 = vmul.f32 %v5786, %v6047
        %v6054 = vmul.f32 %v5788, %v6047
        %v6055 = vmul.f32 %v5789, %v6047
        %v6056 = vmul.f32 %v5790, %v6047
        %v6057 = vmul.f32 %v5792, %v6047
        %v6058 = vmul.f32 %v5793, %v6047
        %v6059 = vmul.f32 %v5794, %v6047
        %v6060 = vmul.f32 %v5796, %v6047
        %v6061 = vmul.f32 %v5797, %v6047
        %v6062 = vmul.f32 %v5798, %v6047
        %v6063 = vmul.f32 %v5800, %v6047
        %v6064 = vmul.f32 %v5801, %v6047
        %v6065 = vmul.f32 %v5802, %v6047
        %v6066 = vmul.f32 %v5804, %v6047
        %v6067 = vmul.f32 %v5805, %v6047
        %v6068 = vmul.f32 %v5806, %v6047
        %v6069 = vmul.f32 %v5808, %v6047
        %v6070 = vmul.f32 %v5809, %v6047
        %v6071 = vmul.f32 %v5810, %v6047
        %v6072 = vmul.f32 %v5812, %v6047
        %v6073 = vmul.f32 %v5813, %v6047
        %v6074 = vmul.f32 %v5814, %v6047
        %v6075 = vmul.f32 %v5816, %v6047
        %v6076 = vmul.f32 %v5817, %v6047
        %v6077 = vmul.f32 %v5818, %v6047
        %v6078 = vmul.f32 %v5820, %v6047
        %v6079 = vmul.f32 %v5821, %v6047
        %v6080 = vmul.f32 %v5822, %v6047
        %v6081 = vmul.f32 %v5824, %v6047
        %v6082 = vmul.f32 %v5825, %v6047
        %v6083 = vmul.f32 %v5826, %v6047
        %v6084 = vmul.f32 %v5828, %v6047
        %v6085 = vmul.f32 %v5829, %v6047
        %v6086 = vmul.f32 %v5830, %v6047
        %v6087 = vmul.f32 %v5832, %v6047
        %v6088 = vmul.f32 %v5833, %v6047
        %v6089 = vmul.f32 %v5834, %v6047
        %v6090 = vmul.f32 %v5836, %v6047
        %v6091 = vmul.f32 %v5837, %v6047
        %v6092 = vmul.f32 %v5838, %v6047
        %v6093 = vmul.f32 %v5840, %v6047
        %v6094 = vmul.f32 %v5841, %v6047
        %v6095 = vmul.f32 %v5842, %v6047
        %v6096 = vadd.f32 %v5996, %v6048
        %v6097 = vadd.f32 %v5997, %v6049
        %v6098 = vadd.f32 %v5998, %v6050
        %v6099 = vadd.f32 %v5999, %v6051
        %v6100 = vadd.f32 %v6000, %v6052
        %v6101 = vadd.f32 %v6001, %v6053
        %v6102 = vadd.f32 %v6002, %v6054
        %v6103 = vadd.f32 %v6003, %v6055
        %v6104 = vadd.f32 %v6004, %v6056
        %v6105 = vadd.f32 %v6005, %v6057
        %v6106 = vadd.f32 %v6006, %v6058
        %v6107 = vadd.f32 %v6007, %v6059
        %v6108 = vadd.f32 %v6008, %v6060
        %v6109 = vadd.f32 %v6009, %v6061
        %v6110 = vadd.f32 %v6010, %v6062
        %v6111 = vadd.f32 %v6011, %v6063
        %v6112 = vadd.f32 %v6012, %v6064
        %v6113 = vadd.f32 %v6013, %v6065
        %v6114 = vadd.f32 %v6014, %v6066
        %v6115 = vadd.f32 %v6015, %v6067
        %v6116 = vadd.f32 %v6016, %v6068
        %v6117 = vadd.f32 %v6017, %v6069
        %v6118 = vadd.f32 %v6018, %v6070
        %v6119 = vadd.f32 %v6019, %v6071
        %v6120 = vadd.f32 %v6020, %v6072
        %v6121 = vadd.f32 %v6021, %v6073
        %v6122 = vadd.f32 %v6022, %v6074
        %v6123 = vadd.f32 %v6023, %v6075
        %v6124 = vadd.f32 %v6024, %v6076
        %v6125 = vadd.f32 %v6025, %v6077
        %v6126 = vadd.f32 %v6026, %v6078
        %v6127 = vadd.f32 %v6027, %v6079
        %v6128 = vadd.f32 %v6028, %v6080
        %v6129 = vadd.f32 %v6029, %v6081
        %v6130 = vadd.f32 %v6030, %v6082
        %v6131 = vadd.f32 %v6031, %v6083
        %v6132 = vadd.f32 %v6032, %v6084
        %v6133 = vadd.f32 %v6033, %v6085
        %v6134 = vadd.f32 %v6034, %v6086
        %v6135 = vadd.f32 %v6035, %v6087
        %v6136 = vadd.f32 %v6036, %v6088
        %v6137 = vadd.f32 %v6037, %v6089
        %v6138 = vadd.f32 %v6038, %v6090
        %v6139 = vadd.f32 %v6039, %v6091
        %v6140 = vadd.f32 %v6040, %v6092
        %v6141 = vadd.f32 %v6041, %v6093
        %v6142 = vadd.f32 %v6042, %v6094
        %v6143 = vadd.f32 %v6043, %v6095
        %v6144 = vlaneseq
        %v6145 = vshrl.u32 %v6144, 7
        %v6146 = vsub.s32 1, %v6145
        %v6147 = vrot.slane %v5747, %v6146
        %v6148 = vmul.f32 %v5757, %v6147
        %v6149 = vmul.f32 %v5758, %v6147
        %v6150 = vmul.f32 %v5761, %v6147
        %v6151 = vmul.f32 %v5762, %v6147
        %v6152 = vmul.f32 %v5765, %v6147
        %v6153 = vmul.f32 %v5766, %v6147
        %v6154 = vmul.f32 %v5769, %v6147
        %v6155 = vmul.f32 %v5770, %v6147
        %v6156 = vmul.f32 %v5773, %v6147
        %v6157 = vmul.f32 %v5774, %v6147
        %v6158 = vmul.f32 %v5777, %v6147
        %v6159 = vmul.f32 %v5778, %v6147
        %v6160 = vmul.f32 %v5781, %v6147
        %v6161 = vmul.f32 %v5782, %v6147
        %v6162 = vmul.f32 %v5785, %v6147
        %v6163 = vmul.f32 %v5786, %v6147
        %v6164 = vmul.f32 %v5789, %v6147
        %v6165 = vmul.f32 %v5790, %v6147
        %v6166 = vmul.f32 %v5793, %v6147
        %v6167 = vmul.f32 %v5794, %v6147
        %v6168 = vmul.f32 %v5797, %v6147
        %v6169 = vmul.f32 %v5798, %v6147
        %v6170 = vmul.f32 %v5801, %v6147
        %v6171 = vmul.f32 %v5802, %v6147
        %v6172 = vmul.f32 %v5805, %v6147
        %v6173 = vmul.f32 %v5806, %v6147
        %v6174 = vmul.f32 %v5809, %v6147
        %v6175 = vmul.f32 %v5810, %v6147
        %v6176 = vmul.f32 %v5813, %v6147
        %v6177 = vmul.f32 %v5814, %v6147
        %v6178 = vmul.f32 %v5817, %v6147
        %v6179 = vmul.f32 %v5818, %v6147
        %vm6212 = vcmask 1044480
        %v6213 = vrot.slane %v6148, 3
        %v6214 = vrot.slane %v6149, 3
        %v6215 = vsel %vm6212, %v6213, %v6214
        %v6216 = vrot.slane %v6150, 3
        %v6217 = vrot.slane %v6151, 3
        %v6218 = vsel %vm6212, %v6216, %v6217
        %v6219 = vrot.slane %v6152, 3
        %v6220 = vrot.slane %v6153, 3
        %v6221 = vsel %vm6212, %v6219, %v6220
        %v6222 = vrot.slane %v6154, 3
        %v6223 = vrot.slane %v6155, 3
        %v6224 = vsel %vm6212, %v6222, %v6223
        %v6225 = vrot.slane %v6156, 3
        %v6226 = vrot.slane %v6157, 3
        %v6227 = vsel %vm6212, %v6225, %v6226
        %v6228 = vrot.slane %v6158, 3
        %v6229 = vrot.slane %v6159, 3
        %v6230 = vsel %vm6212, %v6228, %v6229
        %v6231 = vrot.slane %v6160, 3
        %v6232 = vrot.slane %v6161, 3
        %v6233 = vsel %vm6212, %v6231, %v6232
        %v6234 = vrot.slane %v6162, 3
        %v6235 = vrot.slane %v6163, 3
        %v6236 = vsel %vm6212, %v6234, %v6235
        %v6237 = vrot.slane %v6164, 3
        %v6238 = vrot.slane %v6165, 3
        %v6239 = vsel %vm6212, %v6237, %v6238
        %v6240 = vrot.slane %v6166, 3
        %v6241 = vrot.slane %v6167, 3
        %v6242 = vsel %vm6212, %v6240, %v6241
        %v6243 = vrot.slane %v6168, 3
        %v6244 = vrot.slane %v6169, 3
        %v6245 = vsel %vm6212, %v6243, %v6244
        %v6246 = vrot.slane %v6170, 3
        %v6247 = vrot.slane %v6171, 3
        %v6248 = vsel %vm6212, %v6246, %v6247
        %v6249 = vrot.slane %v6172, 3
        %v6250 = vrot.slane %v6173, 3
        %v6251 = vsel %vm6212, %v6249, %v6250
        %v6252 = vrot.slane %v6174, 3
        %v6253 = vrot.slane %v6175, 3
        %v6254 = vsel %vm6212, %v6252, %v6253
        %v6255 = vrot.slane %v6176, 3
        %v6256 = vrot.slane %v6177, 3
        %v6257 = vsel %vm6212, %v6255, %v6256
        %v6258 = vrot.slane %v6178, 3
        %v6259 = vrot.slane %v6179, 3
        %v6260 = vsel %vm6212, %v6258, %v6259
        %v6309 = vadd.f32 %v6096, %v6213
        %v6310 = vadd.f32 %v6097, %v6215
        %v6311 = vadd.f32 %v6098, %v6214
        %v6312 = vadd.f32 %v6099, %v6216
        %v6313 = vadd.f32 %v6100, %v6218
        %v6314 = vadd.f32 %v6101, %v6217
        %v6315 = vadd.f32 %v6102, %v6219
        %v6316 = vadd.f32 %v6103, %v6221
        %v6317 = vadd.f32 %v6104, %v6220
        %v6318 = vadd.f32 %v6105, %v6222
        %v6319 = vadd.f32 %v6106, %v6224
        %v6320 = vadd.f32 %v6107, %v6223
        %v6321 = vadd.f32 %v6108, %v6225
        %v6322 = vadd.f32 %v6109, %v6227
        %v6323 = vadd.f32 %v6110, %v6226
        %v6324 = vadd.f32 %v6111, %v6228
        %v6325 = vadd.f32 %v6112, %v6230
        %v6326 = vadd.f32 %v6113, %v6229
        %v6327 = vadd.f32 %v6114, %v6231
        %v6328 = vadd.f32 %v6115, %v6233
        %v6329 = vadd.f32 %v6116, %v6232
        %v6330 = vadd.f32 %v6117, %v6234
        %v6331 = vadd.f32 %v6118, %v6236
        %v6332 = vadd.f32 %v6119, %v6235
        %v6333 = vadd.f32 %v6120, %v6237
        %v6334 = vadd.f32 %v6121, %v6239
        %v6335 = vadd.f32 %v6122, %v6238
        %v6336 = vadd.f32 %v6123, %v6240
        %v6337 = vadd.f32 %v6124, %v6242
        %v6338 = vadd.f32 %v6125, %v6241
        %v6339 = vadd.f32 %v6126, %v6243
        %v6340 = vadd.f32 %v6127, %v6245
        %v6341 = vadd.f32 %v6128, %v6244
        %v6342 = vadd.f32 %v6129, %v6246
        %v6343 = vadd.f32 %v6130, %v6248
        %v6344 = vadd.f32 %v6131, %v6247
        %v6345 = vadd.f32 %v6132, %v6249
        %v6346 = vadd.f32 %v6133, %v6251
        %v6347 = vadd.f32 %v6134, %v6250
        %v6348 = vadd.f32 %v6135, %v6252
        %v6349 = vadd.f32 %v6136, %v6254
        %v6350 = vadd.f32 %v6137, %v6253
        %v6351 = vadd.f32 %v6138, %v6255
        %v6352 = vadd.f32 %v6139, %v6257
        %v6353 = vadd.f32 %v6140, %v6256
        %v6354 = vadd.f32 %v6141, %v6258
        %v6355 = vadd.f32 %v6142, %v6260
        %v6356 = vadd.f32 %v6143, %v6259
        %v6357 = vlaneseq
        %v6358 = vshrl.u32 %v6357, 7
        %v6359 = vsub.s32 4, %v6358
        %v6360 = vrot.slane %v5747, %v6359
        %v6361 = vmul.f32 %v5769, %v6360
        %v6362 = vmul.f32 %v5770, %v6360
        %v6363 = vmul.f32 %v5773, %v6360
        %v6364 = vmul.f32 %v5774, %v6360
        %v6365 = vmul.f32 %v5777, %v6360
        %v6366 = vmul.f32 %v5778, %v6360
        %v6367 = vmul.f32 %v5781, %v6360
        %v6368 = vmul.f32 %v5782, %v6360
        %v6369 = vmul.f32 %v5785, %v6360
        %v6370 = vmul.f32 %v5786, %v6360
        %v6371 = vmul.f32 %v5789, %v6360
        %v6372 = vmul.f32 %v5790, %v6360
        %v6373 = vmul.f32 %v5793, %v6360
        %v6374 = vmul.f32 %v5794, %v6360
        %v6375 = vmul.f32 %v5797, %v6360
        %v6376 = vmul.f32 %v5798, %v6360
        %v6377 = vmul.f32 %v5801, %v6360
        %v6378 = vmul.f32 %v5802, %v6360
        %v6379 = vmul.f32 %v5805, %v6360
        %v6380 = vmul.f32 %v5806, %v6360
        %v6381 = vmul.f32 %v5809, %v6360
        %v6382 = vmul.f32 %v5810, %v6360
        %v6383 = vmul.f32 %v5813, %v6360
        %v6384 = vmul.f32 %v5814, %v6360
        %v6385 = vmul.f32 %v5817, %v6360
        %v6386 = vmul.f32 %v5818, %v6360
        %v6387 = vmul.f32 %v5821, %v6360
        %v6388 = vmul.f32 %v5822, %v6360
        %v6389 = vmul.f32 %v5825, %v6360
        %v6390 = vmul.f32 %v5826, %v6360
        %v6391 = vmul.f32 %v5829, %v6360
        %v6392 = vmul.f32 %v5830, %v6360
        %v6425 = vrot.slane %v6361, 3
        %v6426 = vrot.slane %v6362, 3
        %v6427 = vsel %vm6212, %v6425, %v6426
        %v6428 = vrot.slane %v6363, 3
        %v6429 = vrot.slane %v6364, 3
        %v6430 = vsel %vm6212, %v6428, %v6429
        %v6431 = vrot.slane %v6365, 3
        %v6432 = vrot.slane %v6366, 3
        %v6433 = vsel %vm6212, %v6431, %v6432
        %v6434 = vrot.slane %v6367, 3
        %v6435 = vrot.slane %v6368, 3
        %v6436 = vsel %vm6212, %v6434, %v6435
        %v6437 = vrot.slane %v6369, 3
        %v6438 = vrot.slane %v6370, 3
        %v6439 = vsel %vm6212, %v6437, %v6438
        %v6440 = vrot.slane %v6371, 3
        %v6441 = vrot.slane %v6372, 3
        %v6442 = vsel %vm6212, %v6440, %v6441
        %v6443 = vrot.slane %v6373, 3
        %v6444 = vrot.slane %v6374, 3
        %v6445 = vsel %vm6212, %v6443, %v6444
        %v6446 = vrot.slane %v6375, 3
        %v6447 = vrot.slane %v6376, 3
        %v6448 = vsel %vm6212, %v6446, %v6447
        %v6449 = vrot.slane %v6377, 3
        %v6450 = vrot.slane %v6378, 3
        %v6451 = vsel %vm6212, %v6449, %v6450
        %v6452 = vrot.slane %v6379, 3
        %v6453 = vrot.slane %v6380, 3
        %v6454 = vsel %vm6212, %v6452, %v6453
        %v6455 = vrot.slane %v6381, 3
        %v6456 = vrot.slane %v6382, 3
        %v6457 = vsel %vm6212, %v6455, %v6456
        %v6458 = vrot.slane %v6383, 3
        %v6459 = vrot.slane %v6384, 3
        %v6460 = vsel %vm6212, %v6458, %v6459
        %v6461 = vrot.slane %v6385, 3
        %v6462 = vrot.slane %v6386, 3
        %v6463 = vsel %vm6212, %v6461, %v6462
        %v6464 = vrot.slane %v6387, 3
        %v6465 = vrot.slane %v6388, 3
        %v6466 = vsel %vm6212, %v6464, %v6465
        %v6467 = vrot.slane %v6389, 3
        %v6468 = vrot.slane %v6390, 3
        %v6469 = vsel %vm6212, %v6467, %v6468
        %v6470 = vrot.slane %v6391, 3
        %v6471 = vrot.slane %v6392, 3
        %v6472 = vsel %vm6212, %v6470, %v6471
        %v6521 = vadd.f32 %v6309, %v6425
        %v6522 = vadd.f32 %v6310, %v6427
        %v6523 = vadd.f32 %v6311, %v6426
        %v6524 = vadd.f32 %v6312, %v6428
        %v6525 = vadd.f32 %v6313, %v6430
        %v6526 = vadd.f32 %v6314, %v6429
        %v6527 = vadd.f32 %v6315, %v6431
        %v6528 = vadd.f32 %v6316, %v6433
        %v6529 = vadd.f32 %v6317, %v6432
        %v6530 = vadd.f32 %v6318, %v6434
        %v6531 = vadd.f32 %v6319, %v6436
        %v6532 = vadd.f32 %v6320, %v6435
        %v6533 = vadd.f32 %v6321, %v6437
        %v6534 = vadd.f32 %v6322, %v6439
        %v6535 = vadd.f32 %v6323, %v6438
        %v6536 = vadd.f32 %v6324, %v6440
        %v6537 = vadd.f32 %v6325, %v6442
        %v6538 = vadd.f32 %v6326, %v6441
        %v6539 = vadd.f32 %v6327, %v6443
        %v6540 = vadd.f32 %v6328, %v6445
        %v6541 = vadd.f32 %v6329, %v6444
        %v6542 = vadd.f32 %v6330, %v6446
        %v6543 = vadd.f32 %v6331, %v6448
        %v6544 = vadd.f32 %v6332, %v6447
        %v6545 = vadd.f32 %v6333, %v6449
        %v6546 = vadd.f32 %v6334, %v6451
        %v6547 = vadd.f32 %v6335, %v6450
        %v6548 = vadd.f32 %v6336, %v6452
        %v6549 = vadd.f32 %v6337, %v6454
        %v6550 = vadd.f32 %v6338, %v6453
        %v6551 = vadd.f32 %v6339, %v6455
        %v6552 = vadd.f32 %v6340, %v6457
        %v6553 = vadd.f32 %v6341, %v6456
        %v6554 = vadd.f32 %v6342, %v6458
        %v6555 = vadd.f32 %v6343, %v6460
        %v6556 = vadd.f32 %v6344, %v6459
        %v6557 = vadd.f32 %v6345, %v6461
        %v6558 = vadd.f32 %v6346, %v6463
        %v6559 = vadd.f32 %v6347, %v6462
        %v6560 = vadd.f32 %v6348, %v6464
        %v6561 = vadd.f32 %v6349, %v6466
        %v6562 = vadd.f32 %v6350, %v6465
        %v6563 = vadd.f32 %v6351, %v6467
        %v6564 = vadd.f32 %v6352, %v6469
        %v6565 = vadd.f32 %v6353, %v6468
        %v6566 = vadd.f32 %v6354, %v6470
        %v6567 = vadd.f32 %v6355, %v6472
        %v6568 = vadd.f32 %v6356, %v6471
        %v6569 = vlaneseq
        %v6570 = vshrl.u32 %v6569, 7
        %v6571 = vsub.s32 7, %v6570
        %v6572 = vrot.slane %v5747, %v6571
        %v6573 = vmul.f32 %v5781, %v6572
        %v6574 = vmul.f32 %v5782, %v6572
        %v6575 = vmul.f32 %v5785, %v6572
        %v6576 = vmul.f32 %v5786, %v6572
        %v6577 = vmul.f32 %v5789, %v6572
        %v6578 = vmul.f32 %v5790, %v6572
        %v6579 = vmul.f32 %v5793, %v6572
        %v6580 = vmul.f32 %v5794, %v6572
        %v6581 = vmul.f32 %v5797, %v6572
        %v6582 = vmul.f32 %v5798, %v6572
        %v6583 = vmul.f32 %v5801, %v6572
        %v6584 = vmul.f32 %v5802, %v6572
        %v6585 = vmul.f32 %v5805, %v6572
        %v6586 = vmul.f32 %v5806, %v6572
        %v6587 = vmul.f32 %v5809, %v6572
        %v6588 = vmul.f32 %v5810, %v6572
        %v6589 = vmul.f32 %v5813, %v6572
        %v6590 = vmul.f32 %v5814, %v6572
        %v6591 = vmul.f32 %v5817, %v6572
        %v6592 = vmul.f32 %v5818, %v6572
        %v6593 = vmul.f32 %v5821, %v6572
        %v6594 = vmul.f32 %v5822, %v6572
        %v6595 = vmul.f32 %v5825, %v6572
        %v6596 = vmul.f32 %v5826, %v6572
        %v6597 = vmul.f32 %v5829, %v6572
        %v6598 = vmul.f32 %v5830, %v6572
        %v6599 = vmul.f32 %v5833, %v6572
        %v6600 = vmul.f32 %v5834, %v6572
        %v6601 = vmul.f32 %v5837, %v6572
        %v6602 = vmul.f32 %v5838, %v6572
        %v6603 = vmul.f32 %v5841, %v6572
        %v6604 = vmul.f32 %v5842, %v6572
        %v6637 = vrot.slane %v6573, 3
        %v6638 = vrot.slane %v6574, 3
        %v6639 = vsel %vm6212, %v6637, %v6638
        %v6640 = vrot.slane %v6575, 3
        %v6641 = vrot.slane %v6576, 3
        %v6642 = vsel %vm6212, %v6640, %v6641
        %v6643 = vrot.slane %v6577, 3
        %v6644 = vrot.slane %v6578, 3
        %v6645 = vsel %vm6212, %v6643, %v6644
        %v6646 = vrot.slane %v6579, 3
        %v6647 = vrot.slane %v6580, 3
        %v6648 = vsel %vm6212, %v6646, %v6647
        %v6649 = vrot.slane %v6581, 3
        %v6650 = vrot.slane %v6582, 3
        %v6651 = vsel %vm6212, %v6649, %v6650
        %v6652 = vrot.slane %v6583, 3
        %v6653 = vrot.slane %v6584, 3
        %v6654 = vsel %vm6212, %v6652, %v6653
        %v6655 = vrot.slane %v6585, 3
        %v6656 = vrot.slane %v6586, 3
        %v6657 = vsel %vm6212, %v6655, %v6656
        %v6658 = vrot.slane %v6587, 3
        %v6659 = vrot.slane %v6588, 3
        %v6660 = vsel %vm6212, %v6658, %v6659
        %v6661 = vrot.slane %v6589, 3
        %v6662 = vrot.slane %v6590, 3
        %v6663 = vsel %vm6212, %v6661, %v6662
        %v6664 = vrot.slane %v6591, 3
        %v6665 = vrot.slane %v6592, 3
        %v6666 = vsel %vm6212, %v6664, %v6665
        %v6667 = vrot.slane %v6593, 3
        %v6668 = vrot.slane %v6594, 3
        %v6669 = vsel %vm6212, %v6667, %v6668
        %v6670 = vrot.slane %v6595, 3
        %v6671 = vrot.slane %v6596, 3
        %v6672 = vsel %vm6212, %v6670, %v6671
        %v6673 = vrot.slane %v6597, 3
        %v6674 = vrot.slane %v6598, 3
        %v6675 = vsel %vm6212, %v6673, %v6674
        %v6676 = vrot.slane %v6599, 3
        %v6677 = vrot.slane %v6600, 3
        %v6678 = vsel %vm6212, %v6676, %v6677
        %v6679 = vrot.slane %v6601, 3
        %v6680 = vrot.slane %v6602, 3
        %v6681 = vsel %vm6212, %v6679, %v6680
        %v6682 = vrot.slane %v6603, 3
        %v6683 = vrot.slane %v6604, 3
        %v6684 = vsel %vm6212, %v6682, %v6683
        %v6733 = vadd.f32 %v6521, %v6637
        %v6734 = vadd.f32 %v6522, %v6639
        %v6735 = vadd.f32 %v6523, %v6638
        %v6736 = vadd.f32 %v6524, %v6640
        %v6737 = vadd.f32 %v6525, %v6642
        %v6738 = vadd.f32 %v6526, %v6641
        %v6739 = vadd.f32 %v6527, %v6643
        %v6740 = vadd.f32 %v6528, %v6645
        %v6741 = vadd.f32 %v6529, %v6644
        %v6742 = vadd.f32 %v6530, %v6646
        %v6743 = vadd.f32 %v6531, %v6648
        %v6744 = vadd.f32 %v6532, %v6647
        %v6745 = vadd.f32 %v6533, %v6649
        %v6746 = vadd.f32 %v6534, %v6651
        %v6747 = vadd.f32 %v6535, %v6650
        %v6748 = vadd.f32 %v6536, %v6652
        %v6749 = vadd.f32 %v6537, %v6654
        %v6750 = vadd.f32 %v6538, %v6653
        %v6751 = vadd.f32 %v6539, %v6655
        %v6752 = vadd.f32 %v6540, %v6657
        %v6753 = vadd.f32 %v6541, %v6656
        %v6754 = vadd.f32 %v6542, %v6658
        %v6755 = vadd.f32 %v6543, %v6660
        %v6756 = vadd.f32 %v6544, %v6659
        %v6757 = vadd.f32 %v6545, %v6661
        %v6758 = vadd.f32 %v6546, %v6663
        %v6759 = vadd.f32 %v6547, %v6662
        %v6760 = vadd.f32 %v6548, %v6664
        %v6761 = vadd.f32 %v6549, %v6666
        %v6762 = vadd.f32 %v6550, %v6665
        %v6763 = vadd.f32 %v6551, %v6667
        %v6764 = vadd.f32 %v6552, %v6669
        %v6765 = vadd.f32 %v6553, %v6668
        %v6766 = vadd.f32 %v6554, %v6670
        %v6767 = vadd.f32 %v6555, %v6672
        %v6768 = vadd.f32 %v6556, %v6671
        %v6769 = vadd.f32 %v6557, %v6673
        %v6770 = vadd.f32 %v6558, %v6675
        %v6771 = vadd.f32 %v6559, %v6674
        %v6772 = vadd.f32 %v6560, %v6676
        %v6773 = vadd.f32 %v6561, %v6678
        %v6774 = vadd.f32 %v6562, %v6677
        %v6775 = vadd.f32 %v6563, %v6679
        %v6776 = vadd.f32 %v6564, %v6681
        %v6777 = vadd.f32 %v6565, %v6680
        %v6778 = vadd.f32 %v6566, %v6682
        %v6779 = vadd.f32 %v6567, %v6684
        %v6780 = vadd.f32 %v6568, %v6683
        %v6781 = vlaneseq
        %v6782 = vshrl.u32 %v6781, 7
        %v6783 = vsub.s32 2, %v6782
        %v6784 = vrot.slane %v5747, %v6783
        %v6785 = vmul.f32 %v5757, %v6784
        %v6786 = vmul.f32 %v5758, %v6784
        %v6787 = vmul.f32 %v5759, %v6784
        %v6788 = vmul.f32 %v5761, %v6784
        %v6789 = vmul.f32 %v5762, %v6784
        %v6790 = vmul.f32 %v5763, %v6784
        %v6791 = vmul.f32 %v5765, %v6784
        %v6792 = vmul.f32 %v5766, %v6784
        %v6793 = vmul.f32 %v5767, %v6784
        %v6794 = vmul.f32 %v5769, %v6784
        %v6795 = vmul.f32 %v5770, %v6784
        %v6796 = vmul.f32 %v5771, %v6784
        %v6797 = vmul.f32 %v5773, %v6784
        %v6798 = vmul.f32 %v5774, %v6784
        %v6799 = vmul.f32 %v5775, %v6784
        %v6800 = vmul.f32 %v5777, %v6784
        %v6801 = vmul.f32 %v5778, %v6784
        %v6802 = vmul.f32 %v5779, %v6784
        %v6803 = vmul.f32 %v5781, %v6784
        %v6804 = vmul.f32 %v5782, %v6784
        %v6805 = vmul.f32 %v5783, %v6784
        %v6806 = vmul.f32 %v5785, %v6784
        %v6807 = vmul.f32 %v5786, %v6784
        %v6808 = vmul.f32 %v5787, %v6784
        %v6809 = vmul.f32 %v5789, %v6784
        %v6810 = vmul.f32 %v5790, %v6784
        %v6811 = vmul.f32 %v5791, %v6784
        %v6812 = vmul.f32 %v5793, %v6784
        %v6813 = vmul.f32 %v5794, %v6784
        %v6814 = vmul.f32 %v5795, %v6784
        %v6815 = vmul.f32 %v5797, %v6784
        %v6816 = vmul.f32 %v5798, %v6784
        %v6817 = vmul.f32 %v5799, %v6784
        %v6818 = vmul.f32 %v5801, %v6784
        %v6819 = vmul.f32 %v5802, %v6784
        %v6820 = vmul.f32 %v5803, %v6784
        %v6821 = vmul.f32 %v5805, %v6784
        %v6822 = vmul.f32 %v5806, %v6784
        %v6823 = vmul.f32 %v5807, %v6784
        %v6824 = vmul.f32 %v5809, %v6784
        %v6825 = vmul.f32 %v5810, %v6784
        %v6826 = vmul.f32 %v5811, %v6784
        %v6827 = vmul.f32 %v5813, %v6784
        %v6828 = vmul.f32 %v5814, %v6784
        %v6829 = vmul.f32 %v5815, %v6784
        %v6830 = vmul.f32 %v5817, %v6784
        %v6831 = vmul.f32 %v5818, %v6784
        %v6832 = vmul.f32 %v5819, %v6784
        %v6881 = vrot.slane %v6785, 6
        %v6882 = vrot.slane %v6786, 6
        %v6883 = vsel %vm572, %v6881, %v6882
        %v6884 = vrot.slane %v6787, 6
        %v6885 = vsel %vm572, %v6882, %v6884
        %v6886 = vrot.slane %v6788, 6
        %v6887 = vrot.slane %v6789, 6
        %v6888 = vsel %vm572, %v6886, %v6887
        %v6889 = vrot.slane %v6790, 6
        %v6890 = vsel %vm572, %v6887, %v6889
        %v6891 = vrot.slane %v6791, 6
        %v6892 = vrot.slane %v6792, 6
        %v6893 = vsel %vm572, %v6891, %v6892
        %v6894 = vrot.slane %v6793, 6
        %v6895 = vsel %vm572, %v6892, %v6894
        %v6896 = vrot.slane %v6794, 6
        %v6897 = vrot.slane %v6795, 6
        %v6898 = vsel %vm572, %v6896, %v6897
        %v6899 = vrot.slane %v6796, 6
        %v6900 = vsel %vm572, %v6897, %v6899
        %v6901 = vrot.slane %v6797, 6
        %v6902 = vrot.slane %v6798, 6
        %v6903 = vsel %vm572, %v6901, %v6902
        %v6904 = vrot.slane %v6799, 6
        %v6905 = vsel %vm572, %v6902, %v6904
        %v6906 = vrot.slane %v6800, 6
        %v6907 = vrot.slane %v6801, 6
        %v6908 = vsel %vm572, %v6906, %v6907
        %v6909 = vrot.slane %v6802, 6
        %v6910 = vsel %vm572, %v6907, %v6909
        %v6911 = vrot.slane %v6803, 6
        %v6912 = vrot.slane %v6804, 6
        %v6913 = vsel %vm572, %v6911, %v6912
        %v6914 = vrot.slane %v6805, 6
        %v6915 = vsel %vm572, %v6912, %v6914
        %v6916 = vrot.slane %v6806, 6
        %v6917 = vrot.slane %v6807, 6
        %v6918 = vsel %vm572, %v6916, %v6917
        %v6919 = vrot.slane %v6808, 6
        %v6920 = vsel %vm572, %v6917, %v6919
        %v6921 = vrot.slane %v6809, 6
        %v6922 = vrot.slane %v6810, 6
        %v6923 = vsel %vm572, %v6921, %v6922
        %v6924 = vrot.slane %v6811, 6
        %v6925 = vsel %vm572, %v6922, %v6924
        %v6926 = vrot.slane %v6812, 6
        %v6927 = vrot.slane %v6813, 6
        %v6928 = vsel %vm572, %v6926, %v6927
        %v6929 = vrot.slane %v6814, 6
        %v6930 = vsel %vm572, %v6927, %v6929
        %v6931 = vrot.slane %v6815, 6
        %v6932 = vrot.slane %v6816, 6
        %v6933 = vsel %vm572, %v6931, %v6932
        %v6934 = vrot.slane %v6817, 6
        %v6935 = vsel %vm572, %v6932, %v6934
        %v6936 = vrot.slane %v6818, 6
        %v6937 = vrot.slane %v6819, 6
        %v6938 = vsel %vm572, %v6936, %v6937
        %v6939 = vrot.slane %v6820, 6
        %v6940 = vsel %vm572, %v6937, %v6939
        %v6941 = vrot.slane %v6821, 6
        %v6942 = vrot.slane %v6822, 6
        %v6943 = vsel %vm572, %v6941, %v6942
        %v6944 = vrot.slane %v6823, 6
        %v6945 = vsel %vm572, %v6942, %v6944
        %v6946 = vrot.slane %v6824, 6
        %v6947 = vrot.slane %v6825, 6
        %v6948 = vsel %vm572, %v6946, %v6947
        %v6949 = vrot.slane %v6826, 6
        %v6950 = vsel %vm572, %v6947, %v6949
        %v6951 = vrot.slane %v6827, 6
        %v6952 = vrot.slane %v6828, 6
        %v6953 = vsel %vm572, %v6951, %v6952
        %v6954 = vrot.slane %v6829, 6
        %v6955 = vsel %vm572, %v6952, %v6954
        %v6956 = vrot.slane %v6830, 6
        %v6957 = vrot.slane %v6831, 6
        %v6958 = vsel %vm572, %v6956, %v6957
        %v6959 = vrot.slane %v6832, 6
        %v6960 = vsel %vm572, %v6957, %v6959
        %v7009 = vadd.f32 %v6733, %v6881
        %v7010 = vadd.f32 %v6734, %v6883
        %v7011 = vadd.f32 %v6735, %v6885
        %v7012 = vadd.f32 %v6736, %v6886
        %v7013 = vadd.f32 %v6737, %v6888
        %v7014 = vadd.f32 %v6738, %v6890
        %v7015 = vadd.f32 %v6739, %v6891
        %v7016 = vadd.f32 %v6740, %v6893
        %v7017 = vadd.f32 %v6741, %v6895
        %v7018 = vadd.f32 %v6742, %v6896
        %v7019 = vadd.f32 %v6743, %v6898
        %v7020 = vadd.f32 %v6744, %v6900
        %v7021 = vadd.f32 %v6745, %v6901
        %v7022 = vadd.f32 %v6746, %v6903
        %v7023 = vadd.f32 %v6747, %v6905
        %v7024 = vadd.f32 %v6748, %v6906
        %v7025 = vadd.f32 %v6749, %v6908
        %v7026 = vadd.f32 %v6750, %v6910
        %v7027 = vadd.f32 %v6751, %v6911
        %v7028 = vadd.f32 %v6752, %v6913
        %v7029 = vadd.f32 %v6753, %v6915
        %v7030 = vadd.f32 %v6754, %v6916
        %v7031 = vadd.f32 %v6755, %v6918
        %v7032 = vadd.f32 %v6756, %v6920
        %v7033 = vadd.f32 %v6757, %v6921
        %v7034 = vadd.f32 %v6758, %v6923
        %v7035 = vadd.f32 %v6759, %v6925
        %v7036 = vadd.f32 %v6760, %v6926
        %v7037 = vadd.f32 %v6761, %v6928
        %v7038 = vadd.f32 %v6762, %v6930
        %v7039 = vadd.f32 %v6763, %v6931
        %v7040 = vadd.f32 %v6764, %v6933
        %v7041 = vadd.f32 %v6765, %v6935
        %v7042 = vadd.f32 %v6766, %v6936
        %v7043 = vadd.f32 %v6767, %v6938
        %v7044 = vadd.f32 %v6768, %v6940
        %v7045 = vadd.f32 %v6769, %v6941
        %v7046 = vadd.f32 %v6770, %v6943
        %v7047 = vadd.f32 %v6771, %v6945
        %v7048 = vadd.f32 %v6772, %v6946
        %v7049 = vadd.f32 %v6773, %v6948
        %v7050 = vadd.f32 %v6774, %v6950
        %v7051 = vadd.f32 %v6775, %v6951
        %v7052 = vadd.f32 %v6776, %v6953
        %v7053 = vadd.f32 %v6777, %v6955
        %v7054 = vadd.f32 %v6778, %v6956
        %v7055 = vadd.f32 %v6779, %v6958
        %v7056 = vadd.f32 %v6780, %v6960
        %v7057 = vlaneseq
        %v7058 = vshrl.u32 %v7057, 7
        %v7059 = vsub.s32 5, %v7058
        %v7060 = vrot.slane %v5747, %v7059
        %v7061 = vmul.f32 %v5769, %v7060
        %v7062 = vmul.f32 %v5770, %v7060
        %v7063 = vmul.f32 %v5771, %v7060
        %v7064 = vmul.f32 %v5773, %v7060
        %v7065 = vmul.f32 %v5774, %v7060
        %v7066 = vmul.f32 %v5775, %v7060
        %v7067 = vmul.f32 %v5777, %v7060
        %v7068 = vmul.f32 %v5778, %v7060
        %v7069 = vmul.f32 %v5779, %v7060
        %v7070 = vmul.f32 %v5781, %v7060
        %v7071 = vmul.f32 %v5782, %v7060
        %v7072 = vmul.f32 %v5783, %v7060
        %v7073 = vmul.f32 %v5785, %v7060
        %v7074 = vmul.f32 %v5786, %v7060
        %v7075 = vmul.f32 %v5787, %v7060
        %v7076 = vmul.f32 %v5789, %v7060
        %v7077 = vmul.f32 %v5790, %v7060
        %v7078 = vmul.f32 %v5791, %v7060
        %v7079 = vmul.f32 %v5793, %v7060
        %v7080 = vmul.f32 %v5794, %v7060
        %v7081 = vmul.f32 %v5795, %v7060
        %v7082 = vmul.f32 %v5797, %v7060
        %v7083 = vmul.f32 %v5798, %v7060
        %v7084 = vmul.f32 %v5799, %v7060
        %v7085 = vmul.f32 %v5801, %v7060
        %v7086 = vmul.f32 %v5802, %v7060
        %v7087 = vmul.f32 %v5803, %v7060
        %v7088 = vmul.f32 %v5805, %v7060
        %v7089 = vmul.f32 %v5806, %v7060
        %v7090 = vmul.f32 %v5807, %v7060
        %v7091 = vmul.f32 %v5809, %v7060
        %v7092 = vmul.f32 %v5810, %v7060
        %v7093 = vmul.f32 %v5811, %v7060
        %v7094 = vmul.f32 %v5813, %v7060
        %v7095 = vmul.f32 %v5814, %v7060
        %v7096 = vmul.f32 %v5815, %v7060
        %v7097 = vmul.f32 %v5817, %v7060
        %v7098 = vmul.f32 %v5818, %v7060
        %v7099 = vmul.f32 %v5819, %v7060
        %v7100 = vmul.f32 %v5821, %v7060
        %v7101 = vmul.f32 %v5822, %v7060
        %v7102 = vmul.f32 %v5823, %v7060
        %v7103 = vmul.f32 %v5825, %v7060
        %v7104 = vmul.f32 %v5826, %v7060
        %v7105 = vmul.f32 %v5827, %v7060
        %v7106 = vmul.f32 %v5829, %v7060
        %v7107 = vmul.f32 %v5830, %v7060
        %v7108 = vmul.f32 %v5831, %v7060
        %v7157 = vrot.slane %v7061, 6
        %v7158 = vrot.slane %v7062, 6
        %v7159 = vsel %vm572, %v7157, %v7158
        %v7160 = vrot.slane %v7063, 6
        %v7161 = vsel %vm572, %v7158, %v7160
        %v7162 = vrot.slane %v7064, 6
        %v7163 = vrot.slane %v7065, 6
        %v7164 = vsel %vm572, %v7162, %v7163
        %v7165 = vrot.slane %v7066, 6
        %v7166 = vsel %vm572, %v7163, %v7165
        %v7167 = vrot.slane %v7067, 6
        %v7168 = vrot.slane %v7068, 6
        %v7169 = vsel %vm572, %v7167, %v7168
        %v7170 = vrot.slane %v7069, 6
        %v7171 = vsel %vm572, %v7168, %v7170
        %v7172 = vrot.slane %v7070, 6
        %v7173 = vrot.slane %v7071, 6
        %v7174 = vsel %vm572, %v7172, %v7173
        %v7175 = vrot.slane %v7072, 6
        %v7176 = vsel %vm572, %v7173, %v7175
        %v7177 = vrot.slane %v7073, 6
        %v7178 = vrot.slane %v7074, 6
        %v7179 = vsel %vm572, %v7177, %v7178
        %v7180 = vrot.slane %v7075, 6
        %v7181 = vsel %vm572, %v7178, %v7180
        %v7182 = vrot.slane %v7076, 6
        %v7183 = vrot.slane %v7077, 6
        %v7184 = vsel %vm572, %v7182, %v7183
        %v7185 = vrot.slane %v7078, 6
        %v7186 = vsel %vm572, %v7183, %v7185
        %v7187 = vrot.slane %v7079, 6
        %v7188 = vrot.slane %v7080, 6
        %v7189 = vsel %vm572, %v7187, %v7188
        %v7190 = vrot.slane %v7081, 6
        %v7191 = vsel %vm572, %v7188, %v7190
        %v7192 = vrot.slane %v7082, 6
        %v7193 = vrot.slane %v7083, 6
        %v7194 = vsel %vm572, %v7192, %v7193
        %v7195 = vrot.slane %v7084, 6
        %v7196 = vsel %vm572, %v7193, %v7195
        %v7197 = vrot.slane %v7085, 6
        %v7198 = vrot.slane %v7086, 6
        %v7199 = vsel %vm572, %v7197, %v7198
        %v7200 = vrot.slane %v7087, 6
        %v7201 = vsel %vm572, %v7198, %v7200
        %v7202 = vrot.slane %v7088, 6
        %v7203 = vrot.slane %v7089, 6
        %v7204 = vsel %vm572, %v7202, %v7203
        %v7205 = vrot.slane %v7090, 6
        %v7206 = vsel %vm572, %v7203, %v7205
        %v7207 = vrot.slane %v7091, 6
        %v7208 = vrot.slane %v7092, 6
        %v7209 = vsel %vm572, %v7207, %v7208
        %v7210 = vrot.slane %v7093, 6
        %v7211 = vsel %vm572, %v7208, %v7210
        %v7212 = vrot.slane %v7094, 6
        %v7213 = vrot.slane %v7095, 6
        %v7214 = vsel %vm572, %v7212, %v7213
        %v7215 = vrot.slane %v7096, 6
        %v7216 = vsel %vm572, %v7213, %v7215
        %v7217 = vrot.slane %v7097, 6
        %v7218 = vrot.slane %v7098, 6
        %v7219 = vsel %vm572, %v7217, %v7218
        %v7220 = vrot.slane %v7099, 6
        %v7221 = vsel %vm572, %v7218, %v7220
        %v7222 = vrot.slane %v7100, 6
        %v7223 = vrot.slane %v7101, 6
        %v7224 = vsel %vm572, %v7222, %v7223
        %v7225 = vrot.slane %v7102, 6
        %v7226 = vsel %vm572, %v7223, %v7225
        %v7227 = vrot.slane %v7103, 6
        %v7228 = vrot.slane %v7104, 6
        %v7229 = vsel %vm572, %v7227, %v7228
        %v7230 = vrot.slane %v7105, 6
        %v7231 = vsel %vm572, %v7228, %v7230
        %v7232 = vrot.slane %v7106, 6
        %v7233 = vrot.slane %v7107, 6
        %v7234 = vsel %vm572, %v7232, %v7233
        %v7235 = vrot.slane %v7108, 6
        %v7236 = vsel %vm572, %v7233, %v7235
        %v7285 = vadd.f32 %v7009, %v7157
        %v7286 = vadd.f32 %v7010, %v7159
        %v7287 = vadd.f32 %v7011, %v7161
        %v7288 = vadd.f32 %v7012, %v7162
        %v7289 = vadd.f32 %v7013, %v7164
        %v7290 = vadd.f32 %v7014, %v7166
        %v7291 = vadd.f32 %v7015, %v7167
        %v7292 = vadd.f32 %v7016, %v7169
        %v7293 = vadd.f32 %v7017, %v7171
        %v7294 = vadd.f32 %v7018, %v7172
        %v7295 = vadd.f32 %v7019, %v7174
        %v7296 = vadd.f32 %v7020, %v7176
        %v7297 = vadd.f32 %v7021, %v7177
        %v7298 = vadd.f32 %v7022, %v7179
        %v7299 = vadd.f32 %v7023, %v7181
        %v7300 = vadd.f32 %v7024, %v7182
        %v7301 = vadd.f32 %v7025, %v7184
        %v7302 = vadd.f32 %v7026, %v7186
        %v7303 = vadd.f32 %v7027, %v7187
        %v7304 = vadd.f32 %v7028, %v7189
        %v7305 = vadd.f32 %v7029, %v7191
        %v7306 = vadd.f32 %v7030, %v7192
        %v7307 = vadd.f32 %v7031, %v7194
        %v7308 = vadd.f32 %v7032, %v7196
        %v7309 = vadd.f32 %v7033, %v7197
        %v7310 = vadd.f32 %v7034, %v7199
        %v7311 = vadd.f32 %v7035, %v7201
        %v7312 = vadd.f32 %v7036, %v7202
        %v7313 = vadd.f32 %v7037, %v7204
        %v7314 = vadd.f32 %v7038, %v7206
        %v7315 = vadd.f32 %v7039, %v7207
        %v7316 = vadd.f32 %v7040, %v7209
        %v7317 = vadd.f32 %v7041, %v7211
        %v7318 = vadd.f32 %v7042, %v7212
        %v7319 = vadd.f32 %v7043, %v7214
        %v7320 = vadd.f32 %v7044, %v7216
        %v7321 = vadd.f32 %v7045, %v7217
        %v7322 = vadd.f32 %v7046, %v7219
        %v7323 = vadd.f32 %v7047, %v7221
        %v7324 = vadd.f32 %v7048, %v7222
        %v7325 = vadd.f32 %v7049, %v7224
        %v7326 = vadd.f32 %v7050, %v7226
        %v7327 = vadd.f32 %v7051, %v7227
        %v7328 = vadd.f32 %v7052, %v7229
        %v7329 = vadd.f32 %v7053, %v7231
        %v7330 = vadd.f32 %v7054, %v7232
        %v7331 = vadd.f32 %v7055, %v7234
        %v7332 = vadd.f32 %v7056, %v7236
        %v7333 = vlaneseq
        %v7334 = vshrl.u32 %v7333, 7
        %v7335 = vsub.s32 0, %v7334
        %v7336 = vrot.slane %v5748, %v7335
        %v7337 = vmul.f32 %v5781, %v7336
        %v7338 = vmul.f32 %v5782, %v7336
        %v7339 = vmul.f32 %v5783, %v7336
        %v7340 = vmul.f32 %v5785, %v7336
        %v7341 = vmul.f32 %v5786, %v7336
        %v7342 = vmul.f32 %v5787, %v7336
        %v7343 = vmul.f32 %v5789, %v7336
        %v7344 = vmul.f32 %v5790, %v7336
        %v7345 = vmul.f32 %v5791, %v7336
        %v7346 = vmul.f32 %v5793, %v7336
        %v7347 = vmul.f32 %v5794, %v7336
        %v7348 = vmul.f32 %v5795, %v7336
        %v7349 = vmul.f32 %v5797, %v7336
        %v7350 = vmul.f32 %v5798, %v7336
        %v7351 = vmul.f32 %v5799, %v7336
        %v7352 = vmul.f32 %v5801, %v7336
        %v7353 = vmul.f32 %v5802, %v7336
        %v7354 = vmul.f32 %v5803, %v7336
        %v7355 = vmul.f32 %v5805, %v7336
        %v7356 = vmul.f32 %v5806, %v7336
        %v7357 = vmul.f32 %v5807, %v7336
        %v7358 = vmul.f32 %v5809, %v7336
        %v7359 = vmul.f32 %v5810, %v7336
        %v7360 = vmul.f32 %v5811, %v7336
        %v7361 = vmul.f32 %v5813, %v7336
        %v7362 = vmul.f32 %v5814, %v7336
        %v7363 = vmul.f32 %v5815, %v7336
        %v7364 = vmul.f32 %v5817, %v7336
        %v7365 = vmul.f32 %v5818, %v7336
        %v7366 = vmul.f32 %v5819, %v7336
        %v7367 = vmul.f32 %v5821, %v7336
        %v7368 = vmul.f32 %v5822, %v7336
        %v7369 = vmul.f32 %v5823, %v7336
        %v7370 = vmul.f32 %v5825, %v7336
        %v7371 = vmul.f32 %v5826, %v7336
        %v7372 = vmul.f32 %v5827, %v7336
        %v7373 = vmul.f32 %v5829, %v7336
        %v7374 = vmul.f32 %v5830, %v7336
        %v7375 = vmul.f32 %v5831, %v7336
        %v7376 = vmul.f32 %v5833, %v7336
        %v7377 = vmul.f32 %v5834, %v7336
        %v7378 = vmul.f32 %v5835, %v7336
        %v7379 = vmul.f32 %v5837, %v7336
        %v7380 = vmul.f32 %v5838, %v7336
        %v7381 = vmul.f32 %v5839, %v7336
        %v7382 = vmul.f32 %v5841, %v7336
        %v7383 = vmul.f32 %v5842, %v7336
        %v7384 = vmul.f32 %v5843, %v7336
        %v7433 = vrot.slane %v7337, 6
        %v7434 = vrot.slane %v7338, 6
        %v7435 = vsel %vm572, %v7433, %v7434
        %v7436 = vrot.slane %v7339, 6
        %v7437 = vsel %vm572, %v7434, %v7436
        %v7438 = vrot.slane %v7340, 6
        %v7439 = vrot.slane %v7341, 6
        %v7440 = vsel %vm572, %v7438, %v7439
        %v7441 = vrot.slane %v7342, 6
        %v7442 = vsel %vm572, %v7439, %v7441
        %v7443 = vrot.slane %v7343, 6
        %v7444 = vrot.slane %v7344, 6
        %v7445 = vsel %vm572, %v7443, %v7444
        %v7446 = vrot.slane %v7345, 6
        %v7447 = vsel %vm572, %v7444, %v7446
        %v7448 = vrot.slane %v7346, 6
        %v7449 = vrot.slane %v7347, 6
        %v7450 = vsel %vm572, %v7448, %v7449
        %v7451 = vrot.slane %v7348, 6
        %v7452 = vsel %vm572, %v7449, %v7451
        %v7453 = vrot.slane %v7349, 6
        %v7454 = vrot.slane %v7350, 6
        %v7455 = vsel %vm572, %v7453, %v7454
        %v7456 = vrot.slane %v7351, 6
        %v7457 = vsel %vm572, %v7454, %v7456
        %v7458 = vrot.slane %v7352, 6
        %v7459 = vrot.slane %v7353, 6
        %v7460 = vsel %vm572, %v7458, %v7459
        %v7461 = vrot.slane %v7354, 6
        %v7462 = vsel %vm572, %v7459, %v7461
        %v7463 = vrot.slane %v7355, 6
        %v7464 = vrot.slane %v7356, 6
        %v7465 = vsel %vm572, %v7463, %v7464
        %v7466 = vrot.slane %v7357, 6
        %v7467 = vsel %vm572, %v7464, %v7466
        %v7468 = vrot.slane %v7358, 6
        %v7469 = vrot.slane %v7359, 6
        %v7470 = vsel %vm572, %v7468, %v7469
        %v7471 = vrot.slane %v7360, 6
        %v7472 = vsel %vm572, %v7469, %v7471
        %v7473 = vrot.slane %v7361, 6
        %v7474 = vrot.slane %v7362, 6
        %v7475 = vsel %vm572, %v7473, %v7474
        %v7476 = vrot.slane %v7363, 6
        %v7477 = vsel %vm572, %v7474, %v7476
        %v7478 = vrot.slane %v7364, 6
        %v7479 = vrot.slane %v7365, 6
        %v7480 = vsel %vm572, %v7478, %v7479
        %v7481 = vrot.slane %v7366, 6
        %v7482 = vsel %vm572, %v7479, %v7481
        %v7483 = vrot.slane %v7367, 6
        %v7484 = vrot.slane %v7368, 6
        %v7485 = vsel %vm572, %v7483, %v7484
        %v7486 = vrot.slane %v7369, 6
        %v7487 = vsel %vm572, %v7484, %v7486
        %v7488 = vrot.slane %v7370, 6
        %v7489 = vrot.slane %v7371, 6
        %v7490 = vsel %vm572, %v7488, %v7489
        %v7491 = vrot.slane %v7372, 6
        %v7492 = vsel %vm572, %v7489, %v7491
        %v7493 = vrot.slane %v7373, 6
        %v7494 = vrot.slane %v7374, 6
        %v7495 = vsel %vm572, %v7493, %v7494
        %v7496 = vrot.slane %v7375, 6
        %v7497 = vsel %vm572, %v7494, %v7496
        %v7498 = vrot.slane %v7376, 6
        %v7499 = vrot.slane %v7377, 6
        %v7500 = vsel %vm572, %v7498, %v7499
        %v7501 = vrot.slane %v7378, 6
        %v7502 = vsel %vm572, %v7499, %v7501
        %v7503 = vrot.slane %v7379, 6
        %v7504 = vrot.slane %v7380, 6
        %v7505 = vsel %vm572, %v7503, %v7504
        %v7506 = vrot.slane %v7381, 6
        %v7507 = vsel %vm572, %v7504, %v7506
        %v7508 = vrot.slane %v7382, 6
        %v7509 = vrot.slane %v7383, 6
        %v7510 = vsel %vm572, %v7508, %v7509
        %v7511 = vrot.slane %v7384, 6
        %v7512 = vsel %vm572, %v7509, %v7511
        %v7561 = vadd.f32 %v7285, %v7433
        %v7562 = vadd.f32 %v7286, %v7435
        %v7563 = vadd.f32 %v7287, %v7437
        %v7564 = vadd.f32 %v7288, %v7438
        %v7565 = vadd.f32 %v7289, %v7440
        %v7566 = vadd.f32 %v7290, %v7442
        %v7567 = vadd.f32 %v7291, %v7443
        %v7568 = vadd.f32 %v7292, %v7445
        %v7569 = vadd.f32 %v7293, %v7447
        %v7570 = vadd.f32 %v7294, %v7448
        %v7571 = vadd.f32 %v7295, %v7450
        %v7572 = vadd.f32 %v7296, %v7452
        %v7573 = vadd.f32 %v7297, %v7453
        %v7574 = vadd.f32 %v7298, %v7455
        %v7575 = vadd.f32 %v7299, %v7457
        %v7576 = vadd.f32 %v7300, %v7458
        %v7577 = vadd.f32 %v7301, %v7460
        %v7578 = vadd.f32 %v7302, %v7462
        %v7579 = vadd.f32 %v7303, %v7463
        %v7580 = vadd.f32 %v7304, %v7465
        %v7581 = vadd.f32 %v7305, %v7467
        %v7582 = vadd.f32 %v7306, %v7468
        %v7583 = vadd.f32 %v7307, %v7470
        %v7584 = vadd.f32 %v7308, %v7472
        %v7585 = vadd.f32 %v7309, %v7473
        %v7586 = vadd.f32 %v7310, %v7475
        %v7587 = vadd.f32 %v7311, %v7477
        %v7588 = vadd.f32 %v7312, %v7478
        %v7589 = vadd.f32 %v7313, %v7480
        %v7590 = vadd.f32 %v7314, %v7482
        %v7591 = vadd.f32 %v7315, %v7483
        %v7592 = vadd.f32 %v7316, %v7485
        %v7593 = vadd.f32 %v7317, %v7487
        %v7594 = vadd.f32 %v7318, %v7488
        %v7595 = vadd.f32 %v7319, %v7490
        %v7596 = vadd.f32 %v7320, %v7492
        %v7597 = vadd.f32 %v7321, %v7493
        %v7598 = vadd.f32 %v7322, %v7495
        %v7599 = vadd.f32 %v7323, %v7497
        %v7600 = vadd.f32 %v7324, %v7498
        %v7601 = vadd.f32 %v7325, %v7500
        %v7602 = vadd.f32 %v7326, %v7502
        %v7603 = vadd.f32 %v7327, %v7503
        %v7604 = vadd.f32 %v7328, %v7505
        %v7605 = vadd.f32 %v7329, %v7507
        %v7606 = vadd.f32 %v7330, %v7508
        %v7607 = vadd.f32 %v7331, %v7510
        %v7608 = vadd.f32 %v7332, %v7512
        %v7657 = vrot.slane %v7561, 6
        %v7658 = vrot.slane %v7562, 6
        %v7659 = vsel %vm572, %v7657, %v7658
        %v7660 = vrot.slane %v7563, 6
        %v7661 = vsel %vm572, %v7658, %v7660
        %v7662 = vrot.slane %v7564, 6
        %v7663 = vrot.slane %v7565, 6
        %v7664 = vsel %vm572, %v7662, %v7663
        %v7665 = vrot.slane %v7566, 6
        %v7666 = vsel %vm572, %v7663, %v7665
        %v7667 = vrot.slane %v7567, 6
        %v7668 = vrot.slane %v7568, 6
        %v7669 = vsel %vm572, %v7667, %v7668
        %v7670 = vrot.slane %v7569, 6
        %v7671 = vsel %vm572, %v7668, %v7670
        %v7672 = vrot.slane %v7570, 6
        %v7673 = vrot.slane %v7571, 6
        %v7674 = vsel %vm572, %v7672, %v7673
        %v7675 = vrot.slane %v7572, 6
        %v7676 = vsel %vm572, %v7673, %v7675
        %v7677 = vrot.slane %v7573, 6
        %v7678 = vrot.slane %v7574, 6
        %v7679 = vsel %vm572, %v7677, %v7678
        %v7680 = vrot.slane %v7575, 6
        %v7681 = vsel %vm572, %v7678, %v7680
        %v7682 = vrot.slane %v7576, 6
        %v7683 = vrot.slane %v7577, 6
        %v7684 = vsel %vm572, %v7682, %v7683
        %v7685 = vrot.slane %v7578, 6
        %v7686 = vsel %vm572, %v7683, %v7685
        %v7687 = vrot.slane %v7579, 6
        %v7688 = vrot.slane %v7580, 6
        %v7689 = vsel %vm572, %v7687, %v7688
        %v7690 = vrot.slane %v7581, 6
        %v7691 = vsel %vm572, %v7688, %v7690
        %v7692 = vrot.slane %v7582, 6
        %v7693 = vrot.slane %v7583, 6
        %v7694 = vsel %vm572, %v7692, %v7693
        %v7695 = vrot.slane %v7584, 6
        %v7696 = vsel %vm572, %v7693, %v7695
        %v7697 = vrot.slane %v7585, 6
        %v7698 = vrot.slane %v7586, 6
        %v7699 = vsel %vm572, %v7697, %v7698
        %v7700 = vrot.slane %v7587, 6
        %v7701 = vsel %vm572, %v7698, %v7700
        %v7702 = vrot.slane %v7588, 6
        %v7703 = vrot.slane %v7589, 6
        %v7704 = vsel %vm572, %v7702, %v7703
        %v7705 = vrot.slane %v7590, 6
        %v7706 = vsel %vm572, %v7703, %v7705
        %v7707 = vrot.slane %v7591, 6
        %v7708 = vrot.slane %v7592, 6
        %v7709 = vsel %vm572, %v7707, %v7708
        %v7710 = vrot.slane %v7593, 6
        %v7711 = vsel %vm572, %v7708, %v7710
        %v7712 = vrot.slane %v7594, 6
        %v7713 = vrot.slane %v7595, 6
        %v7714 = vsel %vm572, %v7712, %v7713
        %v7715 = vrot.slane %v7596, 6
        %v7716 = vsel %vm572, %v7713, %v7715
        %v7717 = vrot.slane %v7597, 6
        %v7718 = vrot.slane %v7598, 6
        %v7719 = vsel %vm572, %v7717, %v7718
        %v7720 = vrot.slane %v7599, 6
        %v7721 = vsel %vm572, %v7718, %v7720
        %v7722 = vrot.slane %v7600, 6
        %v7723 = vrot.slane %v7601, 6
        %v7724 = vsel %vm572, %v7722, %v7723
        %v7725 = vrot.slane %v7602, 6
        %v7726 = vsel %vm572, %v7723, %v7725
        %v7727 = vrot.slane %v7603, 6
        %v7728 = vrot.slane %v7604, 6
        %v7729 = vsel %vm572, %v7727, %v7728
        %v7730 = vrot.slane %v7605, 6
        %v7731 = vsel %vm572, %v7728, %v7730
        %v7732 = vrot.slane %v7606, 6
        %v7733 = vrot.slane %v7607, 6
        %v7734 = vsel %vm572, %v7732, %v7733
        %v7735 = vrot.slane %v7608, 6
        %v7736 = vsel %vm572, %v7733, %v7735
        %v7785 = vmul.f32 %v5699, %v7657
        %v7786 = vmul.f32 %v5700, %v7659
        %v7787 = vmul.f32 %v5701, %v7661
        %v7788 = vmul.f32 %v5702, %v7662
        %v7789 = vmul.f32 %v5703, %v7664
        %v7790 = vmul.f32 %v5704, %v7666
        %v7791 = vmul.f32 %v5705, %v7667
        %v7792 = vmul.f32 %v5706, %v7669
        %v7793 = vmul.f32 %v5707, %v7671
        %v7794 = vmul.f32 %v5708, %v7672
        %v7795 = vmul.f32 %v5709, %v7674
        %v7796 = vmul.f32 %v5710, %v7676
        %v7797 = vmul.f32 %v5711, %v7677
        %v7798 = vmul.f32 %v5712, %v7679
        %v7799 = vmul.f32 %v5713, %v7681
        %v7800 = vmul.f32 %v5714, %v7682
        %v7801 = vmul.f32 %v5715, %v7684
        %v7802 = vmul.f32 %v5716, %v7686
        %v7803 = vmul.f32 %v5717, %v7687
        %v7804 = vmul.f32 %v5718, %v7689
        %v7805 = vmul.f32 %v5719, %v7691
        %v7806 = vmul.f32 %v5720, %v7692
        %v7807 = vmul.f32 %v5721, %v7694
        %v7808 = vmul.f32 %v5722, %v7696
        %v7809 = vmul.f32 %v5723, %v7697
        %v7810 = vmul.f32 %v5724, %v7699
        %v7811 = vmul.f32 %v5725, %v7701
        %v7812 = vmul.f32 %v5726, %v7702
        %v7813 = vmul.f32 %v5727, %v7704
        %v7814 = vmul.f32 %v5728, %v7706
        %v7815 = vmul.f32 %v5729, %v7707
        %v7816 = vmul.f32 %v5730, %v7709
        %v7817 = vmul.f32 %v5731, %v7711
        %v7818 = vmul.f32 %v5732, %v7712
        %v7819 = vmul.f32 %v5733, %v7714
        %v7820 = vmul.f32 %v5734, %v7716
        %v7821 = vmul.f32 %v5735, %v7717
        %v7822 = vmul.f32 %v5736, %v7719
        %v7823 = vmul.f32 %v5737, %v7721
        %v7824 = vmul.f32 %v5738, %v7722
        %v7825 = vmul.f32 %v5739, %v7724
        %v7826 = vmul.f32 %v5740, %v7726
        %v7827 = vmul.f32 %v5741, %v7727
        %v7828 = vmul.f32 %v5742, %v7729
        %v7829 = vmul.f32 %v5743, %v7731
        %v7830 = vmul.f32 %v5744, %v7732
        %v7831 = vmul.f32 %v5745, %v7734
        %v7832 = vmul.f32 %v5746, %v7736
        %v7881 = vrot.slane %v7785, 7
        %v7882 = vrot.slane %v7786, 7
        %v7883 = vsel %vm5570, %v7881, %v7882
        %v7884 = vrot.slane %v7787, 7
        %v7885 = vsel %vm5570, %v7882, %v7884
        %v7886 = vrot.slane %v7788, 7
        %v7887 = vrot.slane %v7789, 7
        %v7888 = vsel %vm5570, %v7886, %v7887
        %v7889 = vrot.slane %v7790, 7
        %v7890 = vsel %vm5570, %v7887, %v7889
        %v7891 = vrot.slane %v7791, 7
        %v7892 = vrot.slane %v7792, 7
        %v7893 = vsel %vm5570, %v7891, %v7892
        %v7894 = vrot.slane %v7793, 7
        %v7895 = vsel %vm5570, %v7892, %v7894
        %v7896 = vrot.slane %v7794, 7
        %v7897 = vrot.slane %v7795, 7
        %v7898 = vsel %vm5570, %v7896, %v7897
        %v7899 = vrot.slane %v7796, 7
        %v7900 = vsel %vm5570, %v7897, %v7899
        %v7901 = vrot.slane %v7797, 7
        %v7902 = vrot.slane %v7798, 7
        %v7903 = vsel %vm5570, %v7901, %v7902
        %v7904 = vrot.slane %v7799, 7
        %v7905 = vsel %vm5570, %v7902, %v7904
        %v7906 = vrot.slane %v7800, 7
        %v7907 = vrot.slane %v7801, 7
        %v7908 = vsel %vm5570, %v7906, %v7907
        %v7909 = vrot.slane %v7802, 7
        %v7910 = vsel %vm5570, %v7907, %v7909
        %v7911 = vrot.slane %v7803, 7
        %v7912 = vrot.slane %v7804, 7
        %v7913 = vsel %vm5570, %v7911, %v7912
        %v7914 = vrot.slane %v7805, 7
        %v7915 = vsel %vm5570, %v7912, %v7914
        %v7916 = vrot.slane %v7806, 7
        %v7917 = vrot.slane %v7807, 7
        %v7918 = vsel %vm5570, %v7916, %v7917
        %v7919 = vrot.slane %v7808, 7
        %v7920 = vsel %vm5570, %v7917, %v7919
        %v7921 = vrot.slane %v7809, 7
        %v7922 = vrot.slane %v7810, 7
        %v7923 = vsel %vm5570, %v7921, %v7922
        %v7924 = vrot.slane %v7811, 7
        %v7925 = vsel %vm5570, %v7922, %v7924
        %v7926 = vrot.slane %v7812, 7
        %v7927 = vrot.slane %v7813, 7
        %v7928 = vsel %vm5570, %v7926, %v7927
        %v7929 = vrot.slane %v7814, 7
        %v7930 = vsel %vm5570, %v7927, %v7929
        %v7931 = vrot.slane %v7815, 7
        %v7932 = vrot.slane %v7816, 7
        %v7933 = vsel %vm5570, %v7931, %v7932
        %v7934 = vrot.slane %v7817, 7
        %v7935 = vsel %vm5570, %v7932, %v7934
        %v7936 = vrot.slane %v7818, 7
        %v7937 = vrot.slane %v7819, 7
        %v7938 = vsel %vm5570, %v7936, %v7937
        %v7939 = vrot.slane %v7820, 7
        %v7940 = vsel %vm5570, %v7937, %v7939
        %v7941 = vrot.slane %v7821, 7
        %v7942 = vrot.slane %v7822, 7
        %v7943 = vsel %vm5570, %v7941, %v7942
        %v7944 = vrot.slane %v7823, 7
        %v7945 = vsel %vm5570, %v7942, %v7944
        %v7946 = vrot.slane %v7824, 7
        %v7947 = vrot.slane %v7825, 7
        %v7948 = vsel %vm5570, %v7946, %v7947
        %v7949 = vrot.slane %v7826, 7
        %v7950 = vsel %vm5570, %v7947, %v7949
        %v7951 = vrot.slane %v7827, 7
        %v7952 = vrot.slane %v7828, 7
        %v7953 = vsel %vm5570, %v7951, %v7952
        %v7954 = vrot.slane %v7829, 7
        %v7955 = vsel %vm5570, %v7952, %v7954
        %v7956 = vrot.slane %v7830, 7
        %v7957 = vrot.slane %v7831, 7
        %v7958 = vsel %vm5570, %v7956, %v7957
        %v7959 = vrot.slane %v7832, 7
        %v7960 = vsel %vm5570, %v7957, %v7959
        %v7993 = vpack.c.bf16 %v7885, %v7883
        %v7994 = vpack.c.bf16 %v7890, %v7888
        %v7995 = vpack.c.bf16 %v7895, %v7893
        %v7996 = vpack.c.bf16 %v7900, %v7898
        %v7997 = vpack.c.bf16 %v7905, %v7903
        %v7998 = vpack.c.bf16 %v7910, %v7908
        %v7999 = vpack.c.bf16 %v7915, %v7913
        %v8000 = vpack.c.bf16 %v7920, %v7918
        %v8001 = vpack.c.bf16 %v7925, %v7923
        %v8002 = vpack.c.bf16 %v7930, %v7928
        %v8003 = vpack.c.bf16 %v7935, %v7933
        %v8004 = vpack.c.bf16 %v7940, %v7938
        %v8005 = vpack.c.bf16 %v7945, %v7943
        %v8006 = vpack.c.bf16 %v7950, %v7948
        %v8007 = vpack.c.bf16 %v7955, %v7953
        %v8008 = vpack.c.bf16 %v7960, %v7958
        %v8009 = vld [vmem:[%s9] sm:$0xf]
        %v8010 = vld [vmem:[%s9 + $0x4] sm:$0xf]
        %v8011 = vld [vmem:[%s9 + $0x8] sm:$0xf]
        %v8012 = vld [vmem:[%s9 + $0xc] sm:$0xf]
        %v8013 = vld [vmem:[%s9 + $0x10] sm:$0xf]
        %v8014 = vld [vmem:[%s9 + $0x14] sm:$0xf]
        %v8015 = vld [vmem:[%s9 + $0x18] sm:$0xf]
        %v8016 = vld [vmem:[%s9 + $0x1c] sm:$0xf]
        %v8017 = vld [vmem:[%s9 + $0x20] sm:$0xf]
        %v8018 = vld [vmem:[%s9 + $0x24] sm:$0xf]
        %v8019 = vld [vmem:[%s9 + $0x28] sm:$0xf]
        %v8020 = vld [vmem:[%s9 + $0x2c] sm:$0xf]
        %v8021 = vld [vmem:[%s9 + $0x30] sm:$0xf]
        %v8022 = vld [vmem:[%s9 + $0x34] sm:$0xf]
        %v8023 = vld [vmem:[%s9 + $0x38] sm:$0xf]
        %v8024 = vld [vmem:[%s9 + $0x3c] sm:$0xf]
        %v8025 = vld [vmem:[%s10] sm:$0x1]
        %v8027 = vlaneseq
        %v8028 = vshrl.u32 %v8027, 7
        %v8029 = vsub.s32 0, %v8028
        %v8030 = vrot.slane %v8025, %v8029
        %v8048 = vunpack.c.l.b16 %v8009
        %v8049 = vunpack.c.l.b16 %v8010
        %v8050 = vunpack.c.l.b16 %v8011
        %v8051 = vunpack.c.l.b16 %v8012
        %v8052 = vunpack.c.l.b16 %v8013
        %v8053 = vunpack.c.l.b16 %v8014
        %v8054 = vunpack.c.l.b16 %v8015
        %v8055 = vunpack.c.l.b16 %v8016
        %v8056 = vunpack.c.l.b16 %v8017
        %v8057 = vunpack.c.l.b16 %v8018
        %v8058 = vunpack.c.l.b16 %v8019
        %v8059 = vunpack.c.l.b16 %v8020
        %v8060 = vunpack.c.l.b16 %v8021
        %v8061 = vunpack.c.l.b16 %v8022
        %v8062 = vunpack.c.l.b16 %v8023
        %v8063 = vunpack.c.l.b16 %v8024
        %v8064 = vpack.c.b16 %v8049, %v8048
        %v8065 = vpack.c.b16 %v8051, %v8050
        %v8066 = vpack.c.b16 %v8053, %v8052
        %v8067 = vpack.c.b16 %v8055, %v8054
        %v8068 = vpack.c.b16 %v8057, %v8056
        %v8069 = vpack.c.b16 %v8059, %v8058
        %v8070 = vpack.c.b16 %v8061, %v8060
        %v8071 = vpack.c.b16 %v8063, %v8062
        %8080 = vmatprep.subr.bf16.mxu0 0
        %8081 = vmatpush1.bf16.msra.mxu0 %v8064
        %8082 = vmatprep.subr.bf16.mxu0 0
        %8083 = vmatpush1.bf16.msra.mxu0 %v8065
        %8084 = vmatprep.subr.bf16.mxu0 0
        %8085 = vmatpush1.bf16.msra.mxu0 %v8066
        %8086 = vmatprep.subr.bf16.mxu0 0
        %8087 = vmatpush1.bf16.msra.mxu0 %v8067
        %8088 = vmatprep.subr.bf16.mxu0 0
        %8089 = vmatpush1.bf16.msra.mxu0 %v8068
        %8090 = vmatprep.subr.bf16.mxu0 0
        %8091 = vmatpush1.bf16.msra.mxu0 %v8069
        %8092 = vmatprep.subr.bf16.mxu0 0
        %8093 = vmatpush1.bf16.msra.mxu0 %v8070
        %8094 = vmatprep.subr.bf16.mxu0 0
        %8095 = vmatpush1.bf16.msra.mxu0 %v8071
        %8096 = vmatprep.subr.bf16.mxu0 0
        %8097 = vmatpush1.bf16.msra.mxu0 0
        %8098 = vmatprep.subr.bf16.mxu0 0
        %8099 = vmatpush1.bf16.msra.mxu0 0
        %8100 = vmatprep.subr.bf16.mxu0 0
        %8101 = vmatpush1.bf16.msra.mxu0 0
        %8102 = vmatprep.subr.bf16.mxu0 0
        %8103 = vmatpush1.bf16.msra.mxu0 0
        %8104 = vmatprep.subr.bf16.mxu0 0
        %8105 = vmatpush1.bf16.msra.mxu0 0
        %8106 = vmatprep.subr.bf16.mxu0 0
        %8107 = vmatpush1.bf16.msra.mxu0 0
        %8108 = vmatprep.subr.bf16.mxu0 0
        %8109 = vmatpush1.bf16.msra.mxu0 0
        %8110 = vmatprep.subr.bf16.mxu0 0
        %8111 = vmatpush1.bf16.msra.mxu0 0
        %8112 = vmatprep.mubr.bf16.mxu0 0
        %8113 = vmatmul.mubr.bf16.gmra.mrb[0].mxu0 %v7993
        %v8114 = vpop.f32.mrb[0].mxu0
        %v8115 = vadd.f32 %v8030, %v8114
        %v8116 = vpop.f32.mrb[0].mxu0
        %v8117 = vpop.f32.mrb[0].mxu0
        %v8118 = vadd.f32 %v8030, %v8117
        %v8119 = vpop.f32.mrb[0].mxu0
        %8120 = vmatprep.mubr.bf16.mxu0 0
        %8121 = vmatmul.mubr.bf16.gmra.mrb[0].mxu0 %v7994
        %v8122 = vpop.f32.mrb[0].mxu0
        %v8123 = vadd.f32 %v8030, %v8122
        %v8124 = vpop.f32.mrb[0].mxu0
        %v8125 = vpop.f32.mrb[0].mxu0
        %v8126 = vadd.f32 %v8030, %v8125
        %v8127 = vpop.f32.mrb[0].mxu0
        %8128 = vmatprep.mubr.bf16.mxu0 0
        %8129 = vmatmul.mubr.bf16.gmra.mrb[0].mxu0 %v7995
        %v8130 = vpop.f32.mrb[0].mxu0
        %v8131 = vadd.f32 %v8030, %v8130
        %v8132 = vpop.f32.mrb[0].mxu0
        %v8133 = vpop.f32.mrb[0].mxu0
        %v8134 = vadd.f32 %v8030, %v8133
        %v8135 = vpop.f32.mrb[0].mxu0
        %8136 = vmatprep.mubr.bf16.mxu0 0
        %8137 = vmatmul.mubr.bf16.gmra.mrb[0].mxu0 %v7996
        %v8138 = vpop.f32.mrb[0].mxu0
        %v8139 = vadd.f32 %v8030, %v8138
        %v8140 = vpop.f32.mrb[0].mxu0
        %v8141 = vpop.f32.mrb[0].mxu0
        %v8142 = vadd.f32 %v8030, %v8141
        %v8143 = vpop.f32.mrb[0].mxu0
        %8144 = vmatprep.mubr.bf16.mxu0 0
        %8145 = vmatmul.mubr.bf16.gmra.mrb[0].mxu0 %v7997
        %v8146 = vpop.f32.mrb[0].mxu0
        %v8147 = vadd.f32 %v8030, %v8146
        %v8148 = vpop.f32.mrb[0].mxu0
        %v8149 = vpop.f32.mrb[0].mxu0
        %v8150 = vadd.f32 %v8030, %v8149
        %v8151 = vpop.f32.mrb[0].mxu0
        %8152 = vmatprep.mubr.bf16.mxu0 0
        %8153 = vmatmul.mubr.bf16.gmra.mrb[0].mxu0 %v7998
        %v8154 = vpop.f32.mrb[0].mxu0
        %v8155 = vadd.f32 %v8030, %v8154
        %v8156 = vpop.f32.mrb[0].mxu0
        %v8157 = vpop.f32.mrb[0].mxu0
        %v8158 = vadd.f32 %v8030, %v8157
        %v8159 = vpop.f32.mrb[0].mxu0
        %8160 = vmatprep.mubr.bf16.mxu0 0
        %8161 = vmatmul.mubr.bf16.gmra.mrb[0].mxu0 %v7999
        %v8162 = vpop.f32.mrb[0].mxu0
        %v8163 = vadd.f32 %v8030, %v8162
        %v8164 = vpop.f32.mrb[0].mxu0
        %v8165 = vpop.f32.mrb[0].mxu0
        %v8166 = vadd.f32 %v8030, %v8165
        %v8167 = vpop.f32.mrb[0].mxu0
        %8168 = vmatprep.mubr.bf16.mxu0 0
        %8169 = vmatmul.mubr.bf16.gmra.mrb[0].mxu0 %v8000
        %v8170 = vpop.f32.mrb[0].mxu0
        %v8171 = vadd.f32 %v8030, %v8170
        %v8172 = vpop.f32.mrb[0].mxu0
        %v8173 = vpop.f32.mrb[0].mxu0
        %v8174 = vadd.f32 %v8030, %v8173
        %v8175 = vpop.f32.mrb[0].mxu0
        %8176 = vmatprep.mubr.bf16.mxu0 0
        %8177 = vmatmul.mubr.bf16.gmra.mrb[0].mxu0 %v8001
        %v8178 = vpop.f32.mrb[0].mxu0
        %v8179 = vadd.f32 %v8030, %v8178
        %v8180 = vpop.f32.mrb[0].mxu0
        %v8181 = vpop.f32.mrb[0].mxu0
        %v8182 = vadd.f32 %v8030, %v8181
        %v8183 = vpop.f32.mrb[0].mxu0
        %8184 = vmatprep.mubr.bf16.mxu0 0
        %8185 = vmatmul.mubr.bf16.gmra.mrb[0].mxu0 %v8002
        %v8186 = vpop.f32.mrb[0].mxu0
        %v8187 = vadd.f32 %v8030, %v8186
        %v8188 = vpop.f32.mrb[0].mxu0
        %v8189 = vpop.f32.mrb[0].mxu0
        %v8190 = vadd.f32 %v8030, %v8189
        %v8191 = vpop.f32.mrb[0].mxu0
        %8192 = vmatprep.mubr.bf16.mxu0 0
        %8193 = vmatmul.mubr.bf16.gmra.mrb[0].mxu0 %v8003
        %v8194 = vpop.f32.mrb[0].mxu0
        %v8195 = vadd.f32 %v8030, %v8194
        %v8196 = vpop.f32.mrb[0].mxu0
        %v8197 = vpop.f32.mrb[0].mxu0
        %v8198 = vadd.f32 %v8030, %v8197
        %v8199 = vpop.f32.mrb[0].mxu0
        %8200 = vmatprep.mubr.bf16.mxu0 0
        %8201 = vmatmul.mubr.bf16.gmra.mrb[0].mxu0 %v8004
        %v8202 = vpop.f32.mrb[0].mxu0
        %v8203 = vadd.f32 %v8030, %v8202
        %v8204 = vpop.f32.mrb[0].mxu0
        %v8205 = vpop.f32.mrb[0].mxu0
        %v8206 = vadd.f32 %v8030, %v8205
        %v8207 = vpop.f32.mrb[0].mxu0
        %8208 = vmatprep.mubr.bf16.mxu0 0
        %8209 = vmatmul.mubr.bf16.gmra.mrb[0].mxu0 %v8005
        %v8210 = vpop.f32.mrb[0].mxu0
        %v8211 = vadd.f32 %v8030, %v8210
        %v8212 = vpop.f32.mrb[0].mxu0
        %v8213 = vpop.f32.mrb[0].mxu0
        %v8214 = vadd.f32 %v8030, %v8213
        %v8215 = vpop.f32.mrb[0].mxu0
        %8216 = vmatprep.mubr.bf16.mxu0 0
        %8217 = vmatmul.mubr.bf16.gmra.mrb[0].mxu0 %v8006
        %v8218 = vpop.f32.mrb[0].mxu0
        %v8219 = vadd.f32 %v8030, %v8218
        %v8220 = vpop.f32.mrb[0].mxu0
        %v8221 = vpop.f32.mrb[0].mxu0
        %v8222 = vadd.f32 %v8030, %v8221
        %v8223 = vpop.f32.mrb[0].mxu0
        %8224 = vmatprep.mubr.bf16.mxu0 0
        %8225 = vmatmul.mubr.bf16.gmra.mrb[0].mxu0 %v8007
        %v8226 = vpop.f32.mrb[0].mxu0
        %v8227 = vadd.f32 %v8030, %v8226
        %v8228 = vpop.f32.mrb[0].mxu0
        %v8229 = vpop.f32.mrb[0].mxu0
        %v8230 = vadd.f32 %v8030, %v8229
        %v8231 = vpop.f32.mrb[0].mxu0
        %8232 = vmatprep.mubr.bf16.mxu0 0
        %8233 = vmatmul.mubr.bf16.gmra.mrb[0].mxu0 %v8008
        %v8234 = vpop.f32.mrb[0].mxu0
        %v8235 = vadd.f32 %v8030, %v8234
        %v8236 = vpop.f32.mrb[0].mxu0
        %v8237 = vpop.f32.mrb[0].mxu0
        %v8238 = vadd.f32 %v8030, %v8237
        %v8239 = vpop.f32.mrb[0].mxu0
        %8240 = vdwg.mxu0
        %8241 = vst [vmem:[%s393] sm:$0xff] %v8115
        %8242 = vst [vmem:[%s393 + $0x8] sm:$0xff] %v8118
        %8243 = vst [vmem:[%s393 + $0x10] sm:$0xff] %v8123
        %8244 = vst [vmem:[%s393 + $0x18] sm:$0xff] %v8126
        %8245 = vst [vmem:[%s393 + $0x20] sm:$0xff] %v8131
        %8246 = vst [vmem:[%s393 + $0x28] sm:$0xff] %v8134
        %8247 = vst [vmem:[%s393 + $0x30] sm:$0xff] %v8139
        %8248 = vst [vmem:[%s393 + $0x38] sm:$0xff] %v8142
        %8249 = vst [vmem:[%s393 + $0x40] sm:$0xff] %v8147
        %8250 = vst [vmem:[%s393 + $0x48] sm:$0xff] %v8150
        %8251 = vst [vmem:[%s393 + $0x50] sm:$0xff] %v8155
        %8252 = vst [vmem:[%s393 + $0x58] sm:$0xff] %v8158
        %8253 = vst [vmem:[%s393 + $0x60] sm:$0xff] %v8163
        %8254 = vst [vmem:[%s393 + $0x68] sm:$0xff] %v8166
        %8255 = vst [vmem:[%s393 + $0x70] sm:$0xff] %v8171
        %8256 = vst [vmem:[%s393 + $0x78] sm:$0xff] %v8174
        %8257 = vst [vmem:[%s393 + $0x80] sm:$0xff] %v8179
        %8258 = vst [vmem:[%s393 + $0x88] sm:$0xff] %v8182
        %8259 = vst [vmem:[%s393 + $0x90] sm:$0xff] %v8187
        %8260 = vst [vmem:[%s393 + $0x98] sm:$0xff] %v8190
        %8261 = vst [vmem:[%s393 + $0xa0] sm:$0xff] %v8195
        %8262 = vst [vmem:[%s393 + $0xa8] sm:$0xff] %v8198
        %8263 = vst [vmem:[%s393 + $0xb0] sm:$0xff] %v8203
        %8264 = vst [vmem:[%s393 + $0xb8] sm:$0xff] %v8206
        %8265 = vst [vmem:[%s393 + $0xc0] sm:$0xff] %v8211
        %8266 = vst [vmem:[%s393 + $0xc8] sm:$0xff] %v8214
        %8267 = vst [vmem:[%s393 + $0xd0] sm:$0xff] %v8219
        %8268 = vst [vmem:[%s393 + $0xd8] sm:$0xff] %v8222
        %8269 = vst [vmem:[%s393 + $0xe0] sm:$0xff] %v8227
        %8270 = vst [vmem:[%s393 + $0xe8] sm:$0xff] %v8230
        %8271 = vst [vmem:[%s393 + $0xf0] sm:$0xff] %v8235
        %8272 = vst [vmem:[%s393 + $0xf8] sm:$0xff] %v8238
        %s8273 = sand.u32 %s283, 1
        %s8274 = scalar_lea.sflag [#allocation6], %s8273
        %s8275 = sand.u32 %s283, 1
        %s8276 = smul.addr %s8275, 256
        %s8277 = scalar_lea.vmem [#allocation5], %s8276
        // Predicated region
        $region69: #{tpu_custom_call.1} parent=63 // pred_check
          %p8278 = pneg %p293
        $region70: #{tpu_custom_call.1} parent=63 // pred_check_branch
          %8280 = sbr.rel (%p8278) target = $region72
        $region71: #{tpu_custom_call.1} parent=63 // pred_region
          %s8281 = smul.u32 16, %s30
          %s8283 = ssub.s32 4096, 4096
          %8284 = vsyncadd %s8274, %s8283
          %s8285 = smul.addr %s8281, 2
          %s8286 = smul.addr %s29, 32
          %s8287 = sadd.s32 %s8285, %s8286
          %s8288 = smul.addr %s8287, 128
          %s8289 = scalar_lea.hbm %s11, %s8288
          %s8290 = sshll.u32 %s8277, 4
          %s8291 = int_to_ptr.vmem [resolvable:$true] %s8290
          %8296 = dma.vmem_to_hbm [thread:$0]  %s8291, 4096, %s8289, %s8274, 128, 128, 8
        $region72: #{tpu_custom_call.1} parent=63 // pred_fallthru
          _
      $region64: #{tpu_custom_call.1} parent=5 // pred_fallthru
        _
      %p8297 = scmp.le.s32.totalorder 2, %s20
      // Predicated region
      $region73: #{tpu_custom_call.1} parent=5 // pred_check
        %p8298 = pneg %p8297
      $region74: #{tpu_custom_call.1} parent=5 // pred_check_branch
        %8300 = sbr.rel (%p8298) target = $region76
      $region75: #{tpu_custom_call.1} parent=5 // pred_region
        %s8301 = ssub.s32 %s20, 2
        // Predicated region
        $region77: #{tpu_custom_call.1} parent=75 // pred_check
          %p8302 = pneg %p299
        $region78: #{tpu_custom_call.1} parent=75 // pred_check_branch
          %8304 = sbr.rel (%p8302) target = $region80
        $region79: #{tpu_custom_call.1} parent=75 // pred_region
          %s8305 = sand.u32 %s284, 1
          %s8306 = scalar_lea.sflag [#allocation6], %s8305
          %s8307 = sand.u32 %s284, 1
          %s8308 = smul.addr %s8307, 256
          %s8309 = scalar_lea.vmem [#allocation5], %s8308
          %8310 = dma.done %s8306, 4096
        $region80: #{tpu_custom_call.1} parent=75 // pred_fallthru
          _
      $region76: #{tpu_custom_call.1} parent=5 // pred_fallthru
        _
    $region6: #{tpu_custom_call.1} parent=1 // loop_footer
      %s24 = sadd.s32 1, %s20
    $region7: #{tpu_custom_call.1} parent=1 // loop_footer_branch
      %19 = sbr.rel target = $region3
    $region8: #{tpu_custom_call.1} parent=1 // loop_exit
      _
    %8311 = vsyncpa [#allocation6], 1
    %s8312 = scalar_lea.sflag [#allocation6], 1
    %8313 = vsyncpa %s8312, 1

</llo_original>
